<compile_context>
chip_gen: v5e
topology: v5e:2x2
jax: 0.10.0
libtpu: 0.0.40
codegen_flags: <defaults>
</compile_context>

<pallas_src>
import jax
import jax.numpy as jnp
from jax.experimental import pallas as pl
from jax.experimental.pallas import tpu as pltpu


# --------------------------------------------------------------------------- #
# Fused Pallas kernel: delta -> Mask (3x conv3x3 + ReLU) -> blend
# --------------------------------------------------------------------------- #
def _mask_blend_kernel(pred_ref, feat_ref,
                       w1_ref, b1_ref, w2_ref, b2_ref, w3_ref, b3_ref,
                       out_ref, acc1_ref, acc2_ref, acc3_ref):
    """pred_ref/feat_ref: (1, H, W, C) bf16 NHWC blocks (one batch element).
    w1_ref: (C, 9*64) bf16   (taps packed along N, column = tap*64 + cout)
    w2_ref: (64, 9*8) bf16
    w3_ref: (9, 1, 8) f32    (per-tap channel weights of the 8->1 conv)
    b*_ref: (1, cout) f32
    out_ref: (1, H, W, C) f32.  acc1/acc2/acc3: f32 scratch accumulators."""
    H, W, C = pred_ref.shape[1], pred_ref.shape[2], pred_ref.shape[3]
    C1 = acc1_ref.shape[-1]     # 64
    C2 = acc2_ref.shape[-1]     # 8

    pred = pred_ref[0]          # (H, W, C) bf16
    feat = feat_ref[0]
    delta = jnp.abs(pred - feat)

    # Center tap first (full coverage) so the accumulator is initialised with '='
    # (bias folded in) and never needs zeroing; remaining taps accumulate into
    # shifted sub-windows, which implements the 1-px zero padding of the convs.
    TAPS = [(1, 1)] + [(dy, dx) for dy in range(3) for dx in range(3)
                       if (dy, dx) != (1, 1)]

    def scatter_taps(acc_ref, tap_val, center_bias=None):
        for idx, (dy, dx) in enumerate(TAPS):
            t = tap_val(dy * 3 + dx)                      # (H, W, cout) f32
            oy, ox = dy - 1, dx - 1
            if idx == 0:
                acc_ref[...] = t if center_bias is None else t + center_bias
            else:
                o_r = slice(max(0, -oy), H + min(0, -oy))
                o_c = slice(max(0, -ox), W + min(0, -ox))
                s_r = slice(max(0, oy), H + min(0, oy))
                s_c = slice(max(0, ox), W + min(0, ox))
                acc_ref[o_r, o_c, :] += t[s_r, s_c, :]

    # ---- conv1: C -> 64, 3x3, pad 1, ReLU.  One MXU matmul, taps packed on N. --
    x_flat = delta.reshape(H * W, C)                      # layout-neutral reshape
    t1_all = jnp.dot(x_flat, w1_ref[...],
                     preferred_element_type=jnp.float32).reshape(H, W, 9 * C1)
    b1 = b1_ref[...].reshape(1, 1, C1)
    scatter_taps(acc1_ref, lambda tap: t1_all[:, :, tap * C1:(tap + 1) * C1], b1)
    y1 = jnp.maximum(acc1_ref[...], 0.0).astype(jnp.bfloat16)        # (H, W, 64)

    # ---- conv2: 64 -> 8, 3x3, pad 1, ReLU.  One matmul, 72 output lanes. -------
    t2_all = jnp.dot(y1.reshape(H * W, C1), w2_ref[...],
                     preferred_element_type=jnp.float32).reshape(H, W, 9 * C2)
    b2 = b2_ref[...].reshape(1, 1, C2)
    scatter_taps(acc2_ref, lambda tap: t2_all[:, :, tap * C2:(tap + 1) * C2], b2)
    y2 = jnp.maximum(acc2_ref[...], 0.0)                              # (H, W, 8) f32

    # ---- conv3: 8 -> 1, 3x3, pad 1, ReLU.  VPU (1 MXU output lane is wasteful). -
    w3 = w3_ref[...]                                                  # (9, 1, 8)
    scatter_taps(acc3_ref, lambda tap: y2 * w3[tap].reshape(1, 1, C2))
    b3 = b3_ref[...].reshape(1, 1, 1)
    m = jnp.maximum(jnp.sum(acc3_ref[...], axis=-1, keepdims=True) + b3, 0.0)

    # ---- blend: (1 - M) * feat + M * pred, stays in (H, W, C) layout. ----------
    feat32 = feat.astype(jnp.float32)
    pred32 = pred.astype(jnp.float32)
    out_ref[0] = feat32 + m * (pred32 - feat32)


def mask_blend(pred_nhwc, feat_nhwc, params):
    """Runs the fused Mask + blend Pallas kernel, grid over batch."""
    N, H, W, C = pred_nhwc.shape
    w1, b1, w2, b2, w3, b3 = params
    C1, C2 = w1.shape[-1], w2.shape[-1]          # 64, 8

    # bf16 matmul path (f32 accumulation inside the kernel).
    pred_bf = pred_nhwc.astype(jnp.bfloat16)
    feat_bf = feat_nhwc.astype(jnp.bfloat16)
    # Pack the 3x3 taps along the N (output-lane) axis: column = tap*Cout + cout.
    w1p = jnp.transpose(w1, (2, 0, 1, 3)).reshape(C, 9 * C1).astype(jnp.bfloat16)
    w2p = jnp.transpose(w2, (2, 0, 1, 3)).reshape(C1, 9 * C2).astype(jnp.bfloat16)
    w3p = w3[..., 0].reshape(9, 1, C2).astype(jnp.float32)   # per-tap (8,) vectors
    b1f = b1.astype(jnp.float32)
    b2f = b2.astype(jnp.float32)
    b3f = b3.astype(jnp.float32)

    def full_spec(a):
        nd = a.ndim
        return pl.BlockSpec(a.shape, lambda n, _nd=nd: (0,) * _nd)

    return pl.pallas_call(
        _mask_blend_kernel,
        out_shape=jax.ShapeDtypeStruct((N, H, W, C), jnp.float32),
        grid_spec=pltpu.PrefetchScalarGridSpec(
            num_scalar_prefetch=0,
            grid=(N,),
            in_specs=[
                pl.BlockSpec((1, H, W, C), lambda n: (n, 0, 0, 0)),
                pl.BlockSpec((1, H, W, C), lambda n: (n, 0, 0, 0)),
                full_spec(w1p), full_spec(b1f),
                full_spec(w2p), full_spec(b2f),
                full_spec(w3p), full_spec(b3f),
            ],
            out_specs=pl.BlockSpec((1, H, W, C), lambda n: (n, 0, 0, 0)),
            scratch_shapes=[
                pltpu.VMEM((H, W, C1), jnp.float32),
                pltpu.VMEM((H, W, C2), jnp.float32),
                pltpu.VMEM((H, W, C2), jnp.float32),
            ],
        ),
        compiler_params=pltpu.CompilerParams(
            dimension_semantics=("parallel",),        # batch elems independent
            vmem_limit_bytes=48 * 1024 * 1024,        # headroom for the real 44x44x512
        ),
    )(pred_bf, feat_bf, w1p, b1f, w2p, b2f, w3p, b3f)


# --------------------------------------------------------------------------- #
# Forward pass (glue in plain JAX, hot path in the Pallas kernel above)
# --------------------------------------------------------------------------- #
def video_colorization_forward(prev_fm_nchw, fm_nchw, flow_nchw, mask_params):
    """prev_fm/fm: (N, C, H1, W1) encoder feature maps (stand-ins for
    color_model.encode outputs); flow: (N, 2, Hf, Wf) (stand-in for FlowNet2)."""
    N, C, H1, W1 = prev_fm_nchw.shape

    # F.interpolate(flow, (H1, W1), mode='bilinear')  (align_corners=False)
    flow_rs = jax.image.resize(flow_nchw, (N, 2, H1, W1),
                               method='linear', antialias=False)

    # FlowWeight = flow.permute(0,2,3,1).int() + ori_index ; clamp to [0, H1-1].
    # NOTE: the reference clamps BOTH coordinates with H1 (it always uses square
    # 44x44 maps), reproduced here for fidelity.
    fw = jnp.transpose(flow_rs, (0, 2, 3, 1)).astype(jnp.int32)   # trunc toward 0
    ii, jj = jnp.meshgrid(jnp.arange(H1, dtype=jnp.int32),
                          jnp.arange(W1, dtype=jnp.int32), indexing='ij')
    ori_index = jnp.stack([ii, jj], axis=-1)                      # (H1, W1, 2)
    fw = jnp.clip(fw + ori_index, 0, H1 - 1)

    prev_nhwc = jnp.transpose(prev_fm_nchw, (0, 2, 3, 1))
    fm_nhwc = jnp.transpose(fm_nchw, (0, 2, 3, 1))

    # TODO(synk): literal `previous_feature_map[FlowWeight]` (advanced indexing on
    # dim 0) is shape-inconsistent with the following Conv2d(512, ...); the intended
    # per-pixel spatial warp is implemented instead (data-dependent gather left to XLA).
    bidx = jnp.arange(N)[:, None, None]
    pred_nhwc = prev_nhwc[bidx, fw[..., 0], fw[..., 1], :]        # (N, H1, W1, C)

    out_nhwc = mask_blend(pred_nhwc, fm_nhwc, mask_params)
    # TODO(synk): color_model.decode(conv1_2, conv2_2, output_feature_map) is an
    # external network and is not part of this kernel.
    return jnp.transpose(out_nhwc, (0, 3, 1, 2))                  # back to NCHW


# --------------------------------------------------------------------------- #
# Deterministic parameter init + smoke test
# --------------------------------------------------------------------------- #
def _conv_params(key, cin, cout):
    ka, kb = jax.random.split(key)
    scale = 1.0 / jnp.sqrt(cin * 9.0)
    w = jax.random.uniform(ka, (3, 3, cin, cout), jnp.float32, -scale, scale)
    b = jax.random.uniform(kb, (1, cout), jnp.float32, -scale, scale)
    return w, b


if __name__ == "__main__":
    key = jax.random.PRNGKey(0)
    # Real module: C=512 (Mask(512)), H1=W1=IDX_RANGE=44.  Small demo: 16x16 spatial.
    N, C, H1, W1 = 2, 512, 16, 16
    Hf, Wf = 64, 64

    k1, k2, k3, kw1, kw2, kw3 = jax.random.split(key, 6)
    prev_fm = jax.random.normal(k1, (N, C, H1, W1), jnp.float32)
    fm = jax.random.normal(k2, (N, C, H1, W1), jnp.float32)
    flow = jax.random.normal(k3, (N, 2, Hf, Wf), jnp.float32) * 3.0

    w1, b1 = _conv_params(kw1, C, 64)
    w2, b2 = _conv_params(kw2, 64, 8)
    w3, b3 = _conv_params(kw3, 8, 1)
    params = (w1, b1, w2, b2, w3, b3)

    out = jax.jit(video_colorization_forward)(prev_fm, fm, flow, params)
    out = jax.block_until_ready(out)
    assert out.shape == (N, C, H1, W1)
    assert bool(jnp.all(jnp.isfinite(out)))
    print("KERNEL_OK")
</pallas_src>

<mosaic_0001>
module attributes {stable_mosaic.version = 11 : i64} {
  func.func @_mask_blend_kernel(%arg0: i32, %arg1: memref<1x16x16x512xbf16, #tpu.memory_space<vmem>>, %arg2: memref<1x16x16x512xbf16, #tpu.memory_space<vmem>>, %arg3: memref<512x576xbf16, #tpu.memory_space<vmem>>, %arg4: memref<1x64xf32, #tpu.memory_space<vmem>>, %arg5: memref<64x72xbf16, #tpu.memory_space<vmem>>, %arg6: memref<1x8xf32, #tpu.memory_space<vmem>>, %arg7: memref<9x1x8xf32, #tpu.memory_space<vmem>>, %arg8: memref<1x1xf32, #tpu.memory_space<vmem>>, %arg9: memref<1x16x16x512xf32, #tpu.memory_space<vmem>>, %arg10: memref<16x16x64xf32, #tpu.memory_space<vmem>>, %arg11: memref<16x16x8xf32, #tpu.memory_space<vmem>>, %arg12: memref<16x16x8xf32, #tpu.memory_space<vmem>>) attributes {dimension_semantics = [#tpu.dimension_semantics<parallel>], iteration_bounds = array<i64: 2>, scalar_prefetch = 0 : i64, scratch_operands = 3 : i64, tpu.core_type = #tpu.core_type<tc>, window_params = [{transform_indices = @transform_0, window_bounds = array<i64: 1, 16, 16, 512>}, {transform_indices = @transform_1, window_bounds = array<i64: 1, 16, 16, 512>}, {pipeline_mode = #tpu.pipeline_mode<synchronous>, transform_indices = @transform_2, window_bounds = array<i64: 512, 576>}, {pipeline_mode = #tpu.pipeline_mode<synchronous>, transform_indices = @transform_3, window_bounds = array<i64: 1, 64>}, {pipeline_mode = #tpu.pipeline_mode<synchronous>, transform_indices = @transform_4, window_bounds = array<i64: 64, 72>}, {pipeline_mode = #tpu.pipeline_mode<synchronous>, transform_indices = @transform_5, window_bounds = array<i64: 1, 8>}, {pipeline_mode = #tpu.pipeline_mode<synchronous>, transform_indices = @transform_6, window_bounds = array<i64: 9, 1, 8>}, {pipeline_mode = #tpu.pipeline_mode<synchronous>, transform_indices = @transform_7, window_bounds = array<i64: 1, 1>}, {transform_indices = @transform_8, window_bounds = array<i64: 1, 16, 16, 512>}]} {
    %c0 = arith.constant 0 : index
    %c0_0 = arith.constant 0 : index
    %c0_1 = arith.constant 0 : index
    %c0_2 = arith.constant 0 : index
    %0 = vector.load %arg1[%c0, %c0_0, %c0_1, %c0_2] : memref<1x16x16x512xbf16, #tpu.memory_space<vmem>>, vector<1x16x16x512xbf16>
    %1 = vector.shape_cast %0 : vector<1x16x16x512xbf16> to vector<16x16x512xbf16>
    %c0_3 = arith.constant 0 : index
    %c0_4 = arith.constant 0 : index
    %c0_5 = arith.constant 0 : index
    %c0_6 = arith.constant 0 : index
    %2 = vector.load %arg2[%c0_3, %c0_4, %c0_5, %c0_6] : memref<1x16x16x512xbf16, #tpu.memory_space<vmem>>, vector<1x16x16x512xbf16>
    %3 = vector.shape_cast %2 : vector<1x16x16x512xbf16> to vector<16x16x512xbf16>
    %4 = arith.subf %1, %3 : vector<16x16x512xbf16>
    %5 = math.absf %4 : vector<16x16x512xbf16>
    %6 = vector.shape_cast %5 : vector<16x16x512xbf16> to vector<256x512xbf16>
    %c0_7 = arith.constant 0 : index
    %c0_8 = arith.constant 0 : index
    %7 = vector.load %arg3[%c0_7, %c0_8] : memref<512x576xbf16, #tpu.memory_space<vmem>>, vector<512x576xbf16>
    %cst = arith.constant dense<0.000000e+00> : vector<256x576xf32>
    %8 = tpu.matmul %6, %7, %cst {dimension_numbers = #tpu.dot_dimension_numbers<[1], [0], [0], [1], [0, 0, 1, 1], [], []>} : vector<256x512xbf16>, vector<512x576xbf16>, vector<256x576xf32> -> vector<256x576xf32>
    %9 = vector.shape_cast %8 : vector<256x576xf32> to vector<16x16x576xf32>
    %c0_9 = arith.constant 0 : index
    %c0_10 = arith.constant 0 : index
    %10 = vector.load %arg4[%c0_9, %c0_10] : memref<1x64xf32, #tpu.memory_space<vmem>>, vector<1x64xf32>
    %11 = vector.shape_cast %10 : vector<1x64xf32> to vector<1x1x64xf32>
    %12 = vector.extract_strided_slice %9 {offsets = [0, 0, 256], sizes = [16, 16, 64], strides = [1, 1, 1]} : vector<16x16x576xf32> to vector<16x16x64xf32>
    %13 = vector.broadcast %11 : vector<1x1x64xf32> to vector<16x16x64xf32>
    %14 = arith.addf %12, %13 : vector<16x16x64xf32>
    %c0_11 = arith.constant 0 : index
    %c0_12 = arith.constant 0 : index
    %c0_13 = arith.constant 0 : index
    %15 = vector.load %arg10[%c0_11, %c0_12, %c0_13] : memref<16x16x64xf32, #tpu.memory_space<vmem>>, vector<16x16x64xf32>
    tpu.vector_store %arg10[%c0_11, %c0_12, %c0_13], %14 {strides = array<i32>} : memref<16x16x64xf32, #tpu.memory_space<vmem>>, vector<16x16x64xf32>,
    %16 = vector.extract_strided_slice %9 {offsets = [0, 0, 0], sizes = [16, 16, 64], strides = [1, 1, 1]} : vector<16x16x576xf32> to vector<16x16x64xf32>
    %c1 = arith.constant 1 : index
    %c1_14 = arith.constant 1 : index
    %c0_15 = arith.constant 0 : index
    %17 = vector.load %arg10[%c1, %c1_14, %c0_15] : memref<16x16x64xf32, #tpu.memory_space<vmem>>, vector<15x15x64xf32>
    %18 = vector.extract_strided_slice %16 {offsets = [0, 0, 0], sizes = [15, 15, 64], strides = [1, 1, 1]} : vector<16x16x64xf32> to vector<15x15x64xf32>
    %19 = arith.addf %17, %18 : vector<15x15x64xf32>
    %c1_16 = arith.constant 1 : index
    %c1_17 = arith.constant 1 : index
    %c0_18 = arith.constant 0 : index
    %20 = vector.load %arg10[%c1_16, %c1_17, %c0_18] : memref<16x16x64xf32, #tpu.memory_space<vmem>>, vector<15x15x64xf32>
    tpu.vector_store %arg10[%c1_16, %c1_17, %c0_18], %19 {strides = array<i32>} : memref<16x16x64xf32, #tpu.memory_space<vmem>>, vector<15x15x64xf32>,
    %21 = vector.extract_strided_slice %9 {offsets = [0, 0, 64], sizes = [16, 16, 64], strides = [1, 1, 1]} : vector<16x16x576xf32> to vector<16x16x64xf32>
    %c1_19 = arith.constant 1 : index
    %c0_20 = arith.constant 0 : index
    %c0_21 = arith.constant 0 : index
    %22 = vector.load %arg10[%c1_19, %c0_20, %c0_21] : memref<16x16x64xf32, #tpu.memory_space<vmem>>, vector<15x16x64xf32>
    %23 = vector.extract_strided_slice %21 {offsets = [0, 0, 0], sizes = [15, 16, 64], strides = [1, 1, 1]} : vector<16x16x64xf32> to vector<15x16x64xf32>
    %24 = arith.addf %22, %23 : vector<15x16x64xf32>
    %c1_22 = arith.constant 1 : index
    %c0_23 = arith.constant 0 : index
    %c0_24 = arith.constant 0 : index
    %25 = vector.load %arg10[%c1_22, %c0_23, %c0_24] : memref<16x16x64xf32, #tpu.memory_space<vmem>>, vector<15x16x64xf32>
    tpu.vector_store %arg10[%c1_22, %c0_23, %c0_24], %24 {strides = array<i32>} : memref<16x16x64xf32, #tpu.memory_space<vmem>>, vector<15x16x64xf32>,
    %26 = vector.extract_strided_slice %9 {offsets = [0, 0, 128], sizes = [16, 16, 64], strides = [1, 1, 1]} : vector<16x16x576xf32> to vector<16x16x64xf32>
    %c1_25 = arith.constant 1 : index
    %c0_26 = arith.constant 0 : index
    %c0_27 = arith.constant 0 : index
    %27 = vector.load %arg10[%c1_25, %c0_26, %c0_27] : memref<16x16x64xf32, #tpu.memory_space<vmem>>, vector<15x15x64xf32>
    %28 = vector.extract_strided_slice %26 {offsets = [0, 1, 0], sizes = [15, 15, 64], strides = [1, 1, 1]} : vector<16x16x64xf32> to vector<15x15x64xf32>
    %29 = arith.addf %27, %28 : vector<15x15x64xf32>
    %c1_28 = arith.constant 1 : index
    %c0_29 = arith.constant 0 : index
    %c0_30 = arith.constant 0 : index
    %30 = vector.load %arg10[%c1_28, %c0_29, %c0_30] : memref<16x16x64xf32, #tpu.memory_space<vmem>>, vector<15x15x64xf32>
    tpu.vector_store %arg10[%c1_28, %c0_29, %c0_30], %29 {strides = array<i32>} : memref<16x16x64xf32, #tpu.memory_space<vmem>>, vector<15x15x64xf32>,
    %31 = vector.extract_strided_slice %9 {offsets = [0, 0, 192], sizes = [16, 16, 64], strides = [1, 1, 1]} : vector<16x16x576xf32> to vector<16x16x64xf32>
    %c0_31 = arith.constant 0 : index
    %c1_32 = arith.constant 1 : index
    %c0_33 = arith.constant 0 : index
    %32 = vector.load %arg10[%c0_31, %c1_32, %c0_33] : memref<16x16x64xf32, #tpu.memory_space<vmem>>, vector<16x15x64xf32>
    %33 = vector.extract_strided_slice %31 {offsets = [0, 0, 0], sizes = [16, 15, 64], strides = [1, 1, 1]} : vector<16x16x64xf32> to vector<16x15x64xf32>
    %34 = arith.addf %32, %33 : vector<16x15x64xf32>
    %c0_34 = arith.constant 0 : index
    %c1_35 = arith.constant 1 : index
    %c0_36 = arith.constant 0 : index
    %35 = vector.load %arg10[%c0_34, %c1_35, %c0_36] : memref<16x16x64xf32, #tpu.memory_space<vmem>>, vector<16x15x64xf32>
    tpu.vector_store %arg10[%c0_34, %c1_35, %c0_36], %34 {strides = array<i32>} : memref<16x16x64xf32, #tpu.memory_space<vmem>>, vector<16x15x64xf32>,
    %36 = vector.extract_strided_slice %9 {offsets = [0, 0, 320], sizes = [16, 16, 64], strides = [1, 1, 1]} : vector<16x16x576xf32> to vector<16x16x64xf32>
    %c0_37 = arith.constant 0 : index
    %c0_38 = arith.constant 0 : index
    %c0_39 = arith.constant 0 : index
    %37 = vector.load %arg10[%c0_37, %c0_38, %c0_39] : memref<16x16x64xf32, #tpu.memory_space<vmem>>, vector<16x15x64xf32>
    %38 = vector.extract_strided_slice %36 {offsets = [0, 1, 0], sizes = [16, 15, 64], strides = [1, 1, 1]} : vector<16x16x64xf32> to vector<16x15x64xf32>
    %39 = arith.addf %37, %38 : vector<16x15x64xf32>
    %c0_40 = arith.constant 0 : index
    %c0_41 = arith.constant 0 : index
    %c0_42 = arith.constant 0 : index
    %40 = vector.load %arg10[%c0_40, %c0_41, %c0_42] : memref<16x16x64xf32, #tpu.memory_space<vmem>>, vector<16x15x64xf32>
    tpu.vector_store %arg10[%c0_40, %c0_41, %c0_42], %39 {strides = array<i32>} : memref<16x16x64xf32, #tpu.memory_space<vmem>>, vector<16x15x64xf32>,
    %41 = vector.extract_strided_slice %9 {offsets = [0, 0, 384], sizes = [16, 16, 64], strides = [1, 1, 1]} : vector<16x16x576xf32> to vector<16x16x64xf32>
    %c0_43 = arith.constant 0 : index
    %c1_44 = arith.constant 1 : index
    %c0_45 = arith.constant 0 : index
    %42 = vector.load %arg10[%c0_43, %c1_44, %c0_45] : memref<16x16x64xf32, #tpu.memory_space<vmem>>, vector<15x15x64xf32>
    %43 = vector.extract_strided_slice %41 {offsets = [1, 0, 0], sizes = [15, 15, 64], strides = [1, 1, 1]} : vector<16x16x64xf32> to vector<15x15x64xf32>
    %44 = arith.addf %42, %43 : vector<15x15x64xf32>
    %c0_46 = arith.constant 0 : index
    %c1_47 = arith.constant 1 : index
    %c0_48 = arith.constant 0 : index
    %45 = vector.load %arg10[%c0_46, %c1_47, %c0_48] : memref<16x16x64xf32, #tpu.memory_space<vmem>>, vector<15x15x64xf32>
    tpu.vector_store %arg10[%c0_46, %c1_47, %c0_48], %44 {strides = array<i32>} : memref<16x16x64xf32, #tpu.memory_space<vmem>>, vector<15x15x64xf32>,
    %46 = vector.extract_strided_slice %9 {offsets = [0, 0, 448], sizes = [16, 16, 64], strides = [1, 1, 1]} : vector<16x16x576xf32> to vector<16x16x64xf32>
    %c0_49 = arith.constant 0 : index
    %c0_50 = arith.constant 0 : index
    %c0_51 = arith.constant 0 : index
    %47 = vector.load %arg10[%c0_49, %c0_50, %c0_51] : memref<16x16x64xf32, #tpu.memory_space<vmem>>, vector<15x16x64xf32>
    %48 = vector.extract_strided_slice %46 {offsets = [1, 0, 0], sizes = [15, 16, 64], strides = [1, 1, 1]} : vector<16x16x64xf32> to vector<15x16x64xf32>
    %49 = arith.addf %47, %48 : vector<15x16x64xf32>
    %c0_52 = arith.constant 0 : index
    %c0_53 = arith.constant 0 : index
    %c0_54 = arith.constant 0 : index
    %50 = vector.load %arg10[%c0_52, %c0_53, %c0_54] : memref<16x16x64xf32, #tpu.memory_space<vmem>>, vector<15x16x64xf32>
    tpu.vector_store %arg10[%c0_52, %c0_53, %c0_54], %49 {strides = array<i32>} : memref<16x16x64xf32, #tpu.memory_space<vmem>>, vector<15x16x64xf32>,
    %51 = vector.extract_strided_slice %9 {offsets = [0, 0, 512], sizes = [16, 16, 64], strides = [1, 1, 1]} : vector<16x16x576xf32> to vector<16x16x64xf32>
    %c0_55 = arith.constant 0 : index
    %c0_56 = arith.constant 0 : index
    %c0_57 = arith.constant 0 : index
    %52 = vector.load %arg10[%c0_55, %c0_56, %c0_57] : memref<16x16x64xf32, #tpu.memory_space<vmem>>, vector<15x15x64xf32>
    %53 = vector.extract_strided_slice %51 {offsets = [1, 1, 0], sizes = [15, 15, 64], strides = [1, 1, 1]} : vector<16x16x64xf32> to vector<15x15x64xf32>
    %54 = arith.addf %52, %53 : vector<15x15x64xf32>
    %c0_58 = arith.constant 0 : index
    %c0_59 = arith.constant 0 : index
    %c0_60 = arith.constant 0 : index
    %55 = vector.load %arg10[%c0_58, %c0_59, %c0_60] : memref<16x16x64xf32, #tpu.memory_space<vmem>>, vector<15x15x64xf32>
    tpu.vector_store %arg10[%c0_58, %c0_59, %c0_60], %54 {strides = array<i32>} : memref<16x16x64xf32, #tpu.memory_space<vmem>>, vector<15x15x64xf32>,
    %c0_61 = arith.constant 0 : index
    %c0_62 = arith.constant 0 : index
    %c0_63 = arith.constant 0 : index
    %56 = vector.load %arg10[%c0_61, %c0_62, %c0_63] : memref<16x16x64xf32, #tpu.memory_space<vmem>>, vector<16x16x64xf32>
    %cst_64 = arith.constant 0.000000e+00 : f32
    %57 = vector.broadcast %cst_64 : f32 to vector<16x16x64xf32>
    %58 = arith.maximumf %56, %57 : vector<16x16x64xf32>
    %59 = arith.truncf %58 : vector<16x16x64xf32> to vector<16x16x64xbf16>
    %60 = vector.shape_cast %59 : vector<16x16x64xbf16> to vector<256x64xbf16>
    %c0_65 = arith.constant 0 : index
    %c0_66 = arith.constant 0 : index
    %61 = vector.load %arg5[%c0_65, %c0_66] : memref<64x72xbf16, #tpu.memory_space<vmem>>, vector<64x72xbf16>
    %cst_67 = arith.constant dense<0.000000e+00> : vector<256x72xf32>
    %62 = tpu.matmul %60, %61, %cst_67 {dimension_numbers = #tpu.dot_dimension_numbers<[1], [0], [0], [1], [0, 0, 1, 1], [], []>} : vector<256x64xbf16>, vector<64x72xbf16>, vector<256x72xf32> -> vector<256x72xf32>
    %63 = vector.shape_cast %62 : vector<256x72xf32> to vector<16x16x72xf32>
    %c0_68 = arith.constant 0 : index
    %c0_69 = arith.constant 0 : index
    %64 = vector.load %arg6[%c0_68, %c0_69] : memref<1x8xf32, #tpu.memory_space<vmem>>, vector<1x8xf32>
    %65 = vector.shape_cast %64 : vector<1x8xf32> to vector<1x1x8xf32>
    %66 = vector.extract_strided_slice %63 {offsets = [0, 0, 32], sizes = [16, 16, 8], strides = [1, 1, 1]} : vector<16x16x72xf32> to vector<16x16x8xf32>
    %67 = vector.broadcast %65 : vector<1x1x8xf32> to vector<16x16x8xf32>
    %68 = arith.addf %66, %67 : vector<16x16x8xf32>
    %c0_70 = arith.constant 0 : index
    %c0_71 = arith.constant 0 : index
    %c0_72 = arith.constant 0 : index
    %69 = vector.load %arg11[%c0_70, %c0_71, %c0_72] : memref<16x16x8xf32, #tpu.memory_space<vmem>>, vector<16x16x8xf32>
    tpu.vector_store %arg11[%c0_70, %c0_71, %c0_72], %68 {strides = array<i32>} : memref<16x16x8xf32, #tpu.memory_space<vmem>>, vector<16x16x8xf32>,
    %70 = vector.extract_strided_slice %63 {offsets = [0, 0, 0], sizes = [16, 16, 8], strides = [1, 1, 1]} : vector<16x16x72xf32> to vector<16x16x8xf32>
    %c1_73 = arith.constant 1 : index
    %c1_74 = arith.constant 1 : index
    %c0_75 = arith.constant 0 : index
    %71 = vector.load %arg11[%c1_73, %c1_74, %c0_75] : memref<16x16x8xf32, #tpu.memory_space<vmem>>, vector<15x15x8xf32>
    %72 = vector.extract_strided_slice %70 {offsets = [0, 0, 0], sizes = [15, 15, 8], strides = [1, 1, 1]} : vector<16x16x8xf32> to vector<15x15x8xf32>
    %73 = arith.addf %71, %72 : vector<15x15x8xf32>
    %c1_76 = arith.constant 1 : index
    %c1_77 = arith.constant 1 : index
    %c0_78 = arith.constant 0 : index
    %74 = vector.load %arg11[%c1_76, %c1_77, %c0_78] : memref<16x16x8xf32, #tpu.memory_space<vmem>>, vector<15x15x8xf32>
    tpu.vector_store %arg11[%c1_76, %c1_77, %c0_78], %73 {strides = array<i32>} : memref<16x16x8xf32, #tpu.memory_space<vmem>>, vector<15x15x8xf32>,
    %75 = vector.extract_strided_slice %63 {offsets = [0, 0, 8], sizes = [16, 16, 8], strides = [1, 1, 1]} : vector<16x16x72xf32> to vector<16x16x8xf32>
    %c1_79 = arith.constant 1 : index
    %c0_80 = arith.constant 0 : index
    %c0_81 = arith.constant 0 : index
    %76 = vector.load %arg11[%c1_79, %c0_80, %c0_81] : memref<16x16x8xf32, #tpu.memory_space<vmem>>, vector<15x16x8xf32>
    %77 = vector.extract_strided_slice %75 {offsets = [0, 0, 0], sizes = [15, 16, 8], strides = [1, 1, 1]} : vector<16x16x8xf32> to vector<15x16x8xf32>
    %78 = arith.addf %76, %77 : vector<15x16x8xf32>
    %c1_82 = arith.constant 1 : index
    %c0_83 = arith.constant 0 : index
    %c0_84 = arith.constant 0 : index
    %79 = vector.load %arg11[%c1_82, %c0_83, %c0_84] : memref<16x16x8xf32, #tpu.memory_space<vmem>>, vector<15x16x8xf32>
    tpu.vector_store %arg11[%c1_82, %c0_83, %c0_84], %78 {strides = array<i32>} : memref<16x16x8xf32, #tpu.memory_space<vmem>>, vector<15x16x8xf32>,
    %80 = vector.extract_strided_slice %63 {offsets = [0, 0, 16], sizes = [16, 16, 8], strides = [1, 1, 1]} : vector<16x16x72xf32> to vector<16x16x8xf32>
    %c1_85 = arith.constant 1 : index
    %c0_86 = arith.constant 0 : index
    %c0_87 = arith.constant 0 : index
    %81 = vector.load %arg11[%c1_85, %c0_86, %c0_87] : memref<16x16x8xf32, #tpu.memory_space<vmem>>, vector<15x15x8xf32>
    %82 = vector.extract_strided_slice %80 {offsets = [0, 1, 0], sizes = [15, 15, 8], strides = [1, 1, 1]} : vector<16x16x8xf32> to vector<15x15x8xf32>
    %83 = arith.addf %81, %82 : vector<15x15x8xf32>
    %c1_88 = arith.constant 1 : index
    %c0_89 = arith.constant 0 : index
    %c0_90 = arith.constant 0 : index
    %84 = vector.load %arg11[%c1_88, %c0_89, %c0_90] : memref<16x16x8xf32, #tpu.memory_space<vmem>>, vector<15x15x8xf32>
    tpu.vector_store %arg11[%c1_88, %c0_89, %c0_90], %83 {strides = array<i32>} : memref<16x16x8xf32, #tpu.memory_space<vmem>>, vector<15x15x8xf32>,
    %85 = vector.extract_strided_slice %63 {offsets = [0, 0, 24], sizes = [16, 16, 8], strides = [1, 1, 1]} : vector<16x16x72xf32> to vector<16x16x8xf32>
    %c0_91 = arith.constant 0 : index
    %c1_92 = arith.constant 1 : index
    %c0_93 = arith.constant 0 : index
    %86 = vector.load %arg11[%c0_91, %c1_92, %c0_93] : memref<16x16x8xf32, #tpu.memory_space<vmem>>, vector<16x15x8xf32>
    %87 = vector.extract_strided_slice %85 {offsets = [0, 0, 0], sizes = [16, 15, 8], strides = [1, 1, 1]} : vector<16x16x8xf32> to vector<16x15x8xf32>
    %88 = arith.addf %86, %87 : vector<16x15x8xf32>
    %c0_94 = arith.constant 0 : index
    %c1_95 = arith.constant 1 : index
    %c0_96 = arith.constant 0 : index
    %89 = vector.load %arg11[%c0_94, %c1_95, %c0_96] : memref<16x16x8xf32, #tpu.memory_space<vmem>>, vector<16x15x8xf32>
    tpu.vector_store %arg11[%c0_94, %c1_95, %c0_96], %88 {strides = array<i32>} : memref<16x16x8xf32, #tpu.memory_space<vmem>>, vector<16x15x8xf32>,
    %90 = vector.extract_strided_slice %63 {offsets = [0, 0, 40], sizes = [16, 16, 8], strides = [1, 1, 1]} : vector<16x16x72xf32> to vector<16x16x8xf32>
    %c0_97 = arith.constant 0 : index
    %c0_98 = arith.constant 0 : index
    %c0_99 = arith.constant 0 : index
    %91 = vector.load %arg11[%c0_97, %c0_98, %c0_99] : memref<16x16x8xf32, #tpu.memory_space<vmem>>, vector<16x15x8xf32>
    %92 = vector.extract_strided_slice %90 {offsets = [0, 1, 0], sizes = [16, 15, 8], strides = [1, 1, 1]} : vector<16x16x8xf32> to vector<16x15x8xf32>
    %93 = arith.addf %91, %92 : vector<16x15x8xf32>
    %c0_100 = arith.constant 0 : index
    %c0_101 = arith.constant 0 : index
    %c0_102 = arith.constant 0 : index
    %94 = vector.load %arg11[%c0_100, %c0_101, %c0_102] : memref<16x16x8xf32, #tpu.memory_space<vmem>>, vector<16x15x8xf32>
    tpu.vector_store %arg11[%c0_100, %c0_101, %c0_102], %93 {strides = array<i32>} : memref<16x16x8xf32, #tpu.memory_space<vmem>>, vector<16x15x8xf32>,
    %95 = vector.extract_strided_slice %63 {offsets = [0, 0, 48], sizes = [16, 16, 8], strides = [1, 1, 1]} : vector<16x16x72xf32> to vector<16x16x8xf32>
    %c0_103 = arith.constant 0 : index
    %c1_104 = arith.constant 1 : index
    %c0_105 = arith.constant 0 : index
    %96 = vector.load %arg11[%c0_103, %c1_104, %c0_105] : memref<16x16x8xf32, #tpu.memory_space<vmem>>, vector<15x15x8xf32>
    %97 = vector.extract_strided_slice %95 {offsets = [1, 0, 0], sizes = [15, 15, 8], strides = [1, 1, 1]} : vector<16x16x8xf32> to vector<15x15x8xf32>
    %98 = arith.addf %96, %97 : vector<15x15x8xf32>
    %c0_106 = arith.constant 0 : index
    %c1_107 = arith.constant 1 : index
    %c0_108 = arith.constant 0 : index
    %99 = vector.load %arg11[%c0_106, %c1_107, %c0_108] : memref<16x16x8xf32, #tpu.memory_space<vmem>>, vector<15x15x8xf32>
    tpu.vector_store %arg11[%c0_106, %c1_107, %c0_108], %98 {strides = array<i32>} : memref<16x16x8xf32, #tpu.memory_space<vmem>>, vector<15x15x8xf32>,
    %100 = vector.extract_strided_slice %63 {offsets = [0, 0, 56], sizes = [16, 16, 8], strides = [1, 1, 1]} : vector<16x16x72xf32> to vector<16x16x8xf32>
    %c0_109 = arith.constant 0 : index
    %c0_110 = arith.constant 0 : index
    %c0_111 = arith.constant 0 : index
    %101 = vector.load %arg11[%c0_109, %c0_110, %c0_111] : memref<16x16x8xf32, #tpu.memory_space<vmem>>, vector<15x16x8xf32>
    %102 = vector.extract_strided_slice %100 {offsets = [1, 0, 0], sizes = [15, 16, 8], strides = [1, 1, 1]} : vector<16x16x8xf32> to vector<15x16x8xf32>
    %103 = arith.addf %101, %102 : vector<15x16x8xf32>
    %c0_112 = arith.constant 0 : index
    %c0_113 = arith.constant 0 : index
    %c0_114 = arith.constant 0 : index
    %104 = vector.load %arg11[%c0_112, %c0_113, %c0_114] : memref<16x16x8xf32, #tpu.memory_space<vmem>>, vector<15x16x8xf32>
    tpu.vector_store %arg11[%c0_112, %c0_113, %c0_114], %103 {strides = array<i32>} : memref<16x16x8xf32, #tpu.memory_space<vmem>>, vector<15x16x8xf32>,
    %105 = vector.extract_strided_slice %63 {offsets = [0, 0, 64], sizes = [16, 16, 8], strides = [1, 1, 1]} : vector<16x16x72xf32> to vector<16x16x8xf32>
    %c0_115 = arith.constant 0 : index
    %c0_116 = arith.constant 0 : index
    %c0_117 = arith.constant 0 : index
    %106 = vector.load %arg11[%c0_115, %c0_116, %c0_117] : memref<16x16x8xf32, #tpu.memory_space<vmem>>, vector<15x15x8xf32>
    %107 = vector.extract_strided_slice %105 {offsets = [1, 1, 0], sizes = [15, 15, 8], strides = [1, 1, 1]} : vector<16x16x8xf32> to vector<15x15x8xf32>
    %108 = arith.addf %106, %107 : vector<15x15x8xf32>
    %c0_118 = arith.constant 0 : index
    %c0_119 = arith.constant 0 : index
    %c0_120 = arith.constant 0 : index
    %109 = vector.load %arg11[%c0_118, %c0_119, %c0_120] : memref<16x16x8xf32, #tpu.memory_space<vmem>>, vector<15x15x8xf32>
    tpu.vector_store %arg11[%c0_118, %c0_119, %c0_120], %108 {strides = array<i32>} : memref<16x16x8xf32, #tpu.memory_space<vmem>>, vector<15x15x8xf32>,
    %c0_121 = arith.constant 0 : index
    %c0_122 = arith.constant 0 : index
    %c0_123 = arith.constant 0 : index
    %110 = vector.load %arg11[%c0_121, %c0_122, %c0_123] : memref<16x16x8xf32, #tpu.memory_space<vmem>>, vector<16x16x8xf32>
    %cst_124 = arith.constant 0.000000e+00 : f32
    %111 = vector.broadcast %cst_124 : f32 to vector<16x16x8xf32>
    %112 = arith.maximumf %110, %111 : vector<16x16x8xf32>
    %c0_125 = arith.constant 0 : index
    %c0_126 = arith.constant 0 : index
    %c0_127 = arith.constant 0 : index
    %113 = vector.load %arg7[%c0_125, %c0_126, %c0_127] : memref<9x1x8xf32, #tpu.memory_space<vmem>>, vector<9x1x8xf32>
    %114 = vector.extract_strided_slice %113 {offsets = [4, 0, 0], sizes = [1, 1, 8], strides = [1, 1, 1]} : vector<9x1x8xf32> to vector<1x1x8xf32>
    %115 = vector.shape_cast %114 : vector<1x1x8xf32> to vector<1x8xf32>
    %116 = vector.shape_cast %115 : vector<1x8xf32> to vector<1x1x8xf32>
    %117 = vector.broadcast %116 : vector<1x1x8xf32> to vector<16x16x8xf32>
    %118 = arith.mulf %112, %117 : vector<16x16x8xf32>
    %c0_128 = arith.constant 0 : index
    %c0_129 = arith.constant 0 : index
    %c0_130 = arith.constant 0 : index
    %119 = vector.load %arg12[%c0_128, %c0_129, %c0_130] : memref<16x16x8xf32, #tpu.memory_space<vmem>>, vector<16x16x8xf32>
    tpu.vector_store %arg12[%c0_128, %c0_129, %c0_130], %118 {strides = array<i32>} : memref<16x16x8xf32, #tpu.memory_space<vmem>>, vector<16x16x8xf32>,
    %120 = vector.extract_strided_slice %113 {offsets = [0, 0, 0], sizes = [1, 1, 8], strides = [1, 1, 1]} : vector<9x1x8xf32> to vector<1x1x8xf32>
    %121 = vector.shape_cast %120 : vector<1x1x8xf32> to vector<1x8xf32>
    %122 = vector.shape_cast %121 : vector<1x8xf32> to vector<1x1x8xf32>
    %123 = vector.broadcast %122 : vector<1x1x8xf32> to vector<16x16x8xf32>
    %124 = arith.mulf %112, %123 : vector<16x16x8xf32>
    %c1_131 = arith.constant 1 : index
    %c1_132 = arith.constant 1 : index
    %c0_133 = arith.constant 0 : index
    %125 = vector.load %arg12[%c1_131, %c1_132, %c0_133] : memref<16x16x8xf32, #tpu.memory_space<vmem>>, vector<15x15x8xf32>
    %126 = vector.extract_strided_slice %124 {offsets = [0, 0, 0], sizes = [15, 15, 8], strides = [1, 1, 1]} : vector<16x16x8xf32> to vector<15x15x8xf32>
    %127 = arith.addf %125, %126 : vector<15x15x8xf32>
    %c1_134 = arith.constant 1 : index
    %c1_135 = arith.constant 1 : index
    %c0_136 = arith.constant 0 : index
    %128 = vector.load %arg12[%c1_134, %c1_135, %c0_136] : memref<16x16x8xf32, #tpu.memory_space<vmem>>, vector<15x15x8xf32>
    tpu.vector_store %arg12[%c1_134, %c1_135, %c0_136], %127 {strides = array<i32>} : memref<16x16x8xf32, #tpu.memory_space<vmem>>, vector<15x15x8xf32>,
    %129 = vector.extract_strided_slice %113 {offsets = [1, 0, 0], sizes = [1, 1, 8], strides = [1, 1, 1]} : vector<9x1x8xf32> to vector<1x1x8xf32>
    %130 = vector.shape_cast %129 : vector<1x1x8xf32> to vector<1x8xf32>
    %131 = vector.shape_cast %130 : vector<1x8xf32> to vector<1x1x8xf32>
    %132 = vector.broadcast %131 : vector<1x1x8xf32> to vector<16x16x8xf32>
    %133 = arith.mulf %112, %132 : vector<16x16x8xf32>
    %c1_137 = arith.constant 1 : index
    %c0_138 = arith.constant 0 : index
    %c0_139 = arith.constant 0 : index
    %134 = vector.load %arg12[%c1_137, %c0_138, %c0_139] : memref<16x16x8xf32, #tpu.memory_space<vmem>>, vector<15x16x8xf32>
    %135 = vector.extract_strided_slice %133 {offsets = [0, 0, 0], sizes = [15, 16, 8], strides = [1, 1, 1]} : vector<16x16x8xf32> to vector<15x16x8xf32>
    %136 = arith.addf %134, %135 : vector<15x16x8xf32>
    %c1_140 = arith.constant 1 : index
    %c0_141 = arith.constant 0 : index
    %c0_142 = arith.constant 0 : index
    %137 = vector.load %arg12[%c1_140, %c0_141, %c0_142] : memref<16x16x8xf32, #tpu.memory_space<vmem>>, vector<15x16x8xf32>
    tpu.vector_store %arg12[%c1_140, %c0_141, %c0_142], %136 {strides = array<i32>} : memref<16x16x8xf32, #tpu.memory_space<vmem>>, vector<15x16x8xf32>,
    %138 = vector.extract_strided_slice %113 {offsets = [2, 0, 0], sizes = [1, 1, 8], strides = [1, 1, 1]} : vector<9x1x8xf32> to vector<1x1x8xf32>
    %139 = vector.shape_cast %138 : vector<1x1x8xf32> to vector<1x8xf32>
    %140 = vector.shape_cast %139 : vector<1x8xf32> to vector<1x1x8xf32>
    %141 = vector.broadcast %140 : vector<1x1x8xf32> to vector<16x16x8xf32>
    %142 = arith.mulf %112, %141 : vector<16x16x8xf32>
    %c1_143 = arith.constant 1 : index
    %c0_144 = arith.constant 0 : index
    %c0_145 = arith.constant 0 : index
    %143 = vector.load %arg12[%c1_143, %c0_144, %c0_145] : memref<16x16x8xf32, #tpu.memory_space<vmem>>, vector<15x15x8xf32>
    %144 = vector.extract_strided_slice %142 {offsets = [0, 1, 0], sizes = [15, 15, 8], strides = [1, 1, 1]} : vector<16x16x8xf32> to vector<15x15x8xf32>
    %145 = arith.addf %143, %144 : vector<15x15x8xf32>
    %c1_146 = arith.constant 1 : index
    %c0_147 = arith.constant 0 : index
    %c0_148 = arith.constant 0 : index
    %146 = vector.load %arg12[%c1_146, %c0_147, %c0_148] : memref<16x16x8xf32, #tpu.memory_space<vmem>>, vector<15x15x8xf32>
    tpu.vector_store %arg12[%c1_146, %c0_147, %c0_148], %145 {strides = array<i32>} : memref<16x16x8xf32, #tpu.memory_space<vmem>>, vector<15x15x8xf32>,
    %147 = vector.extract_strided_slice %113 {offsets = [3, 0, 0], sizes = [1, 1, 8], strides = [1, 1, 1]} : vector<9x1x8xf32> to vector<1x1x8xf32>
    %148 = vector.shape_cast %147 : vector<1x1x8xf32> to vector<1x8xf32>
    %149 = vector.shape_cast %148 : vector<1x8xf32> to vector<1x1x8xf32>
    %150 = vector.broadcast %149 : vector<1x1x8xf32> to vector<16x16x8xf32>
    %151 = arith.mulf %112, %150 : vector<16x16x8xf32>
    %c0_149 = arith.constant 0 : index
    %c1_150 = arith.constant 1 : index
    %c0_151 = arith.constant 0 : index
    %152 = vector.load %arg12[%c0_149, %c1_150, %c0_151] : memref<16x16x8xf32, #tpu.memory_space<vmem>>, vector<16x15x8xf32>
    %153 = vector.extract_strided_slice %151 {offsets = [0, 0, 0], sizes = [16, 15, 8], strides = [1, 1, 1]} : vector<16x16x8xf32> to vector<16x15x8xf32>
    %154 = arith.addf %152, %153 : vector<16x15x8xf32>
    %c0_152 = arith.constant 0 : index
    %c1_153 = arith.constant 1 : index
    %c0_154 = arith.constant 0 : index
    %155 = vector.load %arg12[%c0_152, %c1_153, %c0_154] : memref<16x16x8xf32, #tpu.memory_space<vmem>>, vector<16x15x8xf32>
    tpu.vector_store %arg12[%c0_152, %c1_153, %c0_154], %154 {strides = array<i32>} : memref<16x16x8xf32, #tpu.memory_space<vmem>>, vector<16x15x8xf32>,
    %156 = vector.extract_strided_slice %113 {offsets = [5, 0, 0], sizes = [1, 1, 8], strides = [1, 1, 1]} : vector<9x1x8xf32> to vector<1x1x8xf32>
    %157 = vector.shape_cast %156 : vector<1x1x8xf32> to vector<1x8xf32>
    %158 = vector.shape_cast %157 : vector<1x8xf32> to vector<1x1x8xf32>
    %159 = vector.broadcast %158 : vector<1x1x8xf32> to vector<16x16x8xf32>
    %160 = arith.mulf %112, %159 : vector<16x16x8xf32>
    %c0_155 = arith.constant 0 : index
    %c0_156 = arith.constant 0 : index
    %c0_157 = arith.constant 0 : index
    %161 = vector.load %arg12[%c0_155, %c0_156, %c0_157] : memref<16x16x8xf32, #tpu.memory_space<vmem>>, vector<16x15x8xf32>
    %162 = vector.extract_strided_slice %160 {offsets = [0, 1, 0], sizes = [16, 15, 8], strides = [1, 1, 1]} : vector<16x16x8xf32> to vector<16x15x8xf32>
    %163 = arith.addf %161, %162 : vector<16x15x8xf32>
    %c0_158 = arith.constant 0 : index
    %c0_159 = arith.constant 0 : index
    %c0_160 = arith.constant 0 : index
    %164 = vector.load %arg12[%c0_158, %c0_159, %c0_160] : memref<16x16x8xf32, #tpu.memory_space<vmem>>, vector<16x15x8xf32>
    tpu.vector_store %arg12[%c0_158, %c0_159, %c0_160], %163 {strides = array<i32>} : memref<16x16x8xf32, #tpu.memory_space<vmem>>, vector<16x15x8xf32>,
    %165 = vector.extract_strided_slice %113 {offsets = [6, 0, 0], sizes = [1, 1, 8], strides = [1, 1, 1]} : vector<9x1x8xf32> to vector<1x1x8xf32>
    %166 = vector.shape_cast %165 : vector<1x1x8xf32> to vector<1x8xf32>
    %167 = vector.shape_cast %166 : vector<1x8xf32> to vector<1x1x8xf32>
    %168 = vector.broadcast %167 : vector<1x1x8xf32> to vector<16x16x8xf32>
    %169 = arith.mulf %112, %168 : vector<16x16x8xf32>
    %c0_161 = arith.constant 0 : index
    %c1_162 = arith.constant 1 : index
    %c0_163 = arith.constant 0 : index
    %170 = vector.load %arg12[%c0_161, %c1_162, %c0_163] : memref<16x16x8xf32, #tpu.memory_space<vmem>>, vector<15x15x8xf32>
    %171 = vector.extract_strided_slice %169 {offsets = [1, 0, 0], sizes = [15, 15, 8], strides = [1, 1, 1]} : vector<16x16x8xf32> to vector<15x15x8xf32>
    %172 = arith.addf %170, %171 : vector<15x15x8xf32>
    %c0_164 = arith.constant 0 : index
    %c1_165 = arith.constant 1 : index
    %c0_166 = arith.constant 0 : index
    %173 = vector.load %arg12[%c0_164, %c1_165, %c0_166] : memref<16x16x8xf32, #tpu.memory_space<vmem>>, vector<15x15x8xf32>
    tpu.vector_store %arg12[%c0_164, %c1_165, %c0_166], %172 {strides = array<i32>} : memref<16x16x8xf32, #tpu.memory_space<vmem>>, vector<15x15x8xf32>,
    %174 = vector.extract_strided_slice %113 {offsets = [7, 0, 0], sizes = [1, 1, 8], strides = [1, 1, 1]} : vector<9x1x8xf32> to vector<1x1x8xf32>
    %175 = vector.shape_cast %174 : vector<1x1x8xf32> to vector<1x8xf32>
    %176 = vector.shape_cast %175 : vector<1x8xf32> to vector<1x1x8xf32>
    %177 = vector.broadcast %176 : vector<1x1x8xf32> to vector<16x16x8xf32>
    %178 = arith.mulf %112, %177 : vector<16x16x8xf32>
    %c0_167 = arith.constant 0 : index
    %c0_168 = arith.constant 0 : index
    %c0_169 = arith.constant 0 : index
    %179 = vector.load %arg12[%c0_167, %c0_168, %c0_169] : memref<16x16x8xf32, #tpu.memory_space<vmem>>, vector<15x16x8xf32>
    %180 = vector.extract_strided_slice %178 {offsets = [1, 0, 0], sizes = [15, 16, 8], strides = [1, 1, 1]} : vector<16x16x8xf32> to vector<15x16x8xf32>
    %181 = arith.addf %179, %180 : vector<15x16x8xf32>
    %c0_170 = arith.constant 0 : index
    %c0_171 = arith.constant 0 : index
    %c0_172 = arith.constant 0 : index
    %182 = vector.load %arg12[%c0_170, %c0_171, %c0_172] : memref<16x16x8xf32, #tpu.memory_space<vmem>>, vector<15x16x8xf32>
    tpu.vector_store %arg12[%c0_170, %c0_171, %c0_172], %181 {strides = array<i32>} : memref<16x16x8xf32, #tpu.memory_space<vmem>>, vector<15x16x8xf32>,
    %183 = vector.extract_strided_slice %113 {offsets = [8, 0, 0], sizes = [1, 1, 8], strides = [1, 1, 1]} : vector<9x1x8xf32> to vector<1x1x8xf32>
    %184 = vector.shape_cast %183 : vector<1x1x8xf32> to vector<1x8xf32>
    %185 = vector.shape_cast %184 : vector<1x8xf32> to vector<1x1x8xf32>
    %186 = vector.broadcast %185 : vector<1x1x8xf32> to vector<16x16x8xf32>
    %187 = arith.mulf %112, %186 : vector<16x16x8xf32>
    %c0_173 = arith.constant 0 : index
    %c0_174 = arith.constant 0 : index
    %c0_175 = arith.constant 0 : index
    %188 = vector.load %arg12[%c0_173, %c0_174, %c0_175] : memref<16x16x8xf32, #tpu.memory_space<vmem>>, vector<15x15x8xf32>
    %189 = vector.extract_strided_slice %187 {offsets = [1, 1, 0], sizes = [15, 15, 8], strides = [1, 1, 1]} : vector<16x16x8xf32> to vector<15x15x8xf32>
    %190 = arith.addf %188, %189 : vector<15x15x8xf32>
    %c0_176 = arith.constant 0 : index
    %c0_177 = arith.constant 0 : index
    %c0_178 = arith.constant 0 : index
    %191 = vector.load %arg12[%c0_176, %c0_177, %c0_178] : memref<16x16x8xf32, #tpu.memory_space<vmem>>, vector<15x15x8xf32>
    tpu.vector_store %arg12[%c0_176, %c0_177, %c0_178], %190 {strides = array<i32>} : memref<16x16x8xf32, #tpu.memory_space<vmem>>, vector<15x15x8xf32>,
    %c0_179 = arith.constant 0 : index
    %c0_180 = arith.constant 0 : index
    %192 = vector.load %arg8[%c0_179, %c0_180] : memref<1x1xf32, #tpu.memory_space<vmem>>, vector<1x1xf32>
    %193 = vector.shape_cast %192 : vector<1x1xf32> to vector<1x1x1xf32>
    %c0_181 = arith.constant 0 : index
    %c0_182 = arith.constant 0 : index
    %c0_183 = arith.constant 0 : index
    %194 = vector.load %arg12[%c0_181, %c0_182, %c0_183] : memref<16x16x8xf32, #tpu.memory_space<vmem>>, vector<16x16x8xf32>
    %cst_184 = arith.constant dense<0.000000e+00> : vector<16x16xf32>
    %195 = vector.multi_reduction <add>, %194, %cst_184 [2] : vector<16x16x8xf32> to vector<16x16xf32>
    %196 = vector.shape_cast %195 : vector<16x16xf32> to vector<16x16x1xf32>
    %197 = vector.broadcast %193 : vector<1x1x1xf32> to vector<16x16x1xf32>
    %198 = arith.addf %196, %197 : vector<16x16x1xf32>
    %cst_185 = arith.constant 0.000000e+00 : f32
    %199 = vector.broadcast %cst_185 : f32 to vector<16x16x1xf32>
    %200 = arith.maximumf %198, %199 : vector<16x16x1xf32>
    %201 = arith.extf %3 : vector<16x16x512xbf16> to vector<16x16x512xf32>
    %202 = arith.extf %1 : vector<16x16x512xbf16> to vector<16x16x512xf32>
    %203 = arith.subf %202, %201 : vector<16x16x512xf32>
    %204 = vector.broadcast %200 : vector<16x16x1xf32> to vector<16x16x512xf32>
    %205 = arith.mulf %204, %203 : vector<16x16x512xf32>
    %206 = arith.addf %201, %205 : vector<16x16x512xf32>
    %c0_186 = arith.constant 0 : index
    %c0_187 = arith.constant 0 : index
    %c0_188 = arith.constant 0 : index
    %c0_189 = arith.constant 0 : index
    %207 = vector.load %arg9[%c0_186, %c0_187, %c0_188, %c0_189] : memref<1x16x16x512xf32, #tpu.memory_space<vmem>>, vector<1x16x16x512xf32>
    %208 = vector.shape_cast %207 : vector<1x16x16x512xf32> to vector<16x16x512xf32>
    %209 = vector.shape_cast %206 : vector<16x16x512xf32> to vector<1x16x16x512xf32>
    tpu.vector_store %arg9[%c0_186, %c0_187, %c0_188, %c0_189], %209 {strides = array<i32>} : memref<1x16x16x512xf32, #tpu.memory_space<vmem>>, vector<1x16x16x512xf32>,
    return
  }
  func.func @transform_0(%arg0: i32) -> (i32, i32, i32, i32) {
    %c0_i32 = arith.constant 0 : i32
    %c0_i32_0 = arith.constant 0 : i32
    %c0_i32_1 = arith.constant 0 : i32
    %c0_i32_2 = arith.constant 0 : i32
    return %arg0, %c0_i32, %c0_i32_0, %c0_i32_1 : i32, i32, i32, i32
  }
  func.func @transform_1(%arg0: i32) -> (i32, i32, i32, i32) {
    %c0_i32 = arith.constant 0 : i32
    %c0_i32_0 = arith.constant 0 : i32
    %c0_i32_1 = arith.constant 0 : i32
    %c0_i32_2 = arith.constant 0 : i32
    return %arg0, %c0_i32, %c0_i32_0, %c0_i32_1 : i32, i32, i32, i32
  }
  func.func @transform_2(%arg0: i32) -> (i32, i32) {
    %c0_i32 = arith.constant 0 : i32
    %c0_i32_0 = arith.constant 0 : i32
    %c0_i32_1 = arith.constant 0 : i32
    return %c0_i32, %c0_i32_0 : i32, i32
  }
  func.func @transform_3(%arg0: i32) -> (i32, i32) {
    %c0_i32 = arith.constant 0 : i32
    %c0_i32_0 = arith.constant 0 : i32
    %c0_i32_1 = arith.constant 0 : i32
    return %c0_i32, %c0_i32_0 : i32, i32
  }
  func.func @transform_4(%arg0: i32) -> (i32, i32) {
    %c0_i32 = arith.constant 0 : i32
    %c0_i32_0 = arith.constant 0 : i32
    %c0_i32_1 = arith.constant 0 : i32
    return %c0_i32, %c0_i32_0 : i32, i32
  }
  func.func @transform_5(%arg0: i32) -> (i32, i32) {
    %c0_i32 = arith.constant 0 : i32
    %c0_i32_0 = arith.constant 0 : i32
    %c0_i32_1 = arith.constant 0 : i32
    return %c0_i32, %c0_i32_0 : i32, i32
  }
  func.func @transform_6(%arg0: i32) -> (i32, i32, i32) {
    %c0_i32 = arith.constant 0 : i32
    %c0_i32_0 = arith.constant 0 : i32
    %c0_i32_1 = arith.constant 0 : i32
    %c0_i32_2 = arith.constant 0 : i32
    return %c0_i32, %c0_i32_0, %c0_i32_1 : i32, i32, i32
  }
  func.func @transform_7(%arg0: i32) -> (i32, i32) {
    %c0_i32 = arith.constant 0 : i32
    %c0_i32_0 = arith.constant 0 : i32
    %c0_i32_1 = arith.constant 0 : i32
    return %c0_i32, %c0_i32_0 : i32, i32
  }
  func.func @transform_8(%arg0: i32) -> (i32, i32, i32, i32) {
    %c0_i32 = arith.constant 0 : i32
    %c0_i32_0 = arith.constant 0 : i32
    %c0_i32_1 = arith.constant 0 : i32
    %c0_i32_2 = arith.constant 0 : i32
    return %arg0, %c0_i32, %c0_i32_0, %c0_i32_1 : i32, i32, i32, i32
  }
}

</mosaic_0001>

<llo_original>
// kernel: video_colorization_forward.1
$region0: #{video_colorization_forward.1}
  #allocation0 [shape = 'u32[]', space=smem, size = 0x4, offset = 0x4, fixed_abs, tag = 'smem constant byte address 0x4 - core index']
  #allocation1 [shape = 'u32[72,128]{1,0:T(1,128)}', space=vmem, size = 0x9000, scoped, tag = 'internal scratch']
  #allocation2 [shape = 'f32[16,16,64]{2,1,0:T(8,128)}', space=vmem, size = 0x20000, scoped, tag = 'scratch operand']
  #allocation3 [shape = 'f32[16,16,8]{2,1,0:T(8,128)}', space=vmem, size = 0x20000, scoped, tag = 'scratch operand']
  #allocation4 [shape = 'f32[16,16,8]{2,1,0:T(8,128)}', space=vmem, size = 0x20000, scoped, tag = 'scratch operand']
  #allocation5 [shape = 'f32[1,1]{1,0:T(1,128)S(1)}', space=vmem, size = 0x200, scoped, tag = 'scoped memory for video_colorization_forward.1']
  %s0 = inlined_call_operand.vmem [shape: bf16[2,16,16,512], index: 0, kind: input, shape index: {}]
  %s1 = inlined_call_operand.vmem [shape: bf16[2,16,16,512], index: 1, kind: input, shape index: {}]
  %s2 = inlined_call_operand.vmem [shape: bf16[512,576], index: 2, kind: input, shape index: {}]
  %s3 = inlined_call_operand.vmem [shape: f32[1,64], index: 3, kind: input, shape index: {}]
  %s4 = inlined_call_operand.vmem [shape: bf16[64,72], index: 4, kind: input, shape index: {}]
  %s5 = inlined_call_operand.vmem [shape: f32[1,8], index: 5, kind: input, shape index: {}]
  %s6 = inlined_call_operand.vmem [shape: f32[9,1,8], index: 6, kind: input, shape index: {}]
  %s7 = inlined_call_operand.<no memory space> [shape: f32[1,1], index: 7, kind: input, shape index: {}]
  %s8 = inlined_call_operand.hbm [shape: f32[2,16,16,512], index: 8, kind: output, shape index: {}]
  %s9 = sld [smem:[#allocation0]]
  $region65: #{video_colorization_forward.1} parent=0
    _
  %s11 = ssub.s32 1, %s9
  %s12 = scalar_select 0, %s11, %s9
  %v13 = vstv %s7
  %14 = vst [vmem:[#allocation5] sm:$0x1] %v13
  $region1: #{video_colorization_forward.1} parent=0
    #allocation6 [shape = 'u8[1048576]{0}', space=vmem, size = 0x100000, scoped, tag = 'output window, operand 0']
    #allocation7 [shape = 's32[2]{0}', space=sflag, size = 0x8, scoped, tag = 'scoped memory for video_colorization_forward.1']
    %15 = vsyncpa [#allocation7], 0
    %s16 = scalar_lea.sflag [#allocation7], 1
    %17 = vsyncpa %s16, 0
    loop: start=0, step=1, limit=4
    $region2: #{video_colorization_forward.1} parent=1 // loop_pre_header
      _
    $region3: #{video_colorization_forward.1} parent=1 // loop_header
      %s19 = sphi 0, %s23
      %p20 = scmp.ge.s32.totalorder %s19, 4
      %s29 = sphi 0, %s31
      %s32 = sphi 0, %s29
      %s33 = sphi 0, %s32
      %s49 = sphi 0, %s33
      %s55 = sphi 0, %s57
      %s58 = sphi 0, %s55
      %s59 = sphi 0, %s58
      %s75 = sphi 0, %s59
      %s79 = sphi 0, %s79
      %s81 = sphi 0, %s79
      %s82 = sphi 0, %s81
      %s96 = sphi 0, %s82
      %s100 = sphi 0, %s100
      %s102 = sphi 0, %s100
      %s103 = sphi 0, %s102
      %s117 = sphi 0, %s103
      %s121 = sphi 0, %s121
      %s123 = sphi 0, %s121
      %s124 = sphi 0, %s123
      %s138 = sphi 0, %s124
      %s142 = sphi 0, %s142
      %s144 = sphi 0, %s142
      %s145 = sphi 0, %s144
      %s159 = sphi 0, %s145
      %s163 = sphi 0, %s163
      %s165 = sphi 0, %s163
      %s166 = sphi 0, %s165
      %s180 = sphi 0, %s166
      %s184 = sphi 0, %s184
      %s186 = sphi 0, %s184
      %s187 = sphi 0, %s186
      %s201 = sphi 0, %s187
      %s207 = sphi 0, %s209
      %s210 = sphi 0, %s207
      %s211 = sphi 0, %s210
      %s227 = sphi 0, %s211
    $region4: #{video_colorization_forward.1} parent=1 // loop_header_branch
      %22 = sbr.rel (%p20) target = $region8
    $region5: #{video_colorization_forward.1} parent=1 // loop_body
      %s24 = ssub.s32 %s19, 1
      %s25 = ssub.s32 %s19, 2
      %s26 = sadd.s32 %s19, 1
      %s27 = ssub.s32 %s19, %s26
      %p28 = scmp.eq.s32.totalorder %s27, 0
      %s30 = sadd.s32 %s29, 1
      %s31 = scalar_select %p28, %s29, %s30
      %p34 = pneg %p28
      %p35 = scmp.eq.s32.totalorder %s19, 1
      %p36 = por %p34, %p35
      %p37 = scmp.ne.s32.totalorder %s29, %s32
      %p38 = scmp.eq.s32.totalorder %s19, 0
      %p39 = por %p37, %p38
      %p40 = scmp.ne.s32.totalorder %s29, %s32
      %p41 = scmp.eq.s32.totalorder %s24, 1
      %p42 = por %p40, %p41
      %p43 = scmp.ne.s32.totalorder %s32, %s33
      %p44 = scmp.eq.s32.totalorder %s24, 0
      %p45 = por %p43, %p44
      %p46 = scmp.ne.s32.totalorder %s32, %s33
      %p47 = scmp.eq.s32.totalorder %s25, 1
      %p48 = por %p46, %p47
      %p50 = scmp.ne.s32.totalorder %s33, %s49
      %p51 = scmp.eq.s32.totalorder %s25, 0
      %p52 = por %p50, %p51
      %s53 = ssub.s32 %s19, %s26
      %p54 = scmp.eq.s32.totalorder %s53, 0
      %s56 = sadd.s32 %s55, 1
      %s57 = scalar_select %p54, %s55, %s56
      %p60 = pneg %p54
      %p61 = scmp.eq.s32.totalorder %s19, 1
      %p62 = por %p60, %p61
      %p63 = scmp.ne.s32.totalorder %s55, %s58
      %p64 = scmp.eq.s32.totalorder %s19, 0
      %p65 = por %p63, %p64
      %p66 = scmp.ne.s32.totalorder %s55, %s58
      %p67 = scmp.eq.s32.totalorder %s24, 1
      %p68 = por %p66, %p67
      %p69 = scmp.ne.s32.totalorder %s58, %s59
      %p70 = scmp.eq.s32.totalorder %s24, 0
      %p71 = por %p69, %p70
      %p72 = scmp.ne.s32.totalorder %s58, %s59
      %p73 = scmp.eq.s32.totalorder %s25, 1
      %p74 = por %p72, %p73
      %p76 = scmp.ne.s32.totalorder %s59, %s75
      %p77 = scmp.eq.s32.totalorder %s25, 0
      %p78 = por %p76, %p77
      %s80 = sadd.s32 %s79, 1
      %p83 = scmp.eq.s32.totalorder %s19, 1
      %p84 = scmp.ne.s32.totalorder %s79, %s81
      %p85 = scmp.eq.s32.totalorder %s19, 0
      %p86 = por %p84, %p85
      %p87 = scmp.ne.s32.totalorder %s79, %s81
      %p88 = scmp.eq.s32.totalorder %s24, 1
      %p89 = por %p87, %p88
      %p90 = scmp.ne.s32.totalorder %s81, %s82
      %p91 = scmp.eq.s32.totalorder %s24, 0
      %p92 = por %p90, %p91
      %p93 = scmp.ne.s32.totalorder %s81, %s82
      %p94 = scmp.eq.s32.totalorder %s25, 1
      %p95 = por %p93, %p94
      %p97 = scmp.ne.s32.totalorder %s82, %s96
      %p98 = scmp.eq.s32.totalorder %s25, 0
      %p99 = por %p97, %p98
      %s101 = sadd.s32 %s100, 1
      %p104 = scmp.eq.s32.totalorder %s19, 1
      %p105 = scmp.ne.s32.totalorder %s100, %s102
      %p106 = scmp.eq.s32.totalorder %s19, 0
      %p107 = por %p105, %p106
      %p108 = scmp.ne.s32.totalorder %s100, %s102
      %p109 = scmp.eq.s32.totalorder %s24, 1
      %p110 = por %p108, %p109
      %p111 = scmp.ne.s32.totalorder %s102, %s103
      %p112 = scmp.eq.s32.totalorder %s24, 0
      %p113 = por %p111, %p112
      %p114 = scmp.ne.s32.totalorder %s102, %s103
      %p115 = scmp.eq.s32.totalorder %s25, 1
      %p116 = por %p114, %p115
      %p118 = scmp.ne.s32.totalorder %s103, %s117
      %p119 = scmp.eq.s32.totalorder %s25, 0
      %p120 = por %p118, %p119
      %s122 = sadd.s32 %s121, 1
      %p125 = scmp.eq.s32.totalorder %s19, 1
      %p126 = scmp.ne.s32.totalorder %s121, %s123
      %p127 = scmp.eq.s32.totalorder %s19, 0
      %p128 = por %p126, %p127
      %p129 = scmp.ne.s32.totalorder %s121, %s123
      %p130 = scmp.eq.s32.totalorder %s24, 1
      %p131 = por %p129, %p130
      %p132 = scmp.ne.s32.totalorder %s123, %s124
      %p133 = scmp.eq.s32.totalorder %s24, 0
      %p134 = por %p132, %p133
      %p135 = scmp.ne.s32.totalorder %s123, %s124
      %p136 = scmp.eq.s32.totalorder %s25, 1
      %p137 = por %p135, %p136
      %p139 = scmp.ne.s32.totalorder %s124, %s138
      %p140 = scmp.eq.s32.totalorder %s25, 0
      %p141 = por %p139, %p140
      %s143 = sadd.s32 %s142, 1
      %p146 = scmp.eq.s32.totalorder %s19, 1
      %p147 = scmp.ne.s32.totalorder %s142, %s144
      %p148 = scmp.eq.s32.totalorder %s19, 0
      %p149 = por %p147, %p148
      %p150 = scmp.ne.s32.totalorder %s142, %s144
      %p151 = scmp.eq.s32.totalorder %s24, 1
      %p152 = por %p150, %p151
      %p153 = scmp.ne.s32.totalorder %s144, %s145
      %p154 = scmp.eq.s32.totalorder %s24, 0
      %p155 = por %p153, %p154
      %p156 = scmp.ne.s32.totalorder %s144, %s145
      %p157 = scmp.eq.s32.totalorder %s25, 1
      %p158 = por %p156, %p157
      %p160 = scmp.ne.s32.totalorder %s145, %s159
      %p161 = scmp.eq.s32.totalorder %s25, 0
      %p162 = por %p160, %p161
      %s164 = sadd.s32 %s163, 1
      %p167 = scmp.eq.s32.totalorder %s19, 1
      %p168 = scmp.ne.s32.totalorder %s163, %s165
      %p169 = scmp.eq.s32.totalorder %s19, 0
      %p170 = por %p168, %p169
      %p171 = scmp.ne.s32.totalorder %s163, %s165
      %p172 = scmp.eq.s32.totalorder %s24, 1
      %p173 = por %p171, %p172
      %p174 = scmp.ne.s32.totalorder %s165, %s166
      %p175 = scmp.eq.s32.totalorder %s24, 0
      %p176 = por %p174, %p175
      %p177 = scmp.ne.s32.totalorder %s165, %s166
      %p178 = scmp.eq.s32.totalorder %s25, 1
      %p179 = por %p177, %p178
      %p181 = scmp.ne.s32.totalorder %s166, %s180
      %p182 = scmp.eq.s32.totalorder %s25, 0
      %p183 = por %p181, %p182
      %s185 = sadd.s32 %s184, 1
      %p188 = scmp.eq.s32.totalorder %s19, 1
      %p189 = scmp.ne.s32.totalorder %s184, %s186
      %p190 = scmp.eq.s32.totalorder %s19, 0
      %p191 = por %p189, %p190
      %p192 = scmp.ne.s32.totalorder %s184, %s186
      %p193 = scmp.eq.s32.totalorder %s24, 1
      %p194 = por %p192, %p193
      %p195 = scmp.ne.s32.totalorder %s186, %s187
      %p196 = scmp.eq.s32.totalorder %s24, 0
      %p197 = por %p195, %p196
      %p198 = scmp.ne.s32.totalorder %s186, %s187
      %p199 = scmp.eq.s32.totalorder %s25, 1
      %p200 = por %p198, %p199
      %p202 = scmp.ne.s32.totalorder %s187, %s201
      %p203 = scmp.eq.s32.totalorder %s25, 0
      %p204 = por %p202, %p203
      %s205 = ssub.s32 %s19, %s26
      %p206 = scmp.eq.s32.totalorder %s205, 0
      %s208 = sadd.s32 %s207, 1
      %s209 = scalar_select %p206, %s207, %s208
      %p212 = pneg %p206
      %p213 = scmp.eq.s32.totalorder %s19, 1
      %p214 = por %p212, %p213
      %p215 = scmp.ne.s32.totalorder %s207, %s210
      %p216 = scmp.eq.s32.totalorder %s19, 0
      %p217 = por %p215, %p216
      %p218 = scmp.ne.s32.totalorder %s207, %s210
      %p219 = scmp.eq.s32.totalorder %s24, 1
      %p220 = por %p218, %p219
      %p221 = scmp.ne.s32.totalorder %s210, %s211
      %p222 = scmp.eq.s32.totalorder %s24, 0
      %p223 = por %p221, %p222
      %p224 = scmp.ne.s32.totalorder %s210, %s211
      %p225 = scmp.eq.s32.totalorder %s25, 1
      %p226 = por %p224, %p225
      %p228 = scmp.ne.s32.totalorder %s211, %s227
      %p229 = scmp.eq.s32.totalorder %s25, 0
      %p230 = por %p228, %p229
      %p231 = scmp.le.s32.totalorder 1, %s19
      %p232 = scmp.lt.s32.totalorder %s19, 3
      %p233 = pnand %p231, %p232
      %p234 = pneg %p233
      // Predicated region
      $region9: #{video_colorization_forward.1} parent=5 // pred_check
        _
      $region10: #{video_colorization_forward.1} parent=5 // pred_check_branch
        %236 = sbr.rel (%p233) target = $region12
      $region11: #{video_colorization_forward.1} parent=5 // pred_region
        %s237 = ssub.s32 %s19, 1
        // Predicated region
        $region13: #{video_colorization_forward.1} parent=11 // pred_check
          %p238 = pneg %p92
        $region14: #{video_colorization_forward.1} parent=11 // pred_check_branch
          %240 = sbr.rel (%p238) target = $region16
        $region15: #{video_colorization_forward.1} parent=11 // pred_region
          _
        $region16: #{video_colorization_forward.1} parent=11 // pred_fallthru
          _
        // Predicated region
        $region17: #{video_colorization_forward.1} parent=11 // pred_check
          %p241 = pneg %p113
        $region18: #{video_colorization_forward.1} parent=11 // pred_check_branch
          %243 = sbr.rel (%p241) target = $region20
        $region19: #{video_colorization_forward.1} parent=11 // pred_region
          _
        $region20: #{video_colorization_forward.1} parent=11 // pred_fallthru
          _
        // Predicated region
        $region21: #{video_colorization_forward.1} parent=11 // pred_check
          %p244 = pneg %p134
        $region22: #{video_colorization_forward.1} parent=11 // pred_check_branch
          %246 = sbr.rel (%p244) target = $region24
        $region23: #{video_colorization_forward.1} parent=11 // pred_region
          _
        $region24: #{video_colorization_forward.1} parent=11 // pred_fallthru
          _
        // Predicated region
        $region25: #{video_colorization_forward.1} parent=11 // pred_check
          %p247 = pneg %p155
        $region26: #{video_colorization_forward.1} parent=11 // pred_check_branch
          %249 = sbr.rel (%p247) target = $region28
        $region27: #{video_colorization_forward.1} parent=11 // pred_region
          _
        $region28: #{video_colorization_forward.1} parent=11 // pred_fallthru
          _
        // Predicated region
        $region29: #{video_colorization_forward.1} parent=11 // pred_check
          %p250 = pneg %p176
        $region30: #{video_colorization_forward.1} parent=11 // pred_check_branch
          %252 = sbr.rel (%p250) target = $region32
        $region31: #{video_colorization_forward.1} parent=11 // pred_region
          _
        $region32: #{video_colorization_forward.1} parent=11 // pred_fallthru
          _
        // Predicated region
        $region33: #{video_colorization_forward.1} parent=11 // pred_check
          %p253 = pneg %p197
        $region34: #{video_colorization_forward.1} parent=11 // pred_check_branch
          %255 = sbr.rel (%p253) target = $region36
        $region35: #{video_colorization_forward.1} parent=11 // pred_region
          _
        $region36: #{video_colorization_forward.1} parent=11 // pred_fallthru
          _
      $region12: #{video_colorization_forward.1} parent=5 // pred_fallthru
        _
      %p256 = scmp.lt.s32.totalorder %s19, 2
      // Predicated region
      $region37: #{video_colorization_forward.1} parent=5 // pred_check
        %p257 = pneg %p256
      $region38: #{video_colorization_forward.1} parent=5 // pred_check_branch
        %259 = sbr.rel (%p257) target = $region40
      $region39: #{video_colorization_forward.1} parent=5 // pred_region
        // Predicated region
        $region41: #{video_colorization_forward.1} parent=39 // pred_check
          %p260 = pneg %p39
        $region42: #{video_colorization_forward.1} parent=39 // pred_check_branch
          %262 = sbr.rel (%p260) target = $region44
        $region43: #{video_colorization_forward.1} parent=39 // pred_region
          %p263 = scmp.lt.s32.totalorder %s19, 1
          %s264 = scalar_select %p263, %s19, 1
          %s265 = smul.addr %s264, 128
          %s266 = smul.addr %s265, 4
          %s267 = scalar_lea.vmem %s0, %s266
        $region44: #{video_colorization_forward.1} parent=39 // pred_fallthru
          _
        // Predicated region
        $region45: #{video_colorization_forward.1} parent=39 // pred_check
          %p268 = pneg %p65
        $region46: #{video_colorization_forward.1} parent=39 // pred_check_branch
          %270 = sbr.rel (%p268) target = $region48
        $region47: #{video_colorization_forward.1} parent=39 // pred_region
          %p271 = scmp.lt.s32.totalorder %s19, 1
          %s272 = scalar_select %p271, %s19, 1
          %s273 = smul.addr %s272, 128
          %s274 = smul.addr %s273, 4
          %s275 = scalar_lea.vmem %s1, %s274
        $region48: #{video_colorization_forward.1} parent=39 // pred_fallthru
          _
      $region40: #{video_colorization_forward.1} parent=5 // pred_fallthru
        _
      %p276 = scmp.le.s32.totalorder 1, %s19
      %p277 = scmp.lt.s32.totalorder %s19, 3
      %p278 = pnand %p276, %p277
      %p279 = pneg %p278
      // Predicated region
      $region49: #{video_colorization_forward.1} parent=5 // pred_check
        _
      $region50: #{video_colorization_forward.1} parent=5 // pred_check_branch
        %281 = sbr.rel (%p278) target = $region52
      $region51: #{video_colorization_forward.1} parent=5 // pred_region
        %s282 = ssub.s32 %s19, 1
        %p283 = scmp.lt.s32.totalorder %s24, 1
        %s284 = scalar_select %p283, %s24, 1
        %s285 = smul.addr %s284, 128
        %s286 = smul.addr %s285, 4
        %s287 = scalar_lea.vmem %s0, %s286
        %p288 = pneg %p45
        %p289 = pneg %p42
        %p290 = scmp.lt.s32.totalorder %s24, 1
        %s291 = scalar_select %p290, %s24, 1
        %s292 = smul.addr %s291, 128
        %s293 = smul.addr %s292, 4
        %s294 = scalar_lea.vmem %s1, %s293
        %p295 = pneg %p71
        %p296 = pneg %p68
        %p297 = pneg %p92
        %p298 = pneg %p89
        %p299 = pneg %p113
        %p300 = pneg %p110
        %p301 = pneg %p134
        %p302 = pneg %p131
        %p303 = pneg %p155
        %p304 = pneg %p152
        %p305 = pneg %p176
        %p306 = pneg %p173
        %p307 = pneg %p197
        %p308 = pneg %p194
        %p309 = pneg %p223
        %p310 = pneg %p220
        %s311 = sand.u32 %s210, 1
        %s312 = scalar_lea.sflag [#allocation7], %s311
        %s313 = sand.u32 %s210, 1
        %s314 = smul.addr %s313, 1024
        %s315 = scalar_lea.vmem [#allocation6], %s314
        %p316 = scmp.lt.s32.totalorder %s24, 1
        %s317 = scalar_select %p316, %s24, 1
        %s318 = smul.addr %s317, 128
        %s319 = smul.addr %s318, 4
        %s320 = scalar_lea.vmem %s0, %s319
        %p321 = scmp.lt.s32.totalorder %s24, 1
        %s322 = scalar_select %p321, %s24, 1
        %s323 = smul.addr %s322, 128
        %s324 = smul.addr %s323, 4
        %s325 = scalar_lea.vmem %s1, %s324
        %v327 = vld [vmem:[%s320] sm:$0xff]
        %v328 = vld [vmem:[%s320 + $0x8] sm:$0xff]
        %v329 = vld [vmem:[%s320 + $0x10] sm:$0xff]
        %v330 = vld [vmem:[%s320 + $0x18] sm:$0xff]
        %v331 = vld [vmem:[%s320 + $0x20] sm:$0xff]
        %v332 = vld [vmem:[%s320 + $0x28] sm:$0xff]
        %v333 = vld [vmem:[%s320 + $0x30] sm:$0xff]
        %v334 = vld [vmem:[%s320 + $0x38] sm:$0xff]
        %v335 = vld [vmem:[%s320 + $0x40] sm:$0xff]
        %v336 = vld [vmem:[%s320 + $0x48] sm:$0xff]
        %v337 = vld [vmem:[%s320 + $0x50] sm:$0xff]
        %v338 = vld [vmem:[%s320 + $0x58] sm:$0xff]
        %v339 = vld [vmem:[%s320 + $0x60] sm:$0xff]
        %v340 = vld [vmem:[%s320 + $0x68] sm:$0xff]
        %v341 = vld [vmem:[%s320 + $0x70] sm:$0xff]
        %v342 = vld [vmem:[%s320 + $0x78] sm:$0xff]
        %v343 = vld [vmem:[%s320 + $0x80] sm:$0xff]
        %v344 = vld [vmem:[%s320 + $0x88] sm:$0xff]
        %v345 = vld [vmem:[%s320 + $0x90] sm:$0xff]
        %v346 = vld [vmem:[%s320 + $0x98] sm:$0xff]
        %v347 = vld [vmem:[%s320 + $0xa0] sm:$0xff]
        %v348 = vld [vmem:[%s320 + $0xa8] sm:$0xff]
        %v349 = vld [vmem:[%s320 + $0xb0] sm:$0xff]
        %v350 = vld [vmem:[%s320 + $0xb8] sm:$0xff]
        %v351 = vld [vmem:[%s320 + $0xc0] sm:$0xff]
        %v352 = vld [vmem:[%s320 + $0xc8] sm:$0xff]
        %v353 = vld [vmem:[%s320 + $0xd0] sm:$0xff]
        %v354 = vld [vmem:[%s320 + $0xd8] sm:$0xff]
        %v355 = vld [vmem:[%s320 + $0xe0] sm:$0xff]
        %v356 = vld [vmem:[%s320 + $0xe8] sm:$0xff]
        %v357 = vld [vmem:[%s320 + $0xf0] sm:$0xff]
        %v358 = vld [vmem:[%s320 + $0xf8] sm:$0xff]
        %v359 = vld [vmem:[%s320 + $0x100] sm:$0xff]
        %v360 = vld [vmem:[%s320 + $0x108] sm:$0xff]
        %v361 = vld [vmem:[%s320 + $0x110] sm:$0xff]
        %v362 = vld [vmem:[%s320 + $0x118] sm:$0xff]
        %v363 = vld [vmem:[%s320 + $0x120] sm:$0xff]
        %v364 = vld [vmem:[%s320 + $0x128] sm:$0xff]
        %v365 = vld [vmem:[%s320 + $0x130] sm:$0xff]
        %v366 = vld [vmem:[%s320 + $0x138] sm:$0xff]
        %v367 = vld [vmem:[%s320 + $0x140] sm:$0xff]
        %v368 = vld [vmem:[%s320 + $0x148] sm:$0xff]
        %v369 = vld [vmem:[%s320 + $0x150] sm:$0xff]
        %v370 = vld [vmem:[%s320 + $0x158] sm:$0xff]
        %v371 = vld [vmem:[%s320 + $0x160] sm:$0xff]
        %v372 = vld [vmem:[%s320 + $0x168] sm:$0xff]
        %v373 = vld [vmem:[%s320 + $0x170] sm:$0xff]
        %v374 = vld [vmem:[%s320 + $0x178] sm:$0xff]
        %v375 = vld [vmem:[%s320 + $0x180] sm:$0xff]
        %v376 = vld [vmem:[%s320 + $0x188] sm:$0xff]
        %v377 = vld [vmem:[%s320 + $0x190] sm:$0xff]
        %v378 = vld [vmem:[%s320 + $0x198] sm:$0xff]
        %v379 = vld [vmem:[%s320 + $0x1a0] sm:$0xff]
        %v380 = vld [vmem:[%s320 + $0x1a8] sm:$0xff]
        %v381 = vld [vmem:[%s320 + $0x1b0] sm:$0xff]
        %v382 = vld [vmem:[%s320 + $0x1b8] sm:$0xff]
        %v383 = vld [vmem:[%s320 + $0x1c0] sm:$0xff]
        %v384 = vld [vmem:[%s320 + $0x1c8] sm:$0xff]
        %v385 = vld [vmem:[%s320 + $0x1d0] sm:$0xff]
        %v386 = vld [vmem:[%s320 + $0x1d8] sm:$0xff]
        %v387 = vld [vmem:[%s320 + $0x1e0] sm:$0xff]
        %v388 = vld [vmem:[%s320 + $0x1e8] sm:$0xff]
        %v389 = vld [vmem:[%s320 + $0x1f0] sm:$0xff]
        %v390 = vld [vmem:[%s320 + $0x1f8] sm:$0xff]
        %v391 = vld [vmem:[%s325] sm:$0xff]
        %v392 = vld [vmem:[%s325 + $0x8] sm:$0xff]
        %v393 = vld [vmem:[%s325 + $0x10] sm:$0xff]
        %v394 = vld [vmem:[%s325 + $0x18] sm:$0xff]
        %v395 = vld [vmem:[%s325 + $0x20] sm:$0xff]
        %v396 = vld [vmem:[%s325 + $0x28] sm:$0xff]
        %v397 = vld [vmem:[%s325 + $0x30] sm:$0xff]
        %v398 = vld [vmem:[%s325 + $0x38] sm:$0xff]
        %v399 = vld [vmem:[%s325 + $0x40] sm:$0xff]
        %v400 = vld [vmem:[%s325 + $0x48] sm:$0xff]
        %v401 = vld [vmem:[%s325 + $0x50] sm:$0xff]
        %v402 = vld [vmem:[%s325 + $0x58] sm:$0xff]
        %v403 = vld [vmem:[%s325 + $0x60] sm:$0xff]
        %v404 = vld [vmem:[%s325 + $0x68] sm:$0xff]
        %v405 = vld [vmem:[%s325 + $0x70] sm:$0xff]
        %v406 = vld [vmem:[%s325 + $0x78] sm:$0xff]
        %v407 = vld [vmem:[%s325 + $0x80] sm:$0xff]
        %v408 = vld [vmem:[%s325 + $0x88] sm:$0xff]
        %v409 = vld [vmem:[%s325 + $0x90] sm:$0xff]
        %v410 = vld [vmem:[%s325 + $0x98] sm:$0xff]
        %v411 = vld [vmem:[%s325 + $0xa0] sm:$0xff]
        %v412 = vld [vmem:[%s325 + $0xa8] sm:$0xff]
        %v413 = vld [vmem:[%s325 + $0xb0] sm:$0xff]
        %v414 = vld [vmem:[%s325 + $0xb8] sm:$0xff]
        %v415 = vld [vmem:[%s325 + $0xc0] sm:$0xff]
        %v416 = vld [vmem:[%s325 + $0xc8] sm:$0xff]
        %v417 = vld [vmem:[%s325 + $0xd0] sm:$0xff]
        %v418 = vld [vmem:[%s325 + $0xd8] sm:$0xff]
        %v419 = vld [vmem:[%s325 + $0xe0] sm:$0xff]
        %v420 = vld [vmem:[%s325 + $0xe8] sm:$0xff]
        %v421 = vld [vmem:[%s325 + $0xf0] sm:$0xff]
        %v422 = vld [vmem:[%s325 + $0xf8] sm:$0xff]
        %v423 = vld [vmem:[%s325 + $0x100] sm:$0xff]
        %v424 = vld [vmem:[%s325 + $0x108] sm:$0xff]
        %v425 = vld [vmem:[%s325 + $0x110] sm:$0xff]
        %v426 = vld [vmem:[%s325 + $0x118] sm:$0xff]
        %v427 = vld [vmem:[%s325 + $0x120] sm:$0xff]
        %v428 = vld [vmem:[%s325 + $0x128] sm:$0xff]
        %v429 = vld [vmem:[%s325 + $0x130] sm:$0xff]
        %v430 = vld [vmem:[%s325 + $0x138] sm:$0xff]
        %v431 = vld [vmem:[%s325 + $0x140] sm:$0xff]
        %v432 = vld [vmem:[%s325 + $0x148] sm:$0xff]
        %v433 = vld [vmem:[%s325 + $0x150] sm:$0xff]
        %v434 = vld [vmem:[%s325 + $0x158] sm:$0xff]
        %v435 = vld [vmem:[%s325 + $0x160] sm:$0xff]
        %v436 = vld [vmem:[%s325 + $0x168] sm:$0xff]
        %v437 = vld [vmem:[%s325 + $0x170] sm:$0xff]
        %v438 = vld [vmem:[%s325 + $0x178] sm:$0xff]
        %v439 = vld [vmem:[%s325 + $0x180] sm:$0xff]
        %v440 = vld [vmem:[%s325 + $0x188] sm:$0xff]
        %v441 = vld [vmem:[%s325 + $0x190] sm:$0xff]
        %v442 = vld [vmem:[%s325 + $0x198] sm:$0xff]
        %v443 = vld [vmem:[%s325 + $0x1a0] sm:$0xff]
        %v444 = vld [vmem:[%s325 + $0x1a8] sm:$0xff]
        %v445 = vld [vmem:[%s325 + $0x1b0] sm:$0xff]
        %v446 = vld [vmem:[%s325 + $0x1b8] sm:$0xff]
        %v447 = vld [vmem:[%s325 + $0x1c0] sm:$0xff]
        %v448 = vld [vmem:[%s325 + $0x1c8] sm:$0xff]
        %v449 = vld [vmem:[%s325 + $0x1d0] sm:$0xff]
        %v450 = vld [vmem:[%s325 + $0x1d8] sm:$0xff]
        %v451 = vld [vmem:[%s325 + $0x1e0] sm:$0xff]
        %v452 = vld [vmem:[%s325 + $0x1e8] sm:$0xff]
        %v453 = vld [vmem:[%s325 + $0x1f0] sm:$0xff]
        %v454 = vld [vmem:[%s325 + $0x1f8] sm:$0xff]
        %v455 = vunpack.c.l.bf16 %v327
        %v456 = vunpack.c.h.bf16 %v327
        %v457 = vunpack.c.l.bf16 %v328
        %v458 = vunpack.c.h.bf16 %v328
        %v459 = vunpack.c.l.bf16 %v329
        %v460 = vunpack.c.h.bf16 %v329
        %v461 = vunpack.c.l.bf16 %v330
        %v462 = vunpack.c.h.bf16 %v330
        %v463 = vunpack.c.l.bf16 %v331
        %v464 = vunpack.c.h.bf16 %v331
        %v465 = vunpack.c.l.bf16 %v332
        %v466 = vunpack.c.h.bf16 %v332
        %v467 = vunpack.c.l.bf16 %v333
        %v468 = vunpack.c.h.bf16 %v333
        %v469 = vunpack.c.l.bf16 %v334
        %v470 = vunpack.c.h.bf16 %v334
        %v471 = vunpack.c.l.bf16 %v335
        %v472 = vunpack.c.h.bf16 %v335
        %v473 = vunpack.c.l.bf16 %v336
        %v474 = vunpack.c.h.bf16 %v336
        %v475 = vunpack.c.l.bf16 %v337
        %v476 = vunpack.c.h.bf16 %v337
        %v477 = vunpack.c.l.bf16 %v338
        %v478 = vunpack.c.h.bf16 %v338
        %v479 = vunpack.c.l.bf16 %v339
        %v480 = vunpack.c.h.bf16 %v339
        %v481 = vunpack.c.l.bf16 %v340
        %v482 = vunpack.c.h.bf16 %v340
        %v483 = vunpack.c.l.bf16 %v341
        %v484 = vunpack.c.h.bf16 %v341
        %v485 = vunpack.c.l.bf16 %v342
        %v486 = vunpack.c.h.bf16 %v342
        %v487 = vunpack.c.l.bf16 %v343
        %v488 = vunpack.c.h.bf16 %v343
        %v489 = vunpack.c.l.bf16 %v344
        %v490 = vunpack.c.h.bf16 %v344
        %v491 = vunpack.c.l.bf16 %v345
        %v492 = vunpack.c.h.bf16 %v345
        %v493 = vunpack.c.l.bf16 %v346
        %v494 = vunpack.c.h.bf16 %v346
        %v495 = vunpack.c.l.bf16 %v347
        %v496 = vunpack.c.h.bf16 %v347
        %v497 = vunpack.c.l.bf16 %v348
        %v498 = vunpack.c.h.bf16 %v348
        %v499 = vunpack.c.l.bf16 %v349
        %v500 = vunpack.c.h.bf16 %v349
        %v501 = vunpack.c.l.bf16 %v350
        %v502 = vunpack.c.h.bf16 %v350
        %v503 = vunpack.c.l.bf16 %v351
        %v504 = vunpack.c.h.bf16 %v351
        %v505 = vunpack.c.l.bf16 %v352
        %v506 = vunpack.c.h.bf16 %v352
        %v507 = vunpack.c.l.bf16 %v353
        %v508 = vunpack.c.h.bf16 %v353
        %v509 = vunpack.c.l.bf16 %v354
        %v510 = vunpack.c.h.bf16 %v354
        %v511 = vunpack.c.l.bf16 %v355
        %v512 = vunpack.c.h.bf16 %v355
        %v513 = vunpack.c.l.bf16 %v356
        %v514 = vunpack.c.h.bf16 %v356
        %v515 = vunpack.c.l.bf16 %v357
        %v516 = vunpack.c.h.bf16 %v357
        %v517 = vunpack.c.l.bf16 %v358
        %v518 = vunpack.c.h.bf16 %v358
        %v519 = vunpack.c.l.bf16 %v359
        %v520 = vunpack.c.h.bf16 %v359
        %v521 = vunpack.c.l.bf16 %v360
        %v522 = vunpack.c.h.bf16 %v360
        %v523 = vunpack.c.l.bf16 %v361
        %v524 = vunpack.c.h.bf16 %v361
        %v525 = vunpack.c.l.bf16 %v362
        %v526 = vunpack.c.h.bf16 %v362
        %v527 = vunpack.c.l.bf16 %v363
        %v528 = vunpack.c.h.bf16 %v363
        %v529 = vunpack.c.l.bf16 %v364
        %v530 = vunpack.c.h.bf16 %v364
        %v531 = vunpack.c.l.bf16 %v365
        %v532 = vunpack.c.h.bf16 %v365
        %v533 = vunpack.c.l.bf16 %v366
        %v534 = vunpack.c.h.bf16 %v366
        %v535 = vunpack.c.l.bf16 %v367
        %v536 = vunpack.c.h.bf16 %v367
        %v537 = vunpack.c.l.bf16 %v368
        %v538 = vunpack.c.h.bf16 %v368
        %v539 = vunpack.c.l.bf16 %v369
        %v540 = vunpack.c.h.bf16 %v369
        %v541 = vunpack.c.l.bf16 %v370
        %v542 = vunpack.c.h.bf16 %v370
        %v543 = vunpack.c.l.bf16 %v371
        %v544 = vunpack.c.h.bf16 %v371
        %v545 = vunpack.c.l.bf16 %v372
        %v546 = vunpack.c.h.bf16 %v372
        %v547 = vunpack.c.l.bf16 %v373
        %v548 = vunpack.c.h.bf16 %v373
        %v549 = vunpack.c.l.bf16 %v374
        %v550 = vunpack.c.h.bf16 %v374
        %v551 = vunpack.c.l.bf16 %v375
        %v552 = vunpack.c.h.bf16 %v375
        %v553 = vunpack.c.l.bf16 %v376
        %v554 = vunpack.c.h.bf16 %v376
        %v555 = vunpack.c.l.bf16 %v377
        %v556 = vunpack.c.h.bf16 %v377
        %v557 = vunpack.c.l.bf16 %v378
        %v558 = vunpack.c.h.bf16 %v378
        %v559 = vunpack.c.l.bf16 %v379
        %v560 = vunpack.c.h.bf16 %v379
        %v561 = vunpack.c.l.bf16 %v380
        %v562 = vunpack.c.h.bf16 %v380
        %v563 = vunpack.c.l.bf16 %v381
        %v564 = vunpack.c.h.bf16 %v381
        %v565 = vunpack.c.l.bf16 %v382
        %v566 = vunpack.c.h.bf16 %v382
        %v567 = vunpack.c.l.bf16 %v383
        %v568 = vunpack.c.h.bf16 %v383
        %v569 = vunpack.c.l.bf16 %v384
        %v570 = vunpack.c.h.bf16 %v384
        %v571 = vunpack.c.l.bf16 %v385
        %v572 = vunpack.c.h.bf16 %v385
        %v573 = vunpack.c.l.bf16 %v386
        %v574 = vunpack.c.h.bf16 %v386
        %v575 = vunpack.c.l.bf16 %v387
        %v576 = vunpack.c.h.bf16 %v387
        %v577 = vunpack.c.l.bf16 %v388
        %v578 = vunpack.c.h.bf16 %v388
        %v579 = vunpack.c.l.bf16 %v389
        %v580 = vunpack.c.h.bf16 %v389
        %v581 = vunpack.c.l.bf16 %v390
        %v582 = vunpack.c.h.bf16 %v390
        %v583 = vunpack.c.l.bf16 %v391
        %v584 = vunpack.c.h.bf16 %v391
        %v585 = vunpack.c.l.bf16 %v392
        %v586 = vunpack.c.h.bf16 %v392
        %v587 = vunpack.c.l.bf16 %v393
        %v588 = vunpack.c.h.bf16 %v393
        %v589 = vunpack.c.l.bf16 %v394
        %v590 = vunpack.c.h.bf16 %v394
        %v591 = vunpack.c.l.bf16 %v395
        %v592 = vunpack.c.h.bf16 %v395
        %v593 = vunpack.c.l.bf16 %v396
        %v594 = vunpack.c.h.bf16 %v396
        %v595 = vunpack.c.l.bf16 %v397
        %v596 = vunpack.c.h.bf16 %v397
        %v597 = vunpack.c.l.bf16 %v398
        %v598 = vunpack.c.h.bf16 %v398
        %v599 = vunpack.c.l.bf16 %v399
        %v600 = vunpack.c.h.bf16 %v399
        %v601 = vunpack.c.l.bf16 %v400
        %v602 = vunpack.c.h.bf16 %v400
        %v603 = vunpack.c.l.bf16 %v401
        %v604 = vunpack.c.h.bf16 %v401
        %v605 = vunpack.c.l.bf16 %v402
        %v606 = vunpack.c.h.bf16 %v402
        %v607 = vunpack.c.l.bf16 %v403
        %v608 = vunpack.c.h.bf16 %v403
        %v609 = vunpack.c.l.bf16 %v404
        %v610 = vunpack.c.h.bf16 %v404
        %v611 = vunpack.c.l.bf16 %v405
        %v612 = vunpack.c.h.bf16 %v405
        %v613 = vunpack.c.l.bf16 %v406
        %v614 = vunpack.c.h.bf16 %v406
        %v615 = vunpack.c.l.bf16 %v407
        %v616 = vunpack.c.h.bf16 %v407
        %v617 = vunpack.c.l.bf16 %v408
        %v618 = vunpack.c.h.bf16 %v408
        %v619 = vunpack.c.l.bf16 %v409
        %v620 = vunpack.c.h.bf16 %v409
        %v621 = vunpack.c.l.bf16 %v410
        %v622 = vunpack.c.h.bf16 %v410
        %v623 = vunpack.c.l.bf16 %v411
        %v624 = vunpack.c.h.bf16 %v411
        %v625 = vunpack.c.l.bf16 %v412
        %v626 = vunpack.c.h.bf16 %v412
        %v627 = vunpack.c.l.bf16 %v413
        %v628 = vunpack.c.h.bf16 %v413
        %v629 = vunpack.c.l.bf16 %v414
        %v630 = vunpack.c.h.bf16 %v414
        %v631 = vunpack.c.l.bf16 %v415
        %v632 = vunpack.c.h.bf16 %v415
        %v633 = vunpack.c.l.bf16 %v416
        %v634 = vunpack.c.h.bf16 %v416
        %v635 = vunpack.c.l.bf16 %v417
        %v636 = vunpack.c.h.bf16 %v417
        %v637 = vunpack.c.l.bf16 %v418
        %v638 = vunpack.c.h.bf16 %v418
        %v639 = vunpack.c.l.bf16 %v419
        %v640 = vunpack.c.h.bf16 %v419
        %v641 = vunpack.c.l.bf16 %v420
        %v642 = vunpack.c.h.bf16 %v420
        %v643 = vunpack.c.l.bf16 %v421
        %v644 = vunpack.c.h.bf16 %v421
        %v645 = vunpack.c.l.bf16 %v422
        %v646 = vunpack.c.h.bf16 %v422
        %v647 = vunpack.c.l.bf16 %v423
        %v648 = vunpack.c.h.bf16 %v423
        %v649 = vunpack.c.l.bf16 %v424
        %v650 = vunpack.c.h.bf16 %v424
        %v651 = vunpack.c.l.bf16 %v425
        %v652 = vunpack.c.h.bf16 %v425
        %v653 = vunpack.c.l.bf16 %v426
        %v654 = vunpack.c.h.bf16 %v426
        %v655 = vunpack.c.l.bf16 %v427
        %v656 = vunpack.c.h.bf16 %v427
        %v657 = vunpack.c.l.bf16 %v428
        %v658 = vunpack.c.h.bf16 %v428
        %v659 = vunpack.c.l.bf16 %v429
        %v660 = vunpack.c.h.bf16 %v429
        %v661 = vunpack.c.l.bf16 %v430
        %v662 = vunpack.c.h.bf16 %v430
        %v663 = vunpack.c.l.bf16 %v431
        %v664 = vunpack.c.h.bf16 %v431
        %v665 = vunpack.c.l.bf16 %v432
        %v666 = vunpack.c.h.bf16 %v432
        %v667 = vunpack.c.l.bf16 %v433
        %v668 = vunpack.c.h.bf16 %v433
        %v669 = vunpack.c.l.bf16 %v434
        %v670 = vunpack.c.h.bf16 %v434
        %v671 = vunpack.c.l.bf16 %v435
        %v672 = vunpack.c.h.bf16 %v435
        %v673 = vunpack.c.l.bf16 %v436
        %v674 = vunpack.c.h.bf16 %v436
        %v675 = vunpack.c.l.bf16 %v437
        %v676 = vunpack.c.h.bf16 %v437
        %v677 = vunpack.c.l.bf16 %v438
        %v678 = vunpack.c.h.bf16 %v438
        %v679 = vunpack.c.l.bf16 %v439
        %v680 = vunpack.c.h.bf16 %v439
        %v681 = vunpack.c.l.bf16 %v440
        %v682 = vunpack.c.h.bf16 %v440
        %v683 = vunpack.c.l.bf16 %v441
        %v684 = vunpack.c.h.bf16 %v441
        %v685 = vunpack.c.l.bf16 %v442
        %v686 = vunpack.c.h.bf16 %v442
        %v687 = vunpack.c.l.bf16 %v443
        %v688 = vunpack.c.h.bf16 %v443
        %v689 = vunpack.c.l.bf16 %v444
        %v690 = vunpack.c.h.bf16 %v444
        %v691 = vunpack.c.l.bf16 %v445
        %v692 = vunpack.c.h.bf16 %v445
        %v693 = vunpack.c.l.bf16 %v446
        %v694 = vunpack.c.h.bf16 %v446
        %v695 = vunpack.c.l.bf16 %v447
        %v696 = vunpack.c.h.bf16 %v447
        %v697 = vunpack.c.l.bf16 %v448
        %v698 = vunpack.c.h.bf16 %v448
        %v699 = vunpack.c.l.bf16 %v449
        %v700 = vunpack.c.h.bf16 %v449
        %v701 = vunpack.c.l.bf16 %v450
        %v702 = vunpack.c.h.bf16 %v450
        %v703 = vunpack.c.l.bf16 %v451
        %v704 = vunpack.c.h.bf16 %v451
        %v705 = vunpack.c.l.bf16 %v452
        %v706 = vunpack.c.h.bf16 %v452
        %v707 = vunpack.c.l.bf16 %v453
        %v708 = vunpack.c.h.bf16 %v453
        %v709 = vunpack.c.l.bf16 %v454
        %v710 = vunpack.c.h.bf16 %v454
        %v711 = vsub.f32 %v455, %v583
        %v712 = vsub.f32 %v456, %v584
        %v713 = vsub.f32 %v457, %v585
        %v714 = vsub.f32 %v458, %v586
        %v715 = vsub.f32 %v459, %v587
        %v716 = vsub.f32 %v460, %v588
        %v717 = vsub.f32 %v461, %v589
        %v718 = vsub.f32 %v462, %v590
        %v719 = vsub.f32 %v463, %v591
        %v720 = vsub.f32 %v464, %v592
        %v721 = vsub.f32 %v465, %v593
        %v722 = vsub.f32 %v466, %v594
        %v723 = vsub.f32 %v467, %v595
        %v724 = vsub.f32 %v468, %v596
        %v725 = vsub.f32 %v469, %v597
        %v726 = vsub.f32 %v470, %v598
        %v727 = vsub.f32 %v471, %v599
        %v728 = vsub.f32 %v472, %v600
        %v729 = vsub.f32 %v473, %v601
        %v730 = vsub.f32 %v474, %v602
        %v731 = vsub.f32 %v475, %v603
        %v732 = vsub.f32 %v476, %v604
        %v733 = vsub.f32 %v477, %v605
        %v734 = vsub.f32 %v478, %v606
        %v735 = vsub.f32 %v479, %v607
        %v736 = vsub.f32 %v480, %v608
        %v737 = vsub.f32 %v481, %v609
        %v738 = vsub.f32 %v482, %v610
        %v739 = vsub.f32 %v483, %v611
        %v740 = vsub.f32 %v484, %v612
        %v741 = vsub.f32 %v485, %v613
        %v742 = vsub.f32 %v486, %v614
        %v743 = vsub.f32 %v487, %v615
        %v744 = vsub.f32 %v488, %v616
        %v745 = vsub.f32 %v489, %v617
        %v746 = vsub.f32 %v490, %v618
        %v747 = vsub.f32 %v491, %v619
        %v748 = vsub.f32 %v492, %v620
        %v749 = vsub.f32 %v493, %v621
        %v750 = vsub.f32 %v494, %v622
        %v751 = vsub.f32 %v495, %v623
        %v752 = vsub.f32 %v496, %v624
        %v753 = vsub.f32 %v497, %v625
        %v754 = vsub.f32 %v498, %v626
        %v755 = vsub.f32 %v499, %v627
        %v756 = vsub.f32 %v500, %v628
        %v757 = vsub.f32 %v501, %v629
        %v758 = vsub.f32 %v502, %v630
        %v759 = vsub.f32 %v503, %v631
        %v760 = vsub.f32 %v504, %v632
        %v761 = vsub.f32 %v505, %v633
        %v762 = vsub.f32 %v506, %v634
        %v763 = vsub.f32 %v507, %v635
        %v764 = vsub.f32 %v508, %v636
        %v765 = vsub.f32 %v509, %v637
        %v766 = vsub.f32 %v510, %v638
        %v767 = vsub.f32 %v511, %v639
        %v768 = vsub.f32 %v512, %v640
        %v769 = vsub.f32 %v513, %v641
        %v770 = vsub.f32 %v514, %v642
        %v771 = vsub.f32 %v515, %v643
        %v772 = vsub.f32 %v516, %v644
        %v773 = vsub.f32 %v517, %v645
        %v774 = vsub.f32 %v518, %v646
        %v775 = vsub.f32 %v519, %v647
        %v776 = vsub.f32 %v520, %v648
        %v777 = vsub.f32 %v521, %v649
        %v778 = vsub.f32 %v522, %v650
        %v779 = vsub.f32 %v523, %v651
        %v780 = vsub.f32 %v524, %v652
        %v781 = vsub.f32 %v525, %v653
        %v782 = vsub.f32 %v526, %v654
        %v783 = vsub.f32 %v527, %v655
        %v784 = vsub.f32 %v528, %v656
        %v785 = vsub.f32 %v529, %v657
        %v786 = vsub.f32 %v530, %v658
        %v787 = vsub.f32 %v531, %v659
        %v788 = vsub.f32 %v532, %v660
        %v789 = vsub.f32 %v533, %v661
        %v790 = vsub.f32 %v534, %v662
        %v791 = vsub.f32 %v535, %v663
        %v792 = vsub.f32 %v536, %v664
        %v793 = vsub.f32 %v537, %v665
        %v794 = vsub.f32 %v538, %v666
        %v795 = vsub.f32 %v539, %v667
        %v796 = vsub.f32 %v540, %v668
        %v797 = vsub.f32 %v541, %v669
        %v798 = vsub.f32 %v542, %v670
        %v799 = vsub.f32 %v543, %v671
        %v800 = vsub.f32 %v544, %v672
        %v801 = vsub.f32 %v545, %v673
        %v802 = vsub.f32 %v546, %v674
        %v803 = vsub.f32 %v547, %v675
        %v804 = vsub.f32 %v548, %v676
        %v805 = vsub.f32 %v549, %v677
        %v806 = vsub.f32 %v550, %v678
        %v807 = vsub.f32 %v551, %v679
        %v808 = vsub.f32 %v552, %v680
        %v809 = vsub.f32 %v553, %v681
        %v810 = vsub.f32 %v554, %v682
        %v811 = vsub.f32 %v555, %v683
        %v812 = vsub.f32 %v556, %v684
        %v813 = vsub.f32 %v557, %v685
        %v814 = vsub.f32 %v558, %v686
        %v815 = vsub.f32 %v559, %v687
        %v816 = vsub.f32 %v560, %v688
        %v817 = vsub.f32 %v561, %v689
        %v818 = vsub.f32 %v562, %v690
        %v819 = vsub.f32 %v563, %v691
        %v820 = vsub.f32 %v564, %v692
        %v821 = vsub.f32 %v565, %v693
        %v822 = vsub.f32 %v566, %v694
        %v823 = vsub.f32 %v567, %v695
        %v824 = vsub.f32 %v568, %v696
        %v825 = vsub.f32 %v569, %v697
        %v826 = vsub.f32 %v570, %v698
        %v827 = vsub.f32 %v571, %v699
        %v828 = vsub.f32 %v572, %v700
        %v829 = vsub.f32 %v573, %v701
        %v830 = vsub.f32 %v574, %v702
        %v831 = vsub.f32 %v575, %v703
        %v832 = vsub.f32 %v576, %v704
        %v833 = vsub.f32 %v577, %v705
        %v834 = vsub.f32 %v578, %v706
        %v835 = vsub.f32 %v579, %v707
        %v836 = vsub.f32 %v580, %v708
        %v837 = vsub.f32 %v581, %v709
        %v838 = vsub.f32 %v582, %v710
        %v839 = vpack.c.bf16 %v712, %v711
        %v840 = vpack.c.bf16 %v714, %v713
        %v841 = vpack.c.bf16 %v716, %v715
        %v842 = vpack.c.bf16 %v718, %v717
        %v843 = vpack.c.bf16 %v720, %v719
        %v844 = vpack.c.bf16 %v722, %v721
        %v845 = vpack.c.bf16 %v724, %v723
        %v846 = vpack.c.bf16 %v726, %v725
        %v847 = vpack.c.bf16 %v728, %v727
        %v848 = vpack.c.bf16 %v730, %v729
        %v849 = vpack.c.bf16 %v732, %v731
        %v850 = vpack.c.bf16 %v734, %v733
        %v851 = vpack.c.bf16 %v736, %v735
        %v852 = vpack.c.bf16 %v738, %v737
        %v853 = vpack.c.bf16 %v740, %v739
        %v854 = vpack.c.bf16 %v742, %v741
        %v855 = vpack.c.bf16 %v744, %v743
        %v856 = vpack.c.bf16 %v746, %v745
        %v857 = vpack.c.bf16 %v748, %v747
        %v858 = vpack.c.bf16 %v750, %v749
        %v859 = vpack.c.bf16 %v752, %v751
        %v860 = vpack.c.bf16 %v754, %v753
        %v861 = vpack.c.bf16 %v756, %v755
        %v862 = vpack.c.bf16 %v758, %v757
        %v863 = vpack.c.bf16 %v760, %v759
        %v864 = vpack.c.bf16 %v762, %v761
        %v865 = vpack.c.bf16 %v764, %v763
        %v866 = vpack.c.bf16 %v766, %v765
        %v867 = vpack.c.bf16 %v768, %v767
        %v868 = vpack.c.bf16 %v770, %v769
        %v869 = vpack.c.bf16 %v772, %v771
        %v870 = vpack.c.bf16 %v774, %v773
        %v871 = vpack.c.bf16 %v776, %v775
        %v872 = vpack.c.bf16 %v778, %v777
        %v873 = vpack.c.bf16 %v780, %v779
        %v874 = vpack.c.bf16 %v782, %v781
        %v875 = vpack.c.bf16 %v784, %v783
        %v876 = vpack.c.bf16 %v786, %v785
        %v877 = vpack.c.bf16 %v788, %v787
        %v878 = vpack.c.bf16 %v790, %v789
        %v879 = vpack.c.bf16 %v792, %v791
        %v880 = vpack.c.bf16 %v794, %v793
        %v881 = vpack.c.bf16 %v796, %v795
        %v882 = vpack.c.bf16 %v798, %v797
        %v883 = vpack.c.bf16 %v800, %v799
        %v884 = vpack.c.bf16 %v802, %v801
        %v885 = vpack.c.bf16 %v804, %v803
        %v886 = vpack.c.bf16 %v806, %v805
        %v887 = vpack.c.bf16 %v808, %v807
        %v888 = vpack.c.bf16 %v810, %v809
        %v889 = vpack.c.bf16 %v812, %v811
        %v890 = vpack.c.bf16 %v814, %v813
        %v891 = vpack.c.bf16 %v816, %v815
        %v892 = vpack.c.bf16 %v818, %v817
        %v893 = vpack.c.bf16 %v820, %v819
        %v894 = vpack.c.bf16 %v822, %v821
        %v895 = vpack.c.bf16 %v824, %v823
        %v896 = vpack.c.bf16 %v826, %v825
        %v897 = vpack.c.bf16 %v828, %v827
        %v898 = vpack.c.bf16 %v830, %v829
        %v899 = vpack.c.bf16 %v832, %v831
        %v900 = vpack.c.bf16 %v834, %v833
        %v901 = vpack.c.bf16 %v836, %v835
        %v902 = vpack.c.bf16 %v838, %v837
        %v903 = vand.u32 2147450879, %v839
        %v904 = vand.u32 2147450879, %v840
        %v905 = vand.u32 2147450879, %v841
        %v906 = vand.u32 2147450879, %v842
        %v907 = vand.u32 2147450879, %v843
        %v908 = vand.u32 2147450879, %v844
        %v909 = vand.u32 2147450879, %v845
        %v910 = vand.u32 2147450879, %v846
        %v911 = vand.u32 2147450879, %v847
        %v912 = vand.u32 2147450879, %v848
        %v913 = vand.u32 2147450879, %v849
        %v914 = vand.u32 2147450879, %v850
        %v915 = vand.u32 2147450879, %v851
        %v916 = vand.u32 2147450879, %v852
        %v917 = vand.u32 2147450879, %v853
        %v918 = vand.u32 2147450879, %v854
        %v919 = vand.u32 2147450879, %v855
        %v920 = vand.u32 2147450879, %v856
        %v921 = vand.u32 2147450879, %v857
        %v922 = vand.u32 2147450879, %v858
        %v923 = vand.u32 2147450879, %v859
        %v924 = vand.u32 2147450879, %v860
        %v925 = vand.u32 2147450879, %v861
        %v926 = vand.u32 2147450879, %v862
        %v927 = vand.u32 2147450879, %v863
        %v928 = vand.u32 2147450879, %v864
        %v929 = vand.u32 2147450879, %v865
        %v930 = vand.u32 2147450879, %v866
        %v931 = vand.u32 2147450879, %v867
        %v932 = vand.u32 2147450879, %v868
        %v933 = vand.u32 2147450879, %v869
        %v934 = vand.u32 2147450879, %v870
        %v935 = vand.u32 2147450879, %v871
        %v936 = vand.u32 2147450879, %v872
        %v937 = vand.u32 2147450879, %v873
        %v938 = vand.u32 2147450879, %v874
        %v939 = vand.u32 2147450879, %v875
        %v940 = vand.u32 2147450879, %v876
        %v941 = vand.u32 2147450879, %v877
        %v942 = vand.u32 2147450879, %v878
        %v943 = vand.u32 2147450879, %v879
        %v944 = vand.u32 2147450879, %v880
        %v945 = vand.u32 2147450879, %v881
        %v946 = vand.u32 2147450879, %v882
        %v947 = vand.u32 2147450879, %v883
        %v948 = vand.u32 2147450879, %v884
        %v949 = vand.u32 2147450879, %v885
        %v950 = vand.u32 2147450879, %v886
        %v951 = vand.u32 2147450879, %v887
        %v952 = vand.u32 2147450879, %v888
        %v953 = vand.u32 2147450879, %v889
        %v954 = vand.u32 2147450879, %v890
        %v955 = vand.u32 2147450879, %v891
        %v956 = vand.u32 2147450879, %v892
        %v957 = vand.u32 2147450879, %v893
        %v958 = vand.u32 2147450879, %v894
        %v959 = vand.u32 2147450879, %v895
        %v960 = vand.u32 2147450879, %v896
        %v961 = vand.u32 2147450879, %v897
        %v962 = vand.u32 2147450879, %v898
        %v963 = vand.u32 2147450879, %v899
        %v964 = vand.u32 2147450879, %v900
        %v965 = vand.u32 2147450879, %v901
        %v966 = vand.u32 2147450879, %v902
        %v967 = vld [vmem:[%s2] sm:$0xff]
        %v968 = vld [vmem:[%s2 + $0x8] sm:$0xff]
        %v969 = vld [vmem:[%s2 + $0x10] sm:$0xf]
        %v970 = vld [vmem:[%s2 + $0x14] sm:$0xff]
        %v971 = vld [vmem:[%s2 + $0x1c] sm:$0xff]
        %v972 = vld [vmem:[%s2 + $0x24] sm:$0xf]
        %v973 = vld [vmem:[%s2 + $0x28] sm:$0xff]
        %v974 = vld [vmem:[%s2 + $0x30] sm:$0xff]
        %v975 = vld [vmem:[%s2 + $0x38] sm:$0xf]
        %v976 = vld [vmem:[%s2 + $0x3c] sm:$0xff]
        %v977 = vld [vmem:[%s2 + $0x44] sm:$0xff]
        %v978 = vld [vmem:[%s2 + $0x4c] sm:$0xf]
        %v979 = vld [vmem:[%s2 + $0x50] sm:$0xff]
        %v980 = vld [vmem:[%s2 + $0x58] sm:$0xff]
        %v981 = vld [vmem:[%s2 + $0x60] sm:$0xf]
        %v982 = vld [vmem:[%s2 + $0x64] sm:$0xff]
        %v983 = vld [vmem:[%s2 + $0x6c] sm:$0xff]
        %v984 = vld [vmem:[%s2 + $0x74] sm:$0xf]
        %v985 = vld [vmem:[%s2 + $0x78] sm:$0xff]
        %v986 = vld [vmem:[%s2 + $0x80] sm:$0xff]
        %v987 = vld [vmem:[%s2 + $0x88] sm:$0xf]
        %v988 = vld [vmem:[%s2 + $0x8c] sm:$0xff]
        %v989 = vld [vmem:[%s2 + $0x94] sm:$0xff]
        %v990 = vld [vmem:[%s2 + $0x9c] sm:$0xf]
        %v991 = vld [vmem:[%s2 + $0xa0] sm:$0xff]
        %v992 = vld [vmem:[%s2 + $0xa8] sm:$0xff]
        %v993 = vld [vmem:[%s2 + $0xb0] sm:$0xf]
        %v994 = vld [vmem:[%s2 + $0xb4] sm:$0xff]
        %v995 = vld [vmem:[%s2 + $0xbc] sm:$0xff]
        %v996 = vld [vmem:[%s2 + $0xc4] sm:$0xf]
        %v997 = vld [vmem:[%s2 + $0xc8] sm:$0xff]
        %v998 = vld [vmem:[%s2 + $0xd0] sm:$0xff]
        %v999 = vld [vmem:[%s2 + $0xd8] sm:$0xf]
        %v1000 = vld [vmem:[%s2 + $0xdc] sm:$0xff]
        %v1001 = vld [vmem:[%s2 + $0xe4] sm:$0xff]
        %v1002 = vld [vmem:[%s2 + $0xec] sm:$0xf]
        %v1003 = vld [vmem:[%s2 + $0xf0] sm:$0xff]
        %v1004 = vld [vmem:[%s2 + $0xf8] sm:$0xff]
        %v1005 = vld [vmem:[%s2 + $0x100] sm:$0xf]
        %v1006 = vld [vmem:[%s2 + $0x104] sm:$0xff]
        %v1007 = vld [vmem:[%s2 + $0x10c] sm:$0xff]
        %v1008 = vld [vmem:[%s2 + $0x114] sm:$0xf]
        %v1009 = vld [vmem:[%s2 + $0x118] sm:$0xff]
        %v1010 = vld [vmem:[%s2 + $0x120] sm:$0xff]
        %v1011 = vld [vmem:[%s2 + $0x128] sm:$0xf]
        %v1012 = vld [vmem:[%s2 + $0x12c] sm:$0xff]
        %v1013 = vld [vmem:[%s2 + $0x134] sm:$0xff]
        %v1014 = vld [vmem:[%s2 + $0x13c] sm:$0xf]
        %v1015 = vld [vmem:[%s2 + $0x140] sm:$0xff]
        %v1016 = vld [vmem:[%s2 + $0x148] sm:$0xff]
        %v1017 = vld [vmem:[%s2 + $0x150] sm:$0xf]
        %v1018 = vld [vmem:[%s2 + $0x154] sm:$0xff]
        %v1019 = vld [vmem:[%s2 + $0x15c] sm:$0xff]
        %v1020 = vld [vmem:[%s2 + $0x164] sm:$0xf]
        %v1021 = vld [vmem:[%s2 + $0x168] sm:$0xff]
        %v1022 = vld [vmem:[%s2 + $0x170] sm:$0xff]
        %v1023 = vld [vmem:[%s2 + $0x178] sm:$0xf]
        %v1024 = vld [vmem:[%s2 + $0x17c] sm:$0xff]
        %v1025 = vld [vmem:[%s2 + $0x184] sm:$0xff]
        %v1026 = vld [vmem:[%s2 + $0x18c] sm:$0xf]
        %v1027 = vld [vmem:[%s2 + $0x190] sm:$0xff]
        %v1028 = vld [vmem:[%s2 + $0x198] sm:$0xff]
        %v1029 = vld [vmem:[%s2 + $0x1a0] sm:$0xf]
        %v1030 = vld [vmem:[%s2 + $0x1a4] sm:$0xff]
        %v1031 = vld [vmem:[%s2 + $0x1ac] sm:$0xff]
        %v1032 = vld [vmem:[%s2 + $0x1b4] sm:$0xf]
        %v1033 = vld [vmem:[%s2 + $0x1b8] sm:$0xff]
        %v1034 = vld [vmem:[%s2 + $0x1c0] sm:$0xff]
        %v1035 = vld [vmem:[%s2 + $0x1c8] sm:$0xf]
        %v1036 = vld [vmem:[%s2 + $0x1cc] sm:$0xff]
        %v1037 = vld [vmem:[%s2 + $0x1d4] sm:$0xff]
        %v1038 = vld [vmem:[%s2 + $0x1dc] sm:$0xf]
        %v1039 = vld [vmem:[%s2 + $0x1e0] sm:$0xff]
        %v1040 = vld [vmem:[%s2 + $0x1e8] sm:$0xff]
        %v1041 = vld [vmem:[%s2 + $0x1f0] sm:$0xf]
        %v1042 = vld [vmem:[%s2 + $0x1f4] sm:$0xff]
        %v1043 = vld [vmem:[%s2 + $0x1fc] sm:$0xff]
        %v1044 = vld [vmem:[%s2 + $0x204] sm:$0xf]
        %v1045 = vld [vmem:[%s2 + $0x208] sm:$0xff]
        %v1046 = vld [vmem:[%s2 + $0x210] sm:$0xff]
        %v1047 = vld [vmem:[%s2 + $0x218] sm:$0xf]
        %v1048 = vld [vmem:[%s2 + $0x21c] sm:$0xff]
        %v1049 = vld [vmem:[%s2 + $0x224] sm:$0xff]
        %v1050 = vld [vmem:[%s2 + $0x22c] sm:$0xf]
        %v1051 = vld [vmem:[%s2 + $0x230] sm:$0xff]
        %v1052 = vld [vmem:[%s2 + $0x238] sm:$0xff]
        %v1053 = vld [vmem:[%s2 + $0x240] sm:$0xf]
        %v1054 = vld [vmem:[%s2 + $0x244] sm:$0xff]
        %v1055 = vld [vmem:[%s2 + $0x24c] sm:$0xff]
        %v1056 = vld [vmem:[%s2 + $0x254] sm:$0xf]
        %v1057 = vld [vmem:[%s2 + $0x258] sm:$0xff]
        %v1058 = vld [vmem:[%s2 + $0x260] sm:$0xff]
        %v1059 = vld [vmem:[%s2 + $0x268] sm:$0xf]
        %v1060 = vld [vmem:[%s2 + $0x26c] sm:$0xff]
        %v1061 = vld [vmem:[%s2 + $0x274] sm:$0xff]
        %v1062 = vld [vmem:[%s2 + $0x27c] sm:$0xf]
        %v1063 = vld [vmem:[%s2 + $0x280] sm:$0xff]
        %v1064 = vld [vmem:[%s2 + $0x288] sm:$0xff]
        %v1065 = vld [vmem:[%s2 + $0x290] sm:$0xf]
        %v1066 = vld [vmem:[%s2 + $0x294] sm:$0xff]
        %v1067 = vld [vmem:[%s2 + $0x29c] sm:$0xff]
        %v1068 = vld [vmem:[%s2 + $0x2a4] sm:$0xf]
        %v1069 = vld [vmem:[%s2 + $0x2a8] sm:$0xff]
        %v1070 = vld [vmem:[%s2 + $0x2b0] sm:$0xff]
        %v1071 = vld [vmem:[%s2 + $0x2b8] sm:$0xf]
        %v1072 = vld [vmem:[%s2 + $0x2bc] sm:$0xff]
        %v1073 = vld [vmem:[%s2 + $0x2c4] sm:$0xff]
        %v1074 = vld [vmem:[%s2 + $0x2cc] sm:$0xf]
        %v1075 = vld [vmem:[%s2 + $0x2d0] sm:$0xff]
        %v1076 = vld [vmem:[%s2 + $0x2d8] sm:$0xff]
        %v1077 = vld [vmem:[%s2 + $0x2e0] sm:$0xf]
        %v1078 = vld [vmem:[%s2 + $0x2e4] sm:$0xff]
        %v1079 = vld [vmem:[%s2 + $0x2ec] sm:$0xff]
        %v1080 = vld [vmem:[%s2 + $0x2f4] sm:$0xf]
        %v1081 = vld [vmem:[%s2 + $0x2f8] sm:$0xff]
        %v1082 = vld [vmem:[%s2 + $0x300] sm:$0xff]
        %v1083 = vld [vmem:[%s2 + $0x308] sm:$0xf]
        %v1084 = vld [vmem:[%s2 + $0x30c] sm:$0xff]
        %v1085 = vld [vmem:[%s2 + $0x314] sm:$0xff]
        %v1086 = vld [vmem:[%s2 + $0x31c] sm:$0xf]
        %v1087 = vld [vmem:[%s2 + $0x320] sm:$0xff]
        %v1088 = vld [vmem:[%s2 + $0x328] sm:$0xff]
        %v1089 = vld [vmem:[%s2 + $0x330] sm:$0xf]
        %v1090 = vld [vmem:[%s2 + $0x334] sm:$0xff]
        %v1091 = vld [vmem:[%s2 + $0x33c] sm:$0xff]
        %v1092 = vld [vmem:[%s2 + $0x344] sm:$0xf]
        %v1093 = vld [vmem:[%s2 + $0x348] sm:$0xff]
        %v1094 = vld [vmem:[%s2 + $0x350] sm:$0xff]
        %v1095 = vld [vmem:[%s2 + $0x358] sm:$0xf]
        %v1096 = vld [vmem:[%s2 + $0x35c] sm:$0xff]
        %v1097 = vld [vmem:[%s2 + $0x364] sm:$0xff]
        %v1098 = vld [vmem:[%s2 + $0x36c] sm:$0xf]
        %v1099 = vld [vmem:[%s2 + $0x370] sm:$0xff]
        %v1100 = vld [vmem:[%s2 + $0x378] sm:$0xff]
        %v1101 = vld [vmem:[%s2 + $0x380] sm:$0xf]
        %v1102 = vld [vmem:[%s2 + $0x384] sm:$0xff]
        %v1103 = vld [vmem:[%s2 + $0x38c] sm:$0xff]
        %v1104 = vld [vmem:[%s2 + $0x394] sm:$0xf]
        %v1105 = vld [vmem:[%s2 + $0x398] sm:$0xff]
        %v1106 = vld [vmem:[%s2 + $0x3a0] sm:$0xff]
        %v1107 = vld [vmem:[%s2 + $0x3a8] sm:$0xf]
        %v1108 = vld [vmem:[%s2 + $0x3ac] sm:$0xff]
        %v1109 = vld [vmem:[%s2 + $0x3b4] sm:$0xff]
        %v1110 = vld [vmem:[%s2 + $0x3bc] sm:$0xf]
        %v1111 = vld [vmem:[%s2 + $0x3c0] sm:$0xff]
        %v1112 = vld [vmem:[%s2 + $0x3c8] sm:$0xff]
        %v1113 = vld [vmem:[%s2 + $0x3d0] sm:$0xf]
        %v1114 = vld [vmem:[%s2 + $0x3d4] sm:$0xff]
        %v1115 = vld [vmem:[%s2 + $0x3dc] sm:$0xff]
        %v1116 = vld [vmem:[%s2 + $0x3e4] sm:$0xf]
        %v1117 = vld [vmem:[%s2 + $0x3e8] sm:$0xff]
        %v1118 = vld [vmem:[%s2 + $0x3f0] sm:$0xff]
        %v1119 = vld [vmem:[%s2 + $0x3f8] sm:$0xf]
        %v1120 = vld [vmem:[%s2 + $0x3fc] sm:$0xff]
        %v1121 = vld [vmem:[%s2 + $0x404] sm:$0xff]
        %v1122 = vld [vmem:[%s2 + $0x40c] sm:$0xf]
        %v1123 = vld [vmem:[%s2 + $0x410] sm:$0xff]
        %v1124 = vld [vmem:[%s2 + $0x418] sm:$0xff]
        %v1125 = vld [vmem:[%s2 + $0x420] sm:$0xf]
        %v1126 = vld [vmem:[%s2 + $0x424] sm:$0xff]
        %v1127 = vld [vmem:[%s2 + $0x42c] sm:$0xff]
        %v1128 = vld [vmem:[%s2 + $0x434] sm:$0xf]
        %v1129 = vld [vmem:[%s2 + $0x438] sm:$0xff]
        %v1130 = vld [vmem:[%s2 + $0x440] sm:$0xff]
        %v1131 = vld [vmem:[%s2 + $0x448] sm:$0xf]
        %v1132 = vld [vmem:[%s2 + $0x44c] sm:$0xff]
        %v1133 = vld [vmem:[%s2 + $0x454] sm:$0xff]
        %v1134 = vld [vmem:[%s2 + $0x45c] sm:$0xf]
        %v1135 = vld [vmem:[%s2 + $0x460] sm:$0xff]
        %v1136 = vld [vmem:[%s2 + $0x468] sm:$0xff]
        %v1137 = vld [vmem:[%s2 + $0x470] sm:$0xf]
        %v1138 = vld [vmem:[%s2 + $0x474] sm:$0xff]
        %v1139 = vld [vmem:[%s2 + $0x47c] sm:$0xff]
        %v1140 = vld [vmem:[%s2 + $0x484] sm:$0xf]
        %v1141 = vld [vmem:[%s2 + $0x488] sm:$0xff]
        %v1142 = vld [vmem:[%s2 + $0x490] sm:$0xff]
        %v1143 = vld [vmem:[%s2 + $0x498] sm:$0xf]
        %v1144 = vld [vmem:[%s2 + $0x49c] sm:$0xff]
        %v1145 = vld [vmem:[%s2 + $0x4a4] sm:$0xff]
        %v1146 = vld [vmem:[%s2 + $0x4ac] sm:$0xf]
        %v1147 = vld [vmem:[%s2 + $0x4b0] sm:$0xff]
        %v1148 = vld [vmem:[%s2 + $0x4b8] sm:$0xff]
        %v1149 = vld [vmem:[%s2 + $0x4c0] sm:$0xf]
        %v1150 = vld [vmem:[%s2 + $0x4c4] sm:$0xff]
        %v1151 = vld [vmem:[%s2 + $0x4cc] sm:$0xff]
        %v1152 = vld [vmem:[%s2 + $0x4d4] sm:$0xf]
        %v1153 = vld [vmem:[%s2 + $0x4d8] sm:$0xff]
        %v1154 = vld [vmem:[%s2 + $0x4e0] sm:$0xff]
        %v1155 = vld [vmem:[%s2 + $0x4e8] sm:$0xf]
        %v1156 = vld [vmem:[%s2 + $0x4ec] sm:$0xff]
        %v1157 = vld [vmem:[%s2 + $0x4f4] sm:$0xff]
        %v1158 = vld [vmem:[%s2 + $0x4fc] sm:$0xf]
        %v1223 = vunpack.c.l.b16 %v903
        %v1224 = vunpack.c.h.b16 %v903
        %v1225 = vunpack.c.l.b16 %v904
        %v1226 = vunpack.c.h.b16 %v904
        %v1227 = vunpack.c.l.b16 %v905
        %v1228 = vunpack.c.h.b16 %v905
        %v1229 = vunpack.c.l.b16 %v906
        %v1230 = vunpack.c.h.b16 %v906
        %v1231 = vunpack.c.l.b16 %v907
        %v1232 = vunpack.c.h.b16 %v907
        %v1233 = vunpack.c.l.b16 %v908
        %v1234 = vunpack.c.h.b16 %v908
        %v1235 = vunpack.c.l.b16 %v909
        %v1236 = vunpack.c.h.b16 %v909
        %v1237 = vunpack.c.l.b16 %v910
        %v1238 = vunpack.c.h.b16 %v910
        %v1239 = vunpack.c.l.b16 %v911
        %v1240 = vunpack.c.h.b16 %v911
        %v1241 = vunpack.c.l.b16 %v912
        %v1242 = vunpack.c.h.b16 %v912
        %v1243 = vunpack.c.l.b16 %v913
        %v1244 = vunpack.c.h.b16 %v913
        %v1245 = vunpack.c.l.b16 %v914
        %v1246 = vunpack.c.h.b16 %v914
        %v1247 = vunpack.c.l.b16 %v915
        %v1248 = vunpack.c.h.b16 %v915
        %v1249 = vunpack.c.l.b16 %v916
        %v1250 = vunpack.c.h.b16 %v916
        %v1251 = vunpack.c.l.b16 %v917
        %v1252 = vunpack.c.h.b16 %v917
        %v1253 = vunpack.c.l.b16 %v918
        %v1254 = vunpack.c.h.b16 %v918
        %v1255 = vunpack.c.l.b16 %v919
        %v1256 = vunpack.c.h.b16 %v919
        %v1257 = vunpack.c.l.b16 %v920
        %v1258 = vunpack.c.h.b16 %v920
        %v1259 = vunpack.c.l.b16 %v921
        %v1260 = vunpack.c.h.b16 %v921
        %v1261 = vunpack.c.l.b16 %v922
        %v1262 = vunpack.c.h.b16 %v922
        %v1263 = vunpack.c.l.b16 %v923
        %v1264 = vunpack.c.h.b16 %v923
        %v1265 = vunpack.c.l.b16 %v924
        %v1266 = vunpack.c.h.b16 %v924
        %v1267 = vunpack.c.l.b16 %v925
        %v1268 = vunpack.c.h.b16 %v925
        %v1269 = vunpack.c.l.b16 %v926
        %v1270 = vunpack.c.h.b16 %v926
        %v1271 = vunpack.c.l.b16 %v927
        %v1272 = vunpack.c.h.b16 %v927
        %v1273 = vunpack.c.l.b16 %v928
        %v1274 = vunpack.c.h.b16 %v928
        %v1275 = vunpack.c.l.b16 %v929
        %v1276 = vunpack.c.h.b16 %v929
        %v1277 = vunpack.c.l.b16 %v930
        %v1278 = vunpack.c.h.b16 %v930
        %v1279 = vunpack.c.l.b16 %v931
        %v1280 = vunpack.c.h.b16 %v931
        %v1281 = vunpack.c.l.b16 %v932
        %v1282 = vunpack.c.h.b16 %v932
        %v1283 = vunpack.c.l.b16 %v933
        %v1284 = vunpack.c.h.b16 %v933
        %v1285 = vunpack.c.l.b16 %v934
        %v1286 = vunpack.c.h.b16 %v934
        %v1287 = vunpack.c.l.b16 %v935
        %v1288 = vunpack.c.h.b16 %v935
        %v1289 = vunpack.c.l.b16 %v936
        %v1290 = vunpack.c.h.b16 %v936
        %v1291 = vunpack.c.l.b16 %v937
        %v1292 = vunpack.c.h.b16 %v937
        %v1293 = vunpack.c.l.b16 %v938
        %v1294 = vunpack.c.h.b16 %v938
        %v1295 = vunpack.c.l.b16 %v939
        %v1296 = vunpack.c.h.b16 %v939
        %v1297 = vunpack.c.l.b16 %v940
        %v1298 = vunpack.c.h.b16 %v940
        %v1299 = vunpack.c.l.b16 %v941
        %v1300 = vunpack.c.h.b16 %v941
        %v1301 = vunpack.c.l.b16 %v942
        %v1302 = vunpack.c.h.b16 %v942
        %v1303 = vunpack.c.l.b16 %v943
        %v1304 = vunpack.c.h.b16 %v943
        %v1305 = vunpack.c.l.b16 %v944
        %v1306 = vunpack.c.h.b16 %v944
        %v1307 = vunpack.c.l.b16 %v945
        %v1308 = vunpack.c.h.b16 %v945
        %v1309 = vunpack.c.l.b16 %v946
        %v1310 = vunpack.c.h.b16 %v946
        %v1311 = vunpack.c.l.b16 %v947
        %v1312 = vunpack.c.h.b16 %v947
        %v1313 = vunpack.c.l.b16 %v948
        %v1314 = vunpack.c.h.b16 %v948
        %v1315 = vunpack.c.l.b16 %v949
        %v1316 = vunpack.c.h.b16 %v949
        %v1317 = vunpack.c.l.b16 %v950
        %v1318 = vunpack.c.h.b16 %v950
        %v1319 = vunpack.c.l.b16 %v951
        %v1320 = vunpack.c.h.b16 %v951
        %v1321 = vunpack.c.l.b16 %v952
        %v1322 = vunpack.c.h.b16 %v952
        %v1323 = vunpack.c.l.b16 %v953
        %v1324 = vunpack.c.h.b16 %v953
        %v1325 = vunpack.c.l.b16 %v954
        %v1326 = vunpack.c.h.b16 %v954
        %v1327 = vunpack.c.l.b16 %v955
        %v1328 = vunpack.c.h.b16 %v955
        %v1329 = vunpack.c.l.b16 %v956
        %v1330 = vunpack.c.h.b16 %v956
        %v1331 = vunpack.c.l.b16 %v957
        %v1332 = vunpack.c.h.b16 %v957
        %v1333 = vunpack.c.l.b16 %v958
        %v1334 = vunpack.c.h.b16 %v958
        %v1335 = vunpack.c.l.b16 %v959
        %v1336 = vunpack.c.h.b16 %v959
        %v1337 = vunpack.c.l.b16 %v960
        %v1338 = vunpack.c.h.b16 %v960
        %v1339 = vunpack.c.l.b16 %v961
        %v1340 = vunpack.c.h.b16 %v961
        %v1341 = vunpack.c.l.b16 %v962
        %v1342 = vunpack.c.h.b16 %v962
        %v1343 = vunpack.c.l.b16 %v963
        %v1344 = vunpack.c.h.b16 %v963
        %v1345 = vunpack.c.l.b16 %v964
        %v1346 = vunpack.c.h.b16 %v964
        %v1347 = vunpack.c.l.b16 %v965
        %v1348 = vunpack.c.h.b16 %v965
        %v1349 = vunpack.c.l.b16 %v966
        %v1350 = vunpack.c.h.b16 %v966
        %v1351 = vpack.c.b16 %v1227, %v1223
        %v1352 = vpack.c.b16 %v1228, %v1224
        %v1353 = vpack.c.b16 %v1229, %v1225
        %v1354 = vpack.c.b16 %v1230, %v1226
        %v1355 = vpack.c.b16 %v1235, %v1231
        %v1356 = vpack.c.b16 %v1236, %v1232
        %v1357 = vpack.c.b16 %v1237, %v1233
        %v1358 = vpack.c.b16 %v1238, %v1234
        %v1359 = vpack.c.b16 %v1243, %v1239
        %v1360 = vpack.c.b16 %v1244, %v1240
        %v1361 = vpack.c.b16 %v1245, %v1241
        %v1362 = vpack.c.b16 %v1246, %v1242
        %v1363 = vpack.c.b16 %v1251, %v1247
        %v1364 = vpack.c.b16 %v1252, %v1248
        %v1365 = vpack.c.b16 %v1253, %v1249
        %v1366 = vpack.c.b16 %v1254, %v1250
        %v1367 = vpack.c.b16 %v1259, %v1255
        %v1368 = vpack.c.b16 %v1260, %v1256
        %v1369 = vpack.c.b16 %v1261, %v1257
        %v1370 = vpack.c.b16 %v1262, %v1258
        %v1371 = vpack.c.b16 %v1267, %v1263
        %v1372 = vpack.c.b16 %v1268, %v1264
        %v1373 = vpack.c.b16 %v1269, %v1265
        %v1374 = vpack.c.b16 %v1270, %v1266
        %v1375 = vpack.c.b16 %v1275, %v1271
        %v1376 = vpack.c.b16 %v1276, %v1272
        %v1377 = vpack.c.b16 %v1277, %v1273
        %v1378 = vpack.c.b16 %v1278, %v1274
        %v1379 = vpack.c.b16 %v1283, %v1279
        %v1380 = vpack.c.b16 %v1284, %v1280
        %v1381 = vpack.c.b16 %v1285, %v1281
        %v1382 = vpack.c.b16 %v1286, %v1282
        %v1383 = vpack.c.b16 %v1291, %v1287
        %v1384 = vpack.c.b16 %v1292, %v1288
        %v1385 = vpack.c.b16 %v1293, %v1289
        %v1386 = vpack.c.b16 %v1294, %v1290
        %v1387 = vpack.c.b16 %v1299, %v1295
        %v1388 = vpack.c.b16 %v1300, %v1296
        %v1389 = vpack.c.b16 %v1301, %v1297
        %v1390 = vpack.c.b16 %v1302, %v1298
        %v1391 = vpack.c.b16 %v1307, %v1303
        %v1392 = vpack.c.b16 %v1308, %v1304
        %v1393 = vpack.c.b16 %v1309, %v1305
        %v1394 = vpack.c.b16 %v1310, %v1306
        %v1395 = vpack.c.b16 %v1315, %v1311
        %v1396 = vpack.c.b16 %v1316, %v1312
        %v1397 = vpack.c.b16 %v1317, %v1313
        %v1398 = vpack.c.b16 %v1318, %v1314
        %v1399 = vpack.c.b16 %v1323, %v1319
        %v1400 = vpack.c.b16 %v1324, %v1320
        %v1401 = vpack.c.b16 %v1325, %v1321
        %v1402 = vpack.c.b16 %v1326, %v1322
        %v1403 = vpack.c.b16 %v1331, %v1327
        %v1404 = vpack.c.b16 %v1332, %v1328
        %v1405 = vpack.c.b16 %v1333, %v1329
        %v1406 = vpack.c.b16 %v1334, %v1330
        %v1407 = vpack.c.b16 %v1339, %v1335
        %v1408 = vpack.c.b16 %v1340, %v1336
        %v1409 = vpack.c.b16 %v1341, %v1337
        %v1410 = vpack.c.b16 %v1342, %v1338
        %v1411 = vpack.c.b16 %v1347, %v1343
        %v1412 = vpack.c.b16 %v1348, %v1344
        %v1413 = vpack.c.b16 %v1349, %v1345
        %v1414 = vpack.c.b16 %v1350, %v1346
        %v1671 = vunpack.c.l.b16 %v967
        %v1672 = vunpack.c.h.b16 %v967
        %v1673 = vunpack.c.l.b16 %v968
        %v1674 = vunpack.c.h.b16 %v968
        %v1675 = vunpack.c.l.b16 %v969
        %v1676 = vunpack.c.l.b16 %v970
        %v1677 = vunpack.c.h.b16 %v970
        %v1678 = vunpack.c.l.b16 %v971
        %v1679 = vunpack.c.h.b16 %v971
        %v1680 = vunpack.c.l.b16 %v972
        %v1681 = vunpack.c.l.b16 %v973
        %v1682 = vunpack.c.h.b16 %v973
        %v1683 = vunpack.c.l.b16 %v974
        %v1684 = vunpack.c.h.b16 %v974
        %v1685 = vunpack.c.l.b16 %v975
        %v1686 = vunpack.c.l.b16 %v976
        %v1687 = vunpack.c.h.b16 %v976
        %v1688 = vunpack.c.l.b16 %v977
        %v1689 = vunpack.c.h.b16 %v977
        %v1690 = vunpack.c.l.b16 %v978
        %v1691 = vunpack.c.l.b16 %v979
        %v1692 = vunpack.c.h.b16 %v979
        %v1693 = vunpack.c.l.b16 %v980
        %v1694 = vunpack.c.h.b16 %v980
        %v1695 = vunpack.c.l.b16 %v981
        %v1696 = vunpack.c.l.b16 %v982
        %v1697 = vunpack.c.h.b16 %v982
        %v1698 = vunpack.c.l.b16 %v983
        %v1699 = vunpack.c.h.b16 %v983
        %v1700 = vunpack.c.l.b16 %v984
        %v1701 = vunpack.c.l.b16 %v985
        %v1702 = vunpack.c.h.b16 %v985
        %v1703 = vunpack.c.l.b16 %v986
        %v1704 = vunpack.c.h.b16 %v986
        %v1705 = vunpack.c.l.b16 %v987
        %v1706 = vunpack.c.l.b16 %v988
        %v1707 = vunpack.c.h.b16 %v988
        %v1708 = vunpack.c.l.b16 %v989
        %v1709 = vunpack.c.h.b16 %v989
        %v1710 = vunpack.c.l.b16 %v990
        %v1711 = vunpack.c.l.b16 %v991
        %v1712 = vunpack.c.h.b16 %v991
        %v1713 = vunpack.c.l.b16 %v992
        %v1714 = vunpack.c.h.b16 %v992
        %v1715 = vunpack.c.l.b16 %v993
        %v1716 = vunpack.c.l.b16 %v994
        %v1717 = vunpack.c.h.b16 %v994
        %v1718 = vunpack.c.l.b16 %v995
        %v1719 = vunpack.c.h.b16 %v995
        %v1720 = vunpack.c.l.b16 %v996
        %v1721 = vunpack.c.l.b16 %v997
        %v1722 = vunpack.c.h.b16 %v997
        %v1723 = vunpack.c.l.b16 %v998
        %v1724 = vunpack.c.h.b16 %v998
        %v1725 = vunpack.c.l.b16 %v999
        %v1726 = vunpack.c.l.b16 %v1000
        %v1727 = vunpack.c.h.b16 %v1000
        %v1728 = vunpack.c.l.b16 %v1001
        %v1729 = vunpack.c.h.b16 %v1001
        %v1730 = vunpack.c.l.b16 %v1002
        %v1731 = vunpack.c.l.b16 %v1003
        %v1732 = vunpack.c.h.b16 %v1003
        %v1733 = vunpack.c.l.b16 %v1004
        %v1734 = vunpack.c.h.b16 %v1004
        %v1735 = vunpack.c.l.b16 %v1005
        %v1736 = vunpack.c.l.b16 %v1006
        %v1737 = vunpack.c.h.b16 %v1006
        %v1738 = vunpack.c.l.b16 %v1007
        %v1739 = vunpack.c.h.b16 %v1007
        %v1740 = vunpack.c.l.b16 %v1008
        %v1741 = vunpack.c.l.b16 %v1009
        %v1742 = vunpack.c.h.b16 %v1009
        %v1743 = vunpack.c.l.b16 %v1010
        %v1744 = vunpack.c.h.b16 %v1010
        %v1745 = vunpack.c.l.b16 %v1011
        %v1746 = vunpack.c.l.b16 %v1012
        %v1747 = vunpack.c.h.b16 %v1012
        %v1748 = vunpack.c.l.b16 %v1013
        %v1749 = vunpack.c.h.b16 %v1013
        %v1750 = vunpack.c.l.b16 %v1014
        %v1751 = vunpack.c.l.b16 %v1015
        %v1752 = vunpack.c.h.b16 %v1015
        %v1753 = vunpack.c.l.b16 %v1016
        %v1754 = vunpack.c.h.b16 %v1016
        %v1755 = vunpack.c.l.b16 %v1017
        %v1756 = vunpack.c.l.b16 %v1018
        %v1757 = vunpack.c.h.b16 %v1018
        %v1758 = vunpack.c.l.b16 %v1019
        %v1759 = vunpack.c.h.b16 %v1019
        %v1760 = vunpack.c.l.b16 %v1020
        %v1761 = vunpack.c.l.b16 %v1021
        %v1762 = vunpack.c.h.b16 %v1021
        %v1763 = vunpack.c.l.b16 %v1022
        %v1764 = vunpack.c.h.b16 %v1022
        %v1765 = vunpack.c.l.b16 %v1023
        %v1766 = vunpack.c.l.b16 %v1024
        %v1767 = vunpack.c.h.b16 %v1024
        %v1768 = vunpack.c.l.b16 %v1025
        %v1769 = vunpack.c.h.b16 %v1025
        %v1770 = vunpack.c.l.b16 %v1026
        %v1771 = vunpack.c.l.b16 %v1027
        %v1772 = vunpack.c.h.b16 %v1027
        %v1773 = vunpack.c.l.b16 %v1028
        %v1774 = vunpack.c.h.b16 %v1028
        %v1775 = vunpack.c.l.b16 %v1029
        %v1776 = vunpack.c.l.b16 %v1030
        %v1777 = vunpack.c.h.b16 %v1030
        %v1778 = vunpack.c.l.b16 %v1031
        %v1779 = vunpack.c.h.b16 %v1031
        %v1780 = vunpack.c.l.b16 %v1032
        %v1781 = vunpack.c.l.b16 %v1033
        %v1782 = vunpack.c.h.b16 %v1033
        %v1783 = vunpack.c.l.b16 %v1034
        %v1784 = vunpack.c.h.b16 %v1034
        %v1785 = vunpack.c.l.b16 %v1035
        %v1786 = vunpack.c.l.b16 %v1036
        %v1787 = vunpack.c.h.b16 %v1036
        %v1788 = vunpack.c.l.b16 %v1037
        %v1789 = vunpack.c.h.b16 %v1037
        %v1790 = vunpack.c.l.b16 %v1038
        %v1791 = vunpack.c.l.b16 %v1039
        %v1792 = vunpack.c.h.b16 %v1039
        %v1793 = vunpack.c.l.b16 %v1040
        %v1794 = vunpack.c.h.b16 %v1040
        %v1795 = vunpack.c.l.b16 %v1041
        %v1796 = vunpack.c.l.b16 %v1042
        %v1797 = vunpack.c.h.b16 %v1042
        %v1798 = vunpack.c.l.b16 %v1043
        %v1799 = vunpack.c.h.b16 %v1043
        %v1800 = vunpack.c.l.b16 %v1044
        %v1801 = vunpack.c.l.b16 %v1045
        %v1802 = vunpack.c.h.b16 %v1045
        %v1803 = vunpack.c.l.b16 %v1046
        %v1804 = vunpack.c.h.b16 %v1046
        %v1805 = vunpack.c.l.b16 %v1047
        %v1806 = vunpack.c.l.b16 %v1048
        %v1807 = vunpack.c.h.b16 %v1048
        %v1808 = vunpack.c.l.b16 %v1049
        %v1809 = vunpack.c.h.b16 %v1049
        %v1810 = vunpack.c.l.b16 %v1050
        %v1811 = vunpack.c.l.b16 %v1051
        %v1812 = vunpack.c.h.b16 %v1051
        %v1813 = vunpack.c.l.b16 %v1052
        %v1814 = vunpack.c.h.b16 %v1052
        %v1815 = vunpack.c.l.b16 %v1053
        %v1816 = vunpack.c.l.b16 %v1054
        %v1817 = vunpack.c.h.b16 %v1054
        %v1818 = vunpack.c.l.b16 %v1055
        %v1819 = vunpack.c.h.b16 %v1055
        %v1820 = vunpack.c.l.b16 %v1056
        %v1821 = vunpack.c.l.b16 %v1057
        %v1822 = vunpack.c.h.b16 %v1057
        %v1823 = vunpack.c.l.b16 %v1058
        %v1824 = vunpack.c.h.b16 %v1058
        %v1825 = vunpack.c.l.b16 %v1059
        %v1826 = vunpack.c.l.b16 %v1060
        %v1827 = vunpack.c.h.b16 %v1060
        %v1828 = vunpack.c.l.b16 %v1061
        %v1829 = vunpack.c.h.b16 %v1061
        %v1830 = vunpack.c.l.b16 %v1062
        %v1831 = vunpack.c.l.b16 %v1063
        %v1832 = vunpack.c.h.b16 %v1063
        %v1833 = vunpack.c.l.b16 %v1064
        %v1834 = vunpack.c.h.b16 %v1064
        %v1835 = vunpack.c.l.b16 %v1065
        %v1836 = vunpack.c.l.b16 %v1066
        %v1837 = vunpack.c.h.b16 %v1066
        %v1838 = vunpack.c.l.b16 %v1067
        %v1839 = vunpack.c.h.b16 %v1067
        %v1840 = vunpack.c.l.b16 %v1068
        %v1841 = vunpack.c.l.b16 %v1069
        %v1842 = vunpack.c.h.b16 %v1069
        %v1843 = vunpack.c.l.b16 %v1070
        %v1844 = vunpack.c.h.b16 %v1070
        %v1845 = vunpack.c.l.b16 %v1071
        %v1846 = vunpack.c.l.b16 %v1072
        %v1847 = vunpack.c.h.b16 %v1072
        %v1848 = vunpack.c.l.b16 %v1073
        %v1849 = vunpack.c.h.b16 %v1073
        %v1850 = vunpack.c.l.b16 %v1074
        %v1851 = vunpack.c.l.b16 %v1075
        %v1852 = vunpack.c.h.b16 %v1075
        %v1853 = vunpack.c.l.b16 %v1076
        %v1854 = vunpack.c.h.b16 %v1076
        %v1855 = vunpack.c.l.b16 %v1077
        %v1856 = vunpack.c.l.b16 %v1078
        %v1857 = vunpack.c.h.b16 %v1078
        %v1858 = vunpack.c.l.b16 %v1079
        %v1859 = vunpack.c.h.b16 %v1079
        %v1860 = vunpack.c.l.b16 %v1080
        %v1861 = vunpack.c.l.b16 %v1081
        %v1862 = vunpack.c.h.b16 %v1081
        %v1863 = vunpack.c.l.b16 %v1082
        %v1864 = vunpack.c.h.b16 %v1082
        %v1865 = vunpack.c.l.b16 %v1083
        %v1866 = vunpack.c.l.b16 %v1084
        %v1867 = vunpack.c.h.b16 %v1084
        %v1868 = vunpack.c.l.b16 %v1085
        %v1869 = vunpack.c.h.b16 %v1085
        %v1870 = vunpack.c.l.b16 %v1086
        %v1871 = vunpack.c.l.b16 %v1087
        %v1872 = vunpack.c.h.b16 %v1087
        %v1873 = vunpack.c.l.b16 %v1088
        %v1874 = vunpack.c.h.b16 %v1088
        %v1875 = vunpack.c.l.b16 %v1089
        %v1876 = vunpack.c.l.b16 %v1090
        %v1877 = vunpack.c.h.b16 %v1090
        %v1878 = vunpack.c.l.b16 %v1091
        %v1879 = vunpack.c.h.b16 %v1091
        %v1880 = vunpack.c.l.b16 %v1092
        %v1881 = vunpack.c.l.b16 %v1093
        %v1882 = vunpack.c.h.b16 %v1093
        %v1883 = vunpack.c.l.b16 %v1094
        %v1884 = vunpack.c.h.b16 %v1094
        %v1885 = vunpack.c.l.b16 %v1095
        %v1886 = vunpack.c.l.b16 %v1096
        %v1887 = vunpack.c.h.b16 %v1096
        %v1888 = vunpack.c.l.b16 %v1097
        %v1889 = vunpack.c.h.b16 %v1097
        %v1890 = vunpack.c.l.b16 %v1098
        %v1891 = vunpack.c.l.b16 %v1099
        %v1892 = vunpack.c.h.b16 %v1099
        %v1893 = vunpack.c.l.b16 %v1100
        %v1894 = vunpack.c.h.b16 %v1100
        %v1895 = vunpack.c.l.b16 %v1101
        %v1896 = vunpack.c.l.b16 %v1102
        %v1897 = vunpack.c.h.b16 %v1102
        %v1898 = vunpack.c.l.b16 %v1103
        %v1899 = vunpack.c.h.b16 %v1103
        %v1900 = vunpack.c.l.b16 %v1104
        %v1901 = vunpack.c.l.b16 %v1105
        %v1902 = vunpack.c.h.b16 %v1105
        %v1903 = vunpack.c.l.b16 %v1106
        %v1904 = vunpack.c.h.b16 %v1106
        %v1905 = vunpack.c.l.b16 %v1107
        %v1906 = vunpack.c.l.b16 %v1108
        %v1907 = vunpack.c.h.b16 %v1108
        %v1908 = vunpack.c.l.b16 %v1109
        %v1909 = vunpack.c.h.b16 %v1109
        %v1910 = vunpack.c.l.b16 %v1110
        %v1911 = vunpack.c.l.b16 %v1111
        %v1912 = vunpack.c.h.b16 %v1111
        %v1913 = vunpack.c.l.b16 %v1112
        %v1914 = vunpack.c.h.b16 %v1112
        %v1915 = vunpack.c.l.b16 %v1113
        %v1916 = vunpack.c.l.b16 %v1114
        %v1917 = vunpack.c.h.b16 %v1114
        %v1918 = vunpack.c.l.b16 %v1115
        %v1919 = vunpack.c.h.b16 %v1115
        %v1920 = vunpack.c.l.b16 %v1116
        %v1921 = vunpack.c.l.b16 %v1117
        %v1922 = vunpack.c.h.b16 %v1117
        %v1923 = vunpack.c.l.b16 %v1118
        %v1924 = vunpack.c.h.b16 %v1118
        %v1925 = vunpack.c.l.b16 %v1119
        %v1926 = vunpack.c.l.b16 %v1120
        %v1927 = vunpack.c.h.b16 %v1120
        %v1928 = vunpack.c.l.b16 %v1121
        %v1929 = vunpack.c.h.b16 %v1121
        %v1930 = vunpack.c.l.b16 %v1122
        %v1931 = vunpack.c.l.b16 %v1123
        %v1932 = vunpack.c.h.b16 %v1123
        %v1933 = vunpack.c.l.b16 %v1124
        %v1934 = vunpack.c.h.b16 %v1124
        %v1935 = vunpack.c.l.b16 %v1125
        %v1936 = vunpack.c.l.b16 %v1126
        %v1937 = vunpack.c.h.b16 %v1126
        %v1938 = vunpack.c.l.b16 %v1127
        %v1939 = vunpack.c.h.b16 %v1127
        %v1940 = vunpack.c.l.b16 %v1128
        %v1941 = vunpack.c.l.b16 %v1129
        %v1942 = vunpack.c.h.b16 %v1129
        %v1943 = vunpack.c.l.b16 %v1130
        %v1944 = vunpack.c.h.b16 %v1130
        %v1945 = vunpack.c.l.b16 %v1131
        %v1946 = vunpack.c.l.b16 %v1132
        %v1947 = vunpack.c.h.b16 %v1132
        %v1948 = vunpack.c.l.b16 %v1133
        %v1949 = vunpack.c.h.b16 %v1133
        %v1950 = vunpack.c.l.b16 %v1134
        %v1951 = vunpack.c.l.b16 %v1135
        %v1952 = vunpack.c.h.b16 %v1135
        %v1953 = vunpack.c.l.b16 %v1136
        %v1954 = vunpack.c.h.b16 %v1136
        %v1955 = vunpack.c.l.b16 %v1137
        %v1956 = vunpack.c.l.b16 %v1138
        %v1957 = vunpack.c.h.b16 %v1138
        %v1958 = vunpack.c.l.b16 %v1139
        %v1959 = vunpack.c.h.b16 %v1139
        %v1960 = vunpack.c.l.b16 %v1140
        %v1961 = vunpack.c.l.b16 %v1141
        %v1962 = vunpack.c.h.b16 %v1141
        %v1963 = vunpack.c.l.b16 %v1142
        %v1964 = vunpack.c.h.b16 %v1142
        %v1965 = vunpack.c.l.b16 %v1143
        %v1966 = vunpack.c.l.b16 %v1144
        %v1967 = vunpack.c.h.b16 %v1144
        %v1968 = vunpack.c.l.b16 %v1145
        %v1969 = vunpack.c.h.b16 %v1145
        %v1970 = vunpack.c.l.b16 %v1146
        %v1971 = vunpack.c.l.b16 %v1147
        %v1972 = vunpack.c.h.b16 %v1147
        %v1973 = vunpack.c.l.b16 %v1148
        %v1974 = vunpack.c.h.b16 %v1148
        %v1975 = vunpack.c.l.b16 %v1149
        %v1976 = vunpack.c.l.b16 %v1150
        %v1977 = vunpack.c.h.b16 %v1150
        %v1978 = vunpack.c.l.b16 %v1151
        %v1979 = vunpack.c.h.b16 %v1151
        %v1980 = vunpack.c.l.b16 %v1152
        %v1981 = vunpack.c.l.b16 %v1153
        %v1982 = vunpack.c.h.b16 %v1153
        %v1983 = vunpack.c.l.b16 %v1154
        %v1984 = vunpack.c.h.b16 %v1154
        %v1985 = vunpack.c.l.b16 %v1155
        %v1986 = vunpack.c.l.b16 %v1156
        %v1987 = vunpack.c.h.b16 %v1156
        %v1988 = vunpack.c.l.b16 %v1157
        %v1989 = vunpack.c.h.b16 %v1157
        %v1990 = vunpack.c.l.b16 %v1158
        %v1991 = vpack.c.b16 %v1676, %v1671
        %v1992 = vpack.c.b16 %v1677, %v1672
        %v1993 = vpack.c.b16 %v1678, %v1673
        %v1994 = vpack.c.b16 %v1679, %v1674
        %v1995 = vpack.c.b16 %v1680, %v1675
        %v1996 = vpack.c.b16 %v1686, %v1681
        %v1997 = vpack.c.b16 %v1687, %v1682
        %v1998 = vpack.c.b16 %v1688, %v1683
        %v1999 = vpack.c.b16 %v1689, %v1684
        %v2000 = vpack.c.b16 %v1690, %v1685
        %v2001 = vpack.c.b16 %v1696, %v1691
        %v2002 = vpack.c.b16 %v1697, %v1692
        %v2003 = vpack.c.b16 %v1698, %v1693
        %v2004 = vpack.c.b16 %v1699, %v1694
        %v2005 = vpack.c.b16 %v1700, %v1695
        %v2006 = vpack.c.b16 %v1706, %v1701
        %v2007 = vpack.c.b16 %v1707, %v1702
        %v2008 = vpack.c.b16 %v1708, %v1703
        %v2009 = vpack.c.b16 %v1709, %v1704
        %v2010 = vpack.c.b16 %v1710, %v1705
        %v2011 = vpack.c.b16 %v1716, %v1711
        %v2012 = vpack.c.b16 %v1717, %v1712
        %v2013 = vpack.c.b16 %v1718, %v1713
        %v2014 = vpack.c.b16 %v1719, %v1714
        %v2015 = vpack.c.b16 %v1720, %v1715
        %v2016 = vpack.c.b16 %v1726, %v1721
        %v2017 = vpack.c.b16 %v1727, %v1722
        %v2018 = vpack.c.b16 %v1728, %v1723
        %v2019 = vpack.c.b16 %v1729, %v1724
        %v2020 = vpack.c.b16 %v1730, %v1725
        %v2021 = vpack.c.b16 %v1736, %v1731
        %v2022 = vpack.c.b16 %v1737, %v1732
        %v2023 = vpack.c.b16 %v1738, %v1733
        %v2024 = vpack.c.b16 %v1739, %v1734
        %v2025 = vpack.c.b16 %v1740, %v1735
        %v2026 = vpack.c.b16 %v1746, %v1741
        %v2027 = vpack.c.b16 %v1747, %v1742
        %v2028 = vpack.c.b16 %v1748, %v1743
        %v2029 = vpack.c.b16 %v1749, %v1744
        %v2030 = vpack.c.b16 %v1750, %v1745
        %v2031 = vpack.c.b16 %v1756, %v1751
        %v2032 = vpack.c.b16 %v1757, %v1752
        %v2033 = vpack.c.b16 %v1758, %v1753
        %v2034 = vpack.c.b16 %v1759, %v1754
        %v2035 = vpack.c.b16 %v1760, %v1755
        %v2036 = vpack.c.b16 %v1766, %v1761
        %v2037 = vpack.c.b16 %v1767, %v1762
        %v2038 = vpack.c.b16 %v1768, %v1763
        %v2039 = vpack.c.b16 %v1769, %v1764
        %v2040 = vpack.c.b16 %v1770, %v1765
        %v2041 = vpack.c.b16 %v1776, %v1771
        %v2042 = vpack.c.b16 %v1777, %v1772
        %v2043 = vpack.c.b16 %v1778, %v1773
        %v2044 = vpack.c.b16 %v1779, %v1774
        %v2045 = vpack.c.b16 %v1780, %v1775
        %v2046 = vpack.c.b16 %v1786, %v1781
        %v2047 = vpack.c.b16 %v1787, %v1782
        %v2048 = vpack.c.b16 %v1788, %v1783
        %v2049 = vpack.c.b16 %v1789, %v1784
        %v2050 = vpack.c.b16 %v1790, %v1785
        %v2051 = vpack.c.b16 %v1796, %v1791
        %v2052 = vpack.c.b16 %v1797, %v1792
        %v2053 = vpack.c.b16 %v1798, %v1793
        %v2054 = vpack.c.b16 %v1799, %v1794
        %v2055 = vpack.c.b16 %v1800, %v1795
        %v2056 = vpack.c.b16 %v1806, %v1801
        %v2057 = vpack.c.b16 %v1807, %v1802
        %v2058 = vpack.c.b16 %v1808, %v1803
        %v2059 = vpack.c.b16 %v1809, %v1804
        %v2060 = vpack.c.b16 %v1810, %v1805
        %v2061 = vpack.c.b16 %v1816, %v1811
        %v2062 = vpack.c.b16 %v1817, %v1812
        %v2063 = vpack.c.b16 %v1818, %v1813
        %v2064 = vpack.c.b16 %v1819, %v1814
        %v2065 = vpack.c.b16 %v1820, %v1815
        %v2066 = vpack.c.b16 %v1826, %v1821
        %v2067 = vpack.c.b16 %v1827, %v1822
        %v2068 = vpack.c.b16 %v1828, %v1823
        %v2069 = vpack.c.b16 %v1829, %v1824
        %v2070 = vpack.c.b16 %v1830, %v1825
        %v2071 = vpack.c.b16 %v1836, %v1831
        %v2072 = vpack.c.b16 %v1837, %v1832
        %v2073 = vpack.c.b16 %v1838, %v1833
        %v2074 = vpack.c.b16 %v1839, %v1834
        %v2075 = vpack.c.b16 %v1840, %v1835
        %v2076 = vpack.c.b16 %v1846, %v1841
        %v2077 = vpack.c.b16 %v1847, %v1842
        %v2078 = vpack.c.b16 %v1848, %v1843
        %v2079 = vpack.c.b16 %v1849, %v1844
        %v2080 = vpack.c.b16 %v1850, %v1845
        %v2081 = vpack.c.b16 %v1856, %v1851
        %v2082 = vpack.c.b16 %v1857, %v1852
        %v2083 = vpack.c.b16 %v1858, %v1853
        %v2084 = vpack.c.b16 %v1859, %v1854
        %v2085 = vpack.c.b16 %v1860, %v1855
        %v2086 = vpack.c.b16 %v1866, %v1861
        %v2087 = vpack.c.b16 %v1867, %v1862
        %v2088 = vpack.c.b16 %v1868, %v1863
        %v2089 = vpack.c.b16 %v1869, %v1864
        %v2090 = vpack.c.b16 %v1870, %v1865
        %v2091 = vpack.c.b16 %v1876, %v1871
        %v2092 = vpack.c.b16 %v1877, %v1872
        %v2093 = vpack.c.b16 %v1878, %v1873
        %v2094 = vpack.c.b16 %v1879, %v1874
        %v2095 = vpack.c.b16 %v1880, %v1875
        %v2096 = vpack.c.b16 %v1886, %v1881
        %v2097 = vpack.c.b16 %v1887, %v1882
        %v2098 = vpack.c.b16 %v1888, %v1883
        %v2099 = vpack.c.b16 %v1889, %v1884
        %v2100 = vpack.c.b16 %v1890, %v1885
        %v2101 = vpack.c.b16 %v1896, %v1891
        %v2102 = vpack.c.b16 %v1897, %v1892
        %v2103 = vpack.c.b16 %v1898, %v1893
        %v2104 = vpack.c.b16 %v1899, %v1894
        %v2105 = vpack.c.b16 %v1900, %v1895
        %v2106 = vpack.c.b16 %v1906, %v1901
        %v2107 = vpack.c.b16 %v1907, %v1902
        %v2108 = vpack.c.b16 %v1908, %v1903
        %v2109 = vpack.c.b16 %v1909, %v1904
        %v2110 = vpack.c.b16 %v1910, %v1905
        %v2111 = vpack.c.b16 %v1916, %v1911
        %v2112 = vpack.c.b16 %v1917, %v1912
        %v2113 = vpack.c.b16 %v1918, %v1913
        %v2114 = vpack.c.b16 %v1919, %v1914
        %v2115 = vpack.c.b16 %v1920, %v1915
        %v2116 = vpack.c.b16 %v1926, %v1921
        %v2117 = vpack.c.b16 %v1927, %v1922
        %v2118 = vpack.c.b16 %v1928, %v1923
        %v2119 = vpack.c.b16 %v1929, %v1924
        %v2120 = vpack.c.b16 %v1930, %v1925
        %v2121 = vpack.c.b16 %v1936, %v1931
        %v2122 = vpack.c.b16 %v1937, %v1932
        %v2123 = vpack.c.b16 %v1938, %v1933
        %v2124 = vpack.c.b16 %v1939, %v1934
        %v2125 = vpack.c.b16 %v1940, %v1935
        %v2126 = vpack.c.b16 %v1946, %v1941
        %v2127 = vpack.c.b16 %v1947, %v1942
        %v2128 = vpack.c.b16 %v1948, %v1943
        %v2129 = vpack.c.b16 %v1949, %v1944
        %v2130 = vpack.c.b16 %v1950, %v1945
        %v2131 = vpack.c.b16 %v1956, %v1951
        %v2132 = vpack.c.b16 %v1957, %v1952
        %v2133 = vpack.c.b16 %v1958, %v1953
        %v2134 = vpack.c.b16 %v1959, %v1954
        %v2135 = vpack.c.b16 %v1960, %v1955
        %v2136 = vpack.c.b16 %v1966, %v1961
        %v2137 = vpack.c.b16 %v1967, %v1962
        %v2138 = vpack.c.b16 %v1968, %v1963
        %v2139 = vpack.c.b16 %v1969, %v1964
        %v2140 = vpack.c.b16 %v1970, %v1965
        %v2141 = vpack.c.b16 %v1976, %v1971
        %v2142 = vpack.c.b16 %v1977, %v1972
        %v2143 = vpack.c.b16 %v1978, %v1973
        %v2144 = vpack.c.b16 %v1979, %v1974
        %v2145 = vpack.c.b16 %v1980, %v1975
        %v2146 = vpack.c.b16 %v1986, %v1981
        %v2147 = vpack.c.b16 %v1987, %v1982
        %v2148 = vpack.c.b16 %v1988, %v1983
        %v2149 = vpack.c.b16 %v1989, %v1984
        %v2150 = vpack.c.b16 %v1990, %v1985
        %2311 = vmatpush.bf16.msra.mxu0 %v2026
        %2312 = vmatpush.bf16.msra.mxu0 %v2021
        %2313 = vmatpush.bf16.msra.mxu0 %v2016
        %2314 = vmatpush.bf16.msra.mxu0 %v2011
        %2315 = vmatpush.bf16.msra.mxu0 %v2006
        %2316 = vmatpush.bf16.msra.mxu0 %v2001
        %2317 = vmatpush.bf16.msra.mxu0 %v1996
        %2318 = vmatpush.bf16.msra.mxu0 %v1991
        %2319 = vmatmul.bf16.gmra.mxu0 %v1351
        %v2320 = vpop.f32.mrf.mxu0
        %v2321 = vadd.f32 0.0, %v2320
        %v2322 = vpop.f32.mrf.mxu0
        %v2323 = vadd.f32 0.0, %v2322
        %2324 = vmatmul.bf16.gmra.mxu0 %v1355
        %v2325 = vpop.f32.mrf.mxu0
        %v2326 = vadd.f32 0.0, %v2325
        %v2327 = vpop.f32.mrf.mxu0
        %v2328 = vadd.f32 0.0, %v2327
        %2329 = vmatmul.bf16.gmra.mxu0 %v1359
        %v2330 = vpop.f32.mrf.mxu0
        %v2331 = vadd.f32 0.0, %v2330
        %v2332 = vpop.f32.mrf.mxu0
        %v2333 = vadd.f32 0.0, %v2332
        %2334 = vmatmul.bf16.gmra.mxu0 %v1363
        %v2335 = vpop.f32.mrf.mxu0
        %v2336 = vadd.f32 0.0, %v2335
        %v2337 = vpop.f32.mrf.mxu0
        %v2338 = vadd.f32 0.0, %v2337
        %2339 = vmatmul.bf16.gmra.mxu0 %v1367
        %v2340 = vpop.f32.mrf.mxu0
        %v2341 = vadd.f32 0.0, %v2340
        %v2342 = vpop.f32.mrf.mxu0
        %v2343 = vadd.f32 0.0, %v2342
        %2344 = vmatmul.bf16.gmra.mxu0 %v1371
        %v2345 = vpop.f32.mrf.mxu0
        %v2346 = vadd.f32 0.0, %v2345
        %v2347 = vpop.f32.mrf.mxu0
        %v2348 = vadd.f32 0.0, %v2347
        %2349 = vmatmul.bf16.gmra.mxu0 %v1375
        %v2350 = vpop.f32.mrf.mxu0
        %v2351 = vadd.f32 0.0, %v2350
        %v2352 = vpop.f32.mrf.mxu0
        %v2353 = vadd.f32 0.0, %v2352
        %2354 = vmatmul.bf16.gmra.mxu0 %v1379
        %v2355 = vpop.f32.mrf.mxu0
        %v2356 = vadd.f32 0.0, %v2355
        %v2357 = vpop.f32.mrf.mxu0
        %v2358 = vadd.f32 0.0, %v2357
        %2359 = vmatmul.bf16.gmra.mxu0 %v1383
        %v2360 = vpop.f32.mrf.mxu0
        %v2361 = vadd.f32 0.0, %v2360
        %v2362 = vpop.f32.mrf.mxu0
        %v2363 = vadd.f32 0.0, %v2362
        %2364 = vmatmul.bf16.gmra.mxu0 %v1387
        %v2365 = vpop.f32.mrf.mxu0
        %v2366 = vadd.f32 0.0, %v2365
        %v2367 = vpop.f32.mrf.mxu0
        %v2368 = vadd.f32 0.0, %v2367
        %2369 = vmatmul.bf16.gmra.mxu0 %v1391
        %v2370 = vpop.f32.mrf.mxu0
        %v2371 = vadd.f32 0.0, %v2370
        %v2372 = vpop.f32.mrf.mxu0
        %v2373 = vadd.f32 0.0, %v2372
        %2374 = vmatmul.bf16.gmra.mxu0 %v1395
        %v2375 = vpop.f32.mrf.mxu0
        %v2376 = vadd.f32 0.0, %v2375
        %v2377 = vpop.f32.mrf.mxu0
        %v2378 = vadd.f32 0.0, %v2377
        %2379 = vmatmul.bf16.gmra.mxu0 %v1399
        %v2380 = vpop.f32.mrf.mxu0
        %v2381 = vadd.f32 0.0, %v2380
        %v2382 = vpop.f32.mrf.mxu0
        %v2383 = vadd.f32 0.0, %v2382
        %2384 = vmatmul.bf16.gmra.mxu0 %v1403
        %v2385 = vpop.f32.mrf.mxu0
        %v2386 = vadd.f32 0.0, %v2385
        %v2387 = vpop.f32.mrf.mxu0
        %v2388 = vadd.f32 0.0, %v2387
        %2389 = vmatmul.bf16.gmra.mxu0 %v1407
        %v2390 = vpop.f32.mrf.mxu0
        %v2391 = vadd.f32 0.0, %v2390
        %v2392 = vpop.f32.mrf.mxu0
        %v2393 = vadd.f32 0.0, %v2392
        %2394 = vmatmul.bf16.gmra.mxu0 %v1411
        %v2395 = vpop.f32.mrf.mxu0
        %v2396 = vpop.f32.mrf.mxu0
        %2397 = vdwg.mxu0
        %2398 = vmatpush.bf16.msra.mxu0 %v2066
        %2399 = vmatpush.bf16.msra.mxu0 %v2061
        %2400 = vmatpush.bf16.msra.mxu0 %v2056
        %2401 = vmatpush.bf16.msra.mxu0 %v2051
        %2402 = vmatpush.bf16.msra.mxu0 %v2046
        %2403 = vmatpush.bf16.msra.mxu0 %v2041
        %2404 = vmatpush.bf16.msra.mxu0 %v2036
        %2405 = vmatpush.bf16.msra.mxu0 %v2031
        %2406 = vmatmul.bf16.gmra.mxu0 %v1352
        %v2407 = vpop.f32.mrf.mxu0
        %v2408 = vadd.f32 %v2321, %v2407
        %v2409 = vpop.f32.mrf.mxu0
        %v2410 = vadd.f32 %v2323, %v2409
        %2411 = vmatmul.bf16.gmra.mxu0 %v1356
        %v2412 = vpop.f32.mrf.mxu0
        %v2413 = vadd.f32 %v2326, %v2412
        %v2414 = vpop.f32.mrf.mxu0
        %v2415 = vadd.f32 %v2328, %v2414
        %2416 = vmatmul.bf16.gmra.mxu0 %v1360
        %v2417 = vpop.f32.mrf.mxu0
        %v2418 = vadd.f32 %v2331, %v2417
        %v2419 = vpop.f32.mrf.mxu0
        %v2420 = vadd.f32 %v2333, %v2419
        %2421 = vmatmul.bf16.gmra.mxu0 %v1364
        %v2422 = vpop.f32.mrf.mxu0
        %v2423 = vadd.f32 %v2336, %v2422
        %v2424 = vpop.f32.mrf.mxu0
        %v2425 = vadd.f32 %v2338, %v2424
        %2426 = vmatmul.bf16.gmra.mxu0 %v1368
        %v2427 = vpop.f32.mrf.mxu0
        %v2428 = vadd.f32 %v2341, %v2427
        %v2429 = vpop.f32.mrf.mxu0
        %v2430 = vadd.f32 %v2343, %v2429
        %2431 = vmatmul.bf16.gmra.mxu0 %v1372
        %v2432 = vpop.f32.mrf.mxu0
        %v2433 = vadd.f32 %v2346, %v2432
        %v2434 = vpop.f32.mrf.mxu0
        %v2435 = vadd.f32 %v2348, %v2434
        %2436 = vmatmul.bf16.gmra.mxu0 %v1376
        %v2437 = vpop.f32.mrf.mxu0
        %v2438 = vadd.f32 %v2351, %v2437
        %v2439 = vpop.f32.mrf.mxu0
        %v2440 = vadd.f32 %v2353, %v2439
        %2441 = vmatmul.bf16.gmra.mxu0 %v1380
        %v2442 = vpop.f32.mrf.mxu0
        %v2443 = vadd.f32 %v2356, %v2442
        %v2444 = vpop.f32.mrf.mxu0
        %v2445 = vadd.f32 %v2358, %v2444
        %2446 = vmatmul.bf16.gmra.mxu0 %v1384
        %v2447 = vpop.f32.mrf.mxu0
        %v2448 = vadd.f32 %v2361, %v2447
        %v2449 = vpop.f32.mrf.mxu0
        %v2450 = vadd.f32 %v2363, %v2449
        %2451 = vmatmul.bf16.gmra.mxu0 %v1388
        %v2452 = vpop.f32.mrf.mxu0
        %v2453 = vadd.f32 %v2366, %v2452
        %v2454 = vpop.f32.mrf.mxu0
        %v2455 = vadd.f32 %v2368, %v2454
        %2456 = vmatmul.bf16.gmra.mxu0 %v1392
        %v2457 = vpop.f32.mrf.mxu0
        %v2458 = vadd.f32 %v2371, %v2457
        %v2459 = vpop.f32.mrf.mxu0
        %v2460 = vadd.f32 %v2373, %v2459
        %2461 = vmatmul.bf16.gmra.mxu0 %v1396
        %v2462 = vpop.f32.mrf.mxu0
        %v2463 = vadd.f32 %v2376, %v2462
        %v2464 = vpop.f32.mrf.mxu0
        %v2465 = vadd.f32 %v2378, %v2464
        %2466 = vmatmul.bf16.gmra.mxu0 %v1400
        %v2467 = vpop.f32.mrf.mxu0
        %v2468 = vadd.f32 %v2381, %v2467
        %v2469 = vpop.f32.mrf.mxu0
        %v2470 = vadd.f32 %v2383, %v2469
        %2471 = vmatmul.bf16.gmra.mxu0 %v1404
        %v2472 = vpop.f32.mrf.mxu0
        %v2473 = vadd.f32 %v2386, %v2472
        %v2474 = vpop.f32.mrf.mxu0
        %v2475 = vadd.f32 %v2388, %v2474
        %2476 = vmatmul.bf16.gmra.mxu0 %v1408
        %v2477 = vpop.f32.mrf.mxu0
        %v2478 = vadd.f32 %v2391, %v2477
        %v2479 = vpop.f32.mrf.mxu0
        %v2480 = vadd.f32 %v2393, %v2479
        %2481 = vmatmul.bf16.gmra.mxu0 %v1412
        %v2482 = vpop.f32.mrf.mxu0
        %v2483 = vpop.f32.mrf.mxu0
        %2484 = vdwg.mxu0
        %2485 = vmatpush.bf16.msra.mxu0 %v2106
        %2486 = vmatpush.bf16.msra.mxu0 %v2101
        %2487 = vmatpush.bf16.msra.mxu0 %v2096
        %2488 = vmatpush.bf16.msra.mxu0 %v2091
        %2489 = vmatpush.bf16.msra.mxu0 %v2086
        %2490 = vmatpush.bf16.msra.mxu0 %v2081
        %2491 = vmatpush.bf16.msra.mxu0 %v2076
        %2492 = vmatpush.bf16.msra.mxu0 %v2071
        %2493 = vmatmul.bf16.gmra.mxu0 %v1353
        %v2494 = vpop.f32.mrf.mxu0
        %v2495 = vadd.f32 %v2408, %v2494
        %v2496 = vpop.f32.mrf.mxu0
        %v2497 = vadd.f32 %v2410, %v2496
        %2498 = vmatmul.bf16.gmra.mxu0 %v1357
        %v2499 = vpop.f32.mrf.mxu0
        %v2500 = vadd.f32 %v2413, %v2499
        %v2501 = vpop.f32.mrf.mxu0
        %v2502 = vadd.f32 %v2415, %v2501
        %2503 = vmatmul.bf16.gmra.mxu0 %v1361
        %v2504 = vpop.f32.mrf.mxu0
        %v2505 = vadd.f32 %v2418, %v2504
        %v2506 = vpop.f32.mrf.mxu0
        %v2507 = vadd.f32 %v2420, %v2506
        %2508 = vmatmul.bf16.gmra.mxu0 %v1365
        %v2509 = vpop.f32.mrf.mxu0
        %v2510 = vadd.f32 %v2423, %v2509
        %v2511 = vpop.f32.mrf.mxu0
        %v2512 = vadd.f32 %v2425, %v2511
        %2513 = vmatmul.bf16.gmra.mxu0 %v1369
        %v2514 = vpop.f32.mrf.mxu0
        %v2515 = vadd.f32 %v2428, %v2514
        %v2516 = vpop.f32.mrf.mxu0
        %v2517 = vadd.f32 %v2430, %v2516
        %2518 = vmatmul.bf16.gmra.mxu0 %v1373
        %v2519 = vpop.f32.mrf.mxu0
        %v2520 = vadd.f32 %v2433, %v2519
        %v2521 = vpop.f32.mrf.mxu0
        %v2522 = vadd.f32 %v2435, %v2521
        %2523 = vmatmul.bf16.gmra.mxu0 %v1377
        %v2524 = vpop.f32.mrf.mxu0
        %v2525 = vadd.f32 %v2438, %v2524
        %v2526 = vpop.f32.mrf.mxu0
        %v2527 = vadd.f32 %v2440, %v2526
        %2528 = vmatmul.bf16.gmra.mxu0 %v1381
        %v2529 = vpop.f32.mrf.mxu0
        %v2530 = vadd.f32 %v2443, %v2529
        %v2531 = vpop.f32.mrf.mxu0
        %v2532 = vadd.f32 %v2445, %v2531
        %2533 = vmatmul.bf16.gmra.mxu0 %v1385
        %v2534 = vpop.f32.mrf.mxu0
        %v2535 = vadd.f32 %v2448, %v2534
        %v2536 = vpop.f32.mrf.mxu0
        %v2537 = vadd.f32 %v2450, %v2536
        %2538 = vmatmul.bf16.gmra.mxu0 %v1389
        %v2539 = vpop.f32.mrf.mxu0
        %v2540 = vadd.f32 %v2453, %v2539
        %v2541 = vpop.f32.mrf.mxu0
        %v2542 = vadd.f32 %v2455, %v2541
        %2543 = vmatmul.bf16.gmra.mxu0 %v1393
        %v2544 = vpop.f32.mrf.mxu0
        %v2545 = vadd.f32 %v2458, %v2544
        %v2546 = vpop.f32.mrf.mxu0
        %v2547 = vadd.f32 %v2460, %v2546
        %2548 = vmatmul.bf16.gmra.mxu0 %v1397
        %v2549 = vpop.f32.mrf.mxu0
        %v2550 = vadd.f32 %v2463, %v2549
        %v2551 = vpop.f32.mrf.mxu0
        %v2552 = vadd.f32 %v2465, %v2551
        %2553 = vmatmul.bf16.gmra.mxu0 %v1401
        %v2554 = vpop.f32.mrf.mxu0
        %v2555 = vadd.f32 %v2468, %v2554
        %v2556 = vpop.f32.mrf.mxu0
        %v2557 = vadd.f32 %v2470, %v2556
        %2558 = vmatmul.bf16.gmra.mxu0 %v1405
        %v2559 = vpop.f32.mrf.mxu0
        %v2560 = vadd.f32 %v2473, %v2559
        %v2561 = vpop.f32.mrf.mxu0
        %v2562 = vadd.f32 %v2475, %v2561
        %2563 = vmatmul.bf16.gmra.mxu0 %v1409
        %v2564 = vpop.f32.mrf.mxu0
        %v2565 = vadd.f32 %v2478, %v2564
        %v2566 = vpop.f32.mrf.mxu0
        %v2567 = vadd.f32 %v2480, %v2566
        %2568 = vmatmul.bf16.gmra.mxu0 %v1413
        %v2569 = vpop.f32.mrf.mxu0
        %v2570 = vpop.f32.mrf.mxu0
        %2571 = vdwg.mxu0
        %2572 = vmatpush.bf16.msra.mxu0 %v2146
        %2573 = vmatpush.bf16.msra.mxu0 %v2141
        %2574 = vmatpush.bf16.msra.mxu0 %v2136
        %2575 = vmatpush.bf16.msra.mxu0 %v2131
        %2576 = vmatpush.bf16.msra.mxu0 %v2126
        %2577 = vmatpush.bf16.msra.mxu0 %v2121
        %2578 = vmatpush.bf16.msra.mxu0 %v2116
        %2579 = vmatpush.bf16.msra.mxu0 %v2111
        %2580 = vmatmul.bf16.gmra.mxu0 %v1354
        %v2581 = vpop.f32.mrf.mxu0
        %v2582 = vadd.f32 %v2495, %v2581
        %v2583 = vpop.f32.mrf.mxu0
        %v2584 = vadd.f32 %v2497, %v2583
        %2585 = vmatmul.bf16.gmra.mxu0 %v1358
        %v2586 = vpop.f32.mrf.mxu0
        %v2587 = vadd.f32 %v2500, %v2586
        %v2588 = vpop.f32.mrf.mxu0
        %v2589 = vadd.f32 %v2502, %v2588
        %2590 = vmatmul.bf16.gmra.mxu0 %v1362
        %v2591 = vpop.f32.mrf.mxu0
        %v2592 = vadd.f32 %v2505, %v2591
        %v2593 = vpop.f32.mrf.mxu0
        %v2594 = vadd.f32 %v2507, %v2593
        %2595 = vmatmul.bf16.gmra.mxu0 %v1366
        %v2596 = vpop.f32.mrf.mxu0
        %v2597 = vadd.f32 %v2510, %v2596
        %v2598 = vpop.f32.mrf.mxu0
        %v2599 = vadd.f32 %v2512, %v2598
        %2600 = vmatmul.bf16.gmra.mxu0 %v1370
        %v2601 = vpop.f32.mrf.mxu0
        %v2602 = vadd.f32 %v2515, %v2601
        %v2603 = vpop.f32.mrf.mxu0
        %v2604 = vadd.f32 %v2517, %v2603
        %2605 = vmatmul.bf16.gmra.mxu0 %v1374
        %v2606 = vpop.f32.mrf.mxu0
        %v2607 = vadd.f32 %v2520, %v2606
        %v2608 = vpop.f32.mrf.mxu0
        %v2609 = vadd.f32 %v2522, %v2608
        %2610 = vmatmul.bf16.gmra.mxu0 %v1378
        %v2611 = vpop.f32.mrf.mxu0
        %v2612 = vadd.f32 %v2525, %v2611
        %v2613 = vpop.f32.mrf.mxu0
        %v2614 = vadd.f32 %v2527, %v2613
        %2615 = vmatmul.bf16.gmra.mxu0 %v1382
        %v2616 = vpop.f32.mrf.mxu0
        %v2617 = vadd.f32 %v2530, %v2616
        %v2618 = vpop.f32.mrf.mxu0
        %v2619 = vadd.f32 %v2532, %v2618
        %2620 = vmatmul.bf16.gmra.mxu0 %v1386
        %v2621 = vpop.f32.mrf.mxu0
        %v2622 = vadd.f32 %v2535, %v2621
        %v2623 = vpop.f32.mrf.mxu0
        %v2624 = vadd.f32 %v2537, %v2623
        %2625 = vmatmul.bf16.gmra.mxu0 %v1390
        %v2626 = vpop.f32.mrf.mxu0
        %v2627 = vadd.f32 %v2540, %v2626
        %v2628 = vpop.f32.mrf.mxu0
        %v2629 = vadd.f32 %v2542, %v2628
        %2630 = vmatmul.bf16.gmra.mxu0 %v1394
        %v2631 = vpop.f32.mrf.mxu0
        %v2632 = vadd.f32 %v2545, %v2631
        %v2633 = vpop.f32.mrf.mxu0
        %v2634 = vadd.f32 %v2547, %v2633
        %2635 = vmatmul.bf16.gmra.mxu0 %v1398
        %v2636 = vpop.f32.mrf.mxu0
        %v2637 = vadd.f32 %v2550, %v2636
        %v2638 = vpop.f32.mrf.mxu0
        %v2639 = vadd.f32 %v2552, %v2638
        %2640 = vmatmul.bf16.gmra.mxu0 %v1402
        %v2641 = vpop.f32.mrf.mxu0
        %v2642 = vadd.f32 %v2555, %v2641
        %v2643 = vpop.f32.mrf.mxu0
        %v2644 = vadd.f32 %v2557, %v2643
        %2645 = vmatmul.bf16.gmra.mxu0 %v1406
        %v2646 = vpop.f32.mrf.mxu0
        %v2647 = vadd.f32 %v2560, %v2646
        %v2648 = vpop.f32.mrf.mxu0
        %v2649 = vadd.f32 %v2562, %v2648
        %2650 = vmatmul.bf16.gmra.mxu0 %v1410
        %v2651 = vpop.f32.mrf.mxu0
        %v2652 = vadd.f32 %v2565, %v2651
        %v2653 = vpop.f32.mrf.mxu0
        %v2654 = vadd.f32 %v2567, %v2653
        %2655 = vmatmul.bf16.gmra.mxu0 %v1414
        %v2656 = vpop.f32.mrf.mxu0
        %v2657 = vpop.f32.mrf.mxu0
        %2658 = vdwg.mxu0
        %2659 = vmatpush.bf16.msra.mxu0 %v2027
        %2660 = vmatpush.bf16.msra.mxu0 %v2022
        %2661 = vmatpush.bf16.msra.mxu0 %v2017
        %2662 = vmatpush.bf16.msra.mxu0 %v2012
        %2663 = vmatpush.bf16.msra.mxu0 %v2007
        %2664 = vmatpush.bf16.msra.mxu0 %v2002
        %2665 = vmatpush.bf16.msra.mxu0 %v1997
        %2666 = vmatpush.bf16.msra.mxu0 %v1992
        %2667 = vmatmul.bf16.gmra.mxu0 %v1351
        %v2668 = vpop.f32.mrf.mxu0
        %v2669 = vadd.f32 0.0, %v2668
        %v2670 = vpop.f32.mrf.mxu0
        %v2671 = vadd.f32 0.0, %v2670
        %2672 = vmatmul.bf16.gmra.mxu0 %v1355
        %v2673 = vpop.f32.mrf.mxu0
        %v2674 = vadd.f32 0.0, %v2673
        %v2675 = vpop.f32.mrf.mxu0
        %v2676 = vadd.f32 0.0, %v2675
        %2677 = vmatmul.bf16.gmra.mxu0 %v1359
        %v2678 = vpop.f32.mrf.mxu0
        %v2679 = vadd.f32 0.0, %v2678
        %v2680 = vpop.f32.mrf.mxu0
        %v2681 = vadd.f32 0.0, %v2680
        %2682 = vmatmul.bf16.gmra.mxu0 %v1363
        %v2683 = vpop.f32.mrf.mxu0
        %v2684 = vadd.f32 0.0, %v2683
        %v2685 = vpop.f32.mrf.mxu0
        %v2686 = vadd.f32 0.0, %v2685
        %2687 = vmatmul.bf16.gmra.mxu0 %v1367
        %v2688 = vpop.f32.mrf.mxu0
        %v2689 = vadd.f32 0.0, %v2688
        %v2690 = vpop.f32.mrf.mxu0
        %v2691 = vadd.f32 0.0, %v2690
        %2692 = vmatmul.bf16.gmra.mxu0 %v1371
        %v2693 = vpop.f32.mrf.mxu0
        %v2694 = vadd.f32 0.0, %v2693
        %v2695 = vpop.f32.mrf.mxu0
        %v2696 = vadd.f32 0.0, %v2695
        %2697 = vmatmul.bf16.gmra.mxu0 %v1375
        %v2698 = vpop.f32.mrf.mxu0
        %v2699 = vadd.f32 0.0, %v2698
        %v2700 = vpop.f32.mrf.mxu0
        %v2701 = vadd.f32 0.0, %v2700
        %2702 = vmatmul.bf16.gmra.mxu0 %v1379
        %v2703 = vpop.f32.mrf.mxu0
        %v2704 = vadd.f32 0.0, %v2703
        %v2705 = vpop.f32.mrf.mxu0
        %v2706 = vadd.f32 0.0, %v2705
        %2707 = vmatmul.bf16.gmra.mxu0 %v1383
        %v2708 = vpop.f32.mrf.mxu0
        %v2709 = vadd.f32 0.0, %v2708
        %v2710 = vpop.f32.mrf.mxu0
        %v2711 = vadd.f32 0.0, %v2710
        %2712 = vmatmul.bf16.gmra.mxu0 %v1387
        %v2713 = vpop.f32.mrf.mxu0
        %v2714 = vadd.f32 0.0, %v2713
        %v2715 = vpop.f32.mrf.mxu0
        %v2716 = vadd.f32 0.0, %v2715
        %2717 = vmatmul.bf16.gmra.mxu0 %v1391
        %v2718 = vpop.f32.mrf.mxu0
        %v2719 = vadd.f32 0.0, %v2718
        %v2720 = vpop.f32.mrf.mxu0
        %v2721 = vadd.f32 0.0, %v2720
        %2722 = vmatmul.bf16.gmra.mxu0 %v1395
        %v2723 = vpop.f32.mrf.mxu0
        %v2724 = vadd.f32 0.0, %v2723
        %v2725 = vpop.f32.mrf.mxu0
        %v2726 = vadd.f32 0.0, %v2725
        %2727 = vmatmul.bf16.gmra.mxu0 %v1399
        %v2728 = vpop.f32.mrf.mxu0
        %v2729 = vadd.f32 0.0, %v2728
        %v2730 = vpop.f32.mrf.mxu0
        %v2731 = vadd.f32 0.0, %v2730
        %2732 = vmatmul.bf16.gmra.mxu0 %v1403
        %v2733 = vpop.f32.mrf.mxu0
        %v2734 = vadd.f32 0.0, %v2733
        %v2735 = vpop.f32.mrf.mxu0
        %v2736 = vadd.f32 0.0, %v2735
        %2737 = vmatmul.bf16.gmra.mxu0 %v1407
        %v2738 = vpop.f32.mrf.mxu0
        %v2739 = vadd.f32 0.0, %v2738
        %v2740 = vpop.f32.mrf.mxu0
        %v2741 = vadd.f32 0.0, %v2740
        %2742 = vmatmul.bf16.gmra.mxu0 %v1411
        %v2743 = vpop.f32.mrf.mxu0
        %v2744 = vadd.f32 0.0, %v2743
        %v2745 = vpop.f32.mrf.mxu0
        %v2746 = vadd.f32 0.0, %v2745
        %2747 = vdwg.mxu0
        %2748 = vmatpush.bf16.msra.mxu0 %v2067
        %2749 = vmatpush.bf16.msra.mxu0 %v2062
        %2750 = vmatpush.bf16.msra.mxu0 %v2057
        %2751 = vmatpush.bf16.msra.mxu0 %v2052
        %2752 = vmatpush.bf16.msra.mxu0 %v2047
        %2753 = vmatpush.bf16.msra.mxu0 %v2042
        %2754 = vmatpush.bf16.msra.mxu0 %v2037
        %2755 = vmatpush.bf16.msra.mxu0 %v2032
        %2756 = vmatmul.bf16.gmra.mxu0 %v1352
        %v2757 = vpop.f32.mrf.mxu0
        %v2758 = vadd.f32 %v2669, %v2757
        %v2759 = vpop.f32.mrf.mxu0
        %v2760 = vadd.f32 %v2671, %v2759
        %2761 = vmatmul.bf16.gmra.mxu0 %v1356
        %v2762 = vpop.f32.mrf.mxu0
        %v2763 = vadd.f32 %v2674, %v2762
        %v2764 = vpop.f32.mrf.mxu0
        %v2765 = vadd.f32 %v2676, %v2764
        %2766 = vmatmul.bf16.gmra.mxu0 %v1360
        %v2767 = vpop.f32.mrf.mxu0
        %v2768 = vadd.f32 %v2679, %v2767
        %v2769 = vpop.f32.mrf.mxu0
        %v2770 = vadd.f32 %v2681, %v2769
        %2771 = vmatmul.bf16.gmra.mxu0 %v1364
        %v2772 = vpop.f32.mrf.mxu0
        %v2773 = vadd.f32 %v2684, %v2772
        %v2774 = vpop.f32.mrf.mxu0
        %v2775 = vadd.f32 %v2686, %v2774
        %2776 = vmatmul.bf16.gmra.mxu0 %v1368
        %v2777 = vpop.f32.mrf.mxu0
        %v2778 = vadd.f32 %v2689, %v2777
        %v2779 = vpop.f32.mrf.mxu0
        %v2780 = vadd.f32 %v2691, %v2779
        %2781 = vmatmul.bf16.gmra.mxu0 %v1372
        %v2782 = vpop.f32.mrf.mxu0
        %v2783 = vadd.f32 %v2694, %v2782
        %v2784 = vpop.f32.mrf.mxu0
        %v2785 = vadd.f32 %v2696, %v2784
        %2786 = vmatmul.bf16.gmra.mxu0 %v1376
        %v2787 = vpop.f32.mrf.mxu0
        %v2788 = vadd.f32 %v2699, %v2787
        %v2789 = vpop.f32.mrf.mxu0
        %v2790 = vadd.f32 %v2701, %v2789
        %2791 = vmatmul.bf16.gmra.mxu0 %v1380
        %v2792 = vpop.f32.mrf.mxu0
        %v2793 = vadd.f32 %v2704, %v2792
        %v2794 = vpop.f32.mrf.mxu0
        %v2795 = vadd.f32 %v2706, %v2794
        %2796 = vmatmul.bf16.gmra.mxu0 %v1384
        %v2797 = vpop.f32.mrf.mxu0
        %v2798 = vadd.f32 %v2709, %v2797
        %v2799 = vpop.f32.mrf.mxu0
        %v2800 = vadd.f32 %v2711, %v2799
        %2801 = vmatmul.bf16.gmra.mxu0 %v1388
        %v2802 = vpop.f32.mrf.mxu0
        %v2803 = vadd.f32 %v2714, %v2802
        %v2804 = vpop.f32.mrf.mxu0
        %v2805 = vadd.f32 %v2716, %v2804
        %2806 = vmatmul.bf16.gmra.mxu0 %v1392
        %v2807 = vpop.f32.mrf.mxu0
        %v2808 = vadd.f32 %v2719, %v2807
        %v2809 = vpop.f32.mrf.mxu0
        %v2810 = vadd.f32 %v2721, %v2809
        %2811 = vmatmul.bf16.gmra.mxu0 %v1396
        %v2812 = vpop.f32.mrf.mxu0
        %v2813 = vadd.f32 %v2724, %v2812
        %v2814 = vpop.f32.mrf.mxu0
        %v2815 = vadd.f32 %v2726, %v2814
        %2816 = vmatmul.bf16.gmra.mxu0 %v1400
        %v2817 = vpop.f32.mrf.mxu0
        %v2818 = vadd.f32 %v2729, %v2817
        %v2819 = vpop.f32.mrf.mxu0
        %v2820 = vadd.f32 %v2731, %v2819
        %2821 = vmatmul.bf16.gmra.mxu0 %v1404
        %v2822 = vpop.f32.mrf.mxu0
        %v2823 = vadd.f32 %v2734, %v2822
        %v2824 = vpop.f32.mrf.mxu0
        %v2825 = vadd.f32 %v2736, %v2824
        %2826 = vmatmul.bf16.gmra.mxu0 %v1408
        %v2827 = vpop.f32.mrf.mxu0
        %v2828 = vadd.f32 %v2739, %v2827
        %v2829 = vpop.f32.mrf.mxu0
        %v2830 = vadd.f32 %v2741, %v2829
        %2831 = vmatmul.bf16.gmra.mxu0 %v1412
        %v2832 = vpop.f32.mrf.mxu0
        %v2833 = vadd.f32 %v2744, %v2832
        %v2834 = vpop.f32.mrf.mxu0
        %v2835 = vadd.f32 %v2746, %v2834
        %2836 = vdwg.mxu0
        %2837 = vmatpush.bf16.msra.mxu0 %v2107
        %2838 = vmatpush.bf16.msra.mxu0 %v2102
        %2839 = vmatpush.bf16.msra.mxu0 %v2097
        %2840 = vmatpush.bf16.msra.mxu0 %v2092
        %2841 = vmatpush.bf16.msra.mxu0 %v2087
        %2842 = vmatpush.bf16.msra.mxu0 %v2082
        %2843 = vmatpush.bf16.msra.mxu0 %v2077
        %2844 = vmatpush.bf16.msra.mxu0 %v2072
        %2845 = vmatmul.bf16.gmra.mxu0 %v1353
        %v2846 = vpop.f32.mrf.mxu0
        %v2847 = vadd.f32 %v2758, %v2846
        %v2848 = vpop.f32.mrf.mxu0
        %v2849 = vadd.f32 %v2760, %v2848
        %2850 = vmatmul.bf16.gmra.mxu0 %v1357
        %v2851 = vpop.f32.mrf.mxu0
        %v2852 = vadd.f32 %v2763, %v2851
        %v2853 = vpop.f32.mrf.mxu0
        %v2854 = vadd.f32 %v2765, %v2853
        %2855 = vmatmul.bf16.gmra.mxu0 %v1361
        %v2856 = vpop.f32.mrf.mxu0
        %v2857 = vadd.f32 %v2768, %v2856
        %v2858 = vpop.f32.mrf.mxu0
        %v2859 = vadd.f32 %v2770, %v2858
        %2860 = vmatmul.bf16.gmra.mxu0 %v1365
        %v2861 = vpop.f32.mrf.mxu0
        %v2862 = vadd.f32 %v2773, %v2861
        %v2863 = vpop.f32.mrf.mxu0
        %v2864 = vadd.f32 %v2775, %v2863
        %2865 = vmatmul.bf16.gmra.mxu0 %v1369
        %v2866 = vpop.f32.mrf.mxu0
        %v2867 = vadd.f32 %v2778, %v2866
        %v2868 = vpop.f32.mrf.mxu0
        %v2869 = vadd.f32 %v2780, %v2868
        %2870 = vmatmul.bf16.gmra.mxu0 %v1373
        %v2871 = vpop.f32.mrf.mxu0
        %v2872 = vadd.f32 %v2783, %v2871
        %v2873 = vpop.f32.mrf.mxu0
        %v2874 = vadd.f32 %v2785, %v2873
        %2875 = vmatmul.bf16.gmra.mxu0 %v1377
        %v2876 = vpop.f32.mrf.mxu0
        %v2877 = vadd.f32 %v2788, %v2876
        %v2878 = vpop.f32.mrf.mxu0
        %v2879 = vadd.f32 %v2790, %v2878
        %2880 = vmatmul.bf16.gmra.mxu0 %v1381
        %v2881 = vpop.f32.mrf.mxu0
        %v2882 = vadd.f32 %v2793, %v2881
        %v2883 = vpop.f32.mrf.mxu0
        %v2884 = vadd.f32 %v2795, %v2883
        %2885 = vmatmul.bf16.gmra.mxu0 %v1385
        %v2886 = vpop.f32.mrf.mxu0
        %v2887 = vadd.f32 %v2798, %v2886
        %v2888 = vpop.f32.mrf.mxu0
        %v2889 = vadd.f32 %v2800, %v2888
        %2890 = vmatmul.bf16.gmra.mxu0 %v1389
        %v2891 = vpop.f32.mrf.mxu0
        %v2892 = vadd.f32 %v2803, %v2891
        %v2893 = vpop.f32.mrf.mxu0
        %v2894 = vadd.f32 %v2805, %v2893
        %2895 = vmatmul.bf16.gmra.mxu0 %v1393
        %v2896 = vpop.f32.mrf.mxu0
        %v2897 = vadd.f32 %v2808, %v2896
        %v2898 = vpop.f32.mrf.mxu0
        %v2899 = vadd.f32 %v2810, %v2898
        %2900 = vmatmul.bf16.gmra.mxu0 %v1397
        %v2901 = vpop.f32.mrf.mxu0
        %v2902 = vadd.f32 %v2813, %v2901
        %v2903 = vpop.f32.mrf.mxu0
        %v2904 = vadd.f32 %v2815, %v2903
        %2905 = vmatmul.bf16.gmra.mxu0 %v1401
        %v2906 = vpop.f32.mrf.mxu0
        %v2907 = vadd.f32 %v2818, %v2906
        %v2908 = vpop.f32.mrf.mxu0
        %v2909 = vadd.f32 %v2820, %v2908
        %2910 = vmatmul.bf16.gmra.mxu0 %v1405
        %v2911 = vpop.f32.mrf.mxu0
        %v2912 = vadd.f32 %v2823, %v2911
        %v2913 = vpop.f32.mrf.mxu0
        %v2914 = vadd.f32 %v2825, %v2913
        %2915 = vmatmul.bf16.gmra.mxu0 %v1409
        %v2916 = vpop.f32.mrf.mxu0
        %v2917 = vadd.f32 %v2828, %v2916
        %v2918 = vpop.f32.mrf.mxu0
        %v2919 = vadd.f32 %v2830, %v2918
        %2920 = vmatmul.bf16.gmra.mxu0 %v1413
        %v2921 = vpop.f32.mrf.mxu0
        %v2922 = vadd.f32 %v2833, %v2921
        %v2923 = vpop.f32.mrf.mxu0
        %v2924 = vadd.f32 %v2835, %v2923
        %2925 = vdwg.mxu0
        %2926 = vmatpush.bf16.msra.mxu0 %v2147
        %2927 = vmatpush.bf16.msra.mxu0 %v2142
        %2928 = vmatpush.bf16.msra.mxu0 %v2137
        %2929 = vmatpush.bf16.msra.mxu0 %v2132
        %2930 = vmatpush.bf16.msra.mxu0 %v2127
        %2931 = vmatpush.bf16.msra.mxu0 %v2122
        %2932 = vmatpush.bf16.msra.mxu0 %v2117
        %2933 = vmatpush.bf16.msra.mxu0 %v2112
        %2934 = vmatmul.bf16.gmra.mxu0 %v1354
        %v2935 = vpop.f32.mrf.mxu0
        %v2936 = vadd.f32 %v2847, %v2935
        %v2937 = vpop.f32.mrf.mxu0
        %v2938 = vadd.f32 %v2849, %v2937
        %2939 = vmatmul.bf16.gmra.mxu0 %v1358
        %v2940 = vpop.f32.mrf.mxu0
        %v2941 = vadd.f32 %v2852, %v2940
        %v2942 = vpop.f32.mrf.mxu0
        %v2943 = vadd.f32 %v2854, %v2942
        %2944 = vmatmul.bf16.gmra.mxu0 %v1362
        %v2945 = vpop.f32.mrf.mxu0
        %v2946 = vadd.f32 %v2857, %v2945
        %v2947 = vpop.f32.mrf.mxu0
        %v2948 = vadd.f32 %v2859, %v2947
        %2949 = vmatmul.bf16.gmra.mxu0 %v1366
        %v2950 = vpop.f32.mrf.mxu0
        %v2951 = vadd.f32 %v2862, %v2950
        %v2952 = vpop.f32.mrf.mxu0
        %v2953 = vadd.f32 %v2864, %v2952
        %2954 = vmatmul.bf16.gmra.mxu0 %v1370
        %v2955 = vpop.f32.mrf.mxu0
        %v2956 = vadd.f32 %v2867, %v2955
        %v2957 = vpop.f32.mrf.mxu0
        %v2958 = vadd.f32 %v2869, %v2957
        %2959 = vmatmul.bf16.gmra.mxu0 %v1374
        %v2960 = vpop.f32.mrf.mxu0
        %v2961 = vadd.f32 %v2872, %v2960
        %v2962 = vpop.f32.mrf.mxu0
        %v2963 = vadd.f32 %v2874, %v2962
        %2964 = vmatmul.bf16.gmra.mxu0 %v1378
        %v2965 = vpop.f32.mrf.mxu0
        %v2966 = vadd.f32 %v2877, %v2965
        %v2967 = vpop.f32.mrf.mxu0
        %v2968 = vadd.f32 %v2879, %v2967
        %2969 = vmatmul.bf16.gmra.mxu0 %v1382
        %v2970 = vpop.f32.mrf.mxu0
        %v2971 = vadd.f32 %v2882, %v2970
        %v2972 = vpop.f32.mrf.mxu0
        %v2973 = vadd.f32 %v2884, %v2972
        %2974 = vmatmul.bf16.gmra.mxu0 %v1386
        %v2975 = vpop.f32.mrf.mxu0
        %v2976 = vadd.f32 %v2887, %v2975
        %v2977 = vpop.f32.mrf.mxu0
        %v2978 = vadd.f32 %v2889, %v2977
        %2979 = vmatmul.bf16.gmra.mxu0 %v1390
        %v2980 = vpop.f32.mrf.mxu0
        %v2981 = vadd.f32 %v2892, %v2980
        %v2982 = vpop.f32.mrf.mxu0
        %v2983 = vadd.f32 %v2894, %v2982
        %2984 = vmatmul.bf16.gmra.mxu0 %v1394
        %v2985 = vpop.f32.mrf.mxu0
        %v2986 = vadd.f32 %v2897, %v2985
        %v2987 = vpop.f32.mrf.mxu0
        %v2988 = vadd.f32 %v2899, %v2987
        %2989 = vmatmul.bf16.gmra.mxu0 %v1398
        %v2990 = vpop.f32.mrf.mxu0
        %v2991 = vadd.f32 %v2902, %v2990
        %v2992 = vpop.f32.mrf.mxu0
        %v2993 = vadd.f32 %v2904, %v2992
        %2994 = vmatmul.bf16.gmra.mxu0 %v1402
        %v2995 = vpop.f32.mrf.mxu0
        %v2996 = vadd.f32 %v2907, %v2995
        %v2997 = vpop.f32.mrf.mxu0
        %v2998 = vadd.f32 %v2909, %v2997
        %2999 = vmatmul.bf16.gmra.mxu0 %v1406
        %v3000 = vpop.f32.mrf.mxu0
        %v3001 = vadd.f32 %v2912, %v3000
        %v3002 = vpop.f32.mrf.mxu0
        %v3003 = vadd.f32 %v2914, %v3002
        %3004 = vmatmul.bf16.gmra.mxu0 %v1410
        %v3005 = vpop.f32.mrf.mxu0
        %v3006 = vadd.f32 %v2917, %v3005
        %v3007 = vpop.f32.mrf.mxu0
        %v3008 = vadd.f32 %v2919, %v3007
        %3009 = vmatmul.bf16.gmra.mxu0 %v1414
        %v3010 = vpop.f32.mrf.mxu0
        %v3011 = vadd.f32 %v2922, %v3010
        %v3012 = vpop.f32.mrf.mxu0
        %v3013 = vadd.f32 %v2924, %v3012
        %3014 = vdwg.mxu0
        %3015 = vmatpush.bf16.msra.mxu0 %v2028
        %3016 = vmatpush.bf16.msra.mxu0 %v2023
        %3017 = vmatpush.bf16.msra.mxu0 %v2018
        %3018 = vmatpush.bf16.msra.mxu0 %v2013
        %3019 = vmatpush.bf16.msra.mxu0 %v2008
        %3020 = vmatpush.bf16.msra.mxu0 %v2003
        %3021 = vmatpush.bf16.msra.mxu0 %v1998
        %3022 = vmatpush.bf16.msra.mxu0 %v1993
        %3023 = vmatmul.bf16.gmra.mxu0 %v1351
        %v3024 = vpop.f32.mrf.mxu0
        %v3025 = vadd.f32 0.0, %v3024
        %v3026 = vpop.f32.mrf.mxu0
        %v3027 = vadd.f32 0.0, %v3026
        %3028 = vmatmul.bf16.gmra.mxu0 %v1355
        %v3029 = vpop.f32.mrf.mxu0
        %v3030 = vadd.f32 0.0, %v3029
        %v3031 = vpop.f32.mrf.mxu0
        %v3032 = vadd.f32 0.0, %v3031
        %3033 = vmatmul.bf16.gmra.mxu0 %v1359
        %v3034 = vpop.f32.mrf.mxu0
        %v3035 = vadd.f32 0.0, %v3034
        %v3036 = vpop.f32.mrf.mxu0
        %v3037 = vadd.f32 0.0, %v3036
        %3038 = vmatmul.bf16.gmra.mxu0 %v1363
        %v3039 = vpop.f32.mrf.mxu0
        %v3040 = vadd.f32 0.0, %v3039
        %v3041 = vpop.f32.mrf.mxu0
        %v3042 = vadd.f32 0.0, %v3041
        %3043 = vmatmul.bf16.gmra.mxu0 %v1367
        %v3044 = vpop.f32.mrf.mxu0
        %v3045 = vadd.f32 0.0, %v3044
        %v3046 = vpop.f32.mrf.mxu0
        %v3047 = vadd.f32 0.0, %v3046
        %3048 = vmatmul.bf16.gmra.mxu0 %v1371
        %v3049 = vpop.f32.mrf.mxu0
        %v3050 = vadd.f32 0.0, %v3049
        %v3051 = vpop.f32.mrf.mxu0
        %v3052 = vadd.f32 0.0, %v3051
        %3053 = vmatmul.bf16.gmra.mxu0 %v1375
        %v3054 = vpop.f32.mrf.mxu0
        %v3055 = vadd.f32 0.0, %v3054
        %v3056 = vpop.f32.mrf.mxu0
        %v3057 = vadd.f32 0.0, %v3056
        %3058 = vmatmul.bf16.gmra.mxu0 %v1379
        %v3059 = vpop.f32.mrf.mxu0
        %v3060 = vadd.f32 0.0, %v3059
        %v3061 = vpop.f32.mrf.mxu0
        %v3062 = vadd.f32 0.0, %v3061
        %3063 = vmatmul.bf16.gmra.mxu0 %v1383
        %v3064 = vpop.f32.mrf.mxu0
        %v3065 = vadd.f32 0.0, %v3064
        %v3066 = vpop.f32.mrf.mxu0
        %v3067 = vadd.f32 0.0, %v3066
        %3068 = vmatmul.bf16.gmra.mxu0 %v1387
        %v3069 = vpop.f32.mrf.mxu0
        %v3070 = vadd.f32 0.0, %v3069
        %v3071 = vpop.f32.mrf.mxu0
        %v3072 = vadd.f32 0.0, %v3071
        %3073 = vmatmul.bf16.gmra.mxu0 %v1391
        %v3074 = vpop.f32.mrf.mxu0
        %v3075 = vadd.f32 0.0, %v3074
        %v3076 = vpop.f32.mrf.mxu0
        %v3077 = vadd.f32 0.0, %v3076
        %3078 = vmatmul.bf16.gmra.mxu0 %v1395
        %v3079 = vpop.f32.mrf.mxu0
        %v3080 = vadd.f32 0.0, %v3079
        %v3081 = vpop.f32.mrf.mxu0
        %v3082 = vadd.f32 0.0, %v3081
        %3083 = vmatmul.bf16.gmra.mxu0 %v1399
        %v3084 = vpop.f32.mrf.mxu0
        %v3085 = vadd.f32 0.0, %v3084
        %v3086 = vpop.f32.mrf.mxu0
        %v3087 = vadd.f32 0.0, %v3086
        %3088 = vmatmul.bf16.gmra.mxu0 %v1403
        %v3089 = vpop.f32.mrf.mxu0
        %v3090 = vadd.f32 0.0, %v3089
        %v3091 = vpop.f32.mrf.mxu0
        %v3092 = vadd.f32 0.0, %v3091
        %3093 = vmatmul.bf16.gmra.mxu0 %v1407
        %v3094 = vpop.f32.mrf.mxu0
        %v3095 = vadd.f32 0.0, %v3094
        %v3096 = vpop.f32.mrf.mxu0
        %v3097 = vadd.f32 0.0, %v3096
        %3098 = vmatmul.bf16.gmra.mxu0 %v1411
        %v3099 = vpop.f32.mrf.mxu0
        %v3100 = vadd.f32 0.0, %v3099
        %v3101 = vpop.f32.mrf.mxu0
        %v3102 = vadd.f32 0.0, %v3101
        %3103 = vdwg.mxu0
        %3104 = vmatpush.bf16.msra.mxu0 %v2068
        %3105 = vmatpush.bf16.msra.mxu0 %v2063
        %3106 = vmatpush.bf16.msra.mxu0 %v2058
        %3107 = vmatpush.bf16.msra.mxu0 %v2053
        %3108 = vmatpush.bf16.msra.mxu0 %v2048
        %3109 = vmatpush.bf16.msra.mxu0 %v2043
        %3110 = vmatpush.bf16.msra.mxu0 %v2038
        %3111 = vmatpush.bf16.msra.mxu0 %v2033
        %3112 = vmatmul.bf16.gmra.mxu0 %v1352
        %v3113 = vpop.f32.mrf.mxu0
        %v3114 = vadd.f32 %v3025, %v3113
        %v3115 = vpop.f32.mrf.mxu0
        %v3116 = vadd.f32 %v3027, %v3115
        %3117 = vmatmul.bf16.gmra.mxu0 %v1356
        %v3118 = vpop.f32.mrf.mxu0
        %v3119 = vadd.f32 %v3030, %v3118
        %v3120 = vpop.f32.mrf.mxu0
        %v3121 = vadd.f32 %v3032, %v3120
        %3122 = vmatmul.bf16.gmra.mxu0 %v1360
        %v3123 = vpop.f32.mrf.mxu0
        %v3124 = vadd.f32 %v3035, %v3123
        %v3125 = vpop.f32.mrf.mxu0
        %v3126 = vadd.f32 %v3037, %v3125
        %3127 = vmatmul.bf16.gmra.mxu0 %v1364
        %v3128 = vpop.f32.mrf.mxu0
        %v3129 = vadd.f32 %v3040, %v3128
        %v3130 = vpop.f32.mrf.mxu0
        %v3131 = vadd.f32 %v3042, %v3130
        %3132 = vmatmul.bf16.gmra.mxu0 %v1368
        %v3133 = vpop.f32.mrf.mxu0
        %v3134 = vadd.f32 %v3045, %v3133
        %v3135 = vpop.f32.mrf.mxu0
        %v3136 = vadd.f32 %v3047, %v3135
        %3137 = vmatmul.bf16.gmra.mxu0 %v1372
        %v3138 = vpop.f32.mrf.mxu0
        %v3139 = vadd.f32 %v3050, %v3138
        %v3140 = vpop.f32.mrf.mxu0
        %v3141 = vadd.f32 %v3052, %v3140
        %3142 = vmatmul.bf16.gmra.mxu0 %v1376
        %v3143 = vpop.f32.mrf.mxu0
        %v3144 = vadd.f32 %v3055, %v3143
        %v3145 = vpop.f32.mrf.mxu0
        %v3146 = vadd.f32 %v3057, %v3145
        %3147 = vmatmul.bf16.gmra.mxu0 %v1380
        %v3148 = vpop.f32.mrf.mxu0
        %v3149 = vadd.f32 %v3060, %v3148
        %v3150 = vpop.f32.mrf.mxu0
        %v3151 = vadd.f32 %v3062, %v3150
        %3152 = vmatmul.bf16.gmra.mxu0 %v1384
        %v3153 = vpop.f32.mrf.mxu0
        %v3154 = vadd.f32 %v3065, %v3153
        %v3155 = vpop.f32.mrf.mxu0
        %v3156 = vadd.f32 %v3067, %v3155
        %3157 = vmatmul.bf16.gmra.mxu0 %v1388
        %v3158 = vpop.f32.mrf.mxu0
        %v3159 = vadd.f32 %v3070, %v3158
        %v3160 = vpop.f32.mrf.mxu0
        %v3161 = vadd.f32 %v3072, %v3160
        %3162 = vmatmul.bf16.gmra.mxu0 %v1392
        %v3163 = vpop.f32.mrf.mxu0
        %v3164 = vadd.f32 %v3075, %v3163
        %v3165 = vpop.f32.mrf.mxu0
        %v3166 = vadd.f32 %v3077, %v3165
        %3167 = vmatmul.bf16.gmra.mxu0 %v1396
        %v3168 = vpop.f32.mrf.mxu0
        %v3169 = vadd.f32 %v3080, %v3168
        %v3170 = vpop.f32.mrf.mxu0
        %v3171 = vadd.f32 %v3082, %v3170
        %3172 = vmatmul.bf16.gmra.mxu0 %v1400
        %v3173 = vpop.f32.mrf.mxu0
        %v3174 = vadd.f32 %v3085, %v3173
        %v3175 = vpop.f32.mrf.mxu0
        %v3176 = vadd.f32 %v3087, %v3175
        %3177 = vmatmul.bf16.gmra.mxu0 %v1404
        %v3178 = vpop.f32.mrf.mxu0
        %v3179 = vadd.f32 %v3090, %v3178
        %v3180 = vpop.f32.mrf.mxu0
        %v3181 = vadd.f32 %v3092, %v3180
        %3182 = vmatmul.bf16.gmra.mxu0 %v1408
        %v3183 = vpop.f32.mrf.mxu0
        %v3184 = vadd.f32 %v3095, %v3183
        %v3185 = vpop.f32.mrf.mxu0
        %v3186 = vadd.f32 %v3097, %v3185
        %3187 = vmatmul.bf16.gmra.mxu0 %v1412
        %v3188 = vpop.f32.mrf.mxu0
        %v3189 = vadd.f32 %v3100, %v3188
        %v3190 = vpop.f32.mrf.mxu0
        %v3191 = vadd.f32 %v3102, %v3190
        %3192 = vdwg.mxu0
        %3193 = vmatpush.bf16.msra.mxu0 %v2108
        %3194 = vmatpush.bf16.msra.mxu0 %v2103
        %3195 = vmatpush.bf16.msra.mxu0 %v2098
        %3196 = vmatpush.bf16.msra.mxu0 %v2093
        %3197 = vmatpush.bf16.msra.mxu0 %v2088
        %3198 = vmatpush.bf16.msra.mxu0 %v2083
        %3199 = vmatpush.bf16.msra.mxu0 %v2078
        %3200 = vmatpush.bf16.msra.mxu0 %v2073
        %3201 = vmatmul.bf16.gmra.mxu0 %v1353
        %v3202 = vpop.f32.mrf.mxu0
        %v3203 = vadd.f32 %v3114, %v3202
        %v3204 = vpop.f32.mrf.mxu0
        %v3205 = vadd.f32 %v3116, %v3204
        %3206 = vmatmul.bf16.gmra.mxu0 %v1357
        %v3207 = vpop.f32.mrf.mxu0
        %v3208 = vadd.f32 %v3119, %v3207
        %v3209 = vpop.f32.mrf.mxu0
        %v3210 = vadd.f32 %v3121, %v3209
        %3211 = vmatmul.bf16.gmra.mxu0 %v1361
        %v3212 = vpop.f32.mrf.mxu0
        %v3213 = vadd.f32 %v3124, %v3212
        %v3214 = vpop.f32.mrf.mxu0
        %v3215 = vadd.f32 %v3126, %v3214
        %3216 = vmatmul.bf16.gmra.mxu0 %v1365
        %v3217 = vpop.f32.mrf.mxu0
        %v3218 = vadd.f32 %v3129, %v3217
        %v3219 = vpop.f32.mrf.mxu0
        %v3220 = vadd.f32 %v3131, %v3219
        %3221 = vmatmul.bf16.gmra.mxu0 %v1369
        %v3222 = vpop.f32.mrf.mxu0
        %v3223 = vadd.f32 %v3134, %v3222
        %v3224 = vpop.f32.mrf.mxu0
        %v3225 = vadd.f32 %v3136, %v3224
        %3226 = vmatmul.bf16.gmra.mxu0 %v1373
        %v3227 = vpop.f32.mrf.mxu0
        %v3228 = vadd.f32 %v3139, %v3227
        %v3229 = vpop.f32.mrf.mxu0
        %v3230 = vadd.f32 %v3141, %v3229
        %3231 = vmatmul.bf16.gmra.mxu0 %v1377
        %v3232 = vpop.f32.mrf.mxu0
        %v3233 = vadd.f32 %v3144, %v3232
        %v3234 = vpop.f32.mrf.mxu0
        %v3235 = vadd.f32 %v3146, %v3234
        %3236 = vmatmul.bf16.gmra.mxu0 %v1381
        %v3237 = vpop.f32.mrf.mxu0
        %v3238 = vadd.f32 %v3149, %v3237
        %v3239 = vpop.f32.mrf.mxu0
        %v3240 = vadd.f32 %v3151, %v3239
        %3241 = vmatmul.bf16.gmra.mxu0 %v1385
        %v3242 = vpop.f32.mrf.mxu0
        %v3243 = vadd.f32 %v3154, %v3242
        %v3244 = vpop.f32.mrf.mxu0
        %v3245 = vadd.f32 %v3156, %v3244
        %3246 = vmatmul.bf16.gmra.mxu0 %v1389
        %v3247 = vpop.f32.mrf.mxu0
        %v3248 = vadd.f32 %v3159, %v3247
        %v3249 = vpop.f32.mrf.mxu0
        %v3250 = vadd.f32 %v3161, %v3249
        %3251 = vmatmul.bf16.gmra.mxu0 %v1393
        %v3252 = vpop.f32.mrf.mxu0
        %v3253 = vadd.f32 %v3164, %v3252
        %v3254 = vpop.f32.mrf.mxu0
        %v3255 = vadd.f32 %v3166, %v3254
        %3256 = vmatmul.bf16.gmra.mxu0 %v1397
        %v3257 = vpop.f32.mrf.mxu0
        %v3258 = vadd.f32 %v3169, %v3257
        %v3259 = vpop.f32.mrf.mxu0
        %v3260 = vadd.f32 %v3171, %v3259
        %3261 = vmatmul.bf16.gmra.mxu0 %v1401
        %v3262 = vpop.f32.mrf.mxu0
        %v3263 = vadd.f32 %v3174, %v3262
        %v3264 = vpop.f32.mrf.mxu0
        %v3265 = vadd.f32 %v3176, %v3264
        %3266 = vmatmul.bf16.gmra.mxu0 %v1405
        %v3267 = vpop.f32.mrf.mxu0
        %v3268 = vadd.f32 %v3179, %v3267
        %v3269 = vpop.f32.mrf.mxu0
        %v3270 = vadd.f32 %v3181, %v3269
        %3271 = vmatmul.bf16.gmra.mxu0 %v1409
        %v3272 = vpop.f32.mrf.mxu0
        %v3273 = vadd.f32 %v3184, %v3272
        %v3274 = vpop.f32.mrf.mxu0
        %v3275 = vadd.f32 %v3186, %v3274
        %3276 = vmatmul.bf16.gmra.mxu0 %v1413
        %v3277 = vpop.f32.mrf.mxu0
        %v3278 = vadd.f32 %v3189, %v3277
        %v3279 = vpop.f32.mrf.mxu0
        %v3280 = vadd.f32 %v3191, %v3279
        %3281 = vdwg.mxu0
        %3282 = vmatpush.bf16.msra.mxu0 %v2148
        %3283 = vmatpush.bf16.msra.mxu0 %v2143
        %3284 = vmatpush.bf16.msra.mxu0 %v2138
        %3285 = vmatpush.bf16.msra.mxu0 %v2133
        %3286 = vmatpush.bf16.msra.mxu0 %v2128
        %3287 = vmatpush.bf16.msra.mxu0 %v2123
        %3288 = vmatpush.bf16.msra.mxu0 %v2118
        %3289 = vmatpush.bf16.msra.mxu0 %v2113
        %3290 = vmatmul.bf16.gmra.mxu0 %v1354
        %v3291 = vpop.f32.mrf.mxu0
        %v3292 = vadd.f32 %v3203, %v3291
        %v3293 = vpop.f32.mrf.mxu0
        %v3294 = vadd.f32 %v3205, %v3293
        %3295 = vmatmul.bf16.gmra.mxu0 %v1358
        %v3296 = vpop.f32.mrf.mxu0
        %v3297 = vadd.f32 %v3208, %v3296
        %v3298 = vpop.f32.mrf.mxu0
        %v3299 = vadd.f32 %v3210, %v3298
        %3300 = vmatmul.bf16.gmra.mxu0 %v1362
        %v3301 = vpop.f32.mrf.mxu0
        %v3302 = vadd.f32 %v3213, %v3301
        %v3303 = vpop.f32.mrf.mxu0
        %v3304 = vadd.f32 %v3215, %v3303
        %3305 = vmatmul.bf16.gmra.mxu0 %v1366
        %v3306 = vpop.f32.mrf.mxu0
        %v3307 = vadd.f32 %v3218, %v3306
        %v3308 = vpop.f32.mrf.mxu0
        %v3309 = vadd.f32 %v3220, %v3308
        %3310 = vmatmul.bf16.gmra.mxu0 %v1370
        %v3311 = vpop.f32.mrf.mxu0
        %v3312 = vadd.f32 %v3223, %v3311
        %v3313 = vpop.f32.mrf.mxu0
        %v3314 = vadd.f32 %v3225, %v3313
        %3315 = vmatmul.bf16.gmra.mxu0 %v1374
        %v3316 = vpop.f32.mrf.mxu0
        %v3317 = vadd.f32 %v3228, %v3316
        %v3318 = vpop.f32.mrf.mxu0
        %v3319 = vadd.f32 %v3230, %v3318
        %3320 = vmatmul.bf16.gmra.mxu0 %v1378
        %v3321 = vpop.f32.mrf.mxu0
        %v3322 = vadd.f32 %v3233, %v3321
        %v3323 = vpop.f32.mrf.mxu0
        %v3324 = vadd.f32 %v3235, %v3323
        %3325 = vmatmul.bf16.gmra.mxu0 %v1382
        %v3326 = vpop.f32.mrf.mxu0
        %v3327 = vadd.f32 %v3238, %v3326
        %v3328 = vpop.f32.mrf.mxu0
        %v3329 = vadd.f32 %v3240, %v3328
        %3330 = vmatmul.bf16.gmra.mxu0 %v1386
        %v3331 = vpop.f32.mrf.mxu0
        %v3332 = vadd.f32 %v3243, %v3331
        %v3333 = vpop.f32.mrf.mxu0
        %v3334 = vadd.f32 %v3245, %v3333
        %3335 = vmatmul.bf16.gmra.mxu0 %v1390
        %v3336 = vpop.f32.mrf.mxu0
        %v3337 = vadd.f32 %v3248, %v3336
        %v3338 = vpop.f32.mrf.mxu0
        %v3339 = vadd.f32 %v3250, %v3338
        %3340 = vmatmul.bf16.gmra.mxu0 %v1394
        %v3341 = vpop.f32.mrf.mxu0
        %v3342 = vadd.f32 %v3253, %v3341
        %v3343 = vpop.f32.mrf.mxu0
        %v3344 = vadd.f32 %v3255, %v3343
        %3345 = vmatmul.bf16.gmra.mxu0 %v1398
        %v3346 = vpop.f32.mrf.mxu0
        %v3347 = vadd.f32 %v3258, %v3346
        %v3348 = vpop.f32.mrf.mxu0
        %v3349 = vadd.f32 %v3260, %v3348
        %3350 = vmatmul.bf16.gmra.mxu0 %v1402
        %v3351 = vpop.f32.mrf.mxu0
        %v3352 = vadd.f32 %v3263, %v3351
        %v3353 = vpop.f32.mrf.mxu0
        %v3354 = vadd.f32 %v3265, %v3353
        %3355 = vmatmul.bf16.gmra.mxu0 %v1406
        %v3356 = vpop.f32.mrf.mxu0
        %v3357 = vadd.f32 %v3268, %v3356
        %v3358 = vpop.f32.mrf.mxu0
        %v3359 = vadd.f32 %v3270, %v3358
        %3360 = vmatmul.bf16.gmra.mxu0 %v1410
        %v3361 = vpop.f32.mrf.mxu0
        %v3362 = vadd.f32 %v3273, %v3361
        %v3363 = vpop.f32.mrf.mxu0
        %v3364 = vadd.f32 %v3275, %v3363
        %3365 = vmatmul.bf16.gmra.mxu0 %v1414
        %v3366 = vpop.f32.mrf.mxu0
        %v3367 = vadd.f32 %v3278, %v3366
        %v3368 = vpop.f32.mrf.mxu0
        %v3369 = vadd.f32 %v3280, %v3368
        %3370 = vdwg.mxu0
        %3371 = vmatpush.bf16.msra.mxu0 %v2029
        %3372 = vmatpush.bf16.msra.mxu0 %v2024
        %3373 = vmatpush.bf16.msra.mxu0 %v2019
        %3374 = vmatpush.bf16.msra.mxu0 %v2014
        %3375 = vmatpush.bf16.msra.mxu0 %v2009
        %3376 = vmatpush.bf16.msra.mxu0 %v2004
        %3377 = vmatpush.bf16.msra.mxu0 %v1999
        %3378 = vmatpush.bf16.msra.mxu0 %v1994
        %3379 = vmatmul.bf16.gmra.mxu0 %v1351
        %v3380 = vpop.f32.mrf.mxu0
        %v3381 = vpop.f32.mrf.mxu0
        %3382 = vmatmul.bf16.gmra.mxu0 %v1355
        %v3383 = vpop.f32.mrf.mxu0
        %v3384 = vadd.f32 0.0, %v3383
        %v3385 = vpop.f32.mrf.mxu0
        %v3386 = vadd.f32 0.0, %v3385
        %3387 = vmatmul.bf16.gmra.mxu0 %v1359
        %v3388 = vpop.f32.mrf.mxu0
        %v3389 = vadd.f32 0.0, %v3388
        %v3390 = vpop.f32.mrf.mxu0
        %v3391 = vadd.f32 0.0, %v3390
        %3392 = vmatmul.bf16.gmra.mxu0 %v1363
        %v3393 = vpop.f32.mrf.mxu0
        %v3394 = vadd.f32 0.0, %v3393
        %v3395 = vpop.f32.mrf.mxu0
        %v3396 = vadd.f32 0.0, %v3395
        %3397 = vmatmul.bf16.gmra.mxu0 %v1367
        %v3398 = vpop.f32.mrf.mxu0
        %v3399 = vadd.f32 0.0, %v3398
        %v3400 = vpop.f32.mrf.mxu0
        %v3401 = vadd.f32 0.0, %v3400
        %3402 = vmatmul.bf16.gmra.mxu0 %v1371
        %v3403 = vpop.f32.mrf.mxu0
        %v3404 = vadd.f32 0.0, %v3403
        %v3405 = vpop.f32.mrf.mxu0
        %v3406 = vadd.f32 0.0, %v3405
        %3407 = vmatmul.bf16.gmra.mxu0 %v1375
        %v3408 = vpop.f32.mrf.mxu0
        %v3409 = vadd.f32 0.0, %v3408
        %v3410 = vpop.f32.mrf.mxu0
        %v3411 = vadd.f32 0.0, %v3410
        %3412 = vmatmul.bf16.gmra.mxu0 %v1379
        %v3413 = vpop.f32.mrf.mxu0
        %v3414 = vadd.f32 0.0, %v3413
        %v3415 = vpop.f32.mrf.mxu0
        %v3416 = vadd.f32 0.0, %v3415
        %3417 = vmatmul.bf16.gmra.mxu0 %v1383
        %v3418 = vpop.f32.mrf.mxu0
        %v3419 = vadd.f32 0.0, %v3418
        %v3420 = vpop.f32.mrf.mxu0
        %v3421 = vadd.f32 0.0, %v3420
        %3422 = vmatmul.bf16.gmra.mxu0 %v1387
        %v3423 = vpop.f32.mrf.mxu0
        %v3424 = vadd.f32 0.0, %v3423
        %v3425 = vpop.f32.mrf.mxu0
        %v3426 = vadd.f32 0.0, %v3425
        %3427 = vmatmul.bf16.gmra.mxu0 %v1391
        %v3428 = vpop.f32.mrf.mxu0
        %v3429 = vadd.f32 0.0, %v3428
        %v3430 = vpop.f32.mrf.mxu0
        %v3431 = vadd.f32 0.0, %v3430
        %3432 = vmatmul.bf16.gmra.mxu0 %v1395
        %v3433 = vpop.f32.mrf.mxu0
        %v3434 = vadd.f32 0.0, %v3433
        %v3435 = vpop.f32.mrf.mxu0
        %v3436 = vadd.f32 0.0, %v3435
        %3437 = vmatmul.bf16.gmra.mxu0 %v1399
        %v3438 = vpop.f32.mrf.mxu0
        %v3439 = vadd.f32 0.0, %v3438
        %v3440 = vpop.f32.mrf.mxu0
        %v3441 = vadd.f32 0.0, %v3440
        %3442 = vmatmul.bf16.gmra.mxu0 %v1403
        %v3443 = vpop.f32.mrf.mxu0
        %v3444 = vadd.f32 0.0, %v3443
        %v3445 = vpop.f32.mrf.mxu0
        %v3446 = vadd.f32 0.0, %v3445
        %3447 = vmatmul.bf16.gmra.mxu0 %v1407
        %v3448 = vpop.f32.mrf.mxu0
        %v3449 = vadd.f32 0.0, %v3448
        %v3450 = vpop.f32.mrf.mxu0
        %v3451 = vadd.f32 0.0, %v3450
        %3452 = vmatmul.bf16.gmra.mxu0 %v1411
        %v3453 = vpop.f32.mrf.mxu0
        %v3454 = vadd.f32 0.0, %v3453
        %v3455 = vpop.f32.mrf.mxu0
        %v3456 = vadd.f32 0.0, %v3455
        %3457 = vdwg.mxu0
        %3458 = vmatpush.bf16.msra.mxu0 %v2069
        %3459 = vmatpush.bf16.msra.mxu0 %v2064
        %3460 = vmatpush.bf16.msra.mxu0 %v2059
        %3461 = vmatpush.bf16.msra.mxu0 %v2054
        %3462 = vmatpush.bf16.msra.mxu0 %v2049
        %3463 = vmatpush.bf16.msra.mxu0 %v2044
        %3464 = vmatpush.bf16.msra.mxu0 %v2039
        %3465 = vmatpush.bf16.msra.mxu0 %v2034
        %3466 = vmatmul.bf16.gmra.mxu0 %v1352
        %v3467 = vpop.f32.mrf.mxu0
        %v3468 = vpop.f32.mrf.mxu0
        %3469 = vmatmul.bf16.gmra.mxu0 %v1356
        %v3470 = vpop.f32.mrf.mxu0
        %v3471 = vadd.f32 %v3384, %v3470
        %v3472 = vpop.f32.mrf.mxu0
        %v3473 = vadd.f32 %v3386, %v3472
        %3474 = vmatmul.bf16.gmra.mxu0 %v1360
        %v3475 = vpop.f32.mrf.mxu0
        %v3476 = vadd.f32 %v3389, %v3475
        %v3477 = vpop.f32.mrf.mxu0
        %v3478 = vadd.f32 %v3391, %v3477
        %3479 = vmatmul.bf16.gmra.mxu0 %v1364
        %v3480 = vpop.f32.mrf.mxu0
        %v3481 = vadd.f32 %v3394, %v3480
        %v3482 = vpop.f32.mrf.mxu0
        %v3483 = vadd.f32 %v3396, %v3482
        %3484 = vmatmul.bf16.gmra.mxu0 %v1368
        %v3485 = vpop.f32.mrf.mxu0
        %v3486 = vadd.f32 %v3399, %v3485
        %v3487 = vpop.f32.mrf.mxu0
        %v3488 = vadd.f32 %v3401, %v3487
        %3489 = vmatmul.bf16.gmra.mxu0 %v1372
        %v3490 = vpop.f32.mrf.mxu0
        %v3491 = vadd.f32 %v3404, %v3490
        %v3492 = vpop.f32.mrf.mxu0
        %v3493 = vadd.f32 %v3406, %v3492
        %3494 = vmatmul.bf16.gmra.mxu0 %v1376
        %v3495 = vpop.f32.mrf.mxu0
        %v3496 = vadd.f32 %v3409, %v3495
        %v3497 = vpop.f32.mrf.mxu0
        %v3498 = vadd.f32 %v3411, %v3497
        %3499 = vmatmul.bf16.gmra.mxu0 %v1380
        %v3500 = vpop.f32.mrf.mxu0
        %v3501 = vadd.f32 %v3414, %v3500
        %v3502 = vpop.f32.mrf.mxu0
        %v3503 = vadd.f32 %v3416, %v3502
        %3504 = vmatmul.bf16.gmra.mxu0 %v1384
        %v3505 = vpop.f32.mrf.mxu0
        %v3506 = vadd.f32 %v3419, %v3505
        %v3507 = vpop.f32.mrf.mxu0
        %v3508 = vadd.f32 %v3421, %v3507
        %3509 = vmatmul.bf16.gmra.mxu0 %v1388
        %v3510 = vpop.f32.mrf.mxu0
        %v3511 = vadd.f32 %v3424, %v3510
        %v3512 = vpop.f32.mrf.mxu0
        %v3513 = vadd.f32 %v3426, %v3512
        %3514 = vmatmul.bf16.gmra.mxu0 %v1392
        %v3515 = vpop.f32.mrf.mxu0
        %v3516 = vadd.f32 %v3429, %v3515
        %v3517 = vpop.f32.mrf.mxu0
        %v3518 = vadd.f32 %v3431, %v3517
        %3519 = vmatmul.bf16.gmra.mxu0 %v1396
        %v3520 = vpop.f32.mrf.mxu0
        %v3521 = vadd.f32 %v3434, %v3520
        %v3522 = vpop.f32.mrf.mxu0
        %v3523 = vadd.f32 %v3436, %v3522
        %3524 = vmatmul.bf16.gmra.mxu0 %v1400
        %v3525 = vpop.f32.mrf.mxu0
        %v3526 = vadd.f32 %v3439, %v3525
        %v3527 = vpop.f32.mrf.mxu0
        %v3528 = vadd.f32 %v3441, %v3527
        %3529 = vmatmul.bf16.gmra.mxu0 %v1404
        %v3530 = vpop.f32.mrf.mxu0
        %v3531 = vadd.f32 %v3444, %v3530
        %v3532 = vpop.f32.mrf.mxu0
        %v3533 = vadd.f32 %v3446, %v3532
        %3534 = vmatmul.bf16.gmra.mxu0 %v1408
        %v3535 = vpop.f32.mrf.mxu0
        %v3536 = vadd.f32 %v3449, %v3535
        %v3537 = vpop.f32.mrf.mxu0
        %v3538 = vadd.f32 %v3451, %v3537
        %3539 = vmatmul.bf16.gmra.mxu0 %v1412
        %v3540 = vpop.f32.mrf.mxu0
        %v3541 = vadd.f32 %v3454, %v3540
        %v3542 = vpop.f32.mrf.mxu0
        %v3543 = vadd.f32 %v3456, %v3542
        %3544 = vdwg.mxu0
        %3545 = vmatpush.bf16.msra.mxu0 %v2109
        %3546 = vmatpush.bf16.msra.mxu0 %v2104
        %3547 = vmatpush.bf16.msra.mxu0 %v2099
        %3548 = vmatpush.bf16.msra.mxu0 %v2094
        %3549 = vmatpush.bf16.msra.mxu0 %v2089
        %3550 = vmatpush.bf16.msra.mxu0 %v2084
        %3551 = vmatpush.bf16.msra.mxu0 %v2079
        %3552 = vmatpush.bf16.msra.mxu0 %v2074
        %3553 = vmatmul.bf16.gmra.mxu0 %v1353
        %v3554 = vpop.f32.mrf.mxu0
        %v3555 = vpop.f32.mrf.mxu0
        %3556 = vmatmul.bf16.gmra.mxu0 %v1357
        %v3557 = vpop.f32.mrf.mxu0
        %v3558 = vadd.f32 %v3471, %v3557
        %v3559 = vpop.f32.mrf.mxu0
        %v3560 = vadd.f32 %v3473, %v3559
        %3561 = vmatmul.bf16.gmra.mxu0 %v1361
        %v3562 = vpop.f32.mrf.mxu0
        %v3563 = vadd.f32 %v3476, %v3562
        %v3564 = vpop.f32.mrf.mxu0
        %v3565 = vadd.f32 %v3478, %v3564
        %3566 = vmatmul.bf16.gmra.mxu0 %v1365
        %v3567 = vpop.f32.mrf.mxu0
        %v3568 = vadd.f32 %v3481, %v3567
        %v3569 = vpop.f32.mrf.mxu0
        %v3570 = vadd.f32 %v3483, %v3569
        %3571 = vmatmul.bf16.gmra.mxu0 %v1369
        %v3572 = vpop.f32.mrf.mxu0
        %v3573 = vadd.f32 %v3486, %v3572
        %v3574 = vpop.f32.mrf.mxu0
        %v3575 = vadd.f32 %v3488, %v3574
        %3576 = vmatmul.bf16.gmra.mxu0 %v1373
        %v3577 = vpop.f32.mrf.mxu0
        %v3578 = vadd.f32 %v3491, %v3577
        %v3579 = vpop.f32.mrf.mxu0
        %v3580 = vadd.f32 %v3493, %v3579
        %3581 = vmatmul.bf16.gmra.mxu0 %v1377
        %v3582 = vpop.f32.mrf.mxu0
        %v3583 = vadd.f32 %v3496, %v3582
        %v3584 = vpop.f32.mrf.mxu0
        %v3585 = vadd.f32 %v3498, %v3584
        %3586 = vmatmul.bf16.gmra.mxu0 %v1381
        %v3587 = vpop.f32.mrf.mxu0
        %v3588 = vadd.f32 %v3501, %v3587
        %v3589 = vpop.f32.mrf.mxu0
        %v3590 = vadd.f32 %v3503, %v3589
        %3591 = vmatmul.bf16.gmra.mxu0 %v1385
        %v3592 = vpop.f32.mrf.mxu0
        %v3593 = vadd.f32 %v3506, %v3592
        %v3594 = vpop.f32.mrf.mxu0
        %v3595 = vadd.f32 %v3508, %v3594
        %3596 = vmatmul.bf16.gmra.mxu0 %v1389
        %v3597 = vpop.f32.mrf.mxu0
        %v3598 = vadd.f32 %v3511, %v3597
        %v3599 = vpop.f32.mrf.mxu0
        %v3600 = vadd.f32 %v3513, %v3599
        %3601 = vmatmul.bf16.gmra.mxu0 %v1393
        %v3602 = vpop.f32.mrf.mxu0
        %v3603 = vadd.f32 %v3516, %v3602
        %v3604 = vpop.f32.mrf.mxu0
        %v3605 = vadd.f32 %v3518, %v3604
        %3606 = vmatmul.bf16.gmra.mxu0 %v1397
        %v3607 = vpop.f32.mrf.mxu0
        %v3608 = vadd.f32 %v3521, %v3607
        %v3609 = vpop.f32.mrf.mxu0
        %v3610 = vadd.f32 %v3523, %v3609
        %3611 = vmatmul.bf16.gmra.mxu0 %v1401
        %v3612 = vpop.f32.mrf.mxu0
        %v3613 = vadd.f32 %v3526, %v3612
        %v3614 = vpop.f32.mrf.mxu0
        %v3615 = vadd.f32 %v3528, %v3614
        %3616 = vmatmul.bf16.gmra.mxu0 %v1405
        %v3617 = vpop.f32.mrf.mxu0
        %v3618 = vadd.f32 %v3531, %v3617
        %v3619 = vpop.f32.mrf.mxu0
        %v3620 = vadd.f32 %v3533, %v3619
        %3621 = vmatmul.bf16.gmra.mxu0 %v1409
        %v3622 = vpop.f32.mrf.mxu0
        %v3623 = vadd.f32 %v3536, %v3622
        %v3624 = vpop.f32.mrf.mxu0
        %v3625 = vadd.f32 %v3538, %v3624
        %3626 = vmatmul.bf16.gmra.mxu0 %v1413
        %v3627 = vpop.f32.mrf.mxu0
        %v3628 = vadd.f32 %v3541, %v3627
        %v3629 = vpop.f32.mrf.mxu0
        %v3630 = vadd.f32 %v3543, %v3629
        %3631 = vdwg.mxu0
        %3632 = vmatpush.bf16.msra.mxu0 %v2149
        %3633 = vmatpush.bf16.msra.mxu0 %v2144
        %3634 = vmatpush.bf16.msra.mxu0 %v2139
        %3635 = vmatpush.bf16.msra.mxu0 %v2134
        %3636 = vmatpush.bf16.msra.mxu0 %v2129
        %3637 = vmatpush.bf16.msra.mxu0 %v2124
        %3638 = vmatpush.bf16.msra.mxu0 %v2119
        %3639 = vmatpush.bf16.msra.mxu0 %v2114
        %3640 = vmatmul.bf16.gmra.mxu0 %v1354
        %v3641 = vpop.f32.mrf.mxu0
        %v3642 = vpop.f32.mrf.mxu0
        %3643 = vmatmul.bf16.gmra.mxu0 %v1358
        %v3644 = vpop.f32.mrf.mxu0
        %v3645 = vadd.f32 %v3558, %v3644
        %v3646 = vpop.f32.mrf.mxu0
        %v3647 = vadd.f32 %v3560, %v3646
        %3648 = vmatmul.bf16.gmra.mxu0 %v1362
        %v3649 = vpop.f32.mrf.mxu0
        %v3650 = vadd.f32 %v3563, %v3649
        %v3651 = vpop.f32.mrf.mxu0
        %v3652 = vadd.f32 %v3565, %v3651
        %3653 = vmatmul.bf16.gmra.mxu0 %v1366
        %v3654 = vpop.f32.mrf.mxu0
        %v3655 = vadd.f32 %v3568, %v3654
        %v3656 = vpop.f32.mrf.mxu0
        %v3657 = vadd.f32 %v3570, %v3656
        %3658 = vmatmul.bf16.gmra.mxu0 %v1370
        %v3659 = vpop.f32.mrf.mxu0
        %v3660 = vadd.f32 %v3573, %v3659
        %v3661 = vpop.f32.mrf.mxu0
        %v3662 = vadd.f32 %v3575, %v3661
        %3663 = vmatmul.bf16.gmra.mxu0 %v1374
        %v3664 = vpop.f32.mrf.mxu0
        %v3665 = vadd.f32 %v3578, %v3664
        %v3666 = vpop.f32.mrf.mxu0
        %v3667 = vadd.f32 %v3580, %v3666
        %3668 = vmatmul.bf16.gmra.mxu0 %v1378
        %v3669 = vpop.f32.mrf.mxu0
        %v3670 = vadd.f32 %v3583, %v3669
        %v3671 = vpop.f32.mrf.mxu0
        %v3672 = vadd.f32 %v3585, %v3671
        %3673 = vmatmul.bf16.gmra.mxu0 %v1382
        %v3674 = vpop.f32.mrf.mxu0
        %v3675 = vadd.f32 %v3588, %v3674
        %v3676 = vpop.f32.mrf.mxu0
        %v3677 = vadd.f32 %v3590, %v3676
        %3678 = vmatmul.bf16.gmra.mxu0 %v1386
        %v3679 = vpop.f32.mrf.mxu0
        %v3680 = vadd.f32 %v3593, %v3679
        %v3681 = vpop.f32.mrf.mxu0
        %v3682 = vadd.f32 %v3595, %v3681
        %3683 = vmatmul.bf16.gmra.mxu0 %v1390
        %v3684 = vpop.f32.mrf.mxu0
        %v3685 = vadd.f32 %v3598, %v3684
        %v3686 = vpop.f32.mrf.mxu0
        %v3687 = vadd.f32 %v3600, %v3686
        %3688 = vmatmul.bf16.gmra.mxu0 %v1394
        %v3689 = vpop.f32.mrf.mxu0
        %v3690 = vadd.f32 %v3603, %v3689
        %v3691 = vpop.f32.mrf.mxu0
        %v3692 = vadd.f32 %v3605, %v3691
        %3693 = vmatmul.bf16.gmra.mxu0 %v1398
        %v3694 = vpop.f32.mrf.mxu0
        %v3695 = vadd.f32 %v3608, %v3694
        %v3696 = vpop.f32.mrf.mxu0
        %v3697 = vadd.f32 %v3610, %v3696
        %3698 = vmatmul.bf16.gmra.mxu0 %v1402
        %v3699 = vpop.f32.mrf.mxu0
        %v3700 = vadd.f32 %v3613, %v3699
        %v3701 = vpop.f32.mrf.mxu0
        %v3702 = vadd.f32 %v3615, %v3701
        %3703 = vmatmul.bf16.gmra.mxu0 %v1406
        %v3704 = vpop.f32.mrf.mxu0
        %v3705 = vadd.f32 %v3618, %v3704
        %v3706 = vpop.f32.mrf.mxu0
        %v3707 = vadd.f32 %v3620, %v3706
        %3708 = vmatmul.bf16.gmra.mxu0 %v1410
        %v3709 = vpop.f32.mrf.mxu0
        %v3710 = vadd.f32 %v3623, %v3709
        %v3711 = vpop.f32.mrf.mxu0
        %v3712 = vadd.f32 %v3625, %v3711
        %3713 = vmatmul.bf16.gmra.mxu0 %v1414
        %v3714 = vpop.f32.mrf.mxu0
        %v3715 = vadd.f32 %v3628, %v3714
        %v3716 = vpop.f32.mrf.mxu0
        %v3717 = vadd.f32 %v3630, %v3716
        %3718 = vdwg.mxu0
        %3719 = vmatpush.bf16.msra.mxu0 %v2030
        %3720 = vmatpush.bf16.msra.mxu0 %v2025
        %3721 = vmatpush.bf16.msra.mxu0 %v2020
        %3722 = vmatpush.bf16.msra.mxu0 %v2015
        %3723 = vmatpush.bf16.msra.mxu0 %v2010
        %3724 = vmatpush.bf16.msra.mxu0 %v2005
        %3725 = vmatpush.bf16.msra.mxu0 %v2000
        %3726 = vmatpush.bf16.msra.mxu0 %v1995
        %3727 = vmatmul.bf16.gmra.mxu0 %v1351
        %v3728 = vpop.f32.mrf.mxu0
        %v3729 = vpop.f32.mrf.mxu0
        %3730 = vmatmul.bf16.gmra.mxu0 %v1355
        %v3731 = vpop.f32.mrf.mxu0
        %v3732 = vadd.f32 0.0, %v3731
        %v3733 = vpop.f32.mrf.mxu0
        %v3734 = vadd.f32 0.0, %v3733
        %3735 = vmatmul.bf16.gmra.mxu0 %v1359
        %v3736 = vpop.f32.mrf.mxu0
        %v3737 = vadd.f32 0.0, %v3736
        %v3738 = vpop.f32.mrf.mxu0
        %v3739 = vadd.f32 0.0, %v3738
        %3740 = vmatmul.bf16.gmra.mxu0 %v1363
        %v3741 = vpop.f32.mrf.mxu0
        %v3742 = vadd.f32 0.0, %v3741
        %v3743 = vpop.f32.mrf.mxu0
        %v3744 = vadd.f32 0.0, %v3743
        %3745 = vmatmul.bf16.gmra.mxu0 %v1367
        %v3746 = vpop.f32.mrf.mxu0
        %v3747 = vadd.f32 0.0, %v3746
        %v3748 = vpop.f32.mrf.mxu0
        %v3749 = vadd.f32 0.0, %v3748
        %3750 = vmatmul.bf16.gmra.mxu0 %v1371
        %v3751 = vpop.f32.mrf.mxu0
        %v3752 = vadd.f32 0.0, %v3751
        %v3753 = vpop.f32.mrf.mxu0
        %v3754 = vadd.f32 0.0, %v3753
        %3755 = vmatmul.bf16.gmra.mxu0 %v1375
        %v3756 = vpop.f32.mrf.mxu0
        %v3757 = vadd.f32 0.0, %v3756
        %v3758 = vpop.f32.mrf.mxu0
        %v3759 = vadd.f32 0.0, %v3758
        %3760 = vmatmul.bf16.gmra.mxu0 %v1379
        %v3761 = vpop.f32.mrf.mxu0
        %v3762 = vadd.f32 0.0, %v3761
        %v3763 = vpop.f32.mrf.mxu0
        %v3764 = vadd.f32 0.0, %v3763
        %3765 = vmatmul.bf16.gmra.mxu0 %v1383
        %v3766 = vpop.f32.mrf.mxu0
        %v3767 = vadd.f32 0.0, %v3766
        %v3768 = vpop.f32.mrf.mxu0
        %v3769 = vadd.f32 0.0, %v3768
        %3770 = vmatmul.bf16.gmra.mxu0 %v1387
        %v3771 = vpop.f32.mrf.mxu0
        %v3772 = vadd.f32 0.0, %v3771
        %v3773 = vpop.f32.mrf.mxu0
        %v3774 = vadd.f32 0.0, %v3773
        %3775 = vmatmul.bf16.gmra.mxu0 %v1391
        %v3776 = vpop.f32.mrf.mxu0
        %v3777 = vadd.f32 0.0, %v3776
        %v3778 = vpop.f32.mrf.mxu0
        %v3779 = vadd.f32 0.0, %v3778
        %3780 = vmatmul.bf16.gmra.mxu0 %v1395
        %v3781 = vpop.f32.mrf.mxu0
        %v3782 = vadd.f32 0.0, %v3781
        %v3783 = vpop.f32.mrf.mxu0
        %v3784 = vadd.f32 0.0, %v3783
        %3785 = vmatmul.bf16.gmra.mxu0 %v1399
        %v3786 = vpop.f32.mrf.mxu0
        %v3787 = vadd.f32 0.0, %v3786
        %v3788 = vpop.f32.mrf.mxu0
        %v3789 = vadd.f32 0.0, %v3788
        %3790 = vmatmul.bf16.gmra.mxu0 %v1403
        %v3791 = vpop.f32.mrf.mxu0
        %v3792 = vadd.f32 0.0, %v3791
        %v3793 = vpop.f32.mrf.mxu0
        %v3794 = vadd.f32 0.0, %v3793
        %3795 = vmatmul.bf16.gmra.mxu0 %v1407
        %v3796 = vpop.f32.mrf.mxu0
        %v3797 = vadd.f32 0.0, %v3796
        %v3798 = vpop.f32.mrf.mxu0
        %v3799 = vadd.f32 0.0, %v3798
        %3800 = vmatmul.bf16.gmra.mxu0 %v1411
        %v3801 = vpop.f32.mrf.mxu0
        %v3802 = vadd.f32 0.0, %v3801
        %v3803 = vpop.f32.mrf.mxu0
        %v3804 = vadd.f32 0.0, %v3803
        %3805 = vdwg.mxu0
        %3806 = vmatpush.bf16.msra.mxu0 %v2070
        %3807 = vmatpush.bf16.msra.mxu0 %v2065
        %3808 = vmatpush.bf16.msra.mxu0 %v2060
        %3809 = vmatpush.bf16.msra.mxu0 %v2055
        %3810 = vmatpush.bf16.msra.mxu0 %v2050
        %3811 = vmatpush.bf16.msra.mxu0 %v2045
        %3812 = vmatpush.bf16.msra.mxu0 %v2040
        %3813 = vmatpush.bf16.msra.mxu0 %v2035
        %3814 = vmatmul.bf16.gmra.mxu0 %v1352
        %v3815 = vpop.f32.mrf.mxu0
        %v3816 = vpop.f32.mrf.mxu0
        %3817 = vmatmul.bf16.gmra.mxu0 %v1356
        %v3818 = vpop.f32.mrf.mxu0
        %v3819 = vadd.f32 %v3732, %v3818
        %v3820 = vpop.f32.mrf.mxu0
        %v3821 = vadd.f32 %v3734, %v3820
        %3822 = vmatmul.bf16.gmra.mxu0 %v1360
        %v3823 = vpop.f32.mrf.mxu0
        %v3824 = vadd.f32 %v3737, %v3823
        %v3825 = vpop.f32.mrf.mxu0
        %v3826 = vadd.f32 %v3739, %v3825
        %3827 = vmatmul.bf16.gmra.mxu0 %v1364
        %v3828 = vpop.f32.mrf.mxu0
        %v3829 = vadd.f32 %v3742, %v3828
        %v3830 = vpop.f32.mrf.mxu0
        %v3831 = vadd.f32 %v3744, %v3830
        %3832 = vmatmul.bf16.gmra.mxu0 %v1368
        %v3833 = vpop.f32.mrf.mxu0
        %v3834 = vadd.f32 %v3747, %v3833
        %v3835 = vpop.f32.mrf.mxu0
        %v3836 = vadd.f32 %v3749, %v3835
        %3837 = vmatmul.bf16.gmra.mxu0 %v1372
        %v3838 = vpop.f32.mrf.mxu0
        %v3839 = vadd.f32 %v3752, %v3838
        %v3840 = vpop.f32.mrf.mxu0
        %v3841 = vadd.f32 %v3754, %v3840
        %3842 = vmatmul.bf16.gmra.mxu0 %v1376
        %v3843 = vpop.f32.mrf.mxu0
        %v3844 = vadd.f32 %v3757, %v3843
        %v3845 = vpop.f32.mrf.mxu0
        %v3846 = vadd.f32 %v3759, %v3845
        %3847 = vmatmul.bf16.gmra.mxu0 %v1380
        %v3848 = vpop.f32.mrf.mxu0
        %v3849 = vadd.f32 %v3762, %v3848
        %v3850 = vpop.f32.mrf.mxu0
        %v3851 = vadd.f32 %v3764, %v3850
        %3852 = vmatmul.bf16.gmra.mxu0 %v1384
        %v3853 = vpop.f32.mrf.mxu0
        %v3854 = vadd.f32 %v3767, %v3853
        %v3855 = vpop.f32.mrf.mxu0
        %v3856 = vadd.f32 %v3769, %v3855
        %3857 = vmatmul.bf16.gmra.mxu0 %v1388
        %v3858 = vpop.f32.mrf.mxu0
        %v3859 = vadd.f32 %v3772, %v3858
        %v3860 = vpop.f32.mrf.mxu0
        %v3861 = vadd.f32 %v3774, %v3860
        %3862 = vmatmul.bf16.gmra.mxu0 %v1392
        %v3863 = vpop.f32.mrf.mxu0
        %v3864 = vadd.f32 %v3777, %v3863
        %v3865 = vpop.f32.mrf.mxu0
        %v3866 = vadd.f32 %v3779, %v3865
        %3867 = vmatmul.bf16.gmra.mxu0 %v1396
        %v3868 = vpop.f32.mrf.mxu0
        %v3869 = vadd.f32 %v3782, %v3868
        %v3870 = vpop.f32.mrf.mxu0
        %v3871 = vadd.f32 %v3784, %v3870
        %3872 = vmatmul.bf16.gmra.mxu0 %v1400
        %v3873 = vpop.f32.mrf.mxu0
        %v3874 = vadd.f32 %v3787, %v3873
        %v3875 = vpop.f32.mrf.mxu0
        %v3876 = vadd.f32 %v3789, %v3875
        %3877 = vmatmul.bf16.gmra.mxu0 %v1404
        %v3878 = vpop.f32.mrf.mxu0
        %v3879 = vadd.f32 %v3792, %v3878
        %v3880 = vpop.f32.mrf.mxu0
        %v3881 = vadd.f32 %v3794, %v3880
        %3882 = vmatmul.bf16.gmra.mxu0 %v1408
        %v3883 = vpop.f32.mrf.mxu0
        %v3884 = vadd.f32 %v3797, %v3883
        %v3885 = vpop.f32.mrf.mxu0
        %v3886 = vadd.f32 %v3799, %v3885
        %3887 = vmatmul.bf16.gmra.mxu0 %v1412
        %v3888 = vpop.f32.mrf.mxu0
        %v3889 = vadd.f32 %v3802, %v3888
        %v3890 = vpop.f32.mrf.mxu0
        %v3891 = vadd.f32 %v3804, %v3890
        %3892 = vdwg.mxu0
        %3893 = vmatpush.bf16.msra.mxu0 %v2110
        %3894 = vmatpush.bf16.msra.mxu0 %v2105
        %3895 = vmatpush.bf16.msra.mxu0 %v2100
        %3896 = vmatpush.bf16.msra.mxu0 %v2095
        %3897 = vmatpush.bf16.msra.mxu0 %v2090
        %3898 = vmatpush.bf16.msra.mxu0 %v2085
        %3899 = vmatpush.bf16.msra.mxu0 %v2080
        %3900 = vmatpush.bf16.msra.mxu0 %v2075
        %3901 = vmatmul.bf16.gmra.mxu0 %v1353
        %v3902 = vpop.f32.mrf.mxu0
        %v3903 = vpop.f32.mrf.mxu0
        %3904 = vmatmul.bf16.gmra.mxu0 %v1357
        %v3905 = vpop.f32.mrf.mxu0
        %v3906 = vadd.f32 %v3819, %v3905
        %v3907 = vpop.f32.mrf.mxu0
        %v3908 = vadd.f32 %v3821, %v3907
        %3909 = vmatmul.bf16.gmra.mxu0 %v1361
        %v3910 = vpop.f32.mrf.mxu0
        %v3911 = vadd.f32 %v3824, %v3910
        %v3912 = vpop.f32.mrf.mxu0
        %v3913 = vadd.f32 %v3826, %v3912
        %3914 = vmatmul.bf16.gmra.mxu0 %v1365
        %v3915 = vpop.f32.mrf.mxu0
        %v3916 = vadd.f32 %v3829, %v3915
        %v3917 = vpop.f32.mrf.mxu0
        %v3918 = vadd.f32 %v3831, %v3917
        %3919 = vmatmul.bf16.gmra.mxu0 %v1369
        %v3920 = vpop.f32.mrf.mxu0
        %v3921 = vadd.f32 %v3834, %v3920
        %v3922 = vpop.f32.mrf.mxu0
        %v3923 = vadd.f32 %v3836, %v3922
        %3924 = vmatmul.bf16.gmra.mxu0 %v1373
        %v3925 = vpop.f32.mrf.mxu0
        %v3926 = vadd.f32 %v3839, %v3925
        %v3927 = vpop.f32.mrf.mxu0
        %v3928 = vadd.f32 %v3841, %v3927
        %3929 = vmatmul.bf16.gmra.mxu0 %v1377
        %v3930 = vpop.f32.mrf.mxu0
        %v3931 = vadd.f32 %v3844, %v3930
        %v3932 = vpop.f32.mrf.mxu0
        %v3933 = vadd.f32 %v3846, %v3932
        %3934 = vmatmul.bf16.gmra.mxu0 %v1381
        %v3935 = vpop.f32.mrf.mxu0
        %v3936 = vadd.f32 %v3849, %v3935
        %v3937 = vpop.f32.mrf.mxu0
        %v3938 = vadd.f32 %v3851, %v3937
        %3939 = vmatmul.bf16.gmra.mxu0 %v1385
        %v3940 = vpop.f32.mrf.mxu0
        %v3941 = vadd.f32 %v3854, %v3940
        %v3942 = vpop.f32.mrf.mxu0
        %v3943 = vadd.f32 %v3856, %v3942
        %3944 = vmatmul.bf16.gmra.mxu0 %v1389
        %v3945 = vpop.f32.mrf.mxu0
        %v3946 = vadd.f32 %v3859, %v3945
        %v3947 = vpop.f32.mrf.mxu0
        %v3948 = vadd.f32 %v3861, %v3947
        %3949 = vmatmul.bf16.gmra.mxu0 %v1393
        %v3950 = vpop.f32.mrf.mxu0
        %v3951 = vadd.f32 %v3864, %v3950
        %v3952 = vpop.f32.mrf.mxu0
        %v3953 = vadd.f32 %v3866, %v3952
        %3954 = vmatmul.bf16.gmra.mxu0 %v1397
        %v3955 = vpop.f32.mrf.mxu0
        %v3956 = vadd.f32 %v3869, %v3955
        %v3957 = vpop.f32.mrf.mxu0
        %v3958 = vadd.f32 %v3871, %v3957
        %3959 = vmatmul.bf16.gmra.mxu0 %v1401
        %v3960 = vpop.f32.mrf.mxu0
        %v3961 = vadd.f32 %v3874, %v3960
        %v3962 = vpop.f32.mrf.mxu0
        %v3963 = vadd.f32 %v3876, %v3962
        %3964 = vmatmul.bf16.gmra.mxu0 %v1405
        %v3965 = vpop.f32.mrf.mxu0
        %v3966 = vadd.f32 %v3879, %v3965
        %v3967 = vpop.f32.mrf.mxu0
        %v3968 = vadd.f32 %v3881, %v3967
        %3969 = vmatmul.bf16.gmra.mxu0 %v1409
        %v3970 = vpop.f32.mrf.mxu0
        %v3971 = vadd.f32 %v3884, %v3970
        %v3972 = vpop.f32.mrf.mxu0
        %v3973 = vadd.f32 %v3886, %v3972
        %3974 = vmatmul.bf16.gmra.mxu0 %v1413
        %v3975 = vpop.f32.mrf.mxu0
        %v3976 = vadd.f32 %v3889, %v3975
        %v3977 = vpop.f32.mrf.mxu0
        %v3978 = vadd.f32 %v3891, %v3977
        %3979 = vdwg.mxu0
        %3980 = vmatpush.bf16.msra.mxu0 %v2150
        %3981 = vmatpush.bf16.msra.mxu0 %v2145
        %3982 = vmatpush.bf16.msra.mxu0 %v2140
        %3983 = vmatpush.bf16.msra.mxu0 %v2135
        %3984 = vmatpush.bf16.msra.mxu0 %v2130
        %3985 = vmatpush.bf16.msra.mxu0 %v2125
        %3986 = vmatpush.bf16.msra.mxu0 %v2120
        %3987 = vmatpush.bf16.msra.mxu0 %v2115
        %3988 = vmatmul.bf16.gmra.mxu0 %v1354
        %v3989 = vpop.f32.mrf.mxu0
        %v3990 = vpop.f32.mrf.mxu0
        %3991 = vmatmul.bf16.gmra.mxu0 %v1358
        %v3992 = vpop.f32.mrf.mxu0
        %v3993 = vadd.f32 %v3906, %v3992
        %v3994 = vpop.f32.mrf.mxu0
        %v3995 = vadd.f32 %v3908, %v3994
        %3996 = vmatmul.bf16.gmra.mxu0 %v1362
        %v3997 = vpop.f32.mrf.mxu0
        %v3998 = vadd.f32 %v3911, %v3997
        %v3999 = vpop.f32.mrf.mxu0
        %v4000 = vadd.f32 %v3913, %v3999
        %4001 = vmatmul.bf16.gmra.mxu0 %v1366
        %v4002 = vpop.f32.mrf.mxu0
        %v4003 = vadd.f32 %v3916, %v4002
        %v4004 = vpop.f32.mrf.mxu0
        %v4005 = vadd.f32 %v3918, %v4004
        %4006 = vmatmul.bf16.gmra.mxu0 %v1370
        %v4007 = vpop.f32.mrf.mxu0
        %v4008 = vadd.f32 %v3921, %v4007
        %v4009 = vpop.f32.mrf.mxu0
        %v4010 = vadd.f32 %v3923, %v4009
        %4011 = vmatmul.bf16.gmra.mxu0 %v1374
        %v4012 = vpop.f32.mrf.mxu0
        %v4013 = vadd.f32 %v3926, %v4012
        %v4014 = vpop.f32.mrf.mxu0
        %v4015 = vadd.f32 %v3928, %v4014
        %4016 = vmatmul.bf16.gmra.mxu0 %v1378
        %v4017 = vpop.f32.mrf.mxu0
        %v4018 = vadd.f32 %v3931, %v4017
        %v4019 = vpop.f32.mrf.mxu0
        %v4020 = vadd.f32 %v3933, %v4019
        %4021 = vmatmul.bf16.gmra.mxu0 %v1382
        %v4022 = vpop.f32.mrf.mxu0
        %v4023 = vadd.f32 %v3936, %v4022
        %v4024 = vpop.f32.mrf.mxu0
        %v4025 = vadd.f32 %v3938, %v4024
        %4026 = vmatmul.bf16.gmra.mxu0 %v1386
        %v4027 = vpop.f32.mrf.mxu0
        %v4028 = vadd.f32 %v3941, %v4027
        %v4029 = vpop.f32.mrf.mxu0
        %v4030 = vadd.f32 %v3943, %v4029
        %4031 = vmatmul.bf16.gmra.mxu0 %v1390
        %v4032 = vpop.f32.mrf.mxu0
        %v4033 = vadd.f32 %v3946, %v4032
        %v4034 = vpop.f32.mrf.mxu0
        %v4035 = vadd.f32 %v3948, %v4034
        %4036 = vmatmul.bf16.gmra.mxu0 %v1394
        %v4037 = vpop.f32.mrf.mxu0
        %v4038 = vadd.f32 %v3951, %v4037
        %v4039 = vpop.f32.mrf.mxu0
        %v4040 = vadd.f32 %v3953, %v4039
        %4041 = vmatmul.bf16.gmra.mxu0 %v1398
        %v4042 = vpop.f32.mrf.mxu0
        %v4043 = vadd.f32 %v3956, %v4042
        %v4044 = vpop.f32.mrf.mxu0
        %v4045 = vadd.f32 %v3958, %v4044
        %4046 = vmatmul.bf16.gmra.mxu0 %v1402
        %v4047 = vpop.f32.mrf.mxu0
        %v4048 = vadd.f32 %v3961, %v4047
        %v4049 = vpop.f32.mrf.mxu0
        %v4050 = vadd.f32 %v3963, %v4049
        %4051 = vmatmul.bf16.gmra.mxu0 %v1406
        %v4052 = vpop.f32.mrf.mxu0
        %v4053 = vadd.f32 %v3966, %v4052
        %v4054 = vpop.f32.mrf.mxu0
        %v4055 = vadd.f32 %v3968, %v4054
        %4056 = vmatmul.bf16.gmra.mxu0 %v1410
        %v4057 = vpop.f32.mrf.mxu0
        %v4058 = vadd.f32 %v3971, %v4057
        %v4059 = vpop.f32.mrf.mxu0
        %v4060 = vadd.f32 %v3973, %v4059
        %4061 = vmatmul.bf16.gmra.mxu0 %v1414
        %v4062 = vpop.f32.mrf.mxu0
        %v4063 = vadd.f32 %v3976, %v4062
        %v4064 = vpop.f32.mrf.mxu0
        %v4065 = vadd.f32 %v3978, %v4064
        %4066 = vdwg.mxu0
        %v4067 = vld [vmem:[%s3] sm:$0x1]
        %v4069 = vperm.slane %v4067, 0
        %v4071 = vadd.f32 %v3292, %v4069
        %v4072 = vadd.f32 %v3294, %v4069
        %v4073 = vadd.f32 %v3297, %v4069
        %v4074 = vadd.f32 %v3299, %v4069
        %v4075 = vadd.f32 %v3302, %v4069
        %v4076 = vadd.f32 %v3304, %v4069
        %v4077 = vadd.f32 %v3307, %v4069
        %v4078 = vadd.f32 %v3309, %v4069
        %v4079 = vadd.f32 %v3312, %v4069
        %v4080 = vadd.f32 %v3314, %v4069
        %v4081 = vadd.f32 %v3317, %v4069
        %v4082 = vadd.f32 %v3319, %v4069
        %v4083 = vadd.f32 %v3322, %v4069
        %v4084 = vadd.f32 %v3324, %v4069
        %v4085 = vadd.f32 %v3327, %v4069
        %v4086 = vadd.f32 %v3329, %v4069
        %v4087 = vadd.f32 %v3332, %v4069
        %v4088 = vadd.f32 %v3334, %v4069
        %v4089 = vadd.f32 %v3337, %v4069
        %v4090 = vadd.f32 %v3339, %v4069
        %v4091 = vadd.f32 %v3342, %v4069
        %v4092 = vadd.f32 %v3344, %v4069
        %v4093 = vadd.f32 %v3347, %v4069
        %v4094 = vadd.f32 %v3349, %v4069
        %v4095 = vadd.f32 %v3352, %v4069
        %v4096 = vadd.f32 %v3354, %v4069
        %v4097 = vadd.f32 %v3357, %v4069
        %v4098 = vadd.f32 %v3359, %v4069
        %v4099 = vadd.f32 %v3362, %v4069
        %v4100 = vadd.f32 %v3364, %v4069
        %v4101 = vadd.f32 %v3367, %v4069
        %v4102 = vadd.f32 %v3369, %v4069
        %vm4103 = vcmask 523264
        %4104 = vst.msk [vmem:[#allocation2] sm:$0xff] %vm4103, %v4071
        %4105 = vst.msk [vmem:[#allocation2 + $0x8] sm:$0xff] %vm4103, %v4072
        %4106 = vst.msk [vmem:[#allocation2 + $0x10] sm:$0xff] %vm4103, %v4073
        %4107 = vst.msk [vmem:[#allocation2 + $0x18] sm:$0xff] %vm4103, %v4074
        %4108 = vst.msk [vmem:[#allocation2 + $0x20] sm:$0xff] %vm4103, %v4075
        %4109 = vst.msk [vmem:[#allocation2 + $0x28] sm:$0xff] %vm4103, %v4076
        %4110 = vst.msk [vmem:[#allocation2 + $0x30] sm:$0xff] %vm4103, %v4077
        %4111 = vst.msk [vmem:[#allocation2 + $0x38] sm:$0xff] %vm4103, %v4078
        %4112 = vst.msk [vmem:[#allocation2 + $0x40] sm:$0xff] %vm4103, %v4079
        %4113 = vst.msk [vmem:[#allocation2 + $0x48] sm:$0xff] %vm4103, %v4080
        %4114 = vst.msk [vmem:[#allocation2 + $0x50] sm:$0xff] %vm4103, %v4081
        %4115 = vst.msk [vmem:[#allocation2 + $0x58] sm:$0xff] %vm4103, %v4082
        %4116 = vst.msk [vmem:[#allocation2 + $0x60] sm:$0xff] %vm4103, %v4083
        %4117 = vst.msk [vmem:[#allocation2 + $0x68] sm:$0xff] %vm4103, %v4084
        %4118 = vst.msk [vmem:[#allocation2 + $0x70] sm:$0xff] %vm4103, %v4085
        %4119 = vst.msk [vmem:[#allocation2 + $0x78] sm:$0xff] %vm4103, %v4086
        %4120 = vst.msk [vmem:[#allocation2 + $0x80] sm:$0xff] %vm4103, %v4087
        %4121 = vst.msk [vmem:[#allocation2 + $0x88] sm:$0xff] %vm4103, %v4088
        %4122 = vst.msk [vmem:[#allocation2 + $0x90] sm:$0xff] %vm4103, %v4089
        %4123 = vst.msk [vmem:[#allocation2 + $0x98] sm:$0xff] %vm4103, %v4090
        %4124 = vst.msk [vmem:[#allocation2 + $0xa0] sm:$0xff] %vm4103, %v4091
        %4125 = vst.msk [vmem:[#allocation2 + $0xa8] sm:$0xff] %vm4103, %v4092
        %4126 = vst.msk [vmem:[#allocation2 + $0xb0] sm:$0xff] %vm4103, %v4093
        %4127 = vst.msk [vmem:[#allocation2 + $0xb8] sm:$0xff] %vm4103, %v4094
        %4128 = vst.msk [vmem:[#allocation2 + $0xc0] sm:$0xff] %vm4103, %v4095
        %4129 = vst.msk [vmem:[#allocation2 + $0xc8] sm:$0xff] %vm4103, %v4096
        %4130 = vst.msk [vmem:[#allocation2 + $0xd0] sm:$0xff] %vm4103, %v4097
        %4131 = vst.msk [vmem:[#allocation2 + $0xd8] sm:$0xff] %vm4103, %v4098
        %4132 = vst.msk [vmem:[#allocation2 + $0xe0] sm:$0xff] %vm4103, %v4099
        %4133 = vst.msk [vmem:[#allocation2 + $0xe8] sm:$0xff] %vm4103, %v4100
        %4134 = vst.msk [vmem:[#allocation2 + $0xf0] sm:$0xff] %vm4103, %v4101
        %4135 = vst.msk [vmem:[#allocation2 + $0xf8] sm:$0xff] %vm4103, %v4102
        %s4136 = scalar_lea.vmem [#allocation2], 16
        %v4137 = vld [vmem:[%s4136 + $0x1] sm:$0xff]
        %v4138 = vld [vmem:[%s4136 + $0x9] sm:$0x7f]
        %v4139 = vld [vmem:[%s4136 + $0x11] sm:$0xff]
        %v4140 = vld [vmem:[%s4136 + $0x19] sm:$0x7f]
        %v4141 = vld [vmem:[%s4136 + $0x21] sm:$0xff]
        %v4142 = vld [vmem:[%s4136 + $0x29] sm:$0x7f]
        %v4143 = vld [vmem:[%s4136 + $0x31] sm:$0xff]
        %v4144 = vld [vmem:[%s4136 + $0x39] sm:$0x7f]
        %v4145 = vld [vmem:[%s4136 + $0x41] sm:$0xff]
        %v4146 = vld [vmem:[%s4136 + $0x49] sm:$0x7f]
        %v4147 = vld [vmem:[%s4136 + $0x51] sm:$0xff]
        %v4148 = vld [vmem:[%s4136 + $0x59] sm:$0x7f]
        %v4149 = vld [vmem:[%s4136 + $0x61] sm:$0xff]
        %v4150 = vld [vmem:[%s4136 + $0x69] sm:$0x7f]
        %v4151 = vld [vmem:[%s4136 + $0x71] sm:$0xff]
        %v4152 = vld [vmem:[%s4136 + $0x79] sm:$0x7f]
        %v4153 = vld [vmem:[%s4136 + $0x81] sm:$0xff]
        %v4154 = vld [vmem:[%s4136 + $0x89] sm:$0x7f]
        %v4155 = vld [vmem:[%s4136 + $0x91] sm:$0xff]
        %v4156 = vld [vmem:[%s4136 + $0x99] sm:$0x7f]
        %v4157 = vld [vmem:[%s4136 + $0xa1] sm:$0xff]
        %v4158 = vld [vmem:[%s4136 + $0xa9] sm:$0x7f]
        %v4159 = vld [vmem:[%s4136 + $0xb1] sm:$0xff]
        %v4160 = vld [vmem:[%s4136 + $0xb9] sm:$0x7f]
        %v4161 = vld [vmem:[%s4136 + $0xc1] sm:$0xff]
        %v4162 = vld [vmem:[%s4136 + $0xc9] sm:$0x7f]
        %v4163 = vld [vmem:[%s4136 + $0xd1] sm:$0xff]
        %v4164 = vld [vmem:[%s4136 + $0xd9] sm:$0x7f]
        %v4165 = vld [vmem:[%s4136 + $0xe1] sm:$0xff]
        %v4166 = vld [vmem:[%s4136 + $0xe9] sm:$0x7f]
        %v4167 = vadd.f32 %v4137, %v2582
        %v4168 = vadd.f32 %v4138, %v2584
        %v4169 = vadd.f32 %v4139, %v2587
        %v4170 = vadd.f32 %v4140, %v2589
        %v4171 = vadd.f32 %v4141, %v2592
        %v4172 = vadd.f32 %v4142, %v2594
        %v4173 = vadd.f32 %v4143, %v2597
        %v4174 = vadd.f32 %v4144, %v2599
        %v4175 = vadd.f32 %v4145, %v2602
        %v4176 = vadd.f32 %v4146, %v2604
        %v4177 = vadd.f32 %v4147, %v2607
        %v4178 = vadd.f32 %v4148, %v2609
        %v4179 = vadd.f32 %v4149, %v2612
        %v4180 = vadd.f32 %v4150, %v2614
        %v4181 = vadd.f32 %v4151, %v2617
        %v4182 = vadd.f32 %v4152, %v2619
        %v4183 = vadd.f32 %v4153, %v2622
        %v4184 = vadd.f32 %v4154, %v2624
        %v4185 = vadd.f32 %v4155, %v2627
        %v4186 = vadd.f32 %v4156, %v2629
        %v4187 = vadd.f32 %v4157, %v2632
        %v4188 = vadd.f32 %v4158, %v2634
        %v4189 = vadd.f32 %v4159, %v2637
        %v4190 = vadd.f32 %v4160, %v2639
        %v4191 = vadd.f32 %v4161, %v2642
        %v4192 = vadd.f32 %v4162, %v2644
        %v4193 = vadd.f32 %v4163, %v2647
        %v4194 = vadd.f32 %v4164, %v2649
        %v4195 = vadd.f32 %v4165, %v2652
        %v4196 = vadd.f32 %v4166, %v2654
        %4197 = vst.msk [vmem:[%s4136 + $0x1] sm:$0xff] %vm4103, %v4167
        %vm4198 = vcmask 522240
        %4199 = vst.msk [vmem:[%s4136 + $0x9] sm:$0x7f] %vm4198, %v4168
        %4200 = vst.msk [vmem:[%s4136 + $0x11] sm:$0xff] %vm4103, %v4169
        %4201 = vst.msk [vmem:[%s4136 + $0x19] sm:$0x7f] %vm4198, %v4170
        %4202 = vst.msk [vmem:[%s4136 + $0x21] sm:$0xff] %vm4103, %v4171
        %4203 = vst.msk [vmem:[%s4136 + $0x29] sm:$0x7f] %vm4198, %v4172
        %4204 = vst.msk [vmem:[%s4136 + $0x31] sm:$0xff] %vm4103, %v4173
        %4205 = vst.msk [vmem:[%s4136 + $0x39] sm:$0x7f] %vm4198, %v4174
        %4206 = vst.msk [vmem:[%s4136 + $0x41] sm:$0xff] %vm4103, %v4175
        %4207 = vst.msk [vmem:[%s4136 + $0x49] sm:$0x7f] %vm4198, %v4176
        %4208 = vst.msk [vmem:[%s4136 + $0x51] sm:$0xff] %vm4103, %v4177
        %4209 = vst.msk [vmem:[%s4136 + $0x59] sm:$0x7f] %vm4198, %v4178
        %4210 = vst.msk [vmem:[%s4136 + $0x61] sm:$0xff] %vm4103, %v4179
        %4211 = vst.msk [vmem:[%s4136 + $0x69] sm:$0x7f] %vm4198, %v4180
        %4212 = vst.msk [vmem:[%s4136 + $0x71] sm:$0xff] %vm4103, %v4181
        %4213 = vst.msk [vmem:[%s4136 + $0x79] sm:$0x7f] %vm4198, %v4182
        %4214 = vst.msk [vmem:[%s4136 + $0x81] sm:$0xff] %vm4103, %v4183
        %4215 = vst.msk [vmem:[%s4136 + $0x89] sm:$0x7f] %vm4198, %v4184
        %4216 = vst.msk [vmem:[%s4136 + $0x91] sm:$0xff] %vm4103, %v4185
        %4217 = vst.msk [vmem:[%s4136 + $0x99] sm:$0x7f] %vm4198, %v4186
        %4218 = vst.msk [vmem:[%s4136 + $0xa1] sm:$0xff] %vm4103, %v4187
        %4219 = vst.msk [vmem:[%s4136 + $0xa9] sm:$0x7f] %vm4198, %v4188
        %4220 = vst.msk [vmem:[%s4136 + $0xb1] sm:$0xff] %vm4103, %v4189
        %4221 = vst.msk [vmem:[%s4136 + $0xb9] sm:$0x7f] %vm4198, %v4190
        %4222 = vst.msk [vmem:[%s4136 + $0xc1] sm:$0xff] %vm4103, %v4191
        %4223 = vst.msk [vmem:[%s4136 + $0xc9] sm:$0x7f] %vm4198, %v4192
        %4224 = vst.msk [vmem:[%s4136 + $0xd1] sm:$0xff] %vm4103, %v4193
        %4225 = vst.msk [vmem:[%s4136 + $0xd9] sm:$0x7f] %vm4198, %v4194
        %4226 = vst.msk [vmem:[%s4136 + $0xe1] sm:$0xff] %vm4103, %v4195
        %4227 = vst.msk [vmem:[%s4136 + $0xe9] sm:$0x7f] %vm4198, %v4196
        %v4228 = vld [vmem:[%s4136] sm:$0xff]
        %v4229 = vld [vmem:[%s4136 + $0x8] sm:$0xff]
        %v4230 = vld [vmem:[%s4136 + $0x10] sm:$0xff]
        %v4231 = vld [vmem:[%s4136 + $0x18] sm:$0xff]
        %v4232 = vld [vmem:[%s4136 + $0x20] sm:$0xff]
        %v4233 = vld [vmem:[%s4136 + $0x28] sm:$0xff]
        %v4234 = vld [vmem:[%s4136 + $0x30] sm:$0xff]
        %v4235 = vld [vmem:[%s4136 + $0x38] sm:$0xff]
        %v4236 = vld [vmem:[%s4136 + $0x40] sm:$0xff]
        %v4237 = vld [vmem:[%s4136 + $0x48] sm:$0xff]
        %v4238 = vld [vmem:[%s4136 + $0x50] sm:$0xff]
        %v4239 = vld [vmem:[%s4136 + $0x58] sm:$0xff]
        %v4240 = vld [vmem:[%s4136 + $0x60] sm:$0xff]
        %v4241 = vld [vmem:[%s4136 + $0x68] sm:$0xff]
        %v4242 = vld [vmem:[%s4136 + $0x70] sm:$0xff]
        %v4243 = vld [vmem:[%s4136 + $0x78] sm:$0xff]
        %v4244 = vld [vmem:[%s4136 + $0x80] sm:$0xff]
        %v4245 = vld [vmem:[%s4136 + $0x88] sm:$0xff]
        %v4246 = vld [vmem:[%s4136 + $0x90] sm:$0xff]
        %v4247 = vld [vmem:[%s4136 + $0x98] sm:$0xff]
        %v4248 = vld [vmem:[%s4136 + $0xa0] sm:$0xff]
        %v4249 = vld [vmem:[%s4136 + $0xa8] sm:$0xff]
        %v4250 = vld [vmem:[%s4136 + $0xb0] sm:$0xff]
        %v4251 = vld [vmem:[%s4136 + $0xb8] sm:$0xff]
        %v4252 = vld [vmem:[%s4136 + $0xc0] sm:$0xff]
        %v4253 = vld [vmem:[%s4136 + $0xc8] sm:$0xff]
        %v4254 = vld [vmem:[%s4136 + $0xd0] sm:$0xff]
        %v4255 = vld [vmem:[%s4136 + $0xd8] sm:$0xff]
        %v4256 = vld [vmem:[%s4136 + $0xe0] sm:$0xff]
        %v4257 = vld [vmem:[%s4136 + $0xe8] sm:$0xff]
        %4288 = vrot.lane.b32.xlu0 %v2582, 64
        %v4289 = vpop.permute.xlu0 %4288
        %4290 = vrot.lane.b32.xlu0 %v2584, 64
        %v4291 = vpop.permute.xlu0 %4290
        %4292 = vrot.lane.b32.xlu0 %v2587, 64
        %v4293 = vpop.permute.xlu0 %4292
        %4294 = vrot.lane.b32.xlu0 %v2589, 64
        %v4295 = vpop.permute.xlu0 %4294
        %4296 = vrot.lane.b32.xlu0 %v2592, 64
        %v4297 = vpop.permute.xlu0 %4296
        %4298 = vrot.lane.b32.xlu0 %v2594, 64
        %v4299 = vpop.permute.xlu0 %4298
        %4300 = vrot.lane.b32.xlu0 %v2597, 64
        %v4301 = vpop.permute.xlu0 %4300
        %4302 = vrot.lane.b32.xlu0 %v2599, 64
        %v4303 = vpop.permute.xlu0 %4302
        %4304 = vrot.lane.b32.xlu0 %v2602, 64
        %v4305 = vpop.permute.xlu0 %4304
        %4306 = vrot.lane.b32.xlu0 %v2604, 64
        %v4307 = vpop.permute.xlu0 %4306
        %4308 = vrot.lane.b32.xlu0 %v2607, 64
        %v4309 = vpop.permute.xlu0 %4308
        %4310 = vrot.lane.b32.xlu0 %v2609, 64
        %v4311 = vpop.permute.xlu0 %4310
        %4312 = vrot.lane.b32.xlu0 %v2612, 64
        %v4313 = vpop.permute.xlu0 %4312
        %4314 = vrot.lane.b32.xlu0 %v2614, 64
        %v4315 = vpop.permute.xlu0 %4314
        %4316 = vrot.lane.b32.xlu0 %v2617, 64
        %v4317 = vpop.permute.xlu0 %4316
        %4318 = vrot.lane.b32.xlu0 %v2619, 64
        %v4319 = vpop.permute.xlu0 %4318
        %4320 = vrot.lane.b32.xlu0 %v2622, 64
        %v4321 = vpop.permute.xlu0 %4320
        %4322 = vrot.lane.b32.xlu0 %v2624, 64
        %v4323 = vpop.permute.xlu0 %4322
        %4324 = vrot.lane.b32.xlu0 %v2627, 64
        %v4325 = vpop.permute.xlu0 %4324
        %4326 = vrot.lane.b32.xlu0 %v2629, 64
        %v4327 = vpop.permute.xlu0 %4326
        %4328 = vrot.lane.b32.xlu0 %v2632, 64
        %v4329 = vpop.permute.xlu0 %4328
        %4330 = vrot.lane.b32.xlu0 %v2634, 64
        %v4331 = vpop.permute.xlu0 %4330
        %4332 = vrot.lane.b32.xlu0 %v2637, 64
        %v4333 = vpop.permute.xlu0 %4332
        %4334 = vrot.lane.b32.xlu0 %v2639, 64
        %v4335 = vpop.permute.xlu0 %4334
        %4336 = vrot.lane.b32.xlu0 %v2642, 64
        %v4337 = vpop.permute.xlu0 %4336
        %4338 = vrot.lane.b32.xlu0 %v2644, 64
        %v4339 = vpop.permute.xlu0 %4338
        %4340 = vrot.lane.b32.xlu0 %v2647, 64
        %v4341 = vpop.permute.xlu0 %4340
        %4342 = vrot.lane.b32.xlu0 %v2649, 64
        %v4343 = vpop.permute.xlu0 %4342
        %4344 = vrot.lane.b32.xlu0 %v2652, 64
        %v4345 = vpop.permute.xlu0 %4344
        %4346 = vrot.lane.b32.xlu0 %v2654, 64
        %v4347 = vpop.permute.xlu0 %4346
        %v4378 = vadd.f32 %v4228, %v4289
        %v4379 = vadd.f32 %v4229, %v4291
        %v4380 = vadd.f32 %v4230, %v4293
        %v4381 = vadd.f32 %v4231, %v4295
        %v4382 = vadd.f32 %v4232, %v4297
        %v4383 = vadd.f32 %v4233, %v4299
        %v4384 = vadd.f32 %v4234, %v4301
        %v4385 = vadd.f32 %v4235, %v4303
        %v4386 = vadd.f32 %v4236, %v4305
        %v4387 = vadd.f32 %v4237, %v4307
        %v4388 = vadd.f32 %v4238, %v4309
        %v4389 = vadd.f32 %v4239, %v4311
        %v4390 = vadd.f32 %v4240, %v4313
        %v4391 = vadd.f32 %v4241, %v4315
        %v4392 = vadd.f32 %v4242, %v4317
        %v4393 = vadd.f32 %v4243, %v4319
        %v4394 = vadd.f32 %v4244, %v4321
        %v4395 = vadd.f32 %v4245, %v4323
        %v4396 = vadd.f32 %v4246, %v4325
        %v4397 = vadd.f32 %v4247, %v4327
        %v4398 = vadd.f32 %v4248, %v4329
        %v4399 = vadd.f32 %v4249, %v4331
        %v4400 = vadd.f32 %v4250, %v4333
        %v4401 = vadd.f32 %v4251, %v4335
        %v4402 = vadd.f32 %v4252, %v4337
        %v4403 = vadd.f32 %v4253, %v4339
        %v4404 = vadd.f32 %v4254, %v4341
        %v4405 = vadd.f32 %v4255, %v4343
        %v4406 = vadd.f32 %v4256, %v4345
        %v4407 = vadd.f32 %v4257, %v4347
        %4408 = vst.msk [vmem:[%s4136] sm:$0xff] %vm4103, %v4378
        %4409 = vst.msk [vmem:[%s4136 + $0x8] sm:$0xff] %vm4103, %v4379
        %4410 = vst.msk [vmem:[%s4136 + $0x10] sm:$0xff] %vm4103, %v4380
        %4411 = vst.msk [vmem:[%s4136 + $0x18] sm:$0xff] %vm4103, %v4381
        %4412 = vst.msk [vmem:[%s4136 + $0x20] sm:$0xff] %vm4103, %v4382
        %4413 = vst.msk [vmem:[%s4136 + $0x28] sm:$0xff] %vm4103, %v4383
        %4414 = vst.msk [vmem:[%s4136 + $0x30] sm:$0xff] %vm4103, %v4384
        %4415 = vst.msk [vmem:[%s4136 + $0x38] sm:$0xff] %vm4103, %v4385
        %4416 = vst.msk [vmem:[%s4136 + $0x40] sm:$0xff] %vm4103, %v4386
        %4417 = vst.msk [vmem:[%s4136 + $0x48] sm:$0xff] %vm4103, %v4387
        %4418 = vst.msk [vmem:[%s4136 + $0x50] sm:$0xff] %vm4103, %v4388
        %4419 = vst.msk [vmem:[%s4136 + $0x58] sm:$0xff] %vm4103, %v4389
        %4420 = vst.msk [vmem:[%s4136 + $0x60] sm:$0xff] %vm4103, %v4390
        %4421 = vst.msk [vmem:[%s4136 + $0x68] sm:$0xff] %vm4103, %v4391
        %4422 = vst.msk [vmem:[%s4136 + $0x70] sm:$0xff] %vm4103, %v4392
        %4423 = vst.msk [vmem:[%s4136 + $0x78] sm:$0xff] %vm4103, %v4393
        %4424 = vst.msk [vmem:[%s4136 + $0x80] sm:$0xff] %vm4103, %v4394
        %4425 = vst.msk [vmem:[%s4136 + $0x88] sm:$0xff] %vm4103, %v4395
        %4426 = vst.msk [vmem:[%s4136 + $0x90] sm:$0xff] %vm4103, %v4396
        %4427 = vst.msk [vmem:[%s4136 + $0x98] sm:$0xff] %vm4103, %v4397
        %4428 = vst.msk [vmem:[%s4136 + $0xa0] sm:$0xff] %vm4103, %v4398
        %4429 = vst.msk [vmem:[%s4136 + $0xa8] sm:$0xff] %vm4103, %v4399
        %4430 = vst.msk [vmem:[%s4136 + $0xb0] sm:$0xff] %vm4103, %v4400
        %4431 = vst.msk [vmem:[%s4136 + $0xb8] sm:$0xff] %vm4103, %v4401
        %4432 = vst.msk [vmem:[%s4136 + $0xc0] sm:$0xff] %vm4103, %v4402
        %4433 = vst.msk [vmem:[%s4136 + $0xc8] sm:$0xff] %vm4103, %v4403
        %4434 = vst.msk [vmem:[%s4136 + $0xd0] sm:$0xff] %vm4103, %v4404
        %4435 = vst.msk [vmem:[%s4136 + $0xd8] sm:$0xff] %vm4103, %v4405
        %4436 = vst.msk [vmem:[%s4136 + $0xe0] sm:$0xff] %vm4103, %v4406
        %4437 = vst.msk [vmem:[%s4136 + $0xe8] sm:$0xff] %vm4103, %v4407
        %v4438 = vld [vmem:[%s4136] sm:$0xff]
        %v4439 = vld [vmem:[%s4136 + $0x8] sm:$0x7f]
        %v4440 = vld [vmem:[%s4136 + $0x10] sm:$0xff]
        %v4441 = vld [vmem:[%s4136 + $0x18] sm:$0x7f]
        %v4442 = vld [vmem:[%s4136 + $0x20] sm:$0xff]
        %v4443 = vld [vmem:[%s4136 + $0x28] sm:$0x7f]
        %v4444 = vld [vmem:[%s4136 + $0x30] sm:$0xff]
        %v4445 = vld [vmem:[%s4136 + $0x38] sm:$0x7f]
        %v4446 = vld [vmem:[%s4136 + $0x40] sm:$0xff]
        %v4447 = vld [vmem:[%s4136 + $0x48] sm:$0x7f]
        %v4448 = vld [vmem:[%s4136 + $0x50] sm:$0xff]
        %v4449 = vld [vmem:[%s4136 + $0x58] sm:$0x7f]
        %v4450 = vld [vmem:[%s4136 + $0x60] sm:$0xff]
        %v4451 = vld [vmem:[%s4136 + $0x68] sm:$0x7f]
        %v4452 = vld [vmem:[%s4136 + $0x70] sm:$0xff]
        %v4453 = vld [vmem:[%s4136 + $0x78] sm:$0x7f]
        %v4454 = vld [vmem:[%s4136 + $0x80] sm:$0xff]
        %v4455 = vld [vmem:[%s4136 + $0x88] sm:$0x7f]
        %v4456 = vld [vmem:[%s4136 + $0x90] sm:$0xff]
        %v4457 = vld [vmem:[%s4136 + $0x98] sm:$0x7f]
        %v4458 = vld [vmem:[%s4136 + $0xa0] sm:$0xff]
        %v4459 = vld [vmem:[%s4136 + $0xa8] sm:$0x7f]
        %v4460 = vld [vmem:[%s4136 + $0xb0] sm:$0xff]
        %v4461 = vld [vmem:[%s4136 + $0xb8] sm:$0x7f]
        %v4462 = vld [vmem:[%s4136 + $0xc0] sm:$0xff]
        %v4463 = vld [vmem:[%s4136 + $0xc8] sm:$0x7f]
        %v4464 = vld [vmem:[%s4136 + $0xd0] sm:$0xff]
        %v4465 = vld [vmem:[%s4136 + $0xd8] sm:$0x7f]
        %v4466 = vld [vmem:[%s4136 + $0xe0] sm:$0xff]
        %v4467 = vld [vmem:[%s4136 + $0xe8] sm:$0x7f]
        %vm4498 = vcmask 1046528
        %v4499 = vrot.slane %v2936, 1
        %v4500 = vrot.slane %v2938, 1
        %v4501 = vsel %vm4498, %v4499, %v4500
        %v4502 = vrot.slane %v2941, 1
        %v4503 = vrot.slane %v2943, 1
        %v4504 = vsel %vm4498, %v4502, %v4503
        %v4505 = vrot.slane %v2946, 1
        %v4506 = vrot.slane %v2948, 1
        %v4507 = vsel %vm4498, %v4505, %v4506
        %v4508 = vrot.slane %v2951, 1
        %v4509 = vrot.slane %v2953, 1
        %v4510 = vsel %vm4498, %v4508, %v4509
        %v4511 = vrot.slane %v2956, 1
        %v4512 = vrot.slane %v2958, 1
        %v4513 = vsel %vm4498, %v4511, %v4512
        %v4514 = vrot.slane %v2961, 1
        %v4515 = vrot.slane %v2963, 1
        %v4516 = vsel %vm4498, %v4514, %v4515
        %v4517 = vrot.slane %v2966, 1
        %v4518 = vrot.slane %v2968, 1
        %v4519 = vsel %vm4498, %v4517, %v4518
        %v4520 = vrot.slane %v2971, 1
        %v4521 = vrot.slane %v2973, 1
        %v4522 = vsel %vm4498, %v4520, %v4521
        %v4523 = vrot.slane %v2976, 1
        %v4524 = vrot.slane %v2978, 1
        %v4525 = vsel %vm4498, %v4523, %v4524
        %v4526 = vrot.slane %v2981, 1
        %v4527 = vrot.slane %v2983, 1
        %v4528 = vsel %vm4498, %v4526, %v4527
        %v4529 = vrot.slane %v2986, 1
        %v4530 = vrot.slane %v2988, 1
        %v4531 = vsel %vm4498, %v4529, %v4530
        %v4532 = vrot.slane %v2991, 1
        %v4533 = vrot.slane %v2993, 1
        %v4534 = vsel %vm4498, %v4532, %v4533
        %v4535 = vrot.slane %v2996, 1
        %v4536 = vrot.slane %v2998, 1
        %v4537 = vsel %vm4498, %v4535, %v4536
        %v4538 = vrot.slane %v3001, 1
        %v4539 = vrot.slane %v3003, 1
        %v4540 = vsel %vm4498, %v4538, %v4539
        %v4541 = vrot.slane %v3006, 1
        %v4542 = vrot.slane %v3008, 1
        %v4543 = vsel %vm4498, %v4541, %v4542
        %v4574 = vadd.f32 %v4438, %v4501
        %v4575 = vadd.f32 %v4439, %v4500
        %v4576 = vadd.f32 %v4440, %v4504
        %v4577 = vadd.f32 %v4441, %v4503
        %v4578 = vadd.f32 %v4442, %v4507
        %v4579 = vadd.f32 %v4443, %v4506
        %v4580 = vadd.f32 %v4444, %v4510
        %v4581 = vadd.f32 %v4445, %v4509
        %v4582 = vadd.f32 %v4446, %v4513
        %v4583 = vadd.f32 %v4447, %v4512
        %v4584 = vadd.f32 %v4448, %v4516
        %v4585 = vadd.f32 %v4449, %v4515
        %v4586 = vadd.f32 %v4450, %v4519
        %v4587 = vadd.f32 %v4451, %v4518
        %v4588 = vadd.f32 %v4452, %v4522
        %v4589 = vadd.f32 %v4453, %v4521
        %v4590 = vadd.f32 %v4454, %v4525
        %v4591 = vadd.f32 %v4455, %v4524
        %v4592 = vadd.f32 %v4456, %v4528
        %v4593 = vadd.f32 %v4457, %v4527
        %v4594 = vadd.f32 %v4458, %v4531
        %v4595 = vadd.f32 %v4459, %v4530
        %v4596 = vadd.f32 %v4460, %v4534
        %v4597 = vadd.f32 %v4461, %v4533
        %v4598 = vadd.f32 %v4462, %v4537
        %v4599 = vadd.f32 %v4463, %v4536
        %v4600 = vadd.f32 %v4464, %v4540
        %v4601 = vadd.f32 %v4465, %v4539
        %v4602 = vadd.f32 %v4466, %v4543
        %v4603 = vadd.f32 %v4467, %v4542
        %4604 = vst.msk [vmem:[%s4136] sm:$0xff] %vm4103, %v4574
        %4605 = vst.msk [vmem:[%s4136 + $0x8] sm:$0x7f] %vm4198, %v4575
        %4606 = vst.msk [vmem:[%s4136 + $0x10] sm:$0xff] %vm4103, %v4576
        %4607 = vst.msk [vmem:[%s4136 + $0x18] sm:$0x7f] %vm4198, %v4577
        %4608 = vst.msk [vmem:[%s4136 + $0x20] sm:$0xff] %vm4103, %v4578
        %4609 = vst.msk [vmem:[%s4136 + $0x28] sm:$0x7f] %vm4198, %v4579
        %4610 = vst.msk [vmem:[%s4136 + $0x30] sm:$0xff] %vm4103, %v4580
        %4611 = vst.msk [vmem:[%s4136 + $0x38] sm:$0x7f] %vm4198, %v4581
        %4612 = vst.msk [vmem:[%s4136 + $0x40] sm:$0xff] %vm4103, %v4582
        %4613 = vst.msk [vmem:[%s4136 + $0x48] sm:$0x7f] %vm4198, %v4583
        %4614 = vst.msk [vmem:[%s4136 + $0x50] sm:$0xff] %vm4103, %v4584
        %4615 = vst.msk [vmem:[%s4136 + $0x58] sm:$0x7f] %vm4198, %v4585
        %4616 = vst.msk [vmem:[%s4136 + $0x60] sm:$0xff] %vm4103, %v4586
        %4617 = vst.msk [vmem:[%s4136 + $0x68] sm:$0x7f] %vm4198, %v4587
        %4618 = vst.msk [vmem:[%s4136 + $0x70] sm:$0xff] %vm4103, %v4588
        %4619 = vst.msk [vmem:[%s4136 + $0x78] sm:$0x7f] %vm4198, %v4589
        %4620 = vst.msk [vmem:[%s4136 + $0x80] sm:$0xff] %vm4103, %v4590
        %4621 = vst.msk [vmem:[%s4136 + $0x88] sm:$0x7f] %vm4198, %v4591
        %4622 = vst.msk [vmem:[%s4136 + $0x90] sm:$0xff] %vm4103, %v4592
        %4623 = vst.msk [vmem:[%s4136 + $0x98] sm:$0x7f] %vm4198, %v4593
        %4624 = vst.msk [vmem:[%s4136 + $0xa0] sm:$0xff] %vm4103, %v4594
        %4625 = vst.msk [vmem:[%s4136 + $0xa8] sm:$0x7f] %vm4198, %v4595
        %4626 = vst.msk [vmem:[%s4136 + $0xb0] sm:$0xff] %vm4103, %v4596
        %4627 = vst.msk [vmem:[%s4136 + $0xb8] sm:$0x7f] %vm4198, %v4597
        %4628 = vst.msk [vmem:[%s4136 + $0xc0] sm:$0xff] %vm4103, %v4598
        %4629 = vst.msk [vmem:[%s4136 + $0xc8] sm:$0x7f] %vm4198, %v4599
        %4630 = vst.msk [vmem:[%s4136 + $0xd0] sm:$0xff] %vm4103, %v4600
        %4631 = vst.msk [vmem:[%s4136 + $0xd8] sm:$0x7f] %vm4198, %v4601
        %4632 = vst.msk [vmem:[%s4136 + $0xe0] sm:$0xff] %vm4103, %v4602
        %4633 = vst.msk [vmem:[%s4136 + $0xe8] sm:$0x7f] %vm4198, %v4603
        %v4634 = vld [vmem:[#allocation2 + $0x1] sm:$0xff]
        %v4635 = vld [vmem:[#allocation2 + $0x9] sm:$0x7f]
        %v4636 = vld [vmem:[#allocation2 + $0x11] sm:$0xff]
        %v4637 = vld [vmem:[#allocation2 + $0x19] sm:$0x7f]
        %v4638 = vld [vmem:[#allocation2 + $0x21] sm:$0xff]
        %v4639 = vld [vmem:[#allocation2 + $0x29] sm:$0x7f]
        %v4640 = vld [vmem:[#allocation2 + $0x31] sm:$0xff]
        %v4641 = vld [vmem:[#allocation2 + $0x39] sm:$0x7f]
        %v4642 = vld [vmem:[#allocation2 + $0x41] sm:$0xff]
        %v4643 = vld [vmem:[#allocation2 + $0x49] sm:$0x7f]
        %v4644 = vld [vmem:[#allocation2 + $0x51] sm:$0xff]
        %v4645 = vld [vmem:[#allocation2 + $0x59] sm:$0x7f]
        %v4646 = vld [vmem:[#allocation2 + $0x61] sm:$0xff]
        %v4647 = vld [vmem:[#allocation2 + $0x69] sm:$0x7f]
        %v4648 = vld [vmem:[#allocation2 + $0x71] sm:$0xff]
        %v4649 = vld [vmem:[#allocation2 + $0x79] sm:$0x7f]
        %v4650 = vld [vmem:[#allocation2 + $0x81] sm:$0xff]
        %v4651 = vld [vmem:[#allocation2 + $0x89] sm:$0x7f]
        %v4652 = vld [vmem:[#allocation2 + $0x91] sm:$0xff]
        %v4653 = vld [vmem:[#allocation2 + $0x99] sm:$0x7f]
        %v4654 = vld [vmem:[#allocation2 + $0xa1] sm:$0xff]
        %v4655 = vld [vmem:[#allocation2 + $0xa9] sm:$0x7f]
        %v4656 = vld [vmem:[#allocation2 + $0xb1] sm:$0xff]
        %v4657 = vld [vmem:[#allocation2 + $0xb9] sm:$0x7f]
        %v4658 = vld [vmem:[#allocation2 + $0xc1] sm:$0xff]
        %v4659 = vld [vmem:[#allocation2 + $0xc9] sm:$0x7f]
        %v4660 = vld [vmem:[#allocation2 + $0xd1] sm:$0xff]
        %v4661 = vld [vmem:[#allocation2 + $0xd9] sm:$0x7f]
        %v4662 = vld [vmem:[#allocation2 + $0xe1] sm:$0xff]
        %v4663 = vld [vmem:[#allocation2 + $0xe9] sm:$0x7f]
        %v4664 = vld [vmem:[#allocation2 + $0xf1] sm:$0xff]
        %v4665 = vld [vmem:[#allocation2 + $0xf9] sm:$0x7f]
        %4668 = vrot.lane.b32.xlu0 %v2936, 64
        %v4669 = vpop.permute.xlu0 %4668
        %4670 = vrot.lane.b32.xlu0 %v2938, 64
        %v4671 = vpop.permute.xlu0 %4670
        %4672 = vrot.lane.b32.xlu0 %v2941, 64
        %v4673 = vpop.permute.xlu0 %4672
        %4674 = vrot.lane.b32.xlu0 %v2943, 64
        %v4675 = vpop.permute.xlu0 %4674
        %4676 = vrot.lane.b32.xlu0 %v2946, 64
        %v4677 = vpop.permute.xlu0 %4676
        %4678 = vrot.lane.b32.xlu0 %v2948, 64
        %v4679 = vpop.permute.xlu0 %4678
        %4680 = vrot.lane.b32.xlu0 %v2951, 64
        %v4681 = vpop.permute.xlu0 %4680
        %4682 = vrot.lane.b32.xlu0 %v2953, 64
        %v4683 = vpop.permute.xlu0 %4682
        %4684 = vrot.lane.b32.xlu0 %v2956, 64
        %v4685 = vpop.permute.xlu0 %4684
        %4686 = vrot.lane.b32.xlu0 %v2958, 64
        %v4687 = vpop.permute.xlu0 %4686
        %4688 = vrot.lane.b32.xlu0 %v2961, 64
        %v4689 = vpop.permute.xlu0 %4688
        %4690 = vrot.lane.b32.xlu0 %v2963, 64
        %v4691 = vpop.permute.xlu0 %4690
        %4692 = vrot.lane.b32.xlu0 %v2966, 64
        %v4693 = vpop.permute.xlu0 %4692
        %4694 = vrot.lane.b32.xlu0 %v2968, 64
        %v4695 = vpop.permute.xlu0 %4694
        %4696 = vrot.lane.b32.xlu0 %v2971, 64
        %v4697 = vpop.permute.xlu0 %4696
        %4698 = vrot.lane.b32.xlu0 %v2973, 64
        %v4699 = vpop.permute.xlu0 %4698
        %4700 = vrot.lane.b32.xlu0 %v2976, 64
        %v4701 = vpop.permute.xlu0 %4700
        %4702 = vrot.lane.b32.xlu0 %v2978, 64
        %v4703 = vpop.permute.xlu0 %4702
        %4704 = vrot.lane.b32.xlu0 %v2981, 64
        %v4705 = vpop.permute.xlu0 %4704
        %4706 = vrot.lane.b32.xlu0 %v2983, 64
        %v4707 = vpop.permute.xlu0 %4706
        %4708 = vrot.lane.b32.xlu0 %v2986, 64
        %v4709 = vpop.permute.xlu0 %4708
        %4710 = vrot.lane.b32.xlu0 %v2988, 64
        %v4711 = vpop.permute.xlu0 %4710
        %4712 = vrot.lane.b32.xlu0 %v2991, 64
        %v4713 = vpop.permute.xlu0 %4712
        %4714 = vrot.lane.b32.xlu0 %v2993, 64
        %v4715 = vpop.permute.xlu0 %4714
        %4716 = vrot.lane.b32.xlu0 %v2996, 64
        %v4717 = vpop.permute.xlu0 %4716
        %4718 = vrot.lane.b32.xlu0 %v2998, 64
        %v4719 = vpop.permute.xlu0 %4718
        %4720 = vrot.lane.b32.xlu0 %v3001, 64
        %v4721 = vpop.permute.xlu0 %4720
        %4722 = vrot.lane.b32.xlu0 %v3003, 64
        %v4723 = vpop.permute.xlu0 %4722
        %4724 = vrot.lane.b32.xlu0 %v3006, 64
        %v4725 = vpop.permute.xlu0 %4724
        %4726 = vrot.lane.b32.xlu0 %v3008, 64
        %v4727 = vpop.permute.xlu0 %4726
        %4728 = vrot.lane.b32.xlu0 %v3011, 64
        %v4729 = vpop.permute.xlu0 %4728
        %4730 = vrot.lane.b32.xlu0 %v3013, 64
        %v4731 = vpop.permute.xlu0 %4730
        %v4764 = vadd.f32 %v4634, %v4669
        %v4765 = vadd.f32 %v4635, %v4671
        %v4766 = vadd.f32 %v4636, %v4673
        %v4767 = vadd.f32 %v4637, %v4675
        %v4768 = vadd.f32 %v4638, %v4677
        %v4769 = vadd.f32 %v4639, %v4679
        %v4770 = vadd.f32 %v4640, %v4681
        %v4771 = vadd.f32 %v4641, %v4683
        %v4772 = vadd.f32 %v4642, %v4685
        %v4773 = vadd.f32 %v4643, %v4687
        %v4774 = vadd.f32 %v4644, %v4689
        %v4775 = vadd.f32 %v4645, %v4691
        %v4776 = vadd.f32 %v4646, %v4693
        %v4777 = vadd.f32 %v4647, %v4695
        %v4778 = vadd.f32 %v4648, %v4697
        %v4779 = vadd.f32 %v4649, %v4699
        %v4780 = vadd.f32 %v4650, %v4701
        %v4781 = vadd.f32 %v4651, %v4703
        %v4782 = vadd.f32 %v4652, %v4705
        %v4783 = vadd.f32 %v4653, %v4707
        %v4784 = vadd.f32 %v4654, %v4709
        %v4785 = vadd.f32 %v4655, %v4711
        %v4786 = vadd.f32 %v4656, %v4713
        %v4787 = vadd.f32 %v4657, %v4715
        %v4788 = vadd.f32 %v4658, %v4717
        %v4789 = vadd.f32 %v4659, %v4719
        %v4790 = vadd.f32 %v4660, %v4721
        %v4791 = vadd.f32 %v4661, %v4723
        %v4792 = vadd.f32 %v4662, %v4725
        %v4793 = vadd.f32 %v4663, %v4727
        %v4794 = vadd.f32 %v4664, %v4729
        %v4795 = vadd.f32 %v4665, %v4731
        %4796 = vst.msk [vmem:[#allocation2 + $0x1] sm:$0xff] %vm4103, %v4764
        %4797 = vst.msk [vmem:[#allocation2 + $0x9] sm:$0x7f] %vm4198, %v4765
        %4798 = vst.msk [vmem:[#allocation2 + $0x11] sm:$0xff] %vm4103, %v4766
        %4799 = vst.msk [vmem:[#allocation2 + $0x19] sm:$0x7f] %vm4198, %v4767
        %4800 = vst.msk [vmem:[#allocation2 + $0x21] sm:$0xff] %vm4103, %v4768
        %4801 = vst.msk [vmem:[#allocation2 + $0x29] sm:$0x7f] %vm4198, %v4769
        %4802 = vst.msk [vmem:[#allocation2 + $0x31] sm:$0xff] %vm4103, %v4770
        %4803 = vst.msk [vmem:[#allocation2 + $0x39] sm:$0x7f] %vm4198, %v4771
        %4804 = vst.msk [vmem:[#allocation2 + $0x41] sm:$0xff] %vm4103, %v4772
        %4805 = vst.msk [vmem:[#allocation2 + $0x49] sm:$0x7f] %vm4198, %v4773
        %4806 = vst.msk [vmem:[#allocation2 + $0x51] sm:$0xff] %vm4103, %v4774
        %4807 = vst.msk [vmem:[#allocation2 + $0x59] sm:$0x7f] %vm4198, %v4775
        %4808 = vst.msk [vmem:[#allocation2 + $0x61] sm:$0xff] %vm4103, %v4776
        %4809 = vst.msk [vmem:[#allocation2 + $0x69] sm:$0x7f] %vm4198, %v4777
        %4810 = vst.msk [vmem:[#allocation2 + $0x71] sm:$0xff] %vm4103, %v4778
        %4811 = vst.msk [vmem:[#allocation2 + $0x79] sm:$0x7f] %vm4198, %v4779
        %4812 = vst.msk [vmem:[#allocation2 + $0x81] sm:$0xff] %vm4103, %v4780
        %4813 = vst.msk [vmem:[#allocation2 + $0x89] sm:$0x7f] %vm4198, %v4781
        %4814 = vst.msk [vmem:[#allocation2 + $0x91] sm:$0xff] %vm4103, %v4782
        %4815 = vst.msk [vmem:[#allocation2 + $0x99] sm:$0x7f] %vm4198, %v4783
        %4816 = vst.msk [vmem:[#allocation2 + $0xa1] sm:$0xff] %vm4103, %v4784
        %4817 = vst.msk [vmem:[#allocation2 + $0xa9] sm:$0x7f] %vm4198, %v4785
        %4818 = vst.msk [vmem:[#allocation2 + $0xb1] sm:$0xff] %vm4103, %v4786
        %4819 = vst.msk [vmem:[#allocation2 + $0xb9] sm:$0x7f] %vm4198, %v4787
        %4820 = vst.msk [vmem:[#allocation2 + $0xc1] sm:$0xff] %vm4103, %v4788
        %4821 = vst.msk [vmem:[#allocation2 + $0xc9] sm:$0x7f] %vm4198, %v4789
        %4822 = vst.msk [vmem:[#allocation2 + $0xd1] sm:$0xff] %vm4103, %v4790
        %4823 = vst.msk [vmem:[#allocation2 + $0xd9] sm:$0x7f] %vm4198, %v4791
        %4824 = vst.msk [vmem:[#allocation2 + $0xe1] sm:$0xff] %vm4103, %v4792
        %4825 = vst.msk [vmem:[#allocation2 + $0xe9] sm:$0x7f] %vm4198, %v4793
        %4826 = vst.msk [vmem:[#allocation2 + $0xf1] sm:$0xff] %vm4103, %v4794
        %4827 = vst.msk [vmem:[#allocation2 + $0xf9] sm:$0x7f] %vm4198, %v4795
        %v4828 = vld [vmem:[#allocation2] sm:$0xff]
        %v4829 = vld [vmem:[#allocation2 + $0x8] sm:$0x7f]
        %v4830 = vld [vmem:[#allocation2 + $0x10] sm:$0xff]
        %v4831 = vld [vmem:[#allocation2 + $0x18] sm:$0x7f]
        %v4832 = vld [vmem:[#allocation2 + $0x20] sm:$0xff]
        %v4833 = vld [vmem:[#allocation2 + $0x28] sm:$0x7f]
        %v4834 = vld [vmem:[#allocation2 + $0x30] sm:$0xff]
        %v4835 = vld [vmem:[#allocation2 + $0x38] sm:$0x7f]
        %v4836 = vld [vmem:[#allocation2 + $0x40] sm:$0xff]
        %v4837 = vld [vmem:[#allocation2 + $0x48] sm:$0x7f]
        %v4838 = vld [vmem:[#allocation2 + $0x50] sm:$0xff]
        %v4839 = vld [vmem:[#allocation2 + $0x58] sm:$0x7f]
        %v4840 = vld [vmem:[#allocation2 + $0x60] sm:$0xff]
        %v4841 = vld [vmem:[#allocation2 + $0x68] sm:$0x7f]
        %v4842 = vld [vmem:[#allocation2 + $0x70] sm:$0xff]
        %v4843 = vld [vmem:[#allocation2 + $0x78] sm:$0x7f]
        %v4844 = vld [vmem:[#allocation2 + $0x80] sm:$0xff]
        %v4845 = vld [vmem:[#allocation2 + $0x88] sm:$0x7f]
        %v4846 = vld [vmem:[#allocation2 + $0x90] sm:$0xff]
        %v4847 = vld [vmem:[#allocation2 + $0x98] sm:$0x7f]
        %v4848 = vld [vmem:[#allocation2 + $0xa0] sm:$0xff]
        %v4849 = vld [vmem:[#allocation2 + $0xa8] sm:$0x7f]
        %v4850 = vld [vmem:[#allocation2 + $0xb0] sm:$0xff]
        %v4851 = vld [vmem:[#allocation2 + $0xb8] sm:$0x7f]
        %v4852 = vld [vmem:[#allocation2 + $0xc0] sm:$0xff]
        %v4853 = vld [vmem:[#allocation2 + $0xc8] sm:$0x7f]
        %v4854 = vld [vmem:[#allocation2 + $0xd0] sm:$0xff]
        %v4855 = vld [vmem:[#allocation2 + $0xd8] sm:$0x7f]
        %v4856 = vld [vmem:[#allocation2 + $0xe0] sm:$0xff]
        %v4857 = vld [vmem:[#allocation2 + $0xe8] sm:$0x7f]
        %v4858 = vld [vmem:[#allocation2 + $0xf0] sm:$0xff]
        %v4859 = vld [vmem:[#allocation2 + $0xf8] sm:$0x7f]
        %v4892 = vrot.slane %v3292, 1
        %v4893 = vrot.slane %v3294, 1
        %v4894 = vsel %vm4498, %v4892, %v4893
        %v4895 = vrot.slane %v3297, 1
        %v4896 = vrot.slane %v3299, 1
        %v4897 = vsel %vm4498, %v4895, %v4896
        %v4898 = vrot.slane %v3302, 1
        %v4899 = vrot.slane %v3304, 1
        %v4900 = vsel %vm4498, %v4898, %v4899
        %v4901 = vrot.slane %v3307, 1
        %v4902 = vrot.slane %v3309, 1
        %v4903 = vsel %vm4498, %v4901, %v4902
        %v4904 = vrot.slane %v3312, 1
        %v4905 = vrot.slane %v3314, 1
        %v4906 = vsel %vm4498, %v4904, %v4905
        %v4907 = vrot.slane %v3317, 1
        %v4908 = vrot.slane %v3319, 1
        %v4909 = vsel %vm4498, %v4907, %v4908
        %v4910 = vrot.slane %v3322, 1
        %v4911 = vrot.slane %v3324, 1
        %v4912 = vsel %vm4498, %v4910, %v4911
        %v4913 = vrot.slane %v3327, 1
        %v4914 = vrot.slane %v3329, 1
        %v4915 = vsel %vm4498, %v4913, %v4914
        %v4916 = vrot.slane %v3332, 1
        %v4917 = vrot.slane %v3334, 1
        %v4918 = vsel %vm4498, %v4916, %v4917
        %v4919 = vrot.slane %v3337, 1
        %v4920 = vrot.slane %v3339, 1
        %v4921 = vsel %vm4498, %v4919, %v4920
        %v4922 = vrot.slane %v3342, 1
        %v4923 = vrot.slane %v3344, 1
        %v4924 = vsel %vm4498, %v4922, %v4923
        %v4925 = vrot.slane %v3347, 1
        %v4926 = vrot.slane %v3349, 1
        %v4927 = vsel %vm4498, %v4925, %v4926
        %v4928 = vrot.slane %v3352, 1
        %v4929 = vrot.slane %v3354, 1
        %v4930 = vsel %vm4498, %v4928, %v4929
        %v4931 = vrot.slane %v3357, 1
        %v4932 = vrot.slane %v3359, 1
        %v4933 = vsel %vm4498, %v4931, %v4932
        %v4934 = vrot.slane %v3362, 1
        %v4935 = vrot.slane %v3364, 1
        %v4936 = vsel %vm4498, %v4934, %v4935
        %v4937 = vrot.slane %v3367, 1
        %v4938 = vrot.slane %v3369, 1
        %v4939 = vsel %vm4498, %v4937, %v4938
        %4940 = vrot.lane.b32.xlu0 %v4894, 64
        %v4941 = vpop.permute.xlu0 %4940
        %4942 = vrot.lane.b32.xlu0 %v4893, 64
        %v4943 = vpop.permute.xlu0 %4942
        %4944 = vrot.lane.b32.xlu0 %v4897, 64
        %v4945 = vpop.permute.xlu0 %4944
        %4946 = vrot.lane.b32.xlu0 %v4896, 64
        %v4947 = vpop.permute.xlu0 %4946
        %4948 = vrot.lane.b32.xlu0 %v4900, 64
        %v4949 = vpop.permute.xlu0 %4948
        %4950 = vrot.lane.b32.xlu0 %v4899, 64
        %v4951 = vpop.permute.xlu0 %4950
        %4952 = vrot.lane.b32.xlu0 %v4903, 64
        %v4953 = vpop.permute.xlu0 %4952
        %4954 = vrot.lane.b32.xlu0 %v4902, 64
        %v4955 = vpop.permute.xlu0 %4954
        %4956 = vrot.lane.b32.xlu0 %v4906, 64
        %v4957 = vpop.permute.xlu0 %4956
        %4958 = vrot.lane.b32.xlu0 %v4905, 64
        %v4959 = vpop.permute.xlu0 %4958
        %4960 = vrot.lane.b32.xlu0 %v4909, 64
        %v4961 = vpop.permute.xlu0 %4960
        %4962 = vrot.lane.b32.xlu0 %v4908, 64
        %v4963 = vpop.permute.xlu0 %4962
        %4964 = vrot.lane.b32.xlu0 %v4912, 64
        %v4965 = vpop.permute.xlu0 %4964
        %4966 = vrot.lane.b32.xlu0 %v4911, 64
        %v4967 = vpop.permute.xlu0 %4966
        %4968 = vrot.lane.b32.xlu0 %v4915, 64
        %v4969 = vpop.permute.xlu0 %4968
        %4970 = vrot.lane.b32.xlu0 %v4914, 64
        %v4971 = vpop.permute.xlu0 %4970
        %4972 = vrot.lane.b32.xlu0 %v4918, 64
        %v4973 = vpop.permute.xlu0 %4972
        %4974 = vrot.lane.b32.xlu0 %v4917, 64
        %v4975 = vpop.permute.xlu0 %4974
        %4976 = vrot.lane.b32.xlu0 %v4921, 64
        %v4977 = vpop.permute.xlu0 %4976
        %4978 = vrot.lane.b32.xlu0 %v4920, 64
        %v4979 = vpop.permute.xlu0 %4978
        %4980 = vrot.lane.b32.xlu0 %v4924, 64
        %v4981 = vpop.permute.xlu0 %4980
        %4982 = vrot.lane.b32.xlu0 %v4923, 64
        %v4983 = vpop.permute.xlu0 %4982
        %4984 = vrot.lane.b32.xlu0 %v4927, 64
        %v4985 = vpop.permute.xlu0 %4984
        %4986 = vrot.lane.b32.xlu0 %v4926, 64
        %v4987 = vpop.permute.xlu0 %4986
        %4988 = vrot.lane.b32.xlu0 %v4930, 64
        %v4989 = vpop.permute.xlu0 %4988
        %4990 = vrot.lane.b32.xlu0 %v4929, 64
        %v4991 = vpop.permute.xlu0 %4990
        %4992 = vrot.lane.b32.xlu0 %v4933, 64
        %v4993 = vpop.permute.xlu0 %4992
        %4994 = vrot.lane.b32.xlu0 %v4932, 64
        %v4995 = vpop.permute.xlu0 %4994
        %4996 = vrot.lane.b32.xlu0 %v4936, 64
        %v4997 = vpop.permute.xlu0 %4996
        %4998 = vrot.lane.b32.xlu0 %v4935, 64
        %v4999 = vpop.permute.xlu0 %4998
        %5000 = vrot.lane.b32.xlu0 %v4939, 64
        %v5001 = vpop.permute.xlu0 %5000
        %5002 = vrot.lane.b32.xlu0 %v4938, 64
        %v5003 = vpop.permute.xlu0 %5002
        %v5036 = vadd.f32 %v4828, %v4941
        %v5037 = vadd.f32 %v4829, %v4943
        %v5038 = vadd.f32 %v4830, %v4945
        %v5039 = vadd.f32 %v4831, %v4947
        %v5040 = vadd.f32 %v4832, %v4949
        %v5041 = vadd.f32 %v4833, %v4951
        %v5042 = vadd.f32 %v4834, %v4953
        %v5043 = vadd.f32 %v4835, %v4955
        %v5044 = vadd.f32 %v4836, %v4957
        %v5045 = vadd.f32 %v4837, %v4959
        %v5046 = vadd.f32 %v4838, %v4961
        %v5047 = vadd.f32 %v4839, %v4963
        %v5048 = vadd.f32 %v4840, %v4965
        %v5049 = vadd.f32 %v4841, %v4967
        %v5050 = vadd.f32 %v4842, %v4969
        %v5051 = vadd.f32 %v4843, %v4971
        %v5052 = vadd.f32 %v4844, %v4973
        %v5053 = vadd.f32 %v4845, %v4975
        %v5054 = vadd.f32 %v4846, %v4977
        %v5055 = vadd.f32 %v4847, %v4979
        %v5056 = vadd.f32 %v4848, %v4981
        %v5057 = vadd.f32 %v4849, %v4983
        %v5058 = vadd.f32 %v4850, %v4985
        %v5059 = vadd.f32 %v4851, %v4987
        %v5060 = vadd.f32 %v4852, %v4989
        %v5061 = vadd.f32 %v4853, %v4991
        %v5062 = vadd.f32 %v4854, %v4993
        %v5063 = vadd.f32 %v4855, %v4995
        %v5064 = vadd.f32 %v4856, %v4997
        %v5065 = vadd.f32 %v4857, %v4999
        %v5066 = vadd.f32 %v4858, %v5001
        %v5067 = vadd.f32 %v4859, %v5003
        %5068 = vst.msk [vmem:[#allocation2] sm:$0xff] %vm4103, %v5036
        %5069 = vst.msk [vmem:[#allocation2 + $0x8] sm:$0x7f] %vm4198, %v5037
        %5070 = vst.msk [vmem:[#allocation2 + $0x10] sm:$0xff] %vm4103, %v5038
        %5071 = vst.msk [vmem:[#allocation2 + $0x18] sm:$0x7f] %vm4198, %v5039
        %5072 = vst.msk [vmem:[#allocation2 + $0x20] sm:$0xff] %vm4103, %v5040
        %5073 = vst.msk [vmem:[#allocation2 + $0x28] sm:$0x7f] %vm4198, %v5041
        %5074 = vst.msk [vmem:[#allocation2 + $0x30] sm:$0xff] %vm4103, %v5042
        %5075 = vst.msk [vmem:[#allocation2 + $0x38] sm:$0x7f] %vm4198, %v5043
        %5076 = vst.msk [vmem:[#allocation2 + $0x40] sm:$0xff] %vm4103, %v5044
        %5077 = vst.msk [vmem:[#allocation2 + $0x48] sm:$0x7f] %vm4198, %v5045
        %5078 = vst.msk [vmem:[#allocation2 + $0x50] sm:$0xff] %vm4103, %v5046
        %5079 = vst.msk [vmem:[#allocation2 + $0x58] sm:$0x7f] %vm4198, %v5047
        %5080 = vst.msk [vmem:[#allocation2 + $0x60] sm:$0xff] %vm4103, %v5048
        %5081 = vst.msk [vmem:[#allocation2 + $0x68] sm:$0x7f] %vm4198, %v5049
        %5082 = vst.msk [vmem:[#allocation2 + $0x70] sm:$0xff] %vm4103, %v5050
        %5083 = vst.msk [vmem:[#allocation2 + $0x78] sm:$0x7f] %vm4198, %v5051
        %5084 = vst.msk [vmem:[#allocation2 + $0x80] sm:$0xff] %vm4103, %v5052
        %5085 = vst.msk [vmem:[#allocation2 + $0x88] sm:$0x7f] %vm4198, %v5053
        %5086 = vst.msk [vmem:[#allocation2 + $0x90] sm:$0xff] %vm4103, %v5054
        %5087 = vst.msk [vmem:[#allocation2 + $0x98] sm:$0x7f] %vm4198, %v5055
        %5088 = vst.msk [vmem:[#allocation2 + $0xa0] sm:$0xff] %vm4103, %v5056
        %5089 = vst.msk [vmem:[#allocation2 + $0xa8] sm:$0x7f] %vm4198, %v5057
        %5090 = vst.msk [vmem:[#allocation2 + $0xb0] sm:$0xff] %vm4103, %v5058
        %5091 = vst.msk [vmem:[#allocation2 + $0xb8] sm:$0x7f] %vm4198, %v5059
        %5092 = vst.msk [vmem:[#allocation2 + $0xc0] sm:$0xff] %vm4103, %v5060
        %5093 = vst.msk [vmem:[#allocation2 + $0xc8] sm:$0x7f] %vm4198, %v5061
        %5094 = vst.msk [vmem:[#allocation2 + $0xd0] sm:$0xff] %vm4103, %v5062
        %5095 = vst.msk [vmem:[#allocation2 + $0xd8] sm:$0x7f] %vm4198, %v5063
        %5096 = vst.msk [vmem:[#allocation2 + $0xe0] sm:$0xff] %vm4103, %v5064
        %5097 = vst.msk [vmem:[#allocation2 + $0xe8] sm:$0x7f] %vm4198, %v5065
        %5098 = vst.msk [vmem:[#allocation2 + $0xf0] sm:$0xff] %vm4103, %v5066
        %5099 = vst.msk [vmem:[#allocation2 + $0xf8] sm:$0x7f] %vm4198, %v5067
        %v5100 = vld [vmem:[#allocation2 + $0x1] sm:$0xff]
        %v5101 = vld [vmem:[#allocation2 + $0x9] sm:$0x7f]
        %v5102 = vld [vmem:[#allocation2 + $0x11] sm:$0xff]
        %v5103 = vld [vmem:[#allocation2 + $0x19] sm:$0x7f]
        %v5104 = vld [vmem:[#allocation2 + $0x21] sm:$0xff]
        %v5105 = vld [vmem:[#allocation2 + $0x29] sm:$0x7f]
        %v5106 = vld [vmem:[#allocation2 + $0x31] sm:$0xff]
        %v5107 = vld [vmem:[#allocation2 + $0x39] sm:$0x7f]
        %v5108 = vld [vmem:[#allocation2 + $0x41] sm:$0xff]
        %v5109 = vld [vmem:[#allocation2 + $0x49] sm:$0x7f]
        %v5110 = vld [vmem:[#allocation2 + $0x51] sm:$0xff]
        %v5111 = vld [vmem:[#allocation2 + $0x59] sm:$0x7f]
        %v5112 = vld [vmem:[#allocation2 + $0x61] sm:$0xff]
        %v5113 = vld [vmem:[#allocation2 + $0x69] sm:$0x7f]
        %v5114 = vld [vmem:[#allocation2 + $0x71] sm:$0xff]
        %v5115 = vld [vmem:[#allocation2 + $0x79] sm:$0x7f]
        %v5116 = vld [vmem:[#allocation2 + $0x81] sm:$0xff]
        %v5117 = vld [vmem:[#allocation2 + $0x89] sm:$0x7f]
        %v5118 = vld [vmem:[#allocation2 + $0x91] sm:$0xff]
        %v5119 = vld [vmem:[#allocation2 + $0x99] sm:$0x7f]
        %v5120 = vld [vmem:[#allocation2 + $0xa1] sm:$0xff]
        %v5121 = vld [vmem:[#allocation2 + $0xa9] sm:$0x7f]
        %v5122 = vld [vmem:[#allocation2 + $0xb1] sm:$0xff]
        %v5123 = vld [vmem:[#allocation2 + $0xb9] sm:$0x7f]
        %v5124 = vld [vmem:[#allocation2 + $0xc1] sm:$0xff]
        %v5125 = vld [vmem:[#allocation2 + $0xc9] sm:$0x7f]
        %v5126 = vld [vmem:[#allocation2 + $0xd1] sm:$0xff]
        %v5127 = vld [vmem:[#allocation2 + $0xd9] sm:$0x7f]
        %v5128 = vld [vmem:[#allocation2 + $0xe1] sm:$0xff]
        %v5129 = vld [vmem:[#allocation2 + $0xe9] sm:$0x7f]
        %v5130 = vadd.f32 %v5100, %v3645
        %v5131 = vadd.f32 %v5101, %v3647
        %v5132 = vadd.f32 %v5102, %v3650
        %v5133 = vadd.f32 %v5103, %v3652
        %v5134 = vadd.f32 %v5104, %v3655
        %v5135 = vadd.f32 %v5105, %v3657
        %v5136 = vadd.f32 %v5106, %v3660
        %v5137 = vadd.f32 %v5107, %v3662
        %v5138 = vadd.f32 %v5108, %v3665
        %v5139 = vadd.f32 %v5109, %v3667
        %v5140 = vadd.f32 %v5110, %v3670
        %v5141 = vadd.f32 %v5111, %v3672
        %v5142 = vadd.f32 %v5112, %v3675
        %v5143 = vadd.f32 %v5113, %v3677
        %v5144 = vadd.f32 %v5114, %v3680
        %v5145 = vadd.f32 %v5115, %v3682
        %v5146 = vadd.f32 %v5116, %v3685
        %v5147 = vadd.f32 %v5117, %v3687
        %v5148 = vadd.f32 %v5118, %v3690
        %v5149 = vadd.f32 %v5119, %v3692
        %v5150 = vadd.f32 %v5120, %v3695
        %v5151 = vadd.f32 %v5121, %v3697
        %v5152 = vadd.f32 %v5122, %v3700
        %v5153 = vadd.f32 %v5123, %v3702
        %v5154 = vadd.f32 %v5124, %v3705
        %v5155 = vadd.f32 %v5125, %v3707
        %v5156 = vadd.f32 %v5126, %v3710
        %v5157 = vadd.f32 %v5127, %v3712
        %v5158 = vadd.f32 %v5128, %v3715
        %v5159 = vadd.f32 %v5129, %v3717
        %5160 = vst.msk [vmem:[#allocation2 + $0x1] sm:$0xff] %vm4103, %v5130
        %5161 = vst.msk [vmem:[#allocation2 + $0x9] sm:$0x7f] %vm4198, %v5131
        %5162 = vst.msk [vmem:[#allocation2 + $0x11] sm:$0xff] %vm4103, %v5132
        %5163 = vst.msk [vmem:[#allocation2 + $0x19] sm:$0x7f] %vm4198, %v5133
        %5164 = vst.msk [vmem:[#allocation2 + $0x21] sm:$0xff] %vm4103, %v5134
        %5165 = vst.msk [vmem:[#allocation2 + $0x29] sm:$0x7f] %vm4198, %v5135
        %5166 = vst.msk [vmem:[#allocation2 + $0x31] sm:$0xff] %vm4103, %v5136
        %5167 = vst.msk [vmem:[#allocation2 + $0x39] sm:$0x7f] %vm4198, %v5137
        %5168 = vst.msk [vmem:[#allocation2 + $0x41] sm:$0xff] %vm4103, %v5138
        %5169 = vst.msk [vmem:[#allocation2 + $0x49] sm:$0x7f] %vm4198, %v5139
        %5170 = vst.msk [vmem:[#allocation2 + $0x51] sm:$0xff] %vm4103, %v5140
        %5171 = vst.msk [vmem:[#allocation2 + $0x59] sm:$0x7f] %vm4198, %v5141
        %5172 = vst.msk [vmem:[#allocation2 + $0x61] sm:$0xff] %vm4103, %v5142
        %5173 = vst.msk [vmem:[#allocation2 + $0x69] sm:$0x7f] %vm4198, %v5143
        %5174 = vst.msk [vmem:[#allocation2 + $0x71] sm:$0xff] %vm4103, %v5144
        %5175 = vst.msk [vmem:[#allocation2 + $0x79] sm:$0x7f] %vm4198, %v5145
        %5176 = vst.msk [vmem:[#allocation2 + $0x81] sm:$0xff] %vm4103, %v5146
        %5177 = vst.msk [vmem:[#allocation2 + $0x89] sm:$0x7f] %vm4198, %v5147
        %5178 = vst.msk [vmem:[#allocation2 + $0x91] sm:$0xff] %vm4103, %v5148
        %5179 = vst.msk [vmem:[#allocation2 + $0x99] sm:$0x7f] %vm4198, %v5149
        %5180 = vst.msk [vmem:[#allocation2 + $0xa1] sm:$0xff] %vm4103, %v5150
        %5181 = vst.msk [vmem:[#allocation2 + $0xa9] sm:$0x7f] %vm4198, %v5151
        %5182 = vst.msk [vmem:[#allocation2 + $0xb1] sm:$0xff] %vm4103, %v5152
        %5183 = vst.msk [vmem:[#allocation2 + $0xb9] sm:$0x7f] %vm4198, %v5153
        %5184 = vst.msk [vmem:[#allocation2 + $0xc1] sm:$0xff] %vm4103, %v5154
        %5185 = vst.msk [vmem:[#allocation2 + $0xc9] sm:$0x7f] %vm4198, %v5155
        %5186 = vst.msk [vmem:[#allocation2 + $0xd1] sm:$0xff] %vm4103, %v5156
        %5187 = vst.msk [vmem:[#allocation2 + $0xd9] sm:$0x7f] %vm4198, %v5157
        %5188 = vst.msk [vmem:[#allocation2 + $0xe1] sm:$0xff] %vm4103, %v5158
        %5189 = vst.msk [vmem:[#allocation2 + $0xe9] sm:$0x7f] %vm4198, %v5159
        %v5190 = vld [vmem:[#allocation2] sm:$0xff]
        %v5191 = vld [vmem:[#allocation2 + $0x8] sm:$0xff]
        %v5192 = vld [vmem:[#allocation2 + $0x10] sm:$0xff]
        %v5193 = vld [vmem:[#allocation2 + $0x18] sm:$0xff]
        %v5194 = vld [vmem:[#allocation2 + $0x20] sm:$0xff]
        %v5195 = vld [vmem:[#allocation2 + $0x28] sm:$0xff]
        %v5196 = vld [vmem:[#allocation2 + $0x30] sm:$0xff]
        %v5197 = vld [vmem:[#allocation2 + $0x38] sm:$0xff]
        %v5198 = vld [vmem:[#allocation2 + $0x40] sm:$0xff]
        %v5199 = vld [vmem:[#allocation2 + $0x48] sm:$0xff]
        %v5200 = vld [vmem:[#allocation2 + $0x50] sm:$0xff]
        %v5201 = vld [vmem:[#allocation2 + $0x58] sm:$0xff]
        %v5202 = vld [vmem:[#allocation2 + $0x60] sm:$0xff]
        %v5203 = vld [vmem:[#allocation2 + $0x68] sm:$0xff]
        %v5204 = vld [vmem:[#allocation2 + $0x70] sm:$0xff]
        %v5205 = vld [vmem:[#allocation2 + $0x78] sm:$0xff]
        %v5206 = vld [vmem:[#allocation2 + $0x80] sm:$0xff]
        %v5207 = vld [vmem:[#allocation2 + $0x88] sm:$0xff]
        %v5208 = vld [vmem:[#allocation2 + $0x90] sm:$0xff]
        %v5209 = vld [vmem:[#allocation2 + $0x98] sm:$0xff]
        %v5210 = vld [vmem:[#allocation2 + $0xa0] sm:$0xff]
        %v5211 = vld [vmem:[#allocation2 + $0xa8] sm:$0xff]
        %v5212 = vld [vmem:[#allocation2 + $0xb0] sm:$0xff]
        %v5213 = vld [vmem:[#allocation2 + $0xb8] sm:$0xff]
        %v5214 = vld [vmem:[#allocation2 + $0xc0] sm:$0xff]
        %v5215 = vld [vmem:[#allocation2 + $0xc8] sm:$0xff]
        %v5216 = vld [vmem:[#allocation2 + $0xd0] sm:$0xff]
        %v5217 = vld [vmem:[#allocation2 + $0xd8] sm:$0xff]
        %v5218 = vld [vmem:[#allocation2 + $0xe0] sm:$0xff]
        %v5219 = vld [vmem:[#allocation2 + $0xe8] sm:$0xff]
        %5250 = vrot.lane.b32.xlu0 %v3645, 64
        %v5251 = vpop.permute.xlu0 %5250
        %5252 = vrot.lane.b32.xlu0 %v3647, 64
        %v5253 = vpop.permute.xlu0 %5252
        %5254 = vrot.lane.b32.xlu0 %v3650, 64
        %v5255 = vpop.permute.xlu0 %5254
        %5256 = vrot.lane.b32.xlu0 %v3652, 64
        %v5257 = vpop.permute.xlu0 %5256
        %5258 = vrot.lane.b32.xlu0 %v3655, 64
        %v5259 = vpop.permute.xlu0 %5258
        %5260 = vrot.lane.b32.xlu0 %v3657, 64
        %v5261 = vpop.permute.xlu0 %5260
        %5262 = vrot.lane.b32.xlu0 %v3660, 64
        %v5263 = vpop.permute.xlu0 %5262
        %5264 = vrot.lane.b32.xlu0 %v3662, 64
        %v5265 = vpop.permute.xlu0 %5264
        %5266 = vrot.lane.b32.xlu0 %v3665, 64
        %v5267 = vpop.permute.xlu0 %5266
        %5268 = vrot.lane.b32.xlu0 %v3667, 64
        %v5269 = vpop.permute.xlu0 %5268
        %5270 = vrot.lane.b32.xlu0 %v3670, 64
        %v5271 = vpop.permute.xlu0 %5270
        %5272 = vrot.lane.b32.xlu0 %v3672, 64
        %v5273 = vpop.permute.xlu0 %5272
        %5274 = vrot.lane.b32.xlu0 %v3675, 64
        %v5275 = vpop.permute.xlu0 %5274
        %5276 = vrot.lane.b32.xlu0 %v3677, 64
        %v5277 = vpop.permute.xlu0 %5276
        %5278 = vrot.lane.b32.xlu0 %v3680, 64
        %v5279 = vpop.permute.xlu0 %5278
        %5280 = vrot.lane.b32.xlu0 %v3682, 64
        %v5281 = vpop.permute.xlu0 %5280
        %5282 = vrot.lane.b32.xlu0 %v3685, 64
        %v5283 = vpop.permute.xlu0 %5282
        %5284 = vrot.lane.b32.xlu0 %v3687, 64
        %v5285 = vpop.permute.xlu0 %5284
        %5286 = vrot.lane.b32.xlu0 %v3690, 64
        %v5287 = vpop.permute.xlu0 %5286
        %5288 = vrot.lane.b32.xlu0 %v3692, 64
        %v5289 = vpop.permute.xlu0 %5288
        %5290 = vrot.lane.b32.xlu0 %v3695, 64
        %v5291 = vpop.permute.xlu0 %5290
        %5292 = vrot.lane.b32.xlu0 %v3697, 64
        %v5293 = vpop.permute.xlu0 %5292
        %5294 = vrot.lane.b32.xlu0 %v3700, 64
        %v5295 = vpop.permute.xlu0 %5294
        %5296 = vrot.lane.b32.xlu0 %v3702, 64
        %v5297 = vpop.permute.xlu0 %5296
        %5298 = vrot.lane.b32.xlu0 %v3705, 64
        %v5299 = vpop.permute.xlu0 %5298
        %5300 = vrot.lane.b32.xlu0 %v3707, 64
        %v5301 = vpop.permute.xlu0 %5300
        %5302 = vrot.lane.b32.xlu0 %v3710, 64
        %v5303 = vpop.permute.xlu0 %5302
        %5304 = vrot.lane.b32.xlu0 %v3712, 64
        %v5305 = vpop.permute.xlu0 %5304
        %5306 = vrot.lane.b32.xlu0 %v3715, 64
        %v5307 = vpop.permute.xlu0 %5306
        %5308 = vrot.lane.b32.xlu0 %v3717, 64
        %v5309 = vpop.permute.xlu0 %5308
        %v5340 = vadd.f32 %v5190, %v5251
        %v5341 = vadd.f32 %v5191, %v5253
        %v5342 = vadd.f32 %v5192, %v5255
        %v5343 = vadd.f32 %v5193, %v5257
        %v5344 = vadd.f32 %v5194, %v5259
        %v5345 = vadd.f32 %v5195, %v5261
        %v5346 = vadd.f32 %v5196, %v5263
        %v5347 = vadd.f32 %v5197, %v5265
        %v5348 = vadd.f32 %v5198, %v5267
        %v5349 = vadd.f32 %v5199, %v5269
        %v5350 = vadd.f32 %v5200, %v5271
        %v5351 = vadd.f32 %v5201, %v5273
        %v5352 = vadd.f32 %v5202, %v5275
        %v5353 = vadd.f32 %v5203, %v5277
        %v5354 = vadd.f32 %v5204, %v5279
        %v5355 = vadd.f32 %v5205, %v5281
        %v5356 = vadd.f32 %v5206, %v5283
        %v5357 = vadd.f32 %v5207, %v5285
        %v5358 = vadd.f32 %v5208, %v5287
        %v5359 = vadd.f32 %v5209, %v5289
        %v5360 = vadd.f32 %v5210, %v5291
        %v5361 = vadd.f32 %v5211, %v5293
        %v5362 = vadd.f32 %v5212, %v5295
        %v5363 = vadd.f32 %v5213, %v5297
        %v5364 = vadd.f32 %v5214, %v5299
        %v5365 = vadd.f32 %v5215, %v5301
        %v5366 = vadd.f32 %v5216, %v5303
        %v5367 = vadd.f32 %v5217, %v5305
        %v5368 = vadd.f32 %v5218, %v5307
        %v5369 = vadd.f32 %v5219, %v5309
        %5370 = vst.msk [vmem:[#allocation2] sm:$0xff] %vm4103, %v5340
        %5371 = vst.msk [vmem:[#allocation2 + $0x8] sm:$0xff] %vm4103, %v5341
        %5372 = vst.msk [vmem:[#allocation2 + $0x10] sm:$0xff] %vm4103, %v5342
        %5373 = vst.msk [vmem:[#allocation2 + $0x18] sm:$0xff] %vm4103, %v5343
        %5374 = vst.msk [vmem:[#allocation2 + $0x20] sm:$0xff] %vm4103, %v5344
        %5375 = vst.msk [vmem:[#allocation2 + $0x28] sm:$0xff] %vm4103, %v5345
        %5376 = vst.msk [vmem:[#allocation2 + $0x30] sm:$0xff] %vm4103, %v5346
        %5377 = vst.msk [vmem:[#allocation2 + $0x38] sm:$0xff] %vm4103, %v5347
        %5378 = vst.msk [vmem:[#allocation2 + $0x40] sm:$0xff] %vm4103, %v5348
        %5379 = vst.msk [vmem:[#allocation2 + $0x48] sm:$0xff] %vm4103, %v5349
        %5380 = vst.msk [vmem:[#allocation2 + $0x50] sm:$0xff] %vm4103, %v5350
        %5381 = vst.msk [vmem:[#allocation2 + $0x58] sm:$0xff] %vm4103, %v5351
        %5382 = vst.msk [vmem:[#allocation2 + $0x60] sm:$0xff] %vm4103, %v5352
        %5383 = vst.msk [vmem:[#allocation2 + $0x68] sm:$0xff] %vm4103, %v5353
        %5384 = vst.msk [vmem:[#allocation2 + $0x70] sm:$0xff] %vm4103, %v5354
        %5385 = vst.msk [vmem:[#allocation2 + $0x78] sm:$0xff] %vm4103, %v5355
        %5386 = vst.msk [vmem:[#allocation2 + $0x80] sm:$0xff] %vm4103, %v5356
        %5387 = vst.msk [vmem:[#allocation2 + $0x88] sm:$0xff] %vm4103, %v5357
        %5388 = vst.msk [vmem:[#allocation2 + $0x90] sm:$0xff] %vm4103, %v5358
        %5389 = vst.msk [vmem:[#allocation2 + $0x98] sm:$0xff] %vm4103, %v5359
        %5390 = vst.msk [vmem:[#allocation2 + $0xa0] sm:$0xff] %vm4103, %v5360
        %5391 = vst.msk [vmem:[#allocation2 + $0xa8] sm:$0xff] %vm4103, %v5361
        %5392 = vst.msk [vmem:[#allocation2 + $0xb0] sm:$0xff] %vm4103, %v5362
        %5393 = vst.msk [vmem:[#allocation2 + $0xb8] sm:$0xff] %vm4103, %v5363
        %5394 = vst.msk [vmem:[#allocation2 + $0xc0] sm:$0xff] %vm4103, %v5364
        %5395 = vst.msk [vmem:[#allocation2 + $0xc8] sm:$0xff] %vm4103, %v5365
        %5396 = vst.msk [vmem:[#allocation2 + $0xd0] sm:$0xff] %vm4103, %v5366
        %5397 = vst.msk [vmem:[#allocation2 + $0xd8] sm:$0xff] %vm4103, %v5367
        %5398 = vst.msk [vmem:[#allocation2 + $0xe0] sm:$0xff] %vm4103, %v5368
        %5399 = vst.msk [vmem:[#allocation2 + $0xe8] sm:$0xff] %vm4103, %v5369
        %v5400 = vld [vmem:[#allocation2] sm:$0xff]
        %v5401 = vld [vmem:[#allocation2 + $0x8] sm:$0x7f]
        %v5402 = vld [vmem:[#allocation2 + $0x10] sm:$0xff]
        %v5403 = vld [vmem:[#allocation2 + $0x18] sm:$0x7f]
        %v5404 = vld [vmem:[#allocation2 + $0x20] sm:$0xff]
        %v5405 = vld [vmem:[#allocation2 + $0x28] sm:$0x7f]
        %v5406 = vld [vmem:[#allocation2 + $0x30] sm:$0xff]
        %v5407 = vld [vmem:[#allocation2 + $0x38] sm:$0x7f]
        %v5408 = vld [vmem:[#allocation2 + $0x40] sm:$0xff]
        %v5409 = vld [vmem:[#allocation2 + $0x48] sm:$0x7f]
        %v5410 = vld [vmem:[#allocation2 + $0x50] sm:$0xff]
        %v5411 = vld [vmem:[#allocation2 + $0x58] sm:$0x7f]
        %v5412 = vld [vmem:[#allocation2 + $0x60] sm:$0xff]
        %v5413 = vld [vmem:[#allocation2 + $0x68] sm:$0x7f]
        %v5414 = vld [vmem:[#allocation2 + $0x70] sm:$0xff]
        %v5415 = vld [vmem:[#allocation2 + $0x78] sm:$0x7f]
        %v5416 = vld [vmem:[#allocation2 + $0x80] sm:$0xff]
        %v5417 = vld [vmem:[#allocation2 + $0x88] sm:$0x7f]
        %v5418 = vld [vmem:[#allocation2 + $0x90] sm:$0xff]
        %v5419 = vld [vmem:[#allocation2 + $0x98] sm:$0x7f]
        %v5420 = vld [vmem:[#allocation2 + $0xa0] sm:$0xff]
        %v5421 = vld [vmem:[#allocation2 + $0xa8] sm:$0x7f]
        %v5422 = vld [vmem:[#allocation2 + $0xb0] sm:$0xff]
        %v5423 = vld [vmem:[#allocation2 + $0xb8] sm:$0x7f]
        %v5424 = vld [vmem:[#allocation2 + $0xc0] sm:$0xff]
        %v5425 = vld [vmem:[#allocation2 + $0xc8] sm:$0x7f]
        %v5426 = vld [vmem:[#allocation2 + $0xd0] sm:$0xff]
        %v5427 = vld [vmem:[#allocation2 + $0xd8] sm:$0x7f]
        %v5428 = vld [vmem:[#allocation2 + $0xe0] sm:$0xff]
        %v5429 = vld [vmem:[#allocation2 + $0xe8] sm:$0x7f]
        %v5460 = vrot.slane %v3993, 1
        %v5461 = vrot.slane %v3995, 1
        %v5462 = vsel %vm4498, %v5460, %v5461
        %v5463 = vrot.slane %v3998, 1
        %v5464 = vrot.slane %v4000, 1
        %v5465 = vsel %vm4498, %v5463, %v5464
        %v5466 = vrot.slane %v4003, 1
        %v5467 = vrot.slane %v4005, 1
        %v5468 = vsel %vm4498, %v5466, %v5467
        %v5469 = vrot.slane %v4008, 1
        %v5470 = vrot.slane %v4010, 1
        %v5471 = vsel %vm4498, %v5469, %v5470
        %v5472 = vrot.slane %v4013, 1
        %v5473 = vrot.slane %v4015, 1
        %v5474 = vsel %vm4498, %v5472, %v5473
        %v5475 = vrot.slane %v4018, 1
        %v5476 = vrot.slane %v4020, 1
        %v5477 = vsel %vm4498, %v5475, %v5476
        %v5478 = vrot.slane %v4023, 1
        %v5479 = vrot.slane %v4025, 1
        %v5480 = vsel %vm4498, %v5478, %v5479
        %v5481 = vrot.slane %v4028, 1
        %v5482 = vrot.slane %v4030, 1
        %v5483 = vsel %vm4498, %v5481, %v5482
        %v5484 = vrot.slane %v4033, 1
        %v5485 = vrot.slane %v4035, 1
        %v5486 = vsel %vm4498, %v5484, %v5485
        %v5487 = vrot.slane %v4038, 1
        %v5488 = vrot.slane %v4040, 1
        %v5489 = vsel %vm4498, %v5487, %v5488
        %v5490 = vrot.slane %v4043, 1
        %v5491 = vrot.slane %v4045, 1
        %v5492 = vsel %vm4498, %v5490, %v5491
        %v5493 = vrot.slane %v4048, 1
        %v5494 = vrot.slane %v4050, 1
        %v5495 = vsel %vm4498, %v5493, %v5494
        %v5496 = vrot.slane %v4053, 1
        %v5497 = vrot.slane %v4055, 1
        %v5498 = vsel %vm4498, %v5496, %v5497
        %v5499 = vrot.slane %v4058, 1
        %v5500 = vrot.slane %v4060, 1
        %v5501 = vsel %vm4498, %v5499, %v5500
        %v5502 = vrot.slane %v4063, 1
        %v5503 = vrot.slane %v4065, 1
        %v5504 = vsel %vm4498, %v5502, %v5503
        %v5535 = vadd.f32 %v5400, %v5462
        %v5536 = vadd.f32 %v5401, %v5461
        %v5537 = vadd.f32 %v5402, %v5465
        %v5538 = vadd.f32 %v5403, %v5464
        %v5539 = vadd.f32 %v5404, %v5468
        %v5540 = vadd.f32 %v5405, %v5467
        %v5541 = vadd.f32 %v5406, %v5471
        %v5542 = vadd.f32 %v5407, %v5470
        %v5543 = vadd.f32 %v5408, %v5474
        %v5544 = vadd.f32 %v5409, %v5473
        %v5545 = vadd.f32 %v5410, %v5477
        %v5546 = vadd.f32 %v5411, %v5476
        %v5547 = vadd.f32 %v5412, %v5480
        %v5548 = vadd.f32 %v5413, %v5479
        %v5549 = vadd.f32 %v5414, %v5483
        %v5550 = vadd.f32 %v5415, %v5482
        %v5551 = vadd.f32 %v5416, %v5486
        %v5552 = vadd.f32 %v5417, %v5485
        %v5553 = vadd.f32 %v5418, %v5489
        %v5554 = vadd.f32 %v5419, %v5488
        %v5555 = vadd.f32 %v5420, %v5492
        %v5556 = vadd.f32 %v5421, %v5491
        %v5557 = vadd.f32 %v5422, %v5495
        %v5558 = vadd.f32 %v5423, %v5494
        %v5559 = vadd.f32 %v5424, %v5498
        %v5560 = vadd.f32 %v5425, %v5497
        %v5561 = vadd.f32 %v5426, %v5501
        %v5562 = vadd.f32 %v5427, %v5500
        %v5563 = vadd.f32 %v5428, %v5504
        %v5564 = vadd.f32 %v5429, %v5503
        %5565 = vst.msk [vmem:[#allocation2] sm:$0xff] %vm4103, %v5535
        %5566 = vst.msk [vmem:[#allocation2 + $0x8] sm:$0x7f] %vm4198, %v5536
        %5567 = vst.msk [vmem:[#allocation2 + $0x10] sm:$0xff] %vm4103, %v5537
        %5568 = vst.msk [vmem:[#allocation2 + $0x18] sm:$0x7f] %vm4198, %v5538
        %5569 = vst.msk [vmem:[#allocation2 + $0x20] sm:$0xff] %vm4103, %v5539
        %5570 = vst.msk [vmem:[#allocation2 + $0x28] sm:$0x7f] %vm4198, %v5540
        %5571 = vst.msk [vmem:[#allocation2 + $0x30] sm:$0xff] %vm4103, %v5541
        %5572 = vst.msk [vmem:[#allocation2 + $0x38] sm:$0x7f] %vm4198, %v5542
        %5573 = vst.msk [vmem:[#allocation2 + $0x40] sm:$0xff] %vm4103, %v5543
        %5574 = vst.msk [vmem:[#allocation2 + $0x48] sm:$0x7f] %vm4198, %v5544
        %5575 = vst.msk [vmem:[#allocation2 + $0x50] sm:$0xff] %vm4103, %v5545
        %5576 = vst.msk [vmem:[#allocation2 + $0x58] sm:$0x7f] %vm4198, %v5546
        %5577 = vst.msk [vmem:[#allocation2 + $0x60] sm:$0xff] %vm4103, %v5547
        %5578 = vst.msk [vmem:[#allocation2 + $0x68] sm:$0x7f] %vm4198, %v5548
        %5579 = vst.msk [vmem:[#allocation2 + $0x70] sm:$0xff] %vm4103, %v5549
        %5580 = vst.msk [vmem:[#allocation2 + $0x78] sm:$0x7f] %vm4198, %v5550
        %5581 = vst.msk [vmem:[#allocation2 + $0x80] sm:$0xff] %vm4103, %v5551
        %5582 = vst.msk [vmem:[#allocation2 + $0x88] sm:$0x7f] %vm4198, %v5552
        %5583 = vst.msk [vmem:[#allocation2 + $0x90] sm:$0xff] %vm4103, %v5553
        %5584 = vst.msk [vmem:[#allocation2 + $0x98] sm:$0x7f] %vm4198, %v5554
        %5585 = vst.msk [vmem:[#allocation2 + $0xa0] sm:$0xff] %vm4103, %v5555
        %5586 = vst.msk [vmem:[#allocation2 + $0xa8] sm:$0x7f] %vm4198, %v5556
        %5587 = vst.msk [vmem:[#allocation2 + $0xb0] sm:$0xff] %vm4103, %v5557
        %5588 = vst.msk [vmem:[#allocation2 + $0xb8] sm:$0x7f] %vm4198, %v5558
        %5589 = vst.msk [vmem:[#allocation2 + $0xc0] sm:$0xff] %vm4103, %v5559
        %5590 = vst.msk [vmem:[#allocation2 + $0xc8] sm:$0x7f] %vm4198, %v5560
        %5591 = vst.msk [vmem:[#allocation2 + $0xd0] sm:$0xff] %vm4103, %v5561
        %5592 = vst.msk [vmem:[#allocation2 + $0xd8] sm:$0x7f] %vm4198, %v5562
        %5593 = vst.msk [vmem:[#allocation2 + $0xe0] sm:$0xff] %vm4103, %v5563
        %5594 = vst.msk [vmem:[#allocation2 + $0xe8] sm:$0x7f] %vm4198, %v5564
        %v5595 = vld [vmem:[#allocation2] sm:$0xff]
        %v5596 = vld [vmem:[#allocation2 + $0x8] sm:$0xff]
        %v5597 = vld [vmem:[#allocation2 + $0x10] sm:$0xff]
        %v5598 = vld [vmem:[#allocation2 + $0x18] sm:$0xff]
        %v5599 = vld [vmem:[#allocation2 + $0x20] sm:$0xff]
        %v5600 = vld [vmem:[#allocation2 + $0x28] sm:$0xff]
        %v5601 = vld [vmem:[#allocation2 + $0x30] sm:$0xff]
        %v5602 = vld [vmem:[#allocation2 + $0x38] sm:$0xff]
        %v5603 = vld [vmem:[#allocation2 + $0x40] sm:$0xff]
        %v5604 = vld [vmem:[#allocation2 + $0x48] sm:$0xff]
        %v5605 = vld [vmem:[#allocation2 + $0x50] sm:$0xff]
        %v5606 = vld [vmem:[#allocation2 + $0x58] sm:$0xff]
        %v5607 = vld [vmem:[#allocation2 + $0x60] sm:$0xff]
        %v5608 = vld [vmem:[#allocation2 + $0x68] sm:$0xff]
        %v5609 = vld [vmem:[#allocation2 + $0x70] sm:$0xff]
        %v5610 = vld [vmem:[#allocation2 + $0x78] sm:$0xff]
        %v5611 = vld [vmem:[#allocation2 + $0x80] sm:$0xff]
        %v5612 = vld [vmem:[#allocation2 + $0x88] sm:$0xff]
        %v5613 = vld [vmem:[#allocation2 + $0x90] sm:$0xff]
        %v5614 = vld [vmem:[#allocation2 + $0x98] sm:$0xff]
        %v5615 = vld [vmem:[#allocation2 + $0xa0] sm:$0xff]
        %v5616 = vld [vmem:[#allocation2 + $0xa8] sm:$0xff]
        %v5617 = vld [vmem:[#allocation2 + $0xb0] sm:$0xff]
        %v5618 = vld [vmem:[#allocation2 + $0xb8] sm:$0xff]
        %v5619 = vld [vmem:[#allocation2 + $0xc0] sm:$0xff]
        %v5620 = vld [vmem:[#allocation2 + $0xc8] sm:$0xff]
        %v5621 = vld [vmem:[#allocation2 + $0xd0] sm:$0xff]
        %v5622 = vld [vmem:[#allocation2 + $0xd8] sm:$0xff]
        %v5623 = vld [vmem:[#allocation2 + $0xe0] sm:$0xff]
        %v5624 = vld [vmem:[#allocation2 + $0xe8] sm:$0xff]
        %v5625 = vld [vmem:[#allocation2 + $0xf0] sm:$0xff]
        %v5626 = vld [vmem:[#allocation2 + $0xf8] sm:$0xff]
        %v5627 = vmax.f32 %v5595, 0.0
        %v5628 = vmax.f32 %v5596, 0.0
        %v5629 = vmax.f32 %v5597, 0.0
        %v5630 = vmax.f32 %v5598, 0.0
        %v5631 = vmax.f32 %v5599, 0.0
        %v5632 = vmax.f32 %v5600, 0.0
        %v5633 = vmax.f32 %v5601, 0.0
        %v5634 = vmax.f32 %v5602, 0.0
        %v5635 = vmax.f32 %v5603, 0.0
        %v5636 = vmax.f32 %v5604, 0.0
        %v5637 = vmax.f32 %v5605, 0.0
        %v5638 = vmax.f32 %v5606, 0.0
        %v5639 = vmax.f32 %v5607, 0.0
        %v5640 = vmax.f32 %v5608, 0.0
        %v5641 = vmax.f32 %v5609, 0.0
        %v5642 = vmax.f32 %v5610, 0.0
        %v5643 = vmax.f32 %v5611, 0.0
        %v5644 = vmax.f32 %v5612, 0.0
        %v5645 = vmax.f32 %v5613, 0.0
        %v5646 = vmax.f32 %v5614, 0.0
        %v5647 = vmax.f32 %v5615, 0.0
        %v5648 = vmax.f32 %v5616, 0.0
        %v5649 = vmax.f32 %v5617, 0.0
        %v5650 = vmax.f32 %v5618, 0.0
        %v5651 = vmax.f32 %v5619, 0.0
        %v5652 = vmax.f32 %v5620, 0.0
        %v5653 = vmax.f32 %v5621, 0.0
        %v5654 = vmax.f32 %v5622, 0.0
        %v5655 = vmax.f32 %v5623, 0.0
        %v5656 = vmax.f32 %v5624, 0.0
        %v5657 = vmax.f32 %v5625, 0.0
        %v5658 = vmax.f32 %v5626, 0.0
        %v5659 = vpack.c.bf16 %v5627, %v5627
        %v5660 = vpack.c.bf16 %v5628, %v5628
        %v5661 = vpack.c.bf16 %v5629, %v5629
        %v5662 = vpack.c.bf16 %v5630, %v5630
        %v5663 = vpack.c.bf16 %v5631, %v5631
        %v5664 = vpack.c.bf16 %v5632, %v5632
        %v5665 = vpack.c.bf16 %v5633, %v5633
        %v5666 = vpack.c.bf16 %v5634, %v5634
        %v5667 = vpack.c.bf16 %v5635, %v5635
        %v5668 = vpack.c.bf16 %v5636, %v5636
        %v5669 = vpack.c.bf16 %v5637, %v5637
        %v5670 = vpack.c.bf16 %v5638, %v5638
        %v5671 = vpack.c.bf16 %v5639, %v5639
        %v5672 = vpack.c.bf16 %v5640, %v5640
        %v5673 = vpack.c.bf16 %v5641, %v5641
        %v5674 = vpack.c.bf16 %v5642, %v5642
        %v5675 = vpack.c.bf16 %v5643, %v5643
        %v5676 = vpack.c.bf16 %v5644, %v5644
        %v5677 = vpack.c.bf16 %v5645, %v5645
        %v5678 = vpack.c.bf16 %v5646, %v5646
        %v5679 = vpack.c.bf16 %v5647, %v5647
        %v5680 = vpack.c.bf16 %v5648, %v5648
        %v5681 = vpack.c.bf16 %v5649, %v5649
        %v5682 = vpack.c.bf16 %v5650, %v5650
        %v5683 = vpack.c.bf16 %v5651, %v5651
        %v5684 = vpack.c.bf16 %v5652, %v5652
        %v5685 = vpack.c.bf16 %v5653, %v5653
        %v5686 = vpack.c.bf16 %v5654, %v5654
        %v5687 = vpack.c.bf16 %v5655, %v5655
        %v5688 = vpack.c.bf16 %v5656, %v5656
        %v5689 = vpack.c.bf16 %v5657, %v5657
        %v5690 = vpack.c.bf16 %v5658, %v5658
        %v5691 = vld [vmem:[%s4] sm:$0xf]
        %v5692 = vld [vmem:[%s4 + $0x4] sm:$0xf]
        %v5693 = vld [vmem:[%s4 + $0x8] sm:$0xf]
        %v5694 = vld [vmem:[%s4 + $0xc] sm:$0xf]
        %v5695 = vld [vmem:[%s4 + $0x10] sm:$0xf]
        %v5696 = vld [vmem:[%s4 + $0x14] sm:$0xf]
        %v5697 = vld [vmem:[%s4 + $0x18] sm:$0xf]
        %v5698 = vld [vmem:[%s4 + $0x1c] sm:$0xf]
        %v5731 = vunpack.c.l.b16 %v5659
        %v5732 = vunpack.c.l.b16 %v5660
        %v5733 = vunpack.c.l.b16 %v5661
        %v5734 = vunpack.c.l.b16 %v5662
        %v5735 = vunpack.c.l.b16 %v5663
        %v5736 = vunpack.c.l.b16 %v5664
        %v5737 = vunpack.c.l.b16 %v5665
        %v5738 = vunpack.c.l.b16 %v5666
        %v5739 = vunpack.c.l.b16 %v5667
        %v5740 = vunpack.c.l.b16 %v5668
        %v5741 = vunpack.c.l.b16 %v5669
        %v5742 = vunpack.c.l.b16 %v5670
        %v5743 = vunpack.c.l.b16 %v5671
        %v5744 = vunpack.c.l.b16 %v5672
        %v5745 = vunpack.c.l.b16 %v5673
        %v5746 = vunpack.c.l.b16 %v5674
        %v5747 = vunpack.c.l.b16 %v5675
        %v5748 = vunpack.c.l.b16 %v5676
        %v5749 = vunpack.c.l.b16 %v5677
        %v5750 = vunpack.c.l.b16 %v5678
        %v5751 = vunpack.c.l.b16 %v5679
        %v5752 = vunpack.c.l.b16 %v5680
        %v5753 = vunpack.c.l.b16 %v5681
        %v5754 = vunpack.c.l.b16 %v5682
        %v5755 = vunpack.c.l.b16 %v5683
        %v5756 = vunpack.c.l.b16 %v5684
        %v5757 = vunpack.c.l.b16 %v5685
        %v5758 = vunpack.c.l.b16 %v5686
        %v5759 = vunpack.c.l.b16 %v5687
        %v5760 = vunpack.c.l.b16 %v5688
        %v5761 = vunpack.c.l.b16 %v5689
        %v5762 = vunpack.c.l.b16 %v5690
        %v5763 = vpack.c.b16 %v5732, %v5731
        %v5764 = vpack.c.b16 %v5734, %v5733
        %v5765 = vpack.c.b16 %v5736, %v5735
        %v5766 = vpack.c.b16 %v5738, %v5737
        %v5767 = vpack.c.b16 %v5740, %v5739
        %v5768 = vpack.c.b16 %v5742, %v5741
        %v5769 = vpack.c.b16 %v5744, %v5743
        %v5770 = vpack.c.b16 %v5746, %v5745
        %v5771 = vpack.c.b16 %v5748, %v5747
        %v5772 = vpack.c.b16 %v5750, %v5749
        %v5773 = vpack.c.b16 %v5752, %v5751
        %v5774 = vpack.c.b16 %v5754, %v5753
        %v5775 = vpack.c.b16 %v5756, %v5755
        %v5776 = vpack.c.b16 %v5758, %v5757
        %v5777 = vpack.c.b16 %v5760, %v5759
        %v5778 = vpack.c.b16 %v5762, %v5761
        %v5787 = vunpack.c.l.b16 %v5691
        %v5788 = vunpack.c.l.b16 %v5692
        %v5789 = vunpack.c.l.b16 %v5693
        %v5790 = vunpack.c.l.b16 %v5694
        %v5791 = vunpack.c.l.b16 %v5695
        %v5792 = vunpack.c.l.b16 %v5696
        %v5793 = vunpack.c.l.b16 %v5697
        %v5794 = vunpack.c.l.b16 %v5698
        %v5795 = vpack.c.b16 %v5788, %v5787
        %v5796 = vpack.c.b16 %v5790, %v5789
        %v5797 = vpack.c.b16 %v5792, %v5791
        %v5798 = vpack.c.b16 %v5794, %v5793
        %v5804 = vsel %vm4103, %v5763, 0
        %v5807 = vsel %vm4103, %v5764, 0
        %v5810 = vsel %vm4103, %v5765, 0
        %v5813 = vsel %vm4103, %v5766, 0
        %v5816 = vsel %vm4103, %v5767, 0
        %v5819 = vsel %vm4103, %v5768, 0
        %v5822 = vsel %vm4103, %v5769, 0
        %v5825 = vsel %vm4103, %v5770, 0
        %v5828 = vsel %vm4103, %v5771, 0
        %v5831 = vsel %vm4103, %v5772, 0
        %v5834 = vsel %vm4103, %v5773, 0
        %v5837 = vsel %vm4103, %v5774, 0
        %v5840 = vsel %vm4103, %v5775, 0
        %v5843 = vsel %vm4103, %v5776, 0
        %v5846 = vsel %vm4103, %v5777, 0
        %v5849 = vsel %vm4103, %v5778, 0
        %5851 = vmatpush.bf16.msra.mxu0 0
        %5852 = vmatpush.bf16.msra.mxu0 0
        %5853 = vmatpush.bf16.msra.mxu0 0
        %5854 = vmatpush.bf16.msra.mxu0 0
        %5855 = vmatpush.bf16.msra.mxu0 %v5798
        %5856 = vmatpush.bf16.msra.mxu0 %v5797
        %5857 = vmatpush.bf16.msra.mxu0 %v5796
        %5858 = vmatpush.bf16.msra.mxu0 %v5795
        %5859 = vmatmul.bf16.gmra.mxu0 %v5804
        %v5860 = vpop.f32.mrf.mxu0
        %v5861 = vadd.f32 0.0, %v5860
        %v5862 = vpop.f32.mrf.mxu0
        %v5863 = vadd.f32 0.0, %v5862
        %5864 = vmatmul.bf16.gmra.mxu0 %v5807
        %v5865 = vpop.f32.mrf.mxu0
        %v5866 = vadd.f32 0.0, %v5865
        %v5867 = vpop.f32.mrf.mxu0
        %v5868 = vadd.f32 0.0, %v5867
        %5869 = vmatmul.bf16.gmra.mxu0 %v5810
        %v5870 = vpop.f32.mrf.mxu0
        %v5871 = vadd.f32 0.0, %v5870
        %v5872 = vpop.f32.mrf.mxu0
        %v5873 = vadd.f32 0.0, %v5872
        %5874 = vmatmul.bf16.gmra.mxu0 %v5813
        %v5875 = vpop.f32.mrf.mxu0
        %v5876 = vadd.f32 0.0, %v5875
        %v5877 = vpop.f32.mrf.mxu0
        %v5878 = vadd.f32 0.0, %v5877
        %5879 = vmatmul.bf16.gmra.mxu0 %v5816
        %v5880 = vpop.f32.mrf.mxu0
        %v5881 = vadd.f32 0.0, %v5880
        %v5882 = vpop.f32.mrf.mxu0
        %v5883 = vadd.f32 0.0, %v5882
        %5884 = vmatmul.bf16.gmra.mxu0 %v5819
        %v5885 = vpop.f32.mrf.mxu0
        %v5886 = vadd.f32 0.0, %v5885
        %v5887 = vpop.f32.mrf.mxu0
        %v5888 = vadd.f32 0.0, %v5887
        %5889 = vmatmul.bf16.gmra.mxu0 %v5822
        %v5890 = vpop.f32.mrf.mxu0
        %v5891 = vadd.f32 0.0, %v5890
        %v5892 = vpop.f32.mrf.mxu0
        %v5893 = vadd.f32 0.0, %v5892
        %5894 = vmatmul.bf16.gmra.mxu0 %v5825
        %v5895 = vpop.f32.mrf.mxu0
        %v5896 = vadd.f32 0.0, %v5895
        %v5897 = vpop.f32.mrf.mxu0
        %v5898 = vadd.f32 0.0, %v5897
        %5899 = vmatmul.bf16.gmra.mxu0 %v5828
        %v5900 = vpop.f32.mrf.mxu0
        %v5901 = vadd.f32 0.0, %v5900
        %v5902 = vpop.f32.mrf.mxu0
        %v5903 = vadd.f32 0.0, %v5902
        %5904 = vmatmul.bf16.gmra.mxu0 %v5831
        %v5905 = vpop.f32.mrf.mxu0
        %v5906 = vadd.f32 0.0, %v5905
        %v5907 = vpop.f32.mrf.mxu0
        %v5908 = vadd.f32 0.0, %v5907
        %5909 = vmatmul.bf16.gmra.mxu0 %v5834
        %v5910 = vpop.f32.mrf.mxu0
        %v5911 = vadd.f32 0.0, %v5910
        %v5912 = vpop.f32.mrf.mxu0
        %v5913 = vadd.f32 0.0, %v5912
        %5914 = vmatmul.bf16.gmra.mxu0 %v5837
        %v5915 = vpop.f32.mrf.mxu0
        %v5916 = vadd.f32 0.0, %v5915
        %v5917 = vpop.f32.mrf.mxu0
        %v5918 = vadd.f32 0.0, %v5917
        %5919 = vmatmul.bf16.gmra.mxu0 %v5840
        %v5920 = vpop.f32.mrf.mxu0
        %v5921 = vadd.f32 0.0, %v5920
        %v5922 = vpop.f32.mrf.mxu0
        %v5923 = vadd.f32 0.0, %v5922
        %5924 = vmatmul.bf16.gmra.mxu0 %v5843
        %v5925 = vpop.f32.mrf.mxu0
        %v5926 = vadd.f32 0.0, %v5925
        %v5927 = vpop.f32.mrf.mxu0
        %v5928 = vadd.f32 0.0, %v5927
        %5929 = vmatmul.bf16.gmra.mxu0 %v5846
        %v5930 = vpop.f32.mrf.mxu0
        %v5931 = vadd.f32 0.0, %v5930
        %v5932 = vpop.f32.mrf.mxu0
        %v5933 = vadd.f32 0.0, %v5932
        %5934 = vmatmul.bf16.gmra.mxu0 %v5849
        %v5935 = vpop.f32.mrf.mxu0
        %v5936 = vadd.f32 0.0, %v5935
        %v5937 = vpop.f32.mrf.mxu0
        %v5938 = vadd.f32 0.0, %v5937
        %5939 = vdwg.mxu0
        %v5940 = vld [vmem:[%s5] sm:$0x1]
        %v5942 = vperm.slane %v5940, 0
        %5943 = vrot.lane.b32.xlu0 %v5942, 32
        %v5944 = vpop.permute.xlu0 %5943
        %v5946 = vadd.f32 %v5861, %v5944
        %v5947 = vadd.f32 %v5863, %v5944
        %v5948 = vadd.f32 %v5866, %v5944
        %v5949 = vadd.f32 %v5868, %v5944
        %v5950 = vadd.f32 %v5871, %v5944
        %v5951 = vadd.f32 %v5873, %v5944
        %v5952 = vadd.f32 %v5876, %v5944
        %v5953 = vadd.f32 %v5878, %v5944
        %v5954 = vadd.f32 %v5881, %v5944
        %v5955 = vadd.f32 %v5883, %v5944
        %v5956 = vadd.f32 %v5886, %v5944
        %v5957 = vadd.f32 %v5888, %v5944
        %v5958 = vadd.f32 %v5891, %v5944
        %v5959 = vadd.f32 %v5893, %v5944
        %v5960 = vadd.f32 %v5896, %v5944
        %v5961 = vadd.f32 %v5898, %v5944
        %v5962 = vadd.f32 %v5901, %v5944
        %v5963 = vadd.f32 %v5903, %v5944
        %v5964 = vadd.f32 %v5906, %v5944
        %v5965 = vadd.f32 %v5908, %v5944
        %v5966 = vadd.f32 %v5911, %v5944
        %v5967 = vadd.f32 %v5913, %v5944
        %v5968 = vadd.f32 %v5916, %v5944
        %v5969 = vadd.f32 %v5918, %v5944
        %v5970 = vadd.f32 %v5921, %v5944
        %v5971 = vadd.f32 %v5923, %v5944
        %v5972 = vadd.f32 %v5926, %v5944
        %v5973 = vadd.f32 %v5928, %v5944
        %v5974 = vadd.f32 %v5931, %v5944
        %v5975 = vadd.f32 %v5933, %v5944
        %v5976 = vadd.f32 %v5936, %v5944
        %v5977 = vadd.f32 %v5938, %v5944
        %6010 = vrot.lane.b32.xlu0 %v5946, 96
        %v6011 = vpop.permute.xlu0 %6010
        %6012 = vrot.lane.b32.xlu0 %v5947, 96
        %v6013 = vpop.permute.xlu0 %6012
        %6014 = vrot.lane.b32.xlu0 %v5948, 96
        %v6015 = vpop.permute.xlu0 %6014
        %6016 = vrot.lane.b32.xlu0 %v5949, 96
        %v6017 = vpop.permute.xlu0 %6016
        %6018 = vrot.lane.b32.xlu0 %v5950, 96
        %v6019 = vpop.permute.xlu0 %6018
        %6020 = vrot.lane.b32.xlu0 %v5951, 96
        %v6021 = vpop.permute.xlu0 %6020
        %6022 = vrot.lane.b32.xlu0 %v5952, 96
        %v6023 = vpop.permute.xlu0 %6022
        %6024 = vrot.lane.b32.xlu0 %v5953, 96
        %v6025 = vpop.permute.xlu0 %6024
        %6026 = vrot.lane.b32.xlu0 %v5954, 96
        %v6027 = vpop.permute.xlu0 %6026
        %6028 = vrot.lane.b32.xlu0 %v5955, 96
        %v6029 = vpop.permute.xlu0 %6028
        %6030 = vrot.lane.b32.xlu0 %v5956, 96
        %v6031 = vpop.permute.xlu0 %6030
        %6032 = vrot.lane.b32.xlu0 %v5957, 96
        %v6033 = vpop.permute.xlu0 %6032
        %6034 = vrot.lane.b32.xlu0 %v5958, 96
        %v6035 = vpop.permute.xlu0 %6034
        %6036 = vrot.lane.b32.xlu0 %v5959, 96
        %v6037 = vpop.permute.xlu0 %6036
        %6038 = vrot.lane.b32.xlu0 %v5960, 96
        %v6039 = vpop.permute.xlu0 %6038
        %6040 = vrot.lane.b32.xlu0 %v5961, 96
        %v6041 = vpop.permute.xlu0 %6040
        %6042 = vrot.lane.b32.xlu0 %v5962, 96
        %v6043 = vpop.permute.xlu0 %6042
        %6044 = vrot.lane.b32.xlu0 %v5963, 96
        %v6045 = vpop.permute.xlu0 %6044
        %6046 = vrot.lane.b32.xlu0 %v5964, 96
        %v6047 = vpop.permute.xlu0 %6046
        %6048 = vrot.lane.b32.xlu0 %v5965, 96
        %v6049 = vpop.permute.xlu0 %6048
        %6050 = vrot.lane.b32.xlu0 %v5966, 96
        %v6051 = vpop.permute.xlu0 %6050
        %6052 = vrot.lane.b32.xlu0 %v5967, 96
        %v6053 = vpop.permute.xlu0 %6052
        %6054 = vrot.lane.b32.xlu0 %v5968, 96
        %v6055 = vpop.permute.xlu0 %6054
        %6056 = vrot.lane.b32.xlu0 %v5969, 96
        %v6057 = vpop.permute.xlu0 %6056
        %6058 = vrot.lane.b32.xlu0 %v5970, 96
        %v6059 = vpop.permute.xlu0 %6058
        %6060 = vrot.lane.b32.xlu0 %v5971, 96
        %v6061 = vpop.permute.xlu0 %6060
        %6062 = vrot.lane.b32.xlu0 %v5972, 96
        %v6063 = vpop.permute.xlu0 %6062
        %6064 = vrot.lane.b32.xlu0 %v5973, 96
        %v6065 = vpop.permute.xlu0 %6064
        %6066 = vrot.lane.b32.xlu0 %v5974, 96
        %v6067 = vpop.permute.xlu0 %6066
        %6068 = vrot.lane.b32.xlu0 %v5975, 96
        %v6069 = vpop.permute.xlu0 %6068
        %6070 = vrot.lane.b32.xlu0 %v5976, 96
        %v6071 = vpop.permute.xlu0 %6070
        %6072 = vrot.lane.b32.xlu0 %v5977, 96
        %v6073 = vpop.permute.xlu0 %6072
        %vm6106 = vcmask 64512
        %6107 = vst.msk [vmem:[#allocation3] sm:$0xff] %vm6106, %v6011
        %6108 = vst.msk [vmem:[#allocation3 + $0x8] sm:$0xff] %vm6106, %v6013
        %6109 = vst.msk [vmem:[#allocation3 + $0x10] sm:$0xff] %vm6106, %v6015
        %6110 = vst.msk [vmem:[#allocation3 + $0x18] sm:$0xff] %vm6106, %v6017
        %6111 = vst.msk [vmem:[#allocation3 + $0x20] sm:$0xff] %vm6106, %v6019
        %6112 = vst.msk [vmem:[#allocation3 + $0x28] sm:$0xff] %vm6106, %v6021
        %6113 = vst.msk [vmem:[#allocation3 + $0x30] sm:$0xff] %vm6106, %v6023
        %6114 = vst.msk [vmem:[#allocation3 + $0x38] sm:$0xff] %vm6106, %v6025
        %6115 = vst.msk [vmem:[#allocation3 + $0x40] sm:$0xff] %vm6106, %v6027
        %6116 = vst.msk [vmem:[#allocation3 + $0x48] sm:$0xff] %vm6106, %v6029
        %6117 = vst.msk [vmem:[#allocation3 + $0x50] sm:$0xff] %vm6106, %v6031
        %6118 = vst.msk [vmem:[#allocation3 + $0x58] sm:$0xff] %vm6106, %v6033
        %6119 = vst.msk [vmem:[#allocation3 + $0x60] sm:$0xff] %vm6106, %v6035
        %6120 = vst.msk [vmem:[#allocation3 + $0x68] sm:$0xff] %vm6106, %v6037
        %6121 = vst.msk [vmem:[#allocation3 + $0x70] sm:$0xff] %vm6106, %v6039
        %6122 = vst.msk [vmem:[#allocation3 + $0x78] sm:$0xff] %vm6106, %v6041
        %6123 = vst.msk [vmem:[#allocation3 + $0x80] sm:$0xff] %vm6106, %v6043
        %6124 = vst.msk [vmem:[#allocation3 + $0x88] sm:$0xff] %vm6106, %v6045
        %6125 = vst.msk [vmem:[#allocation3 + $0x90] sm:$0xff] %vm6106, %v6047
        %6126 = vst.msk [vmem:[#allocation3 + $0x98] sm:$0xff] %vm6106, %v6049
        %6127 = vst.msk [vmem:[#allocation3 + $0xa0] sm:$0xff] %vm6106, %v6051
        %6128 = vst.msk [vmem:[#allocation3 + $0xa8] sm:$0xff] %vm6106, %v6053
        %6129 = vst.msk [vmem:[#allocation3 + $0xb0] sm:$0xff] %vm6106, %v6055
        %6130 = vst.msk [vmem:[#allocation3 + $0xb8] sm:$0xff] %vm6106, %v6057
        %6131 = vst.msk [vmem:[#allocation3 + $0xc0] sm:$0xff] %vm6106, %v6059
        %6132 = vst.msk [vmem:[#allocation3 + $0xc8] sm:$0xff] %vm6106, %v6061
        %6133 = vst.msk [vmem:[#allocation3 + $0xd0] sm:$0xff] %vm6106, %v6063
        %6134 = vst.msk [vmem:[#allocation3 + $0xd8] sm:$0xff] %vm6106, %v6065
        %6135 = vst.msk [vmem:[#allocation3 + $0xe0] sm:$0xff] %vm6106, %v6067
        %6136 = vst.msk [vmem:[#allocation3 + $0xe8] sm:$0xff] %vm6106, %v6069
        %6137 = vst.msk [vmem:[#allocation3 + $0xf0] sm:$0xff] %vm6106, %v6071
        %6138 = vst.msk [vmem:[#allocation3 + $0xf8] sm:$0xff] %vm6106, %v6073
        %s6139 = scalar_lea.vmem [#allocation3], 16
        %v6140 = vld [vmem:[%s6139 + $0x1] sm:$0xff]
        %v6141 = vld [vmem:[%s6139 + $0x9] sm:$0x7f]
        %v6142 = vld [vmem:[%s6139 + $0x11] sm:$0xff]
        %v6143 = vld [vmem:[%s6139 + $0x19] sm:$0x7f]
        %v6144 = vld [vmem:[%s6139 + $0x21] sm:$0xff]
        %v6145 = vld [vmem:[%s6139 + $0x29] sm:$0x7f]
        %v6146 = vld [vmem:[%s6139 + $0x31] sm:$0xff]
        %v6147 = vld [vmem:[%s6139 + $0x39] sm:$0x7f]
        %v6148 = vld [vmem:[%s6139 + $0x41] sm:$0xff]
        %v6149 = vld [vmem:[%s6139 + $0x49] sm:$0x7f]
        %v6150 = vld [vmem:[%s6139 + $0x51] sm:$0xff]
        %v6151 = vld [vmem:[%s6139 + $0x59] sm:$0x7f]
        %v6152 = vld [vmem:[%s6139 + $0x61] sm:$0xff]
        %v6153 = vld [vmem:[%s6139 + $0x69] sm:$0x7f]
        %v6154 = vld [vmem:[%s6139 + $0x71] sm:$0xff]
        %v6155 = vld [vmem:[%s6139 + $0x79] sm:$0x7f]
        %v6156 = vld [vmem:[%s6139 + $0x81] sm:$0xff]
        %v6157 = vld [vmem:[%s6139 + $0x89] sm:$0x7f]
        %v6158 = vld [vmem:[%s6139 + $0x91] sm:$0xff]
        %v6159 = vld [vmem:[%s6139 + $0x99] sm:$0x7f]
        %v6160 = vld [vmem:[%s6139 + $0xa1] sm:$0xff]
        %v6161 = vld [vmem:[%s6139 + $0xa9] sm:$0x7f]
        %v6162 = vld [vmem:[%s6139 + $0xb1] sm:$0xff]
        %v6163 = vld [vmem:[%s6139 + $0xb9] sm:$0x7f]
        %v6164 = vld [vmem:[%s6139 + $0xc1] sm:$0xff]
        %v6165 = vld [vmem:[%s6139 + $0xc9] sm:$0x7f]
        %v6166 = vld [vmem:[%s6139 + $0xd1] sm:$0xff]
        %v6167 = vld [vmem:[%s6139 + $0xd9] sm:$0x7f]
        %v6168 = vld [vmem:[%s6139 + $0xe1] sm:$0xff]
        %v6169 = vld [vmem:[%s6139 + $0xe9] sm:$0x7f]
        %v6170 = vadd.f32 %v6140, %v5861
        %v6171 = vadd.f32 %v6141, %v5863
        %v6172 = vadd.f32 %v6142, %v5866
        %v6173 = vadd.f32 %v6143, %v5868
        %v6174 = vadd.f32 %v6144, %v5871
        %v6175 = vadd.f32 %v6145, %v5873
        %v6176 = vadd.f32 %v6146, %v5876
        %v6177 = vadd.f32 %v6147, %v5878
        %v6178 = vadd.f32 %v6148, %v5881
        %v6179 = vadd.f32 %v6149, %v5883
        %v6180 = vadd.f32 %v6150, %v5886
        %v6181 = vadd.f32 %v6151, %v5888
        %v6182 = vadd.f32 %v6152, %v5891
        %v6183 = vadd.f32 %v6153, %v5893
        %v6184 = vadd.f32 %v6154, %v5896
        %v6185 = vadd.f32 %v6155, %v5898
        %v6186 = vadd.f32 %v6156, %v5901
        %v6187 = vadd.f32 %v6157, %v5903
        %v6188 = vadd.f32 %v6158, %v5906
        %v6189 = vadd.f32 %v6159, %v5908
        %v6190 = vadd.f32 %v6160, %v5911
        %v6191 = vadd.f32 %v6161, %v5913
        %v6192 = vadd.f32 %v6162, %v5916
        %v6193 = vadd.f32 %v6163, %v5918
        %v6194 = vadd.f32 %v6164, %v5921
        %v6195 = vadd.f32 %v6165, %v5923
        %v6196 = vadd.f32 %v6166, %v5926
        %v6197 = vadd.f32 %v6167, %v5928
        %v6198 = vadd.f32 %v6168, %v5931
        %v6199 = vadd.f32 %v6169, %v5933
        %6200 = vst.msk [vmem:[%s6139 + $0x1] sm:$0xff] %vm6106, %v6170
        %vm6201 = vcmask 63488
        %6202 = vst.msk [vmem:[%s6139 + $0x9] sm:$0x7f] %vm6201, %v6171
        %6203 = vst.msk [vmem:[%s6139 + $0x11] sm:$0xff] %vm6106, %v6172
        %6204 = vst.msk [vmem:[%s6139 + $0x19] sm:$0x7f] %vm6201, %v6173
        %6205 = vst.msk [vmem:[%s6139 + $0x21] sm:$0xff] %vm6106, %v6174
        %6206 = vst.msk [vmem:[%s6139 + $0x29] sm:$0x7f] %vm6201, %v6175
        %6207 = vst.msk [vmem:[%s6139 + $0x31] sm:$0xff] %vm6106, %v6176
        %6208 = vst.msk [vmem:[%s6139 + $0x39] sm:$0x7f] %vm6201, %v6177
        %6209 = vst.msk [vmem:[%s6139 + $0x41] sm:$0xff] %vm6106, %v6178
        %6210 = vst.msk [vmem:[%s6139 + $0x49] sm:$0x7f] %vm6201, %v6179
        %6211 = vst.msk [vmem:[%s6139 + $0x51] sm:$0xff] %vm6106, %v6180
        %6212 = vst.msk [vmem:[%s6139 + $0x59] sm:$0x7f] %vm6201, %v6181
        %6213 = vst.msk [vmem:[%s6139 + $0x61] sm:$0xff] %vm6106, %v6182
        %6214 = vst.msk [vmem:[%s6139 + $0x69] sm:$0x7f] %vm6201, %v6183
        %6215 = vst.msk [vmem:[%s6139 + $0x71] sm:$0xff] %vm6106, %v6184
        %6216 = vst.msk [vmem:[%s6139 + $0x79] sm:$0x7f] %vm6201, %v6185
        %6217 = vst.msk [vmem:[%s6139 + $0x81] sm:$0xff] %vm6106, %v6186
        %6218 = vst.msk [vmem:[%s6139 + $0x89] sm:$0x7f] %vm6201, %v6187
        %6219 = vst.msk [vmem:[%s6139 + $0x91] sm:$0xff] %vm6106, %v6188
        %6220 = vst.msk [vmem:[%s6139 + $0x99] sm:$0x7f] %vm6201, %v6189
        %6221 = vst.msk [vmem:[%s6139 + $0xa1] sm:$0xff] %vm6106, %v6190
        %6222 = vst.msk [vmem:[%s6139 + $0xa9] sm:$0x7f] %vm6201, %v6191
        %6223 = vst.msk [vmem:[%s6139 + $0xb1] sm:$0xff] %vm6106, %v6192
        %6224 = vst.msk [vmem:[%s6139 + $0xb9] sm:$0x7f] %vm6201, %v6193
        %6225 = vst.msk [vmem:[%s6139 + $0xc1] sm:$0xff] %vm6106, %v6194
        %6226 = vst.msk [vmem:[%s6139 + $0xc9] sm:$0x7f] %vm6201, %v6195
        %6227 = vst.msk [vmem:[%s6139 + $0xd1] sm:$0xff] %vm6106, %v6196
        %6228 = vst.msk [vmem:[%s6139 + $0xd9] sm:$0x7f] %vm6201, %v6197
        %6229 = vst.msk [vmem:[%s6139 + $0xe1] sm:$0xff] %vm6106, %v6198
        %6230 = vst.msk [vmem:[%s6139 + $0xe9] sm:$0x7f] %vm6201, %v6199
        %v6231 = vld [vmem:[%s6139] sm:$0xff]
        %v6232 = vld [vmem:[%s6139 + $0x8] sm:$0xff]
        %v6233 = vld [vmem:[%s6139 + $0x10] sm:$0xff]
        %v6234 = vld [vmem:[%s6139 + $0x18] sm:$0xff]
        %v6235 = vld [vmem:[%s6139 + $0x20] sm:$0xff]
        %v6236 = vld [vmem:[%s6139 + $0x28] sm:$0xff]
        %v6237 = vld [vmem:[%s6139 + $0x30] sm:$0xff]
        %v6238 = vld [vmem:[%s6139 + $0x38] sm:$0xff]
        %v6239 = vld [vmem:[%s6139 + $0x40] sm:$0xff]
        %v6240 = vld [vmem:[%s6139 + $0x48] sm:$0xff]
        %v6241 = vld [vmem:[%s6139 + $0x50] sm:$0xff]
        %v6242 = vld [vmem:[%s6139 + $0x58] sm:$0xff]
        %v6243 = vld [vmem:[%s6139 + $0x60] sm:$0xff]
        %v6244 = vld [vmem:[%s6139 + $0x68] sm:$0xff]
        %v6245 = vld [vmem:[%s6139 + $0x70] sm:$0xff]
        %v6246 = vld [vmem:[%s6139 + $0x78] sm:$0xff]
        %v6247 = vld [vmem:[%s6139 + $0x80] sm:$0xff]
        %v6248 = vld [vmem:[%s6139 + $0x88] sm:$0xff]
        %v6249 = vld [vmem:[%s6139 + $0x90] sm:$0xff]
        %v6250 = vld [vmem:[%s6139 + $0x98] sm:$0xff]
        %v6251 = vld [vmem:[%s6139 + $0xa0] sm:$0xff]
        %v6252 = vld [vmem:[%s6139 + $0xa8] sm:$0xff]
        %v6253 = vld [vmem:[%s6139 + $0xb0] sm:$0xff]
        %v6254 = vld [vmem:[%s6139 + $0xb8] sm:$0xff]
        %v6255 = vld [vmem:[%s6139 + $0xc0] sm:$0xff]
        %v6256 = vld [vmem:[%s6139 + $0xc8] sm:$0xff]
        %v6257 = vld [vmem:[%s6139 + $0xd0] sm:$0xff]
        %v6258 = vld [vmem:[%s6139 + $0xd8] sm:$0xff]
        %v6259 = vld [vmem:[%s6139 + $0xe0] sm:$0xff]
        %v6260 = vld [vmem:[%s6139 + $0xe8] sm:$0xff]
        %6291 = vrot.lane.b32.xlu0 %v5861, 120
        %v6292 = vpop.permute.xlu0 %6291
        %6293 = vrot.lane.b32.xlu0 %v5863, 120
        %v6294 = vpop.permute.xlu0 %6293
        %6295 = vrot.lane.b32.xlu0 %v5866, 120
        %v6296 = vpop.permute.xlu0 %6295
        %6297 = vrot.lane.b32.xlu0 %v5868, 120
        %v6298 = vpop.permute.xlu0 %6297
        %6299 = vrot.lane.b32.xlu0 %v5871, 120
        %v6300 = vpop.permute.xlu0 %6299
        %6301 = vrot.lane.b32.xlu0 %v5873, 120
        %v6302 = vpop.permute.xlu0 %6301
        %6303 = vrot.lane.b32.xlu0 %v5876, 120
        %v6304 = vpop.permute.xlu0 %6303
        %6305 = vrot.lane.b32.xlu0 %v5878, 120
        %v6306 = vpop.permute.xlu0 %6305
        %6307 = vrot.lane.b32.xlu0 %v5881, 120
        %v6308 = vpop.permute.xlu0 %6307
        %6309 = vrot.lane.b32.xlu0 %v5883, 120
        %v6310 = vpop.permute.xlu0 %6309
        %6311 = vrot.lane.b32.xlu0 %v5886, 120
        %v6312 = vpop.permute.xlu0 %6311
        %6313 = vrot.lane.b32.xlu0 %v5888, 120
        %v6314 = vpop.permute.xlu0 %6313
        %6315 = vrot.lane.b32.xlu0 %v5891, 120
        %v6316 = vpop.permute.xlu0 %6315
        %6317 = vrot.lane.b32.xlu0 %v5893, 120
        %v6318 = vpop.permute.xlu0 %6317
        %6319 = vrot.lane.b32.xlu0 %v5896, 120
        %v6320 = vpop.permute.xlu0 %6319
        %6321 = vrot.lane.b32.xlu0 %v5898, 120
        %v6322 = vpop.permute.xlu0 %6321
        %6323 = vrot.lane.b32.xlu0 %v5901, 120
        %v6324 = vpop.permute.xlu0 %6323
        %6325 = vrot.lane.b32.xlu0 %v5903, 120
        %v6326 = vpop.permute.xlu0 %6325
        %6327 = vrot.lane.b32.xlu0 %v5906, 120
        %v6328 = vpop.permute.xlu0 %6327
        %6329 = vrot.lane.b32.xlu0 %v5908, 120
        %v6330 = vpop.permute.xlu0 %6329
        %6331 = vrot.lane.b32.xlu0 %v5911, 120
        %v6332 = vpop.permute.xlu0 %6331
        %6333 = vrot.lane.b32.xlu0 %v5913, 120
        %v6334 = vpop.permute.xlu0 %6333
        %6335 = vrot.lane.b32.xlu0 %v5916, 120
        %v6336 = vpop.permute.xlu0 %6335
        %6337 = vrot.lane.b32.xlu0 %v5918, 120
        %v6338 = vpop.permute.xlu0 %6337
        %6339 = vrot.lane.b32.xlu0 %v5921, 120
        %v6340 = vpop.permute.xlu0 %6339
        %6341 = vrot.lane.b32.xlu0 %v5923, 120
        %v6342 = vpop.permute.xlu0 %6341
        %6343 = vrot.lane.b32.xlu0 %v5926, 120
        %v6344 = vpop.permute.xlu0 %6343
        %6345 = vrot.lane.b32.xlu0 %v5928, 120
        %v6346 = vpop.permute.xlu0 %6345
        %6347 = vrot.lane.b32.xlu0 %v5931, 120
        %v6348 = vpop.permute.xlu0 %6347
        %6349 = vrot.lane.b32.xlu0 %v5933, 120
        %v6350 = vpop.permute.xlu0 %6349
        %v6381 = vadd.f32 %v6231, %v6292
        %v6382 = vadd.f32 %v6232, %v6294
        %v6383 = vadd.f32 %v6233, %v6296
        %v6384 = vadd.f32 %v6234, %v6298
        %v6385 = vadd.f32 %v6235, %v6300
        %v6386 = vadd.f32 %v6236, %v6302
        %v6387 = vadd.f32 %v6237, %v6304
        %v6388 = vadd.f32 %v6238, %v6306
        %v6389 = vadd.f32 %v6239, %v6308
        %v6390 = vadd.f32 %v6240, %v6310
        %v6391 = vadd.f32 %v6241, %v6312
        %v6392 = vadd.f32 %v6242, %v6314
        %v6393 = vadd.f32 %v6243, %v6316
        %v6394 = vadd.f32 %v6244, %v6318
        %v6395 = vadd.f32 %v6245, %v6320
        %v6396 = vadd.f32 %v6246, %v6322
        %v6397 = vadd.f32 %v6247, %v6324
        %v6398 = vadd.f32 %v6248, %v6326
        %v6399 = vadd.f32 %v6249, %v6328
        %v6400 = vadd.f32 %v6250, %v6330
        %v6401 = vadd.f32 %v6251, %v6332
        %v6402 = vadd.f32 %v6252, %v6334
        %v6403 = vadd.f32 %v6253, %v6336
        %v6404 = vadd.f32 %v6254, %v6338
        %v6405 = vadd.f32 %v6255, %v6340
        %v6406 = vadd.f32 %v6256, %v6342
        %v6407 = vadd.f32 %v6257, %v6344
        %v6408 = vadd.f32 %v6258, %v6346
        %v6409 = vadd.f32 %v6259, %v6348
        %v6410 = vadd.f32 %v6260, %v6350
        %6411 = vst.msk [vmem:[%s6139] sm:$0xff] %vm6106, %v6381
        %6412 = vst.msk [vmem:[%s6139 + $0x8] sm:$0xff] %vm6106, %v6382
        %6413 = vst.msk [vmem:[%s6139 + $0x10] sm:$0xff] %vm6106, %v6383
        %6414 = vst.msk [vmem:[%s6139 + $0x18] sm:$0xff] %vm6106, %v6384
        %6415 = vst.msk [vmem:[%s6139 + $0x20] sm:$0xff] %vm6106, %v6385
        %6416 = vst.msk [vmem:[%s6139 + $0x28] sm:$0xff] %vm6106, %v6386
        %6417 = vst.msk [vmem:[%s6139 + $0x30] sm:$0xff] %vm6106, %v6387
        %6418 = vst.msk [vmem:[%s6139 + $0x38] sm:$0xff] %vm6106, %v6388
        %6419 = vst.msk [vmem:[%s6139 + $0x40] sm:$0xff] %vm6106, %v6389
        %6420 = vst.msk [vmem:[%s6139 + $0x48] sm:$0xff] %vm6106, %v6390
        %6421 = vst.msk [vmem:[%s6139 + $0x50] sm:$0xff] %vm6106, %v6391
        %6422 = vst.msk [vmem:[%s6139 + $0x58] sm:$0xff] %vm6106, %v6392
        %6423 = vst.msk [vmem:[%s6139 + $0x60] sm:$0xff] %vm6106, %v6393
        %6424 = vst.msk [vmem:[%s6139 + $0x68] sm:$0xff] %vm6106, %v6394
        %6425 = vst.msk [vmem:[%s6139 + $0x70] sm:$0xff] %vm6106, %v6395
        %6426 = vst.msk [vmem:[%s6139 + $0x78] sm:$0xff] %vm6106, %v6396
        %6427 = vst.msk [vmem:[%s6139 + $0x80] sm:$0xff] %vm6106, %v6397
        %6428 = vst.msk [vmem:[%s6139 + $0x88] sm:$0xff] %vm6106, %v6398
        %6429 = vst.msk [vmem:[%s6139 + $0x90] sm:$0xff] %vm6106, %v6399
        %6430 = vst.msk [vmem:[%s6139 + $0x98] sm:$0xff] %vm6106, %v6400
        %6431 = vst.msk [vmem:[%s6139 + $0xa0] sm:$0xff] %vm6106, %v6401
        %6432 = vst.msk [vmem:[%s6139 + $0xa8] sm:$0xff] %vm6106, %v6402
        %6433 = vst.msk [vmem:[%s6139 + $0xb0] sm:$0xff] %vm6106, %v6403
        %6434 = vst.msk [vmem:[%s6139 + $0xb8] sm:$0xff] %vm6106, %v6404
        %6435 = vst.msk [vmem:[%s6139 + $0xc0] sm:$0xff] %vm6106, %v6405
        %6436 = vst.msk [vmem:[%s6139 + $0xc8] sm:$0xff] %vm6106, %v6406
        %6437 = vst.msk [vmem:[%s6139 + $0xd0] sm:$0xff] %vm6106, %v6407
        %6438 = vst.msk [vmem:[%s6139 + $0xd8] sm:$0xff] %vm6106, %v6408
        %6439 = vst.msk [vmem:[%s6139 + $0xe0] sm:$0xff] %vm6106, %v6409
        %6440 = vst.msk [vmem:[%s6139 + $0xe8] sm:$0xff] %vm6106, %v6410
        %v6441 = vld [vmem:[%s6139] sm:$0xff]
        %v6442 = vld [vmem:[%s6139 + $0x8] sm:$0x7f]
        %v6443 = vld [vmem:[%s6139 + $0x10] sm:$0xff]
        %v6444 = vld [vmem:[%s6139 + $0x18] sm:$0x7f]
        %v6445 = vld [vmem:[%s6139 + $0x20] sm:$0xff]
        %v6446 = vld [vmem:[%s6139 + $0x28] sm:$0x7f]
        %v6447 = vld [vmem:[%s6139 + $0x30] sm:$0xff]
        %v6448 = vld [vmem:[%s6139 + $0x38] sm:$0x7f]
        %v6449 = vld [vmem:[%s6139 + $0x40] sm:$0xff]
        %v6450 = vld [vmem:[%s6139 + $0x48] sm:$0x7f]
        %v6451 = vld [vmem:[%s6139 + $0x50] sm:$0xff]
        %v6452 = vld [vmem:[%s6139 + $0x58] sm:$0x7f]
        %v6453 = vld [vmem:[%s6139 + $0x60] sm:$0xff]
        %v6454 = vld [vmem:[%s6139 + $0x68] sm:$0x7f]
        %v6455 = vld [vmem:[%s6139 + $0x70] sm:$0xff]
        %v6456 = vld [vmem:[%s6139 + $0x78] sm:$0x7f]
        %v6457 = vld [vmem:[%s6139 + $0x80] sm:$0xff]
        %v6458 = vld [vmem:[%s6139 + $0x88] sm:$0x7f]
        %v6459 = vld [vmem:[%s6139 + $0x90] sm:$0xff]
        %v6460 = vld [vmem:[%s6139 + $0x98] sm:$0x7f]
        %v6461 = vld [vmem:[%s6139 + $0xa0] sm:$0xff]
        %v6462 = vld [vmem:[%s6139 + $0xa8] sm:$0x7f]
        %v6463 = vld [vmem:[%s6139 + $0xb0] sm:$0xff]
        %v6464 = vld [vmem:[%s6139 + $0xb8] sm:$0x7f]
        %v6465 = vld [vmem:[%s6139 + $0xc0] sm:$0xff]
        %v6466 = vld [vmem:[%s6139 + $0xc8] sm:$0x7f]
        %v6467 = vld [vmem:[%s6139 + $0xd0] sm:$0xff]
        %v6468 = vld [vmem:[%s6139 + $0xd8] sm:$0x7f]
        %v6469 = vld [vmem:[%s6139 + $0xe0] sm:$0xff]
        %v6470 = vld [vmem:[%s6139 + $0xe8] sm:$0x7f]
        %v6471 = vrot.slane %v5861, 1
        %v6472 = vrot.slane %v5863, 1
        %v6473 = vsel %vm4498, %v6471, %v6472
        %v6474 = vrot.slane %v5866, 1
        %v6475 = vrot.slane %v5868, 1
        %v6476 = vsel %vm4498, %v6474, %v6475
        %v6477 = vrot.slane %v5871, 1
        %v6478 = vrot.slane %v5873, 1
        %v6479 = vsel %vm4498, %v6477, %v6478
        %v6480 = vrot.slane %v5876, 1
        %v6481 = vrot.slane %v5878, 1
        %v6482 = vsel %vm4498, %v6480, %v6481
        %v6483 = vrot.slane %v5881, 1
        %v6484 = vrot.slane %v5883, 1
        %v6485 = vsel %vm4498, %v6483, %v6484
        %v6486 = vrot.slane %v5886, 1
        %v6487 = vrot.slane %v5888, 1
        %v6488 = vsel %vm4498, %v6486, %v6487
        %v6489 = vrot.slane %v5891, 1
        %v6490 = vrot.slane %v5893, 1
        %v6491 = vsel %vm4498, %v6489, %v6490
        %v6492 = vrot.slane %v5896, 1
        %v6493 = vrot.slane %v5898, 1
        %v6494 = vsel %vm4498, %v6492, %v6493
        %v6495 = vrot.slane %v5901, 1
        %v6496 = vrot.slane %v5903, 1
        %v6497 = vsel %vm4498, %v6495, %v6496
        %v6498 = vrot.slane %v5906, 1
        %v6499 = vrot.slane %v5908, 1
        %v6500 = vsel %vm4498, %v6498, %v6499
        %v6501 = vrot.slane %v5911, 1
        %v6502 = vrot.slane %v5913, 1
        %v6503 = vsel %vm4498, %v6501, %v6502
        %v6504 = vrot.slane %v5916, 1
        %v6505 = vrot.slane %v5918, 1
        %v6506 = vsel %vm4498, %v6504, %v6505
        %v6507 = vrot.slane %v5921, 1
        %v6508 = vrot.slane %v5923, 1
        %v6509 = vsel %vm4498, %v6507, %v6508
        %v6510 = vrot.slane %v5926, 1
        %v6511 = vrot.slane %v5928, 1
        %v6512 = vsel %vm4498, %v6510, %v6511
        %v6513 = vrot.slane %v5931, 1
        %v6514 = vrot.slane %v5933, 1
        %v6515 = vsel %vm4498, %v6513, %v6514
        %6516 = vrot.lane.b32.xlu0 %v6473, 112
        %v6517 = vpop.permute.xlu0 %6516
        %6518 = vrot.lane.b32.xlu0 %v6472, 112
        %v6519 = vpop.permute.xlu0 %6518
        %6520 = vrot.lane.b32.xlu0 %v6476, 112
        %v6521 = vpop.permute.xlu0 %6520
        %6522 = vrot.lane.b32.xlu0 %v6475, 112
        %v6523 = vpop.permute.xlu0 %6522
        %6524 = vrot.lane.b32.xlu0 %v6479, 112
        %v6525 = vpop.permute.xlu0 %6524
        %6526 = vrot.lane.b32.xlu0 %v6478, 112
        %v6527 = vpop.permute.xlu0 %6526
        %6528 = vrot.lane.b32.xlu0 %v6482, 112
        %v6529 = vpop.permute.xlu0 %6528
        %6530 = vrot.lane.b32.xlu0 %v6481, 112
        %v6531 = vpop.permute.xlu0 %6530
        %6532 = vrot.lane.b32.xlu0 %v6485, 112
        %v6533 = vpop.permute.xlu0 %6532
        %6534 = vrot.lane.b32.xlu0 %v6484, 112
        %v6535 = vpop.permute.xlu0 %6534
        %6536 = vrot.lane.b32.xlu0 %v6488, 112
        %v6537 = vpop.permute.xlu0 %6536
        %6538 = vrot.lane.b32.xlu0 %v6487, 112
        %v6539 = vpop.permute.xlu0 %6538
        %6540 = vrot.lane.b32.xlu0 %v6491, 112
        %v6541 = vpop.permute.xlu0 %6540
        %6542 = vrot.lane.b32.xlu0 %v6490, 112
        %v6543 = vpop.permute.xlu0 %6542
        %6544 = vrot.lane.b32.xlu0 %v6494, 112
        %v6545 = vpop.permute.xlu0 %6544
        %6546 = vrot.lane.b32.xlu0 %v6493, 112
        %v6547 = vpop.permute.xlu0 %6546
        %6548 = vrot.lane.b32.xlu0 %v6497, 112
        %v6549 = vpop.permute.xlu0 %6548
        %6550 = vrot.lane.b32.xlu0 %v6496, 112
        %v6551 = vpop.permute.xlu0 %6550
        %6552 = vrot.lane.b32.xlu0 %v6500, 112
        %v6553 = vpop.permute.xlu0 %6552
        %6554 = vrot.lane.b32.xlu0 %v6499, 112
        %v6555 = vpop.permute.xlu0 %6554
        %6556 = vrot.lane.b32.xlu0 %v6503, 112
        %v6557 = vpop.permute.xlu0 %6556
        %6558 = vrot.lane.b32.xlu0 %v6502, 112
        %v6559 = vpop.permute.xlu0 %6558
        %6560 = vrot.lane.b32.xlu0 %v6506, 112
        %v6561 = vpop.permute.xlu0 %6560
        %6562 = vrot.lane.b32.xlu0 %v6505, 112
        %v6563 = vpop.permute.xlu0 %6562
        %6564 = vrot.lane.b32.xlu0 %v6509, 112
        %v6565 = vpop.permute.xlu0 %6564
        %6566 = vrot.lane.b32.xlu0 %v6508, 112
        %v6567 = vpop.permute.xlu0 %6566
        %6568 = vrot.lane.b32.xlu0 %v6512, 112
        %v6569 = vpop.permute.xlu0 %6568
        %6570 = vrot.lane.b32.xlu0 %v6511, 112
        %v6571 = vpop.permute.xlu0 %6570
        %6572 = vrot.lane.b32.xlu0 %v6515, 112
        %v6573 = vpop.permute.xlu0 %6572
        %6574 = vrot.lane.b32.xlu0 %v6514, 112
        %v6575 = vpop.permute.xlu0 %6574
        %v6606 = vadd.f32 %v6441, %v6517
        %v6607 = vadd.f32 %v6442, %v6519
        %v6608 = vadd.f32 %v6443, %v6521
        %v6609 = vadd.f32 %v6444, %v6523
        %v6610 = vadd.f32 %v6445, %v6525
        %v6611 = vadd.f32 %v6446, %v6527
        %v6612 = vadd.f32 %v6447, %v6529
        %v6613 = vadd.f32 %v6448, %v6531
        %v6614 = vadd.f32 %v6449, %v6533
        %v6615 = vadd.f32 %v6450, %v6535
        %v6616 = vadd.f32 %v6451, %v6537
        %v6617 = vadd.f32 %v6452, %v6539
        %v6618 = vadd.f32 %v6453, %v6541
        %v6619 = vadd.f32 %v6454, %v6543
        %v6620 = vadd.f32 %v6455, %v6545
        %v6621 = vadd.f32 %v6456, %v6547
        %v6622 = vadd.f32 %v6457, %v6549
        %v6623 = vadd.f32 %v6458, %v6551
        %v6624 = vadd.f32 %v6459, %v6553
        %v6625 = vadd.f32 %v6460, %v6555
        %v6626 = vadd.f32 %v6461, %v6557
        %v6627 = vadd.f32 %v6462, %v6559
        %v6628 = vadd.f32 %v6463, %v6561
        %v6629 = vadd.f32 %v6464, %v6563
        %v6630 = vadd.f32 %v6465, %v6565
        %v6631 = vadd.f32 %v6466, %v6567
        %v6632 = vadd.f32 %v6467, %v6569
        %v6633 = vadd.f32 %v6468, %v6571
        %v6634 = vadd.f32 %v6469, %v6573
        %v6635 = vadd.f32 %v6470, %v6575
        %6636 = vst.msk [vmem:[%s6139] sm:$0xff] %vm6106, %v6606
        %6637 = vst.msk [vmem:[%s6139 + $0x8] sm:$0x7f] %vm6201, %v6607
        %6638 = vst.msk [vmem:[%s6139 + $0x10] sm:$0xff] %vm6106, %v6608
        %6639 = vst.msk [vmem:[%s6139 + $0x18] sm:$0x7f] %vm6201, %v6609
        %6640 = vst.msk [vmem:[%s6139 + $0x20] sm:$0xff] %vm6106, %v6610
        %6641 = vst.msk [vmem:[%s6139 + $0x28] sm:$0x7f] %vm6201, %v6611
        %6642 = vst.msk [vmem:[%s6139 + $0x30] sm:$0xff] %vm6106, %v6612
        %6643 = vst.msk [vmem:[%s6139 + $0x38] sm:$0x7f] %vm6201, %v6613
        %6644 = vst.msk [vmem:[%s6139 + $0x40] sm:$0xff] %vm6106, %v6614
        %6645 = vst.msk [vmem:[%s6139 + $0x48] sm:$0x7f] %vm6201, %v6615
        %6646 = vst.msk [vmem:[%s6139 + $0x50] sm:$0xff] %vm6106, %v6616
        %6647 = vst.msk [vmem:[%s6139 + $0x58] sm:$0x7f] %vm6201, %v6617
        %6648 = vst.msk [vmem:[%s6139 + $0x60] sm:$0xff] %vm6106, %v6618
        %6649 = vst.msk [vmem:[%s6139 + $0x68] sm:$0x7f] %vm6201, %v6619
        %6650 = vst.msk [vmem:[%s6139 + $0x70] sm:$0xff] %vm6106, %v6620
        %6651 = vst.msk [vmem:[%s6139 + $0x78] sm:$0x7f] %vm6201, %v6621
        %6652 = vst.msk [vmem:[%s6139 + $0x80] sm:$0xff] %vm6106, %v6622
        %6653 = vst.msk [vmem:[%s6139 + $0x88] sm:$0x7f] %vm6201, %v6623
        %6654 = vst.msk [vmem:[%s6139 + $0x90] sm:$0xff] %vm6106, %v6624
        %6655 = vst.msk [vmem:[%s6139 + $0x98] sm:$0x7f] %vm6201, %v6625
        %6656 = vst.msk [vmem:[%s6139 + $0xa0] sm:$0xff] %vm6106, %v6626
        %6657 = vst.msk [vmem:[%s6139 + $0xa8] sm:$0x7f] %vm6201, %v6627
        %6658 = vst.msk [vmem:[%s6139 + $0xb0] sm:$0xff] %vm6106, %v6628
        %6659 = vst.msk [vmem:[%s6139 + $0xb8] sm:$0x7f] %vm6201, %v6629
        %6660 = vst.msk [vmem:[%s6139 + $0xc0] sm:$0xff] %vm6106, %v6630
        %6661 = vst.msk [vmem:[%s6139 + $0xc8] sm:$0x7f] %vm6201, %v6631
        %6662 = vst.msk [vmem:[%s6139 + $0xd0] sm:$0xff] %vm6106, %v6632
        %6663 = vst.msk [vmem:[%s6139 + $0xd8] sm:$0x7f] %vm6201, %v6633
        %6664 = vst.msk [vmem:[%s6139 + $0xe0] sm:$0xff] %vm6106, %v6634
        %6665 = vst.msk [vmem:[%s6139 + $0xe8] sm:$0x7f] %vm6201, %v6635
        %v6666 = vld [vmem:[#allocation3 + $0x1] sm:$0xff]
        %v6667 = vld [vmem:[#allocation3 + $0x9] sm:$0x7f]
        %v6668 = vld [vmem:[#allocation3 + $0x11] sm:$0xff]
        %v6669 = vld [vmem:[#allocation3 + $0x19] sm:$0x7f]
        %v6670 = vld [vmem:[#allocation3 + $0x21] sm:$0xff]
        %v6671 = vld [vmem:[#allocation3 + $0x29] sm:$0x7f]
        %v6672 = vld [vmem:[#allocation3 + $0x31] sm:$0xff]
        %v6673 = vld [vmem:[#allocation3 + $0x39] sm:$0x7f]
        %v6674 = vld [vmem:[#allocation3 + $0x41] sm:$0xff]
        %v6675 = vld [vmem:[#allocation3 + $0x49] sm:$0x7f]
        %v6676 = vld [vmem:[#allocation3 + $0x51] sm:$0xff]
        %v6677 = vld [vmem:[#allocation3 + $0x59] sm:$0x7f]
        %v6678 = vld [vmem:[#allocation3 + $0x61] sm:$0xff]
        %v6679 = vld [vmem:[#allocation3 + $0x69] sm:$0x7f]
        %v6680 = vld [vmem:[#allocation3 + $0x71] sm:$0xff]
        %v6681 = vld [vmem:[#allocation3 + $0x79] sm:$0x7f]
        %v6682 = vld [vmem:[#allocation3 + $0x81] sm:$0xff]
        %v6683 = vld [vmem:[#allocation3 + $0x89] sm:$0x7f]
        %v6684 = vld [vmem:[#allocation3 + $0x91] sm:$0xff]
        %v6685 = vld [vmem:[#allocation3 + $0x99] sm:$0x7f]
        %v6686 = vld [vmem:[#allocation3 + $0xa1] sm:$0xff]
        %v6687 = vld [vmem:[#allocation3 + $0xa9] sm:$0x7f]
        %v6688 = vld [vmem:[#allocation3 + $0xb1] sm:$0xff]
        %v6689 = vld [vmem:[#allocation3 + $0xb9] sm:$0x7f]
        %v6690 = vld [vmem:[#allocation3 + $0xc1] sm:$0xff]
        %v6691 = vld [vmem:[#allocation3 + $0xc9] sm:$0x7f]
        %v6692 = vld [vmem:[#allocation3 + $0xd1] sm:$0xff]
        %v6693 = vld [vmem:[#allocation3 + $0xd9] sm:$0x7f]
        %v6694 = vld [vmem:[#allocation3 + $0xe1] sm:$0xff]
        %v6695 = vld [vmem:[#allocation3 + $0xe9] sm:$0x7f]
        %v6696 = vld [vmem:[#allocation3 + $0xf1] sm:$0xff]
        %v6697 = vld [vmem:[#allocation3 + $0xf9] sm:$0x7f]
        %6700 = vrot.lane.b32.xlu0 %v5861, 104
        %v6701 = vpop.permute.xlu0 %6700
        %6702 = vrot.lane.b32.xlu0 %v5863, 104
        %v6703 = vpop.permute.xlu0 %6702
        %6704 = vrot.lane.b32.xlu0 %v5866, 104
        %v6705 = vpop.permute.xlu0 %6704
        %6706 = vrot.lane.b32.xlu0 %v5868, 104
        %v6707 = vpop.permute.xlu0 %6706
        %6708 = vrot.lane.b32.xlu0 %v5871, 104
        %v6709 = vpop.permute.xlu0 %6708
        %6710 = vrot.lane.b32.xlu0 %v5873, 104
        %v6711 = vpop.permute.xlu0 %6710
        %6712 = vrot.lane.b32.xlu0 %v5876, 104
        %v6713 = vpop.permute.xlu0 %6712
        %6714 = vrot.lane.b32.xlu0 %v5878, 104
        %v6715 = vpop.permute.xlu0 %6714
        %6716 = vrot.lane.b32.xlu0 %v5881, 104
        %v6717 = vpop.permute.xlu0 %6716
        %6718 = vrot.lane.b32.xlu0 %v5883, 104
        %v6719 = vpop.permute.xlu0 %6718
        %6720 = vrot.lane.b32.xlu0 %v5886, 104
        %v6721 = vpop.permute.xlu0 %6720
        %6722 = vrot.lane.b32.xlu0 %v5888, 104
        %v6723 = vpop.permute.xlu0 %6722
        %6724 = vrot.lane.b32.xlu0 %v5891, 104
        %v6725 = vpop.permute.xlu0 %6724
        %6726 = vrot.lane.b32.xlu0 %v5893, 104
        %v6727 = vpop.permute.xlu0 %6726
        %6728 = vrot.lane.b32.xlu0 %v5896, 104
        %v6729 = vpop.permute.xlu0 %6728
        %6730 = vrot.lane.b32.xlu0 %v5898, 104
        %v6731 = vpop.permute.xlu0 %6730
        %6732 = vrot.lane.b32.xlu0 %v5901, 104
        %v6733 = vpop.permute.xlu0 %6732
        %6734 = vrot.lane.b32.xlu0 %v5903, 104
        %v6735 = vpop.permute.xlu0 %6734
        %6736 = vrot.lane.b32.xlu0 %v5906, 104
        %v6737 = vpop.permute.xlu0 %6736
        %6738 = vrot.lane.b32.xlu0 %v5908, 104
        %v6739 = vpop.permute.xlu0 %6738
        %6740 = vrot.lane.b32.xlu0 %v5911, 104
        %v6741 = vpop.permute.xlu0 %6740
        %6742 = vrot.lane.b32.xlu0 %v5913, 104
        %v6743 = vpop.permute.xlu0 %6742
        %6744 = vrot.lane.b32.xlu0 %v5916, 104
        %v6745 = vpop.permute.xlu0 %6744
        %6746 = vrot.lane.b32.xlu0 %v5918, 104
        %v6747 = vpop.permute.xlu0 %6746
        %6748 = vrot.lane.b32.xlu0 %v5921, 104
        %v6749 = vpop.permute.xlu0 %6748
        %6750 = vrot.lane.b32.xlu0 %v5923, 104
        %v6751 = vpop.permute.xlu0 %6750
        %6752 = vrot.lane.b32.xlu0 %v5926, 104
        %v6753 = vpop.permute.xlu0 %6752
        %6754 = vrot.lane.b32.xlu0 %v5928, 104
        %v6755 = vpop.permute.xlu0 %6754
        %6756 = vrot.lane.b32.xlu0 %v5931, 104
        %v6757 = vpop.permute.xlu0 %6756
        %6758 = vrot.lane.b32.xlu0 %v5933, 104
        %v6759 = vpop.permute.xlu0 %6758
        %6760 = vrot.lane.b32.xlu0 %v5936, 104
        %v6761 = vpop.permute.xlu0 %6760
        %6762 = vrot.lane.b32.xlu0 %v5938, 104
        %v6763 = vpop.permute.xlu0 %6762
        %v6796 = vadd.f32 %v6666, %v6701
        %v6797 = vadd.f32 %v6667, %v6703
        %v6798 = vadd.f32 %v6668, %v6705
        %v6799 = vadd.f32 %v6669, %v6707
        %v6800 = vadd.f32 %v6670, %v6709
        %v6801 = vadd.f32 %v6671, %v6711
        %v6802 = vadd.f32 %v6672, %v6713
        %v6803 = vadd.f32 %v6673, %v6715
        %v6804 = vadd.f32 %v6674, %v6717
        %v6805 = vadd.f32 %v6675, %v6719
        %v6806 = vadd.f32 %v6676, %v6721
        %v6807 = vadd.f32 %v6677, %v6723
        %v6808 = vadd.f32 %v6678, %v6725
        %v6809 = vadd.f32 %v6679, %v6727
        %v6810 = vadd.f32 %v6680, %v6729
        %v6811 = vadd.f32 %v6681, %v6731
        %v6812 = vadd.f32 %v6682, %v6733
        %v6813 = vadd.f32 %v6683, %v6735
        %v6814 = vadd.f32 %v6684, %v6737
        %v6815 = vadd.f32 %v6685, %v6739
        %v6816 = vadd.f32 %v6686, %v6741
        %v6817 = vadd.f32 %v6687, %v6743
        %v6818 = vadd.f32 %v6688, %v6745
        %v6819 = vadd.f32 %v6689, %v6747
        %v6820 = vadd.f32 %v6690, %v6749
        %v6821 = vadd.f32 %v6691, %v6751
        %v6822 = vadd.f32 %v6692, %v6753
        %v6823 = vadd.f32 %v6693, %v6755
        %v6824 = vadd.f32 %v6694, %v6757
        %v6825 = vadd.f32 %v6695, %v6759
        %v6826 = vadd.f32 %v6696, %v6761
        %v6827 = vadd.f32 %v6697, %v6763
        %6828 = vst.msk [vmem:[#allocation3 + $0x1] sm:$0xff] %vm6106, %v6796
        %6829 = vst.msk [vmem:[#allocation3 + $0x9] sm:$0x7f] %vm6201, %v6797
        %6830 = vst.msk [vmem:[#allocation3 + $0x11] sm:$0xff] %vm6106, %v6798
        %6831 = vst.msk [vmem:[#allocation3 + $0x19] sm:$0x7f] %vm6201, %v6799
        %6832 = vst.msk [vmem:[#allocation3 + $0x21] sm:$0xff] %vm6106, %v6800
        %6833 = vst.msk [vmem:[#allocation3 + $0x29] sm:$0x7f] %vm6201, %v6801
        %6834 = vst.msk [vmem:[#allocation3 + $0x31] sm:$0xff] %vm6106, %v6802
        %6835 = vst.msk [vmem:[#allocation3 + $0x39] sm:$0x7f] %vm6201, %v6803
        %6836 = vst.msk [vmem:[#allocation3 + $0x41] sm:$0xff] %vm6106, %v6804
        %6837 = vst.msk [vmem:[#allocation3 + $0x49] sm:$0x7f] %vm6201, %v6805
        %6838 = vst.msk [vmem:[#allocation3 + $0x51] sm:$0xff] %vm6106, %v6806
        %6839 = vst.msk [vmem:[#allocation3 + $0x59] sm:$0x7f] %vm6201, %v6807
        %6840 = vst.msk [vmem:[#allocation3 + $0x61] sm:$0xff] %vm6106, %v6808
        %6841 = vst.msk [vmem:[#allocation3 + $0x69] sm:$0x7f] %vm6201, %v6809
        %6842 = vst.msk [vmem:[#allocation3 + $0x71] sm:$0xff] %vm6106, %v6810
        %6843 = vst.msk [vmem:[#allocation3 + $0x79] sm:$0x7f] %vm6201, %v6811
        %6844 = vst.msk [vmem:[#allocation3 + $0x81] sm:$0xff] %vm6106, %v6812
        %6845 = vst.msk [vmem:[#allocation3 + $0x89] sm:$0x7f] %vm6201, %v6813
        %6846 = vst.msk [vmem:[#allocation3 + $0x91] sm:$0xff] %vm6106, %v6814
        %6847 = vst.msk [vmem:[#allocation3 + $0x99] sm:$0x7f] %vm6201, %v6815
        %6848 = vst.msk [vmem:[#allocation3 + $0xa1] sm:$0xff] %vm6106, %v6816
        %6849 = vst.msk [vmem:[#allocation3 + $0xa9] sm:$0x7f] %vm6201, %v6817
        %6850 = vst.msk [vmem:[#allocation3 + $0xb1] sm:$0xff] %vm6106, %v6818
        %6851 = vst.msk [vmem:[#allocation3 + $0xb9] sm:$0x7f] %vm6201, %v6819
        %6852 = vst.msk [vmem:[#allocation3 + $0xc1] sm:$0xff] %vm6106, %v6820
        %6853 = vst.msk [vmem:[#allocation3 + $0xc9] sm:$0x7f] %vm6201, %v6821
        %6854 = vst.msk [vmem:[#allocation3 + $0xd1] sm:$0xff] %vm6106, %v6822
        %6855 = vst.msk [vmem:[#allocation3 + $0xd9] sm:$0x7f] %vm6201, %v6823
        %6856 = vst.msk [vmem:[#allocation3 + $0xe1] sm:$0xff] %vm6106, %v6824
        %6857 = vst.msk [vmem:[#allocation3 + $0xe9] sm:$0x7f] %vm6201, %v6825
        %6858 = vst.msk [vmem:[#allocation3 + $0xf1] sm:$0xff] %vm6106, %v6826
        %6859 = vst.msk [vmem:[#allocation3 + $0xf9] sm:$0x7f] %vm6201, %v6827
        %v6860 = vld [vmem:[#allocation3] sm:$0xff]
        %v6861 = vld [vmem:[#allocation3 + $0x8] sm:$0x7f]
        %v6862 = vld [vmem:[#allocation3 + $0x10] sm:$0xff]
        %v6863 = vld [vmem:[#allocation3 + $0x18] sm:$0x7f]
        %v6864 = vld [vmem:[#allocation3 + $0x20] sm:$0xff]
        %v6865 = vld [vmem:[#allocation3 + $0x28] sm:$0x7f]
        %v6866 = vld [vmem:[#allocation3 + $0x30] sm:$0xff]
        %v6867 = vld [vmem:[#allocation3 + $0x38] sm:$0x7f]
        %v6868 = vld [vmem:[#allocation3 + $0x40] sm:$0xff]
        %v6869 = vld [vmem:[#allocation3 + $0x48] sm:$0x7f]
        %v6870 = vld [vmem:[#allocation3 + $0x50] sm:$0xff]
        %v6871 = vld [vmem:[#allocation3 + $0x58] sm:$0x7f]
        %v6872 = vld [vmem:[#allocation3 + $0x60] sm:$0xff]
        %v6873 = vld [vmem:[#allocation3 + $0x68] sm:$0x7f]
        %v6874 = vld [vmem:[#allocation3 + $0x70] sm:$0xff]
        %v6875 = vld [vmem:[#allocation3 + $0x78] sm:$0x7f]
        %v6876 = vld [vmem:[#allocation3 + $0x80] sm:$0xff]
        %v6877 = vld [vmem:[#allocation3 + $0x88] sm:$0x7f]
        %v6878 = vld [vmem:[#allocation3 + $0x90] sm:$0xff]
        %v6879 = vld [vmem:[#allocation3 + $0x98] sm:$0x7f]
        %v6880 = vld [vmem:[#allocation3 + $0xa0] sm:$0xff]
        %v6881 = vld [vmem:[#allocation3 + $0xa8] sm:$0x7f]
        %v6882 = vld [vmem:[#allocation3 + $0xb0] sm:$0xff]
        %v6883 = vld [vmem:[#allocation3 + $0xb8] sm:$0x7f]
        %v6884 = vld [vmem:[#allocation3 + $0xc0] sm:$0xff]
        %v6885 = vld [vmem:[#allocation3 + $0xc8] sm:$0x7f]
        %v6886 = vld [vmem:[#allocation3 + $0xd0] sm:$0xff]
        %v6887 = vld [vmem:[#allocation3 + $0xd8] sm:$0x7f]
        %v6888 = vld [vmem:[#allocation3 + $0xe0] sm:$0xff]
        %v6889 = vld [vmem:[#allocation3 + $0xe8] sm:$0x7f]
        %v6890 = vld [vmem:[#allocation3 + $0xf0] sm:$0xff]
        %v6891 = vld [vmem:[#allocation3 + $0xf8] sm:$0x7f]
        %v6892 = vrot.slane %v5936, 1
        %v6893 = vrot.slane %v5938, 1
        %v6894 = vsel %vm4498, %v6892, %v6893
        %6895 = vrot.lane.b32.xlu0 %v6473, 88
        %v6896 = vpop.permute.xlu0 %6895
        %6897 = vrot.lane.b32.xlu0 %v6472, 88
        %v6898 = vpop.permute.xlu0 %6897
        %6899 = vrot.lane.b32.xlu0 %v6476, 88
        %v6900 = vpop.permute.xlu0 %6899
        %6901 = vrot.lane.b32.xlu0 %v6475, 88
        %v6902 = vpop.permute.xlu0 %6901
        %6903 = vrot.lane.b32.xlu0 %v6479, 88
        %v6904 = vpop.permute.xlu0 %6903
        %6905 = vrot.lane.b32.xlu0 %v6478, 88
        %v6906 = vpop.permute.xlu0 %6905
        %6907 = vrot.lane.b32.xlu0 %v6482, 88
        %v6908 = vpop.permute.xlu0 %6907
        %6909 = vrot.lane.b32.xlu0 %v6481, 88
        %v6910 = vpop.permute.xlu0 %6909
        %6911 = vrot.lane.b32.xlu0 %v6485, 88
        %v6912 = vpop.permute.xlu0 %6911
        %6913 = vrot.lane.b32.xlu0 %v6484, 88
        %v6914 = vpop.permute.xlu0 %6913
        %6915 = vrot.lane.b32.xlu0 %v6488, 88
        %v6916 = vpop.permute.xlu0 %6915
        %6917 = vrot.lane.b32.xlu0 %v6487, 88
        %v6918 = vpop.permute.xlu0 %6917
        %6919 = vrot.lane.b32.xlu0 %v6491, 88
        %v6920 = vpop.permute.xlu0 %6919
        %6921 = vrot.lane.b32.xlu0 %v6490, 88
        %v6922 = vpop.permute.xlu0 %6921
        %6923 = vrot.lane.b32.xlu0 %v6494, 88
        %v6924 = vpop.permute.xlu0 %6923
        %6925 = vrot.lane.b32.xlu0 %v6493, 88
        %v6926 = vpop.permute.xlu0 %6925
        %6927 = vrot.lane.b32.xlu0 %v6497, 88
        %v6928 = vpop.permute.xlu0 %6927
        %6929 = vrot.lane.b32.xlu0 %v6496, 88
        %v6930 = vpop.permute.xlu0 %6929
        %6931 = vrot.lane.b32.xlu0 %v6500, 88
        %v6932 = vpop.permute.xlu0 %6931
        %6933 = vrot.lane.b32.xlu0 %v6499, 88
        %v6934 = vpop.permute.xlu0 %6933
        %6935 = vrot.lane.b32.xlu0 %v6503, 88
        %v6936 = vpop.permute.xlu0 %6935
        %6937 = vrot.lane.b32.xlu0 %v6502, 88
        %v6938 = vpop.permute.xlu0 %6937
        %6939 = vrot.lane.b32.xlu0 %v6506, 88
        %v6940 = vpop.permute.xlu0 %6939
        %6941 = vrot.lane.b32.xlu0 %v6505, 88
        %v6942 = vpop.permute.xlu0 %6941
        %6943 = vrot.lane.b32.xlu0 %v6509, 88
        %v6944 = vpop.permute.xlu0 %6943
        %6945 = vrot.lane.b32.xlu0 %v6508, 88
        %v6946 = vpop.permute.xlu0 %6945
        %6947 = vrot.lane.b32.xlu0 %v6512, 88
        %v6948 = vpop.permute.xlu0 %6947
        %6949 = vrot.lane.b32.xlu0 %v6511, 88
        %v6950 = vpop.permute.xlu0 %6949
        %6951 = vrot.lane.b32.xlu0 %v6515, 88
        %v6952 = vpop.permute.xlu0 %6951
        %6953 = vrot.lane.b32.xlu0 %v6514, 88
        %v6954 = vpop.permute.xlu0 %6953
        %6955 = vrot.lane.b32.xlu0 %v6894, 88
        %v6956 = vpop.permute.xlu0 %6955
        %6957 = vrot.lane.b32.xlu0 %v6893, 88
        %v6958 = vpop.permute.xlu0 %6957
        %v6991 = vadd.f32 %v6860, %v6896
        %v6992 = vadd.f32 %v6861, %v6898
        %v6993 = vadd.f32 %v6862, %v6900
        %v6994 = vadd.f32 %v6863, %v6902
        %v6995 = vadd.f32 %v6864, %v6904
        %v6996 = vadd.f32 %v6865, %v6906
        %v6997 = vadd.f32 %v6866, %v6908
        %v6998 = vadd.f32 %v6867, %v6910
        %v6999 = vadd.f32 %v6868, %v6912
        %v7000 = vadd.f32 %v6869, %v6914
        %v7001 = vadd.f32 %v6870, %v6916
        %v7002 = vadd.f32 %v6871, %v6918
        %v7003 = vadd.f32 %v6872, %v6920
        %v7004 = vadd.f32 %v6873, %v6922
        %v7005 = vadd.f32 %v6874, %v6924
        %v7006 = vadd.f32 %v6875, %v6926
        %v7007 = vadd.f32 %v6876, %v6928
        %v7008 = vadd.f32 %v6877, %v6930
        %v7009 = vadd.f32 %v6878, %v6932
        %v7010 = vadd.f32 %v6879, %v6934
        %v7011 = vadd.f32 %v6880, %v6936
        %v7012 = vadd.f32 %v6881, %v6938
        %v7013 = vadd.f32 %v6882, %v6940
        %v7014 = vadd.f32 %v6883, %v6942
        %v7015 = vadd.f32 %v6884, %v6944
        %v7016 = vadd.f32 %v6885, %v6946
        %v7017 = vadd.f32 %v6886, %v6948
        %v7018 = vadd.f32 %v6887, %v6950
        %v7019 = vadd.f32 %v6888, %v6952
        %v7020 = vadd.f32 %v6889, %v6954
        %v7021 = vadd.f32 %v6890, %v6956
        %v7022 = vadd.f32 %v6891, %v6958
        %7023 = vst.msk [vmem:[#allocation3] sm:$0xff] %vm6106, %v6991
        %7024 = vst.msk [vmem:[#allocation3 + $0x8] sm:$0x7f] %vm6201, %v6992
        %7025 = vst.msk [vmem:[#allocation3 + $0x10] sm:$0xff] %vm6106, %v6993
        %7026 = vst.msk [vmem:[#allocation3 + $0x18] sm:$0x7f] %vm6201, %v6994
        %7027 = vst.msk [vmem:[#allocation3 + $0x20] sm:$0xff] %vm6106, %v6995
        %7028 = vst.msk [vmem:[#allocation3 + $0x28] sm:$0x7f] %vm6201, %v6996
        %7029 = vst.msk [vmem:[#allocation3 + $0x30] sm:$0xff] %vm6106, %v6997
        %7030 = vst.msk [vmem:[#allocation3 + $0x38] sm:$0x7f] %vm6201, %v6998
        %7031 = vst.msk [vmem:[#allocation3 + $0x40] sm:$0xff] %vm6106, %v6999
        %7032 = vst.msk [vmem:[#allocation3 + $0x48] sm:$0x7f] %vm6201, %v7000
        %7033 = vst.msk [vmem:[#allocation3 + $0x50] sm:$0xff] %vm6106, %v7001
        %7034 = vst.msk [vmem:[#allocation3 + $0x58] sm:$0x7f] %vm6201, %v7002
        %7035 = vst.msk [vmem:[#allocation3 + $0x60] sm:$0xff] %vm6106, %v7003
        %7036 = vst.msk [vmem:[#allocation3 + $0x68] sm:$0x7f] %vm6201, %v7004
        %7037 = vst.msk [vmem:[#allocation3 + $0x70] sm:$0xff] %vm6106, %v7005
        %7038 = vst.msk [vmem:[#allocation3 + $0x78] sm:$0x7f] %vm6201, %v7006
        %7039 = vst.msk [vmem:[#allocation3 + $0x80] sm:$0xff] %vm6106, %v7007
        %7040 = vst.msk [vmem:[#allocation3 + $0x88] sm:$0x7f] %vm6201, %v7008
        %7041 = vst.msk [vmem:[#allocation3 + $0x90] sm:$0xff] %vm6106, %v7009
        %7042 = vst.msk [vmem:[#allocation3 + $0x98] sm:$0x7f] %vm6201, %v7010
        %7043 = vst.msk [vmem:[#allocation3 + $0xa0] sm:$0xff] %vm6106, %v7011
        %7044 = vst.msk [vmem:[#allocation3 + $0xa8] sm:$0x7f] %vm6201, %v7012
        %7045 = vst.msk [vmem:[#allocation3 + $0xb0] sm:$0xff] %vm6106, %v7013
        %7046 = vst.msk [vmem:[#allocation3 + $0xb8] sm:$0x7f] %vm6201, %v7014
        %7047 = vst.msk [vmem:[#allocation3 + $0xc0] sm:$0xff] %vm6106, %v7015
        %7048 = vst.msk [vmem:[#allocation3 + $0xc8] sm:$0x7f] %vm6201, %v7016
        %7049 = vst.msk [vmem:[#allocation3 + $0xd0] sm:$0xff] %vm6106, %v7017
        %7050 = vst.msk [vmem:[#allocation3 + $0xd8] sm:$0x7f] %vm6201, %v7018
        %7051 = vst.msk [vmem:[#allocation3 + $0xe0] sm:$0xff] %vm6106, %v7019
        %7052 = vst.msk [vmem:[#allocation3 + $0xe8] sm:$0x7f] %vm6201, %v7020
        %7053 = vst.msk [vmem:[#allocation3 + $0xf0] sm:$0xff] %vm6106, %v7021
        %7054 = vst.msk [vmem:[#allocation3 + $0xf8] sm:$0x7f] %vm6201, %v7022
        %v7055 = vld [vmem:[#allocation3 + $0x1] sm:$0xff]
        %v7056 = vld [vmem:[#allocation3 + $0x9] sm:$0x7f]
        %v7057 = vld [vmem:[#allocation3 + $0x11] sm:$0xff]
        %v7058 = vld [vmem:[#allocation3 + $0x19] sm:$0x7f]
        %v7059 = vld [vmem:[#allocation3 + $0x21] sm:$0xff]
        %v7060 = vld [vmem:[#allocation3 + $0x29] sm:$0x7f]
        %v7061 = vld [vmem:[#allocation3 + $0x31] sm:$0xff]
        %v7062 = vld [vmem:[#allocation3 + $0x39] sm:$0x7f]
        %v7063 = vld [vmem:[#allocation3 + $0x41] sm:$0xff]
        %v7064 = vld [vmem:[#allocation3 + $0x49] sm:$0x7f]
        %v7065 = vld [vmem:[#allocation3 + $0x51] sm:$0xff]
        %v7066 = vld [vmem:[#allocation3 + $0x59] sm:$0x7f]
        %v7067 = vld [vmem:[#allocation3 + $0x61] sm:$0xff]
        %v7068 = vld [vmem:[#allocation3 + $0x69] sm:$0x7f]
        %v7069 = vld [vmem:[#allocation3 + $0x71] sm:$0xff]
        %v7070 = vld [vmem:[#allocation3 + $0x79] sm:$0x7f]
        %v7071 = vld [vmem:[#allocation3 + $0x81] sm:$0xff]
        %v7072 = vld [vmem:[#allocation3 + $0x89] sm:$0x7f]
        %v7073 = vld [vmem:[#allocation3 + $0x91] sm:$0xff]
        %v7074 = vld [vmem:[#allocation3 + $0x99] sm:$0x7f]
        %v7075 = vld [vmem:[#allocation3 + $0xa1] sm:$0xff]
        %v7076 = vld [vmem:[#allocation3 + $0xa9] sm:$0x7f]
        %v7077 = vld [vmem:[#allocation3 + $0xb1] sm:$0xff]
        %v7078 = vld [vmem:[#allocation3 + $0xb9] sm:$0x7f]
        %v7079 = vld [vmem:[#allocation3 + $0xc1] sm:$0xff]
        %v7080 = vld [vmem:[#allocation3 + $0xc9] sm:$0x7f]
        %v7081 = vld [vmem:[#allocation3 + $0xd1] sm:$0xff]
        %v7082 = vld [vmem:[#allocation3 + $0xd9] sm:$0x7f]
        %v7083 = vld [vmem:[#allocation3 + $0xe1] sm:$0xff]
        %v7084 = vld [vmem:[#allocation3 + $0xe9] sm:$0x7f]
        %7085 = vrot.lane.b32.xlu0 %v5866, 80
        %v7086 = vpop.permute.xlu0 %7085
        %7087 = vrot.lane.b32.xlu0 %v5868, 80
        %v7088 = vpop.permute.xlu0 %7087
        %7089 = vrot.lane.b32.xlu0 %v5871, 80
        %v7090 = vpop.permute.xlu0 %7089
        %7091 = vrot.lane.b32.xlu0 %v5873, 80
        %v7092 = vpop.permute.xlu0 %7091
        %7093 = vrot.lane.b32.xlu0 %v5876, 80
        %v7094 = vpop.permute.xlu0 %7093
        %7095 = vrot.lane.b32.xlu0 %v5878, 80
        %v7096 = vpop.permute.xlu0 %7095
        %7097 = vrot.lane.b32.xlu0 %v5881, 80
        %v7098 = vpop.permute.xlu0 %7097
        %7099 = vrot.lane.b32.xlu0 %v5883, 80
        %v7100 = vpop.permute.xlu0 %7099
        %7101 = vrot.lane.b32.xlu0 %v5886, 80
        %v7102 = vpop.permute.xlu0 %7101
        %7103 = vrot.lane.b32.xlu0 %v5888, 80
        %v7104 = vpop.permute.xlu0 %7103
        %7105 = vrot.lane.b32.xlu0 %v5891, 80
        %v7106 = vpop.permute.xlu0 %7105
        %7107 = vrot.lane.b32.xlu0 %v5893, 80
        %v7108 = vpop.permute.xlu0 %7107
        %7109 = vrot.lane.b32.xlu0 %v5896, 80
        %v7110 = vpop.permute.xlu0 %7109
        %7111 = vrot.lane.b32.xlu0 %v5898, 80
        %v7112 = vpop.permute.xlu0 %7111
        %7113 = vrot.lane.b32.xlu0 %v5901, 80
        %v7114 = vpop.permute.xlu0 %7113
        %7115 = vrot.lane.b32.xlu0 %v5903, 80
        %v7116 = vpop.permute.xlu0 %7115
        %7117 = vrot.lane.b32.xlu0 %v5906, 80
        %v7118 = vpop.permute.xlu0 %7117
        %7119 = vrot.lane.b32.xlu0 %v5908, 80
        %v7120 = vpop.permute.xlu0 %7119
        %7121 = vrot.lane.b32.xlu0 %v5911, 80
        %v7122 = vpop.permute.xlu0 %7121
        %7123 = vrot.lane.b32.xlu0 %v5913, 80
        %v7124 = vpop.permute.xlu0 %7123
        %7125 = vrot.lane.b32.xlu0 %v5916, 80
        %v7126 = vpop.permute.xlu0 %7125
        %7127 = vrot.lane.b32.xlu0 %v5918, 80
        %v7128 = vpop.permute.xlu0 %7127
        %7129 = vrot.lane.b32.xlu0 %v5921, 80
        %v7130 = vpop.permute.xlu0 %7129
        %7131 = vrot.lane.b32.xlu0 %v5923, 80
        %v7132 = vpop.permute.xlu0 %7131
        %7133 = vrot.lane.b32.xlu0 %v5926, 80
        %v7134 = vpop.permute.xlu0 %7133
        %7135 = vrot.lane.b32.xlu0 %v5928, 80
        %v7136 = vpop.permute.xlu0 %7135
        %7137 = vrot.lane.b32.xlu0 %v5931, 80
        %v7138 = vpop.permute.xlu0 %7137
        %7139 = vrot.lane.b32.xlu0 %v5933, 80
        %v7140 = vpop.permute.xlu0 %7139
        %7141 = vrot.lane.b32.xlu0 %v5936, 80
        %v7142 = vpop.permute.xlu0 %7141
        %7143 = vrot.lane.b32.xlu0 %v5938, 80
        %v7144 = vpop.permute.xlu0 %7143
        %v7175 = vadd.f32 %v7055, %v7086
        %v7176 = vadd.f32 %v7056, %v7088
        %v7177 = vadd.f32 %v7057, %v7090
        %v7178 = vadd.f32 %v7058, %v7092
        %v7179 = vadd.f32 %v7059, %v7094
        %v7180 = vadd.f32 %v7060, %v7096
        %v7181 = vadd.f32 %v7061, %v7098
        %v7182 = vadd.f32 %v7062, %v7100
        %v7183 = vadd.f32 %v7063, %v7102
        %v7184 = vadd.f32 %v7064, %v7104
        %v7185 = vadd.f32 %v7065, %v7106
        %v7186 = vadd.f32 %v7066, %v7108
        %v7187 = vadd.f32 %v7067, %v7110
        %v7188 = vadd.f32 %v7068, %v7112
        %v7189 = vadd.f32 %v7069, %v7114
        %v7190 = vadd.f32 %v7070, %v7116
        %v7191 = vadd.f32 %v7071, %v7118
        %v7192 = vadd.f32 %v7072, %v7120
        %v7193 = vadd.f32 %v7073, %v7122
        %v7194 = vadd.f32 %v7074, %v7124
        %v7195 = vadd.f32 %v7075, %v7126
        %v7196 = vadd.f32 %v7076, %v7128
        %v7197 = vadd.f32 %v7077, %v7130
        %v7198 = vadd.f32 %v7078, %v7132
        %v7199 = vadd.f32 %v7079, %v7134
        %v7200 = vadd.f32 %v7080, %v7136
        %v7201 = vadd.f32 %v7081, %v7138
        %v7202 = vadd.f32 %v7082, %v7140
        %v7203 = vadd.f32 %v7083, %v7142
        %v7204 = vadd.f32 %v7084, %v7144
        %7205 = vst.msk [vmem:[#allocation3 + $0x1] sm:$0xff] %vm6106, %v7175
        %7206 = vst.msk [vmem:[#allocation3 + $0x9] sm:$0x7f] %vm6201, %v7176
        %7207 = vst.msk [vmem:[#allocation3 + $0x11] sm:$0xff] %vm6106, %v7177
        %7208 = vst.msk [vmem:[#allocation3 + $0x19] sm:$0x7f] %vm6201, %v7178
        %7209 = vst.msk [vmem:[#allocation3 + $0x21] sm:$0xff] %vm6106, %v7179
        %7210 = vst.msk [vmem:[#allocation3 + $0x29] sm:$0x7f] %vm6201, %v7180
        %7211 = vst.msk [vmem:[#allocation3 + $0x31] sm:$0xff] %vm6106, %v7181
        %7212 = vst.msk [vmem:[#allocation3 + $0x39] sm:$0x7f] %vm6201, %v7182
        %7213 = vst.msk [vmem:[#allocation3 + $0x41] sm:$0xff] %vm6106, %v7183
        %7214 = vst.msk [vmem:[#allocation3 + $0x49] sm:$0x7f] %vm6201, %v7184
        %7215 = vst.msk [vmem:[#allocation3 + $0x51] sm:$0xff] %vm6106, %v7185
        %7216 = vst.msk [vmem:[#allocation3 + $0x59] sm:$0x7f] %vm6201, %v7186
        %7217 = vst.msk [vmem:[#allocation3 + $0x61] sm:$0xff] %vm6106, %v7187
        %7218 = vst.msk [vmem:[#allocation3 + $0x69] sm:$0x7f] %vm6201, %v7188
        %7219 = vst.msk [vmem:[#allocation3 + $0x71] sm:$0xff] %vm6106, %v7189
        %7220 = vst.msk [vmem:[#allocation3 + $0x79] sm:$0x7f] %vm6201, %v7190
        %7221 = vst.msk [vmem:[#allocation3 + $0x81] sm:$0xff] %vm6106, %v7191
        %7222 = vst.msk [vmem:[#allocation3 + $0x89] sm:$0x7f] %vm6201, %v7192
        %7223 = vst.msk [vmem:[#allocation3 + $0x91] sm:$0xff] %vm6106, %v7193
        %7224 = vst.msk [vmem:[#allocation3 + $0x99] sm:$0x7f] %vm6201, %v7194
        %7225 = vst.msk [vmem:[#allocation3 + $0xa1] sm:$0xff] %vm6106, %v7195
        %7226 = vst.msk [vmem:[#allocation3 + $0xa9] sm:$0x7f] %vm6201, %v7196
        %7227 = vst.msk [vmem:[#allocation3 + $0xb1] sm:$0xff] %vm6106, %v7197
        %7228 = vst.msk [vmem:[#allocation3 + $0xb9] sm:$0x7f] %vm6201, %v7198
        %7229 = vst.msk [vmem:[#allocation3 + $0xc1] sm:$0xff] %vm6106, %v7199
        %7230 = vst.msk [vmem:[#allocation3 + $0xc9] sm:$0x7f] %vm6201, %v7200
        %7231 = vst.msk [vmem:[#allocation3 + $0xd1] sm:$0xff] %vm6106, %v7201
        %7232 = vst.msk [vmem:[#allocation3 + $0xd9] sm:$0x7f] %vm6201, %v7202
        %7233 = vst.msk [vmem:[#allocation3 + $0xe1] sm:$0xff] %vm6106, %v7203
        %7234 = vst.msk [vmem:[#allocation3 + $0xe9] sm:$0x7f] %vm6201, %v7204
        %v7235 = vld [vmem:[#allocation3] sm:$0xff]
        %v7236 = vld [vmem:[#allocation3 + $0x8] sm:$0xff]
        %v7237 = vld [vmem:[#allocation3 + $0x10] sm:$0xff]
        %v7238 = vld [vmem:[#allocation3 + $0x18] sm:$0xff]
        %v7239 = vld [vmem:[#allocation3 + $0x20] sm:$0xff]
        %v7240 = vld [vmem:[#allocation3 + $0x28] sm:$0xff]
        %v7241 = vld [vmem:[#allocation3 + $0x30] sm:$0xff]
        %v7242 = vld [vmem:[#allocation3 + $0x38] sm:$0xff]
        %v7243 = vld [vmem:[#allocation3 + $0x40] sm:$0xff]
        %v7244 = vld [vmem:[#allocation3 + $0x48] sm:$0xff]
        %v7245 = vld [vmem:[#allocation3 + $0x50] sm:$0xff]
        %v7246 = vld [vmem:[#allocation3 + $0x58] sm:$0xff]
        %v7247 = vld [vmem:[#allocation3 + $0x60] sm:$0xff]
        %v7248 = vld [vmem:[#allocation3 + $0x68] sm:$0xff]
        %v7249 = vld [vmem:[#allocation3 + $0x70] sm:$0xff]
        %v7250 = vld [vmem:[#allocation3 + $0x78] sm:$0xff]
        %v7251 = vld [vmem:[#allocation3 + $0x80] sm:$0xff]
        %v7252 = vld [vmem:[#allocation3 + $0x88] sm:$0xff]
        %v7253 = vld [vmem:[#allocation3 + $0x90] sm:$0xff]
        %v7254 = vld [vmem:[#allocation3 + $0x98] sm:$0xff]
        %v7255 = vld [vmem:[#allocation3 + $0xa0] sm:$0xff]
        %v7256 = vld [vmem:[#allocation3 + $0xa8] sm:$0xff]
        %v7257 = vld [vmem:[#allocation3 + $0xb0] sm:$0xff]
        %v7258 = vld [vmem:[#allocation3 + $0xb8] sm:$0xff]
        %v7259 = vld [vmem:[#allocation3 + $0xc0] sm:$0xff]
        %v7260 = vld [vmem:[#allocation3 + $0xc8] sm:$0xff]
        %v7261 = vld [vmem:[#allocation3 + $0xd0] sm:$0xff]
        %v7262 = vld [vmem:[#allocation3 + $0xd8] sm:$0xff]
        %v7263 = vld [vmem:[#allocation3 + $0xe0] sm:$0xff]
        %v7264 = vld [vmem:[#allocation3 + $0xe8] sm:$0xff]
        %7265 = vrot.lane.b32.xlu0 %v5866, 72
        %v7266 = vpop.permute.xlu0 %7265
        %7267 = vrot.lane.b32.xlu0 %v5868, 72
        %v7268 = vpop.permute.xlu0 %7267
        %7269 = vrot.lane.b32.xlu0 %v5871, 72
        %v7270 = vpop.permute.xlu0 %7269
        %7271 = vrot.lane.b32.xlu0 %v5873, 72
        %v7272 = vpop.permute.xlu0 %7271
        %7273 = vrot.lane.b32.xlu0 %v5876, 72
        %v7274 = vpop.permute.xlu0 %7273
        %7275 = vrot.lane.b32.xlu0 %v5878, 72
        %v7276 = vpop.permute.xlu0 %7275
        %7277 = vrot.lane.b32.xlu0 %v5881, 72
        %v7278 = vpop.permute.xlu0 %7277
        %7279 = vrot.lane.b32.xlu0 %v5883, 72
        %v7280 = vpop.permute.xlu0 %7279
        %7281 = vrot.lane.b32.xlu0 %v5886, 72
        %v7282 = vpop.permute.xlu0 %7281
        %7283 = vrot.lane.b32.xlu0 %v5888, 72
        %v7284 = vpop.permute.xlu0 %7283
        %7285 = vrot.lane.b32.xlu0 %v5891, 72
        %v7286 = vpop.permute.xlu0 %7285
        %7287 = vrot.lane.b32.xlu0 %v5893, 72
        %v7288 = vpop.permute.xlu0 %7287
        %7289 = vrot.lane.b32.xlu0 %v5896, 72
        %v7290 = vpop.permute.xlu0 %7289
        %7291 = vrot.lane.b32.xlu0 %v5898, 72
        %v7292 = vpop.permute.xlu0 %7291
        %7293 = vrot.lane.b32.xlu0 %v5901, 72
        %v7294 = vpop.permute.xlu0 %7293
        %7295 = vrot.lane.b32.xlu0 %v5903, 72
        %v7296 = vpop.permute.xlu0 %7295
        %7297 = vrot.lane.b32.xlu0 %v5906, 72
        %v7298 = vpop.permute.xlu0 %7297
        %7299 = vrot.lane.b32.xlu0 %v5908, 72
        %v7300 = vpop.permute.xlu0 %7299
        %7301 = vrot.lane.b32.xlu0 %v5911, 72
        %v7302 = vpop.permute.xlu0 %7301
        %7303 = vrot.lane.b32.xlu0 %v5913, 72
        %v7304 = vpop.permute.xlu0 %7303
        %7305 = vrot.lane.b32.xlu0 %v5916, 72
        %v7306 = vpop.permute.xlu0 %7305
        %7307 = vrot.lane.b32.xlu0 %v5918, 72
        %v7308 = vpop.permute.xlu0 %7307
        %7309 = vrot.lane.b32.xlu0 %v5921, 72
        %v7310 = vpop.permute.xlu0 %7309
        %7311 = vrot.lane.b32.xlu0 %v5923, 72
        %v7312 = vpop.permute.xlu0 %7311
        %7313 = vrot.lane.b32.xlu0 %v5926, 72
        %v7314 = vpop.permute.xlu0 %7313
        %7315 = vrot.lane.b32.xlu0 %v5928, 72
        %v7316 = vpop.permute.xlu0 %7315
        %7317 = vrot.lane.b32.xlu0 %v5931, 72
        %v7318 = vpop.permute.xlu0 %7317
        %7319 = vrot.lane.b32.xlu0 %v5933, 72
        %v7320 = vpop.permute.xlu0 %7319
        %7321 = vrot.lane.b32.xlu0 %v5936, 72
        %v7322 = vpop.permute.xlu0 %7321
        %7323 = vrot.lane.b32.xlu0 %v5938, 72
        %v7324 = vpop.permute.xlu0 %7323
        %v7355 = vadd.f32 %v7235, %v7266
        %v7356 = vadd.f32 %v7236, %v7268
        %v7357 = vadd.f32 %v7237, %v7270
        %v7358 = vadd.f32 %v7238, %v7272
        %v7359 = vadd.f32 %v7239, %v7274
        %v7360 = vadd.f32 %v7240, %v7276
        %v7361 = vadd.f32 %v7241, %v7278
        %v7362 = vadd.f32 %v7242, %v7280
        %v7363 = vadd.f32 %v7243, %v7282
        %v7364 = vadd.f32 %v7244, %v7284
        %v7365 = vadd.f32 %v7245, %v7286
        %v7366 = vadd.f32 %v7246, %v7288
        %v7367 = vadd.f32 %v7247, %v7290
        %v7368 = vadd.f32 %v7248, %v7292
        %v7369 = vadd.f32 %v7249, %v7294
        %v7370 = vadd.f32 %v7250, %v7296
        %v7371 = vadd.f32 %v7251, %v7298
        %v7372 = vadd.f32 %v7252, %v7300
        %v7373 = vadd.f32 %v7253, %v7302
        %v7374 = vadd.f32 %v7254, %v7304
        %v7375 = vadd.f32 %v7255, %v7306
        %v7376 = vadd.f32 %v7256, %v7308
        %v7377 = vadd.f32 %v7257, %v7310
        %v7378 = vadd.f32 %v7258, %v7312
        %v7379 = vadd.f32 %v7259, %v7314
        %v7380 = vadd.f32 %v7260, %v7316
        %v7381 = vadd.f32 %v7261, %v7318
        %v7382 = vadd.f32 %v7262, %v7320
        %v7383 = vadd.f32 %v7263, %v7322
        %v7384 = vadd.f32 %v7264, %v7324
        %7385 = vst.msk [vmem:[#allocation3] sm:$0xff] %vm6106, %v7355
        %7386 = vst.msk [vmem:[#allocation3 + $0x8] sm:$0xff] %vm6106, %v7356
        %7387 = vst.msk [vmem:[#allocation3 + $0x10] sm:$0xff] %vm6106, %v7357
        %7388 = vst.msk [vmem:[#allocation3 + $0x18] sm:$0xff] %vm6106, %v7358
        %7389 = vst.msk [vmem:[#allocation3 + $0x20] sm:$0xff] %vm6106, %v7359
        %7390 = vst.msk [vmem:[#allocation3 + $0x28] sm:$0xff] %vm6106, %v7360
        %7391 = vst.msk [vmem:[#allocation3 + $0x30] sm:$0xff] %vm6106, %v7361
        %7392 = vst.msk [vmem:[#allocation3 + $0x38] sm:$0xff] %vm6106, %v7362
        %7393 = vst.msk [vmem:[#allocation3 + $0x40] sm:$0xff] %vm6106, %v7363
        %7394 = vst.msk [vmem:[#allocation3 + $0x48] sm:$0xff] %vm6106, %v7364
        %7395 = vst.msk [vmem:[#allocation3 + $0x50] sm:$0xff] %vm6106, %v7365
        %7396 = vst.msk [vmem:[#allocation3 + $0x58] sm:$0xff] %vm6106, %v7366
        %7397 = vst.msk [vmem:[#allocation3 + $0x60] sm:$0xff] %vm6106, %v7367
        %7398 = vst.msk [vmem:[#allocation3 + $0x68] sm:$0xff] %vm6106, %v7368
        %7399 = vst.msk [vmem:[#allocation3 + $0x70] sm:$0xff] %vm6106, %v7369
        %7400 = vst.msk [vmem:[#allocation3 + $0x78] sm:$0xff] %vm6106, %v7370
        %7401 = vst.msk [vmem:[#allocation3 + $0x80] sm:$0xff] %vm6106, %v7371
        %7402 = vst.msk [vmem:[#allocation3 + $0x88] sm:$0xff] %vm6106, %v7372
        %7403 = vst.msk [vmem:[#allocation3 + $0x90] sm:$0xff] %vm6106, %v7373
        %7404 = vst.msk [vmem:[#allocation3 + $0x98] sm:$0xff] %vm6106, %v7374
        %7405 = vst.msk [vmem:[#allocation3 + $0xa0] sm:$0xff] %vm6106, %v7375
        %7406 = vst.msk [vmem:[#allocation3 + $0xa8] sm:$0xff] %vm6106, %v7376
        %7407 = vst.msk [vmem:[#allocation3 + $0xb0] sm:$0xff] %vm6106, %v7377
        %7408 = vst.msk [vmem:[#allocation3 + $0xb8] sm:$0xff] %vm6106, %v7378
        %7409 = vst.msk [vmem:[#allocation3 + $0xc0] sm:$0xff] %vm6106, %v7379
        %7410 = vst.msk [vmem:[#allocation3 + $0xc8] sm:$0xff] %vm6106, %v7380
        %7411 = vst.msk [vmem:[#allocation3 + $0xd0] sm:$0xff] %vm6106, %v7381
        %7412 = vst.msk [vmem:[#allocation3 + $0xd8] sm:$0xff] %vm6106, %v7382
        %7413 = vst.msk [vmem:[#allocation3 + $0xe0] sm:$0xff] %vm6106, %v7383
        %7414 = vst.msk [vmem:[#allocation3 + $0xe8] sm:$0xff] %vm6106, %v7384
        %v7415 = vld [vmem:[#allocation3] sm:$0xff]
        %v7416 = vld [vmem:[#allocation3 + $0x8] sm:$0x7f]
        %v7417 = vld [vmem:[#allocation3 + $0x10] sm:$0xff]
        %v7418 = vld [vmem:[#allocation3 + $0x18] sm:$0x7f]
        %v7419 = vld [vmem:[#allocation3 + $0x20] sm:$0xff]
        %v7420 = vld [vmem:[#allocation3 + $0x28] sm:$0x7f]
        %v7421 = vld [vmem:[#allocation3 + $0x30] sm:$0xff]
        %v7422 = vld [vmem:[#allocation3 + $0x38] sm:$0x7f]
        %v7423 = vld [vmem:[#allocation3 + $0x40] sm:$0xff]
        %v7424 = vld [vmem:[#allocation3 + $0x48] sm:$0x7f]
        %v7425 = vld [vmem:[#allocation3 + $0x50] sm:$0xff]
        %v7426 = vld [vmem:[#allocation3 + $0x58] sm:$0x7f]
        %v7427 = vld [vmem:[#allocation3 + $0x60] sm:$0xff]
        %v7428 = vld [vmem:[#allocation3 + $0x68] sm:$0x7f]
        %v7429 = vld [vmem:[#allocation3 + $0x70] sm:$0xff]
        %v7430 = vld [vmem:[#allocation3 + $0x78] sm:$0x7f]
        %v7431 = vld [vmem:[#allocation3 + $0x80] sm:$0xff]
        %v7432 = vld [vmem:[#allocation3 + $0x88] sm:$0x7f]
        %v7433 = vld [vmem:[#allocation3 + $0x90] sm:$0xff]
        %v7434 = vld [vmem:[#allocation3 + $0x98] sm:$0x7f]
        %v7435 = vld [vmem:[#allocation3 + $0xa0] sm:$0xff]
        %v7436 = vld [vmem:[#allocation3 + $0xa8] sm:$0x7f]
        %v7437 = vld [vmem:[#allocation3 + $0xb0] sm:$0xff]
        %v7438 = vld [vmem:[#allocation3 + $0xb8] sm:$0x7f]
        %v7439 = vld [vmem:[#allocation3 + $0xc0] sm:$0xff]
        %v7440 = vld [vmem:[#allocation3 + $0xc8] sm:$0x7f]
        %v7441 = vld [vmem:[#allocation3 + $0xd0] sm:$0xff]
        %v7442 = vld [vmem:[#allocation3 + $0xd8] sm:$0x7f]
        %v7443 = vld [vmem:[#allocation3 + $0xe0] sm:$0xff]
        %v7444 = vld [vmem:[#allocation3 + $0xe8] sm:$0x7f]
        %7445 = vrot.lane.b32.xlu0 %v6476, 64
        %v7446 = vpop.permute.xlu0 %7445
        %7447 = vrot.lane.b32.xlu0 %v6475, 64
        %v7448 = vpop.permute.xlu0 %7447
        %7449 = vrot.lane.b32.xlu0 %v6479, 64
        %v7450 = vpop.permute.xlu0 %7449
        %7451 = vrot.lane.b32.xlu0 %v6478, 64
        %v7452 = vpop.permute.xlu0 %7451
        %7453 = vrot.lane.b32.xlu0 %v6482, 64
        %v7454 = vpop.permute.xlu0 %7453
        %7455 = vrot.lane.b32.xlu0 %v6481, 64
        %v7456 = vpop.permute.xlu0 %7455
        %7457 = vrot.lane.b32.xlu0 %v6485, 64
        %v7458 = vpop.permute.xlu0 %7457
        %7459 = vrot.lane.b32.xlu0 %v6484, 64
        %v7460 = vpop.permute.xlu0 %7459
        %7461 = vrot.lane.b32.xlu0 %v6488, 64
        %v7462 = vpop.permute.xlu0 %7461
        %7463 = vrot.lane.b32.xlu0 %v6487, 64
        %v7464 = vpop.permute.xlu0 %7463
        %7465 = vrot.lane.b32.xlu0 %v6491, 64
        %v7466 = vpop.permute.xlu0 %7465
        %7467 = vrot.lane.b32.xlu0 %v6490, 64
        %v7468 = vpop.permute.xlu0 %7467
        %7469 = vrot.lane.b32.xlu0 %v6494, 64
        %v7470 = vpop.permute.xlu0 %7469
        %7471 = vrot.lane.b32.xlu0 %v6493, 64
        %v7472 = vpop.permute.xlu0 %7471
        %7473 = vrot.lane.b32.xlu0 %v6497, 64
        %v7474 = vpop.permute.xlu0 %7473
        %7475 = vrot.lane.b32.xlu0 %v6496, 64
        %v7476 = vpop.permute.xlu0 %7475
        %7477 = vrot.lane.b32.xlu0 %v6500, 64
        %v7478 = vpop.permute.xlu0 %7477
        %7479 = vrot.lane.b32.xlu0 %v6499, 64
        %v7480 = vpop.permute.xlu0 %7479
        %7481 = vrot.lane.b32.xlu0 %v6503, 64
        %v7482 = vpop.permute.xlu0 %7481
        %7483 = vrot.lane.b32.xlu0 %v6502, 64
        %v7484 = vpop.permute.xlu0 %7483
        %7485 = vrot.lane.b32.xlu0 %v6506, 64
        %v7486 = vpop.permute.xlu0 %7485
        %7487 = vrot.lane.b32.xlu0 %v6505, 64
        %v7488 = vpop.permute.xlu0 %7487
        %7489 = vrot.lane.b32.xlu0 %v6509, 64
        %v7490 = vpop.permute.xlu0 %7489
        %7491 = vrot.lane.b32.xlu0 %v6508, 64
        %v7492 = vpop.permute.xlu0 %7491
        %7493 = vrot.lane.b32.xlu0 %v6512, 64
        %v7494 = vpop.permute.xlu0 %7493
        %7495 = vrot.lane.b32.xlu0 %v6511, 64
        %v7496 = vpop.permute.xlu0 %7495
        %7497 = vrot.lane.b32.xlu0 %v6515, 64
        %v7498 = vpop.permute.xlu0 %7497
        %7499 = vrot.lane.b32.xlu0 %v6514, 64
        %v7500 = vpop.permute.xlu0 %7499
        %7501 = vrot.lane.b32.xlu0 %v6894, 64
        %v7502 = vpop.permute.xlu0 %7501
        %7503 = vrot.lane.b32.xlu0 %v6893, 64
        %v7504 = vpop.permute.xlu0 %7503
        %v7535 = vadd.f32 %v7415, %v7446
        %v7536 = vadd.f32 %v7416, %v7448
        %v7537 = vadd.f32 %v7417, %v7450
        %v7538 = vadd.f32 %v7418, %v7452
        %v7539 = vadd.f32 %v7419, %v7454
        %v7540 = vadd.f32 %v7420, %v7456
        %v7541 = vadd.f32 %v7421, %v7458
        %v7542 = vadd.f32 %v7422, %v7460
        %v7543 = vadd.f32 %v7423, %v7462
        %v7544 = vadd.f32 %v7424, %v7464
        %v7545 = vadd.f32 %v7425, %v7466
        %v7546 = vadd.f32 %v7426, %v7468
        %v7547 = vadd.f32 %v7427, %v7470
        %v7548 = vadd.f32 %v7428, %v7472
        %v7549 = vadd.f32 %v7429, %v7474
        %v7550 = vadd.f32 %v7430, %v7476
        %v7551 = vadd.f32 %v7431, %v7478
        %v7552 = vadd.f32 %v7432, %v7480
        %v7553 = vadd.f32 %v7433, %v7482
        %v7554 = vadd.f32 %v7434, %v7484
        %v7555 = vadd.f32 %v7435, %v7486
        %v7556 = vadd.f32 %v7436, %v7488
        %v7557 = vadd.f32 %v7437, %v7490
        %v7558 = vadd.f32 %v7438, %v7492
        %v7559 = vadd.f32 %v7439, %v7494
        %v7560 = vadd.f32 %v7440, %v7496
        %v7561 = vadd.f32 %v7441, %v7498
        %v7562 = vadd.f32 %v7442, %v7500
        %v7563 = vadd.f32 %v7443, %v7502
        %v7564 = vadd.f32 %v7444, %v7504
        %7565 = vst.msk [vmem:[#allocation3] sm:$0xff] %vm6106, %v7535
        %7566 = vst.msk [vmem:[#allocation3 + $0x8] sm:$0x7f] %vm6201, %v7536
        %7567 = vst.msk [vmem:[#allocation3 + $0x10] sm:$0xff] %vm6106, %v7537
        %7568 = vst.msk [vmem:[#allocation3 + $0x18] sm:$0x7f] %vm6201, %v7538
        %7569 = vst.msk [vmem:[#allocation3 + $0x20] sm:$0xff] %vm6106, %v7539
        %7570 = vst.msk [vmem:[#allocation3 + $0x28] sm:$0x7f] %vm6201, %v7540
        %7571 = vst.msk [vmem:[#allocation3 + $0x30] sm:$0xff] %vm6106, %v7541
        %7572 = vst.msk [vmem:[#allocation3 + $0x38] sm:$0x7f] %vm6201, %v7542
        %7573 = vst.msk [vmem:[#allocation3 + $0x40] sm:$0xff] %vm6106, %v7543
        %7574 = vst.msk [vmem:[#allocation3 + $0x48] sm:$0x7f] %vm6201, %v7544
        %7575 = vst.msk [vmem:[#allocation3 + $0x50] sm:$0xff] %vm6106, %v7545
        %7576 = vst.msk [vmem:[#allocation3 + $0x58] sm:$0x7f] %vm6201, %v7546
        %7577 = vst.msk [vmem:[#allocation3 + $0x60] sm:$0xff] %vm6106, %v7547
        %7578 = vst.msk [vmem:[#allocation3 + $0x68] sm:$0x7f] %vm6201, %v7548
        %7579 = vst.msk [vmem:[#allocation3 + $0x70] sm:$0xff] %vm6106, %v7549
        %7580 = vst.msk [vmem:[#allocation3 + $0x78] sm:$0x7f] %vm6201, %v7550
        %7581 = vst.msk [vmem:[#allocation3 + $0x80] sm:$0xff] %vm6106, %v7551
        %7582 = vst.msk [vmem:[#allocation3 + $0x88] sm:$0x7f] %vm6201, %v7552
        %7583 = vst.msk [vmem:[#allocation3 + $0x90] sm:$0xff] %vm6106, %v7553
        %7584 = vst.msk [vmem:[#allocation3 + $0x98] sm:$0x7f] %vm6201, %v7554
        %7585 = vst.msk [vmem:[#allocation3 + $0xa0] sm:$0xff] %vm6106, %v7555
        %7586 = vst.msk [vmem:[#allocation3 + $0xa8] sm:$0x7f] %vm6201, %v7556
        %7587 = vst.msk [vmem:[#allocation3 + $0xb0] sm:$0xff] %vm6106, %v7557
        %7588 = vst.msk [vmem:[#allocation3 + $0xb8] sm:$0x7f] %vm6201, %v7558
        %7589 = vst.msk [vmem:[#allocation3 + $0xc0] sm:$0xff] %vm6106, %v7559
        %7590 = vst.msk [vmem:[#allocation3 + $0xc8] sm:$0x7f] %vm6201, %v7560
        %7591 = vst.msk [vmem:[#allocation3 + $0xd0] sm:$0xff] %vm6106, %v7561
        %7592 = vst.msk [vmem:[#allocation3 + $0xd8] sm:$0x7f] %vm6201, %v7562
        %7593 = vst.msk [vmem:[#allocation3 + $0xe0] sm:$0xff] %vm6106, %v7563
        %7594 = vst.msk [vmem:[#allocation3 + $0xe8] sm:$0x7f] %vm6201, %v7564
        %v7595 = vld [vmem:[#allocation3] sm:$0xff]
        %v7596 = vld [vmem:[#allocation3 + $0x8] sm:$0xff]
        %v7597 = vld [vmem:[#allocation3 + $0x10] sm:$0xff]
        %v7598 = vld [vmem:[#allocation3 + $0x18] sm:$0xff]
        %v7599 = vld [vmem:[#allocation3 + $0x20] sm:$0xff]
        %v7600 = vld [vmem:[#allocation3 + $0x28] sm:$0xff]
        %v7601 = vld [vmem:[#allocation3 + $0x30] sm:$0xff]
        %v7602 = vld [vmem:[#allocation3 + $0x38] sm:$0xff]
        %v7603 = vld [vmem:[#allocation3 + $0x40] sm:$0xff]
        %v7604 = vld [vmem:[#allocation3 + $0x48] sm:$0xff]
        %v7605 = vld [vmem:[#allocation3 + $0x50] sm:$0xff]
        %v7606 = vld [vmem:[#allocation3 + $0x58] sm:$0xff]
        %v7607 = vld [vmem:[#allocation3 + $0x60] sm:$0xff]
        %v7608 = vld [vmem:[#allocation3 + $0x68] sm:$0xff]
        %v7609 = vld [vmem:[#allocation3 + $0x70] sm:$0xff]
        %v7610 = vld [vmem:[#allocation3 + $0x78] sm:$0xff]
        %v7611 = vld [vmem:[#allocation3 + $0x80] sm:$0xff]
        %v7612 = vld [vmem:[#allocation3 + $0x88] sm:$0xff]
        %v7613 = vld [vmem:[#allocation3 + $0x90] sm:$0xff]
        %v7614 = vld [vmem:[#allocation3 + $0x98] sm:$0xff]
        %v7615 = vld [vmem:[#allocation3 + $0xa0] sm:$0xff]
        %v7616 = vld [vmem:[#allocation3 + $0xa8] sm:$0xff]
        %v7617 = vld [vmem:[#allocation3 + $0xb0] sm:$0xff]
        %v7618 = vld [vmem:[#allocation3 + $0xb8] sm:$0xff]
        %v7619 = vld [vmem:[#allocation3 + $0xc0] sm:$0xff]
        %v7620 = vld [vmem:[#allocation3 + $0xc8] sm:$0xff]
        %v7621 = vld [vmem:[#allocation3 + $0xd0] sm:$0xff]
        %v7622 = vld [vmem:[#allocation3 + $0xd8] sm:$0xff]
        %v7623 = vld [vmem:[#allocation3 + $0xe0] sm:$0xff]
        %v7624 = vld [vmem:[#allocation3 + $0xe8] sm:$0xff]
        %v7625 = vld [vmem:[#allocation3 + $0xf0] sm:$0xff]
        %v7626 = vld [vmem:[#allocation3 + $0xf8] sm:$0xff]
        %v7627 = vmax.f32 %v7595, 0.0
        %v7628 = vmax.f32 %v7596, 0.0
        %v7629 = vmax.f32 %v7597, 0.0
        %v7630 = vmax.f32 %v7598, 0.0
        %v7631 = vmax.f32 %v7599, 0.0
        %v7632 = vmax.f32 %v7600, 0.0
        %v7633 = vmax.f32 %v7601, 0.0
        %v7634 = vmax.f32 %v7602, 0.0
        %v7635 = vmax.f32 %v7603, 0.0
        %v7636 = vmax.f32 %v7604, 0.0
        %v7637 = vmax.f32 %v7605, 0.0
        %v7638 = vmax.f32 %v7606, 0.0
        %v7639 = vmax.f32 %v7607, 0.0
        %v7640 = vmax.f32 %v7608, 0.0
        %v7641 = vmax.f32 %v7609, 0.0
        %v7642 = vmax.f32 %v7610, 0.0
        %v7643 = vmax.f32 %v7611, 0.0
        %v7644 = vmax.f32 %v7612, 0.0
        %v7645 = vmax.f32 %v7613, 0.0
        %v7646 = vmax.f32 %v7614, 0.0
        %v7647 = vmax.f32 %v7615, 0.0
        %v7648 = vmax.f32 %v7616, 0.0
        %v7649 = vmax.f32 %v7617, 0.0
        %v7650 = vmax.f32 %v7618, 0.0
        %v7651 = vmax.f32 %v7619, 0.0
        %v7652 = vmax.f32 %v7620, 0.0
        %v7653 = vmax.f32 %v7621, 0.0
        %v7654 = vmax.f32 %v7622, 0.0
        %v7655 = vmax.f32 %v7623, 0.0
        %v7656 = vmax.f32 %v7624, 0.0
        %v7657 = vmax.f32 %v7625, 0.0
        %v7658 = vmax.f32 %v7626, 0.0
        %v7659 = vld [vmem:[%s6] sm:$0x1]
        %v7660 = vld [vmem:[%s6 + $0x1] sm:$0x1]
        %v7661 = vld [vmem:[%s6 + $0x2] sm:$0x1]
        %v7662 = vld [vmem:[%s6 + $0x3] sm:$0x1]
        %v7663 = vld [vmem:[%s6 + $0x4] sm:$0x1]
        %v7664 = vld [vmem:[%s6 + $0x5] sm:$0x1]
        %v7665 = vld [vmem:[%s6 + $0x6] sm:$0x1]
        %v7666 = vld [vmem:[%s6 + $0x7] sm:$0x1]
        %v7667 = vld [vmem:[%s6 + $0x8] sm:$0x1]
        %v7669 = vperm.slane %v7663, 0
        %v7671 = vmul.f32 %v7627, %v7669
        %v7672 = vmul.f32 %v7628, %v7669
        %v7673 = vmul.f32 %v7629, %v7669
        %v7674 = vmul.f32 %v7630, %v7669
        %v7675 = vmul.f32 %v7631, %v7669
        %v7676 = vmul.f32 %v7632, %v7669
        %v7677 = vmul.f32 %v7633, %v7669
        %v7678 = vmul.f32 %v7634, %v7669
        %v7679 = vmul.f32 %v7635, %v7669
        %v7680 = vmul.f32 %v7636, %v7669
        %v7681 = vmul.f32 %v7637, %v7669
        %v7682 = vmul.f32 %v7638, %v7669
        %v7683 = vmul.f32 %v7639, %v7669
        %v7684 = vmul.f32 %v7640, %v7669
        %v7685 = vmul.f32 %v7641, %v7669
        %v7686 = vmul.f32 %v7642, %v7669
        %v7687 = vmul.f32 %v7643, %v7669
        %v7688 = vmul.f32 %v7644, %v7669
        %v7689 = vmul.f32 %v7645, %v7669
        %v7690 = vmul.f32 %v7646, %v7669
        %v7691 = vmul.f32 %v7647, %v7669
        %v7692 = vmul.f32 %v7648, %v7669
        %v7693 = vmul.f32 %v7649, %v7669
        %v7694 = vmul.f32 %v7650, %v7669
        %v7695 = vmul.f32 %v7651, %v7669
        %v7696 = vmul.f32 %v7652, %v7669
        %v7697 = vmul.f32 %v7653, %v7669
        %v7698 = vmul.f32 %v7654, %v7669
        %v7699 = vmul.f32 %v7655, %v7669
        %v7700 = vmul.f32 %v7656, %v7669
        %v7701 = vmul.f32 %v7657, %v7669
        %v7702 = vmul.f32 %v7658, %v7669
        %7703 = vst.msk [vmem:[#allocation4] sm:$0xff] %vm6106, %v7671
        %7704 = vst.msk [vmem:[#allocation4 + $0x8] sm:$0xff] %vm6106, %v7672
        %7705 = vst.msk [vmem:[#allocation4 + $0x10] sm:$0xff] %vm6106, %v7673
        %7706 = vst.msk [vmem:[#allocation4 + $0x18] sm:$0xff] %vm6106, %v7674
        %7707 = vst.msk [vmem:[#allocation4 + $0x20] sm:$0xff] %vm6106, %v7675
        %7708 = vst.msk [vmem:[#allocation4 + $0x28] sm:$0xff] %vm6106, %v7676
        %7709 = vst.msk [vmem:[#allocation4 + $0x30] sm:$0xff] %vm6106, %v7677
        %7710 = vst.msk [vmem:[#allocation4 + $0x38] sm:$0xff] %vm6106, %v7678
        %7711 = vst.msk [vmem:[#allocation4 + $0x40] sm:$0xff] %vm6106, %v7679
        %7712 = vst.msk [vmem:[#allocation4 + $0x48] sm:$0xff] %vm6106, %v7680
        %7713 = vst.msk [vmem:[#allocation4 + $0x50] sm:$0xff] %vm6106, %v7681
        %7714 = vst.msk [vmem:[#allocation4 + $0x58] sm:$0xff] %vm6106, %v7682
        %7715 = vst.msk [vmem:[#allocation4 + $0x60] sm:$0xff] %vm6106, %v7683
        %7716 = vst.msk [vmem:[#allocation4 + $0x68] sm:$0xff] %vm6106, %v7684
        %7717 = vst.msk [vmem:[#allocation4 + $0x70] sm:$0xff] %vm6106, %v7685
        %7718 = vst.msk [vmem:[#allocation4 + $0x78] sm:$0xff] %vm6106, %v7686
        %7719 = vst.msk [vmem:[#allocation4 + $0x80] sm:$0xff] %vm6106, %v7687
        %7720 = vst.msk [vmem:[#allocation4 + $0x88] sm:$0xff] %vm6106, %v7688
        %7721 = vst.msk [vmem:[#allocation4 + $0x90] sm:$0xff] %vm6106, %v7689
        %7722 = vst.msk [vmem:[#allocation4 + $0x98] sm:$0xff] %vm6106, %v7690
        %7723 = vst.msk [vmem:[#allocation4 + $0xa0] sm:$0xff] %vm6106, %v7691
        %7724 = vst.msk [vmem:[#allocation4 + $0xa8] sm:$0xff] %vm6106, %v7692
        %7725 = vst.msk [vmem:[#allocation4 + $0xb0] sm:$0xff] %vm6106, %v7693
        %7726 = vst.msk [vmem:[#allocation4 + $0xb8] sm:$0xff] %vm6106, %v7694
        %7727 = vst.msk [vmem:[#allocation4 + $0xc0] sm:$0xff] %vm6106, %v7695
        %7728 = vst.msk [vmem:[#allocation4 + $0xc8] sm:$0xff] %vm6106, %v7696
        %7729 = vst.msk [vmem:[#allocation4 + $0xd0] sm:$0xff] %vm6106, %v7697
        %7730 = vst.msk [vmem:[#allocation4 + $0xd8] sm:$0xff] %vm6106, %v7698
        %7731 = vst.msk [vmem:[#allocation4 + $0xe0] sm:$0xff] %vm6106, %v7699
        %7732 = vst.msk [vmem:[#allocation4 + $0xe8] sm:$0xff] %vm6106, %v7700
        %7733 = vst.msk [vmem:[#allocation4 + $0xf0] sm:$0xff] %vm6106, %v7701
        %7734 = vst.msk [vmem:[#allocation4 + $0xf8] sm:$0xff] %vm6106, %v7702
        %v7736 = vperm.slane %v7659, 0
        %v7738 = vmul.f32 %v7627, %v7736
        %v7739 = vmul.f32 %v7628, %v7736
        %v7740 = vmul.f32 %v7629, %v7736
        %v7741 = vmul.f32 %v7630, %v7736
        %v7742 = vmul.f32 %v7631, %v7736
        %v7743 = vmul.f32 %v7632, %v7736
        %v7744 = vmul.f32 %v7633, %v7736
        %v7745 = vmul.f32 %v7634, %v7736
        %v7746 = vmul.f32 %v7635, %v7736
        %v7747 = vmul.f32 %v7636, %v7736
        %v7748 = vmul.f32 %v7637, %v7736
        %v7749 = vmul.f32 %v7638, %v7736
        %v7750 = vmul.f32 %v7639, %v7736
        %v7751 = vmul.f32 %v7640, %v7736
        %v7752 = vmul.f32 %v7641, %v7736
        %v7753 = vmul.f32 %v7642, %v7736
        %v7754 = vmul.f32 %v7643, %v7736
        %v7755 = vmul.f32 %v7644, %v7736
        %v7756 = vmul.f32 %v7645, %v7736
        %v7757 = vmul.f32 %v7646, %v7736
        %v7758 = vmul.f32 %v7647, %v7736
        %v7759 = vmul.f32 %v7648, %v7736
        %v7760 = vmul.f32 %v7649, %v7736
        %v7761 = vmul.f32 %v7650, %v7736
        %v7762 = vmul.f32 %v7651, %v7736
        %v7763 = vmul.f32 %v7652, %v7736
        %v7764 = vmul.f32 %v7653, %v7736
        %v7765 = vmul.f32 %v7654, %v7736
        %v7766 = vmul.f32 %v7655, %v7736
        %v7767 = vmul.f32 %v7656, %v7736
        %s7768 = scalar_lea.vmem [#allocation4], 16
        %v7769 = vld [vmem:[%s7768 + $0x1] sm:$0xff]
        %v7770 = vld [vmem:[%s7768 + $0x9] sm:$0x7f]
        %v7771 = vld [vmem:[%s7768 + $0x11] sm:$0xff]
        %v7772 = vld [vmem:[%s7768 + $0x19] sm:$0x7f]
        %v7773 = vld [vmem:[%s7768 + $0x21] sm:$0xff]
        %v7774 = vld [vmem:[%s7768 + $0x29] sm:$0x7f]
        %v7775 = vld [vmem:[%s7768 + $0x31] sm:$0xff]
        %v7776 = vld [vmem:[%s7768 + $0x39] sm:$0x7f]
        %v7777 = vld [vmem:[%s7768 + $0x41] sm:$0xff]
        %v7778 = vld [vmem:[%s7768 + $0x49] sm:$0x7f]
        %v7779 = vld [vmem:[%s7768 + $0x51] sm:$0xff]
        %v7780 = vld [vmem:[%s7768 + $0x59] sm:$0x7f]
        %v7781 = vld [vmem:[%s7768 + $0x61] sm:$0xff]
        %v7782 = vld [vmem:[%s7768 + $0x69] sm:$0x7f]
        %v7783 = vld [vmem:[%s7768 + $0x71] sm:$0xff]
        %v7784 = vld [vmem:[%s7768 + $0x79] sm:$0x7f]
        %v7785 = vld [vmem:[%s7768 + $0x81] sm:$0xff]
        %v7786 = vld [vmem:[%s7768 + $0x89] sm:$0x7f]
        %v7787 = vld [vmem:[%s7768 + $0x91] sm:$0xff]
        %v7788 = vld [vmem:[%s7768 + $0x99] sm:$0x7f]
        %v7789 = vld [vmem:[%s7768 + $0xa1] sm:$0xff]
        %v7790 = vld [vmem:[%s7768 + $0xa9] sm:$0x7f]
        %v7791 = vld [vmem:[%s7768 + $0xb1] sm:$0xff]
        %v7792 = vld [vmem:[%s7768 + $0xb9] sm:$0x7f]
        %v7793 = vld [vmem:[%s7768 + $0xc1] sm:$0xff]
        %v7794 = vld [vmem:[%s7768 + $0xc9] sm:$0x7f]
        %v7795 = vld [vmem:[%s7768 + $0xd1] sm:$0xff]
        %v7796 = vld [vmem:[%s7768 + $0xd9] sm:$0x7f]
        %v7797 = vld [vmem:[%s7768 + $0xe1] sm:$0xff]
        %v7798 = vld [vmem:[%s7768 + $0xe9] sm:$0x7f]
        %v7799 = vadd.f32 %v7769, %v7738
        %v7800 = vadd.f32 %v7770, %v7739
        %v7801 = vadd.f32 %v7771, %v7740
        %v7802 = vadd.f32 %v7772, %v7741
        %v7803 = vadd.f32 %v7773, %v7742
        %v7804 = vadd.f32 %v7774, %v7743
        %v7805 = vadd.f32 %v7775, %v7744
        %v7806 = vadd.f32 %v7776, %v7745
        %v7807 = vadd.f32 %v7777, %v7746
        %v7808 = vadd.f32 %v7778, %v7747
        %v7809 = vadd.f32 %v7779, %v7748
        %v7810 = vadd.f32 %v7780, %v7749
        %v7811 = vadd.f32 %v7781, %v7750
        %v7812 = vadd.f32 %v7782, %v7751
        %v7813 = vadd.f32 %v7783, %v7752
        %v7814 = vadd.f32 %v7784, %v7753
        %v7815 = vadd.f32 %v7785, %v7754
        %v7816 = vadd.f32 %v7786, %v7755
        %v7817 = vadd.f32 %v7787, %v7756
        %v7818 = vadd.f32 %v7788, %v7757
        %v7819 = vadd.f32 %v7789, %v7758
        %v7820 = vadd.f32 %v7790, %v7759
        %v7821 = vadd.f32 %v7791, %v7760
        %v7822 = vadd.f32 %v7792, %v7761
        %v7823 = vadd.f32 %v7793, %v7762
        %v7824 = vadd.f32 %v7794, %v7763
        %v7825 = vadd.f32 %v7795, %v7764
        %v7826 = vadd.f32 %v7796, %v7765
        %v7827 = vadd.f32 %v7797, %v7766
        %v7828 = vadd.f32 %v7798, %v7767
        %7829 = vst.msk [vmem:[%s7768 + $0x1] sm:$0xff] %vm6106, %v7799
        %7830 = vst.msk [vmem:[%s7768 + $0x9] sm:$0x7f] %vm6201, %v7800
        %7831 = vst.msk [vmem:[%s7768 + $0x11] sm:$0xff] %vm6106, %v7801
        %7832 = vst.msk [vmem:[%s7768 + $0x19] sm:$0x7f] %vm6201, %v7802
        %7833 = vst.msk [vmem:[%s7768 + $0x21] sm:$0xff] %vm6106, %v7803
        %7834 = vst.msk [vmem:[%s7768 + $0x29] sm:$0x7f] %vm6201, %v7804
        %7835 = vst.msk [vmem:[%s7768 + $0x31] sm:$0xff] %vm6106, %v7805
        %7836 = vst.msk [vmem:[%s7768 + $0x39] sm:$0x7f] %vm6201, %v7806
        %7837 = vst.msk [vmem:[%s7768 + $0x41] sm:$0xff] %vm6106, %v7807
        %7838 = vst.msk [vmem:[%s7768 + $0x49] sm:$0x7f] %vm6201, %v7808
        %7839 = vst.msk [vmem:[%s7768 + $0x51] sm:$0xff] %vm6106, %v7809
        %7840 = vst.msk [vmem:[%s7768 + $0x59] sm:$0x7f] %vm6201, %v7810
        %7841 = vst.msk [vmem:[%s7768 + $0x61] sm:$0xff] %vm6106, %v7811
        %7842 = vst.msk [vmem:[%s7768 + $0x69] sm:$0x7f] %vm6201, %v7812
        %7843 = vst.msk [vmem:[%s7768 + $0x71] sm:$0xff] %vm6106, %v7813
        %7844 = vst.msk [vmem:[%s7768 + $0x79] sm:$0x7f] %vm6201, %v7814
        %7845 = vst.msk [vmem:[%s7768 + $0x81] sm:$0xff] %vm6106, %v7815
        %7846 = vst.msk [vmem:[%s7768 + $0x89] sm:$0x7f] %vm6201, %v7816
        %7847 = vst.msk [vmem:[%s7768 + $0x91] sm:$0xff] %vm6106, %v7817
        %7848 = vst.msk [vmem:[%s7768 + $0x99] sm:$0x7f] %vm6201, %v7818
        %7849 = vst.msk [vmem:[%s7768 + $0xa1] sm:$0xff] %vm6106, %v7819
        %7850 = vst.msk [vmem:[%s7768 + $0xa9] sm:$0x7f] %vm6201, %v7820
        %7851 = vst.msk [vmem:[%s7768 + $0xb1] sm:$0xff] %vm6106, %v7821
        %7852 = vst.msk [vmem:[%s7768 + $0xb9] sm:$0x7f] %vm6201, %v7822
        %7853 = vst.msk [vmem:[%s7768 + $0xc1] sm:$0xff] %vm6106, %v7823
        %7854 = vst.msk [vmem:[%s7768 + $0xc9] sm:$0x7f] %vm6201, %v7824
        %7855 = vst.msk [vmem:[%s7768 + $0xd1] sm:$0xff] %vm6106, %v7825
        %7856 = vst.msk [vmem:[%s7768 + $0xd9] sm:$0x7f] %vm6201, %v7826
        %7857 = vst.msk [vmem:[%s7768 + $0xe1] sm:$0xff] %vm6106, %v7827
        %7858 = vst.msk [vmem:[%s7768 + $0xe9] sm:$0x7f] %vm6201, %v7828
        %v7860 = vperm.slane %v7660, 0
        %v7862 = vmul.f32 %v7627, %v7860
        %v7863 = vmul.f32 %v7628, %v7860
        %v7864 = vmul.f32 %v7629, %v7860
        %v7865 = vmul.f32 %v7630, %v7860
        %v7866 = vmul.f32 %v7631, %v7860
        %v7867 = vmul.f32 %v7632, %v7860
        %v7868 = vmul.f32 %v7633, %v7860
        %v7869 = vmul.f32 %v7634, %v7860
        %v7870 = vmul.f32 %v7635, %v7860
        %v7871 = vmul.f32 %v7636, %v7860
        %v7872 = vmul.f32 %v7637, %v7860
        %v7873 = vmul.f32 %v7638, %v7860
        %v7874 = vmul.f32 %v7639, %v7860
        %v7875 = vmul.f32 %v7640, %v7860
        %v7876 = vmul.f32 %v7641, %v7860
        %v7877 = vmul.f32 %v7642, %v7860
        %v7878 = vmul.f32 %v7643, %v7860
        %v7879 = vmul.f32 %v7644, %v7860
        %v7880 = vmul.f32 %v7645, %v7860
        %v7881 = vmul.f32 %v7646, %v7860
        %v7882 = vmul.f32 %v7647, %v7860
        %v7883 = vmul.f32 %v7648, %v7860
        %v7884 = vmul.f32 %v7649, %v7860
        %v7885 = vmul.f32 %v7650, %v7860
        %v7886 = vmul.f32 %v7651, %v7860
        %v7887 = vmul.f32 %v7652, %v7860
        %v7888 = vmul.f32 %v7653, %v7860
        %v7889 = vmul.f32 %v7654, %v7860
        %v7890 = vmul.f32 %v7655, %v7860
        %v7891 = vmul.f32 %v7656, %v7860
        %v7892 = vld [vmem:[%s7768] sm:$0xff]
        %v7893 = vld [vmem:[%s7768 + $0x8] sm:$0xff]
        %v7894 = vld [vmem:[%s7768 + $0x10] sm:$0xff]
        %v7895 = vld [vmem:[%s7768 + $0x18] sm:$0xff]
        %v7896 = vld [vmem:[%s7768 + $0x20] sm:$0xff]
        %v7897 = vld [vmem:[%s7768 + $0x28] sm:$0xff]
        %v7898 = vld [vmem:[%s7768 + $0x30] sm:$0xff]
        %v7899 = vld [vmem:[%s7768 + $0x38] sm:$0xff]
        %v7900 = vld [vmem:[%s7768 + $0x40] sm:$0xff]
        %v7901 = vld [vmem:[%s7768 + $0x48] sm:$0xff]
        %v7902 = vld [vmem:[%s7768 + $0x50] sm:$0xff]
        %v7903 = vld [vmem:[%s7768 + $0x58] sm:$0xff]
        %v7904 = vld [vmem:[%s7768 + $0x60] sm:$0xff]
        %v7905 = vld [vmem:[%s7768 + $0x68] sm:$0xff]
        %v7906 = vld [vmem:[%s7768 + $0x70] sm:$0xff]
        %v7907 = vld [vmem:[%s7768 + $0x78] sm:$0xff]
        %v7908 = vld [vmem:[%s7768 + $0x80] sm:$0xff]
        %v7909 = vld [vmem:[%s7768 + $0x88] sm:$0xff]
        %v7910 = vld [vmem:[%s7768 + $0x90] sm:$0xff]
        %v7911 = vld [vmem:[%s7768 + $0x98] sm:$0xff]
        %v7912 = vld [vmem:[%s7768 + $0xa0] sm:$0xff]
        %v7913 = vld [vmem:[%s7768 + $0xa8] sm:$0xff]
        %v7914 = vld [vmem:[%s7768 + $0xb0] sm:$0xff]
        %v7915 = vld [vmem:[%s7768 + $0xb8] sm:$0xff]
        %v7916 = vld [vmem:[%s7768 + $0xc0] sm:$0xff]
        %v7917 = vld [vmem:[%s7768 + $0xc8] sm:$0xff]
        %v7918 = vld [vmem:[%s7768 + $0xd0] sm:$0xff]
        %v7919 = vld [vmem:[%s7768 + $0xd8] sm:$0xff]
        %v7920 = vld [vmem:[%s7768 + $0xe0] sm:$0xff]
        %v7921 = vld [vmem:[%s7768 + $0xe8] sm:$0xff]
        %v7922 = vadd.f32 %v7892, %v7862
        %v7923 = vadd.f32 %v7893, %v7863
        %v7924 = vadd.f32 %v7894, %v7864
        %v7925 = vadd.f32 %v7895, %v7865
        %v7926 = vadd.f32 %v7896, %v7866
        %v7927 = vadd.f32 %v7897, %v7867
        %v7928 = vadd.f32 %v7898, %v7868
        %v7929 = vadd.f32 %v7899, %v7869
        %v7930 = vadd.f32 %v7900, %v7870
        %v7931 = vadd.f32 %v7901, %v7871
        %v7932 = vadd.f32 %v7902, %v7872
        %v7933 = vadd.f32 %v7903, %v7873
        %v7934 = vadd.f32 %v7904, %v7874
        %v7935 = vadd.f32 %v7905, %v7875
        %v7936 = vadd.f32 %v7906, %v7876
        %v7937 = vadd.f32 %v7907, %v7877
        %v7938 = vadd.f32 %v7908, %v7878
        %v7939 = vadd.f32 %v7909, %v7879
        %v7940 = vadd.f32 %v7910, %v7880
        %v7941 = vadd.f32 %v7911, %v7881
        %v7942 = vadd.f32 %v7912, %v7882
        %v7943 = vadd.f32 %v7913, %v7883
        %v7944 = vadd.f32 %v7914, %v7884
        %v7945 = vadd.f32 %v7915, %v7885
        %v7946 = vadd.f32 %v7916, %v7886
        %v7947 = vadd.f32 %v7917, %v7887
        %v7948 = vadd.f32 %v7918, %v7888
        %v7949 = vadd.f32 %v7919, %v7889
        %v7950 = vadd.f32 %v7920, %v7890
        %v7951 = vadd.f32 %v7921, %v7891
        %7952 = vst.msk [vmem:[%s7768] sm:$0xff] %vm6106, %v7922
        %7953 = vst.msk [vmem:[%s7768 + $0x8] sm:$0xff] %vm6106, %v7923
        %7954 = vst.msk [vmem:[%s7768 + $0x10] sm:$0xff] %vm6106, %v7924
        %7955 = vst.msk [vmem:[%s7768 + $0x18] sm:$0xff] %vm6106, %v7925
        %7956 = vst.msk [vmem:[%s7768 + $0x20] sm:$0xff] %vm6106, %v7926
        %7957 = vst.msk [vmem:[%s7768 + $0x28] sm:$0xff] %vm6106, %v7927
        %7958 = vst.msk [vmem:[%s7768 + $0x30] sm:$0xff] %vm6106, %v7928
        %7959 = vst.msk [vmem:[%s7768 + $0x38] sm:$0xff] %vm6106, %v7929
        %7960 = vst.msk [vmem:[%s7768 + $0x40] sm:$0xff] %vm6106, %v7930
        %7961 = vst.msk [vmem:[%s7768 + $0x48] sm:$0xff] %vm6106, %v7931
        %7962 = vst.msk [vmem:[%s7768 + $0x50] sm:$0xff] %vm6106, %v7932
        %7963 = vst.msk [vmem:[%s7768 + $0x58] sm:$0xff] %vm6106, %v7933
        %7964 = vst.msk [vmem:[%s7768 + $0x60] sm:$0xff] %vm6106, %v7934
        %7965 = vst.msk [vmem:[%s7768 + $0x68] sm:$0xff] %vm6106, %v7935
        %7966 = vst.msk [vmem:[%s7768 + $0x70] sm:$0xff] %vm6106, %v7936
        %7967 = vst.msk [vmem:[%s7768 + $0x78] sm:$0xff] %vm6106, %v7937
        %7968 = vst.msk [vmem:[%s7768 + $0x80] sm:$0xff] %vm6106, %v7938
        %7969 = vst.msk [vmem:[%s7768 + $0x88] sm:$0xff] %vm6106, %v7939
        %7970 = vst.msk [vmem:[%s7768 + $0x90] sm:$0xff] %vm6106, %v7940
        %7971 = vst.msk [vmem:[%s7768 + $0x98] sm:$0xff] %vm6106, %v7941
        %7972 = vst.msk [vmem:[%s7768 + $0xa0] sm:$0xff] %vm6106, %v7942
        %7973 = vst.msk [vmem:[%s7768 + $0xa8] sm:$0xff] %vm6106, %v7943
        %7974 = vst.msk [vmem:[%s7768 + $0xb0] sm:$0xff] %vm6106, %v7944
        %7975 = vst.msk [vmem:[%s7768 + $0xb8] sm:$0xff] %vm6106, %v7945
        %7976 = vst.msk [vmem:[%s7768 + $0xc0] sm:$0xff] %vm6106, %v7946
        %7977 = vst.msk [vmem:[%s7768 + $0xc8] sm:$0xff] %vm6106, %v7947
        %7978 = vst.msk [vmem:[%s7768 + $0xd0] sm:$0xff] %vm6106, %v7948
        %7979 = vst.msk [vmem:[%s7768 + $0xd8] sm:$0xff] %vm6106, %v7949
        %7980 = vst.msk [vmem:[%s7768 + $0xe0] sm:$0xff] %vm6106, %v7950
        %7981 = vst.msk [vmem:[%s7768 + $0xe8] sm:$0xff] %vm6106, %v7951
        %v7983 = vperm.slane %v7661, 0
        %v7985 = vmul.f32 %v7627, %v7983
        %v7986 = vmul.f32 %v7628, %v7983
        %v7987 = vmul.f32 %v7629, %v7983
        %v7988 = vmul.f32 %v7630, %v7983
        %v7989 = vmul.f32 %v7631, %v7983
        %v7990 = vmul.f32 %v7632, %v7983
        %v7991 = vmul.f32 %v7633, %v7983
        %v7992 = vmul.f32 %v7634, %v7983
        %v7993 = vmul.f32 %v7635, %v7983
        %v7994 = vmul.f32 %v7636, %v7983
        %v7995 = vmul.f32 %v7637, %v7983
        %v7996 = vmul.f32 %v7638, %v7983
        %v7997 = vmul.f32 %v7639, %v7983
        %v7998 = vmul.f32 %v7640, %v7983
        %v7999 = vmul.f32 %v7641, %v7983
        %v8000 = vmul.f32 %v7642, %v7983
        %v8001 = vmul.f32 %v7643, %v7983
        %v8002 = vmul.f32 %v7644, %v7983
        %v8003 = vmul.f32 %v7645, %v7983
        %v8004 = vmul.f32 %v7646, %v7983
        %v8005 = vmul.f32 %v7647, %v7983
        %v8006 = vmul.f32 %v7648, %v7983
        %v8007 = vmul.f32 %v7649, %v7983
        %v8008 = vmul.f32 %v7650, %v7983
        %v8009 = vmul.f32 %v7651, %v7983
        %v8010 = vmul.f32 %v7652, %v7983
        %v8011 = vmul.f32 %v7653, %v7983
        %v8012 = vmul.f32 %v7654, %v7983
        %v8013 = vmul.f32 %v7655, %v7983
        %v8014 = vmul.f32 %v7656, %v7983
        %v8015 = vld [vmem:[%s7768] sm:$0xff]
        %v8016 = vld [vmem:[%s7768 + $0x8] sm:$0x7f]
        %v8017 = vld [vmem:[%s7768 + $0x10] sm:$0xff]
        %v8018 = vld [vmem:[%s7768 + $0x18] sm:$0x7f]
        %v8019 = vld [vmem:[%s7768 + $0x20] sm:$0xff]
        %v8020 = vld [vmem:[%s7768 + $0x28] sm:$0x7f]
        %v8021 = vld [vmem:[%s7768 + $0x30] sm:$0xff]
        %v8022 = vld [vmem:[%s7768 + $0x38] sm:$0x7f]
        %v8023 = vld [vmem:[%s7768 + $0x40] sm:$0xff]
        %v8024 = vld [vmem:[%s7768 + $0x48] sm:$0x7f]
        %v8025 = vld [vmem:[%s7768 + $0x50] sm:$0xff]
        %v8026 = vld [vmem:[%s7768 + $0x58] sm:$0x7f]
        %v8027 = vld [vmem:[%s7768 + $0x60] sm:$0xff]
        %v8028 = vld [vmem:[%s7768 + $0x68] sm:$0x7f]
        %v8029 = vld [vmem:[%s7768 + $0x70] sm:$0xff]
        %v8030 = vld [vmem:[%s7768 + $0x78] sm:$0x7f]
        %v8031 = vld [vmem:[%s7768 + $0x80] sm:$0xff]
        %v8032 = vld [vmem:[%s7768 + $0x88] sm:$0x7f]
        %v8033 = vld [vmem:[%s7768 + $0x90] sm:$0xff]
        %v8034 = vld [vmem:[%s7768 + $0x98] sm:$0x7f]
        %v8035 = vld [vmem:[%s7768 + $0xa0] sm:$0xff]
        %v8036 = vld [vmem:[%s7768 + $0xa8] sm:$0x7f]
        %v8037 = vld [vmem:[%s7768 + $0xb0] sm:$0xff]
        %v8038 = vld [vmem:[%s7768 + $0xb8] sm:$0x7f]
        %v8039 = vld [vmem:[%s7768 + $0xc0] sm:$0xff]
        %v8040 = vld [vmem:[%s7768 + $0xc8] sm:$0x7f]
        %v8041 = vld [vmem:[%s7768 + $0xd0] sm:$0xff]
        %v8042 = vld [vmem:[%s7768 + $0xd8] sm:$0x7f]
        %v8043 = vld [vmem:[%s7768 + $0xe0] sm:$0xff]
        %v8044 = vld [vmem:[%s7768 + $0xe8] sm:$0x7f]
        %v8075 = vrot.slane %v7985, 1
        %v8076 = vrot.slane %v7986, 1
        %v8077 = vsel %vm4498, %v8075, %v8076
        %v8078 = vrot.slane %v7987, 1
        %v8079 = vrot.slane %v7988, 1
        %v8080 = vsel %vm4498, %v8078, %v8079
        %v8081 = vrot.slane %v7989, 1
        %v8082 = vrot.slane %v7990, 1
        %v8083 = vsel %vm4498, %v8081, %v8082
        %v8084 = vrot.slane %v7991, 1
        %v8085 = vrot.slane %v7992, 1
        %v8086 = vsel %vm4498, %v8084, %v8085
        %v8087 = vrot.slane %v7993, 1
        %v8088 = vrot.slane %v7994, 1
        %v8089 = vsel %vm4498, %v8087, %v8088
        %v8090 = vrot.slane %v7995, 1
        %v8091 = vrot.slane %v7996, 1
        %v8092 = vsel %vm4498, %v8090, %v8091
        %v8093 = vrot.slane %v7997, 1
        %v8094 = vrot.slane %v7998, 1
        %v8095 = vsel %vm4498, %v8093, %v8094
        %v8096 = vrot.slane %v7999, 1
        %v8097 = vrot.slane %v8000, 1
        %v8098 = vsel %vm4498, %v8096, %v8097
        %v8099 = vrot.slane %v8001, 1
        %v8100 = vrot.slane %v8002, 1
        %v8101 = vsel %vm4498, %v8099, %v8100
        %v8102 = vrot.slane %v8003, 1
        %v8103 = vrot.slane %v8004, 1
        %v8104 = vsel %vm4498, %v8102, %v8103
        %v8105 = vrot.slane %v8005, 1
        %v8106 = vrot.slane %v8006, 1
        %v8107 = vsel %vm4498, %v8105, %v8106
        %v8108 = vrot.slane %v8007, 1
        %v8109 = vrot.slane %v8008, 1
        %v8110 = vsel %vm4498, %v8108, %v8109
        %v8111 = vrot.slane %v8009, 1
        %v8112 = vrot.slane %v8010, 1
        %v8113 = vsel %vm4498, %v8111, %v8112
        %v8114 = vrot.slane %v8011, 1
        %v8115 = vrot.slane %v8012, 1
        %v8116 = vsel %vm4498, %v8114, %v8115
        %v8117 = vrot.slane %v8013, 1
        %v8118 = vrot.slane %v8014, 1
        %v8119 = vsel %vm4498, %v8117, %v8118
        %v8150 = vadd.f32 %v8015, %v8077
        %v8151 = vadd.f32 %v8016, %v8076
        %v8152 = vadd.f32 %v8017, %v8080
        %v8153 = vadd.f32 %v8018, %v8079
        %v8154 = vadd.f32 %v8019, %v8083
        %v8155 = vadd.f32 %v8020, %v8082
        %v8156 = vadd.f32 %v8021, %v8086
        %v8157 = vadd.f32 %v8022, %v8085
        %v8158 = vadd.f32 %v8023, %v8089
        %v8159 = vadd.f32 %v8024, %v8088
        %v8160 = vadd.f32 %v8025, %v8092
        %v8161 = vadd.f32 %v8026, %v8091
        %v8162 = vadd.f32 %v8027, %v8095
        %v8163 = vadd.f32 %v8028, %v8094
        %v8164 = vadd.f32 %v8029, %v8098
        %v8165 = vadd.f32 %v8030, %v8097
        %v8166 = vadd.f32 %v8031, %v8101
        %v8167 = vadd.f32 %v8032, %v8100
        %v8168 = vadd.f32 %v8033, %v8104
        %v8169 = vadd.f32 %v8034, %v8103
        %v8170 = vadd.f32 %v8035, %v8107
        %v8171 = vadd.f32 %v8036, %v8106
        %v8172 = vadd.f32 %v8037, %v8110
        %v8173 = vadd.f32 %v8038, %v8109
        %v8174 = vadd.f32 %v8039, %v8113
        %v8175 = vadd.f32 %v8040, %v8112
        %v8176 = vadd.f32 %v8041, %v8116
        %v8177 = vadd.f32 %v8042, %v8115
        %v8178 = vadd.f32 %v8043, %v8119
        %v8179 = vadd.f32 %v8044, %v8118
        %8180 = vst.msk [vmem:[%s7768] sm:$0xff] %vm6106, %v8150
        %8181 = vst.msk [vmem:[%s7768 + $0x8] sm:$0x7f] %vm6201, %v8151
        %8182 = vst.msk [vmem:[%s7768 + $0x10] sm:$0xff] %vm6106, %v8152
        %8183 = vst.msk [vmem:[%s7768 + $0x18] sm:$0x7f] %vm6201, %v8153
        %8184 = vst.msk [vmem:[%s7768 + $0x20] sm:$0xff] %vm6106, %v8154
        %8185 = vst.msk [vmem:[%s7768 + $0x28] sm:$0x7f] %vm6201, %v8155
        %8186 = vst.msk [vmem:[%s7768 + $0x30] sm:$0xff] %vm6106, %v8156
        %8187 = vst.msk [vmem:[%s7768 + $0x38] sm:$0x7f] %vm6201, %v8157
        %8188 = vst.msk [vmem:[%s7768 + $0x40] sm:$0xff] %vm6106, %v8158
        %8189 = vst.msk [vmem:[%s7768 + $0x48] sm:$0x7f] %vm6201, %v8159
        %8190 = vst.msk [vmem:[%s7768 + $0x50] sm:$0xff] %vm6106, %v8160
        %8191 = vst.msk [vmem:[%s7768 + $0x58] sm:$0x7f] %vm6201, %v8161
        %8192 = vst.msk [vmem:[%s7768 + $0x60] sm:$0xff] %vm6106, %v8162
        %8193 = vst.msk [vmem:[%s7768 + $0x68] sm:$0x7f] %vm6201, %v8163
        %8194 = vst.msk [vmem:[%s7768 + $0x70] sm:$0xff] %vm6106, %v8164
        %8195 = vst.msk [vmem:[%s7768 + $0x78] sm:$0x7f] %vm6201, %v8165
        %8196 = vst.msk [vmem:[%s7768 + $0x80] sm:$0xff] %vm6106, %v8166
        %8197 = vst.msk [vmem:[%s7768 + $0x88] sm:$0x7f] %vm6201, %v8167
        %8198 = vst.msk [vmem:[%s7768 + $0x90] sm:$0xff] %vm6106, %v8168
        %8199 = vst.msk [vmem:[%s7768 + $0x98] sm:$0x7f] %vm6201, %v8169
        %8200 = vst.msk [vmem:[%s7768 + $0xa0] sm:$0xff] %vm6106, %v8170
        %8201 = vst.msk [vmem:[%s7768 + $0xa8] sm:$0x7f] %vm6201, %v8171
        %8202 = vst.msk [vmem:[%s7768 + $0xb0] sm:$0xff] %vm6106, %v8172
        %8203 = vst.msk [vmem:[%s7768 + $0xb8] sm:$0x7f] %vm6201, %v8173
        %8204 = vst.msk [vmem:[%s7768 + $0xc0] sm:$0xff] %vm6106, %v8174
        %8205 = vst.msk [vmem:[%s7768 + $0xc8] sm:$0x7f] %vm6201, %v8175
        %8206 = vst.msk [vmem:[%s7768 + $0xd0] sm:$0xff] %vm6106, %v8176
        %8207 = vst.msk [vmem:[%s7768 + $0xd8] sm:$0x7f] %vm6201, %v8177
        %8208 = vst.msk [vmem:[%s7768 + $0xe0] sm:$0xff] %vm6106, %v8178
        %8209 = vst.msk [vmem:[%s7768 + $0xe8] sm:$0x7f] %vm6201, %v8179
        %v8211 = vperm.slane %v7662, 0
        %v8213 = vmul.f32 %v7627, %v8211
        %v8214 = vmul.f32 %v7628, %v8211
        %v8215 = vmul.f32 %v7629, %v8211
        %v8216 = vmul.f32 %v7630, %v8211
        %v8217 = vmul.f32 %v7631, %v8211
        %v8218 = vmul.f32 %v7632, %v8211
        %v8219 = vmul.f32 %v7633, %v8211
        %v8220 = vmul.f32 %v7634, %v8211
        %v8221 = vmul.f32 %v7635, %v8211
        %v8222 = vmul.f32 %v7636, %v8211
        %v8223 = vmul.f32 %v7637, %v8211
        %v8224 = vmul.f32 %v7638, %v8211
        %v8225 = vmul.f32 %v7639, %v8211
        %v8226 = vmul.f32 %v7640, %v8211
        %v8227 = vmul.f32 %v7641, %v8211
        %v8228 = vmul.f32 %v7642, %v8211
        %v8229 = vmul.f32 %v7643, %v8211
        %v8230 = vmul.f32 %v7644, %v8211
        %v8231 = vmul.f32 %v7645, %v8211
        %v8232 = vmul.f32 %v7646, %v8211
        %v8233 = vmul.f32 %v7647, %v8211
        %v8234 = vmul.f32 %v7648, %v8211
        %v8235 = vmul.f32 %v7649, %v8211
        %v8236 = vmul.f32 %v7650, %v8211
        %v8237 = vmul.f32 %v7651, %v8211
        %v8238 = vmul.f32 %v7652, %v8211
        %v8239 = vmul.f32 %v7653, %v8211
        %v8240 = vmul.f32 %v7654, %v8211
        %v8241 = vmul.f32 %v7655, %v8211
        %v8242 = vmul.f32 %v7656, %v8211
        %v8243 = vmul.f32 %v7657, %v8211
        %v8244 = vmul.f32 %v7658, %v8211
        %v8245 = vld [vmem:[#allocation4 + $0x1] sm:$0xff]
        %v8246 = vld [vmem:[#allocation4 + $0x9] sm:$0x7f]
        %v8247 = vld [vmem:[#allocation4 + $0x11] sm:$0xff]
        %v8248 = vld [vmem:[#allocation4 + $0x19] sm:$0x7f]
        %v8249 = vld [vmem:[#allocation4 + $0x21] sm:$0xff]
        %v8250 = vld [vmem:[#allocation4 + $0x29] sm:$0x7f]
        %v8251 = vld [vmem:[#allocation4 + $0x31] sm:$0xff]
        %v8252 = vld [vmem:[#allocation4 + $0x39] sm:$0x7f]
        %v8253 = vld [vmem:[#allocation4 + $0x41] sm:$0xff]
        %v8254 = vld [vmem:[#allocation4 + $0x49] sm:$0x7f]
        %v8255 = vld [vmem:[#allocation4 + $0x51] sm:$0xff]
        %v8256 = vld [vmem:[#allocation4 + $0x59] sm:$0x7f]
        %v8257 = vld [vmem:[#allocation4 + $0x61] sm:$0xff]
        %v8258 = vld [vmem:[#allocation4 + $0x69] sm:$0x7f]
        %v8259 = vld [vmem:[#allocation4 + $0x71] sm:$0xff]
        %v8260 = vld [vmem:[#allocation4 + $0x79] sm:$0x7f]
        %v8261 = vld [vmem:[#allocation4 + $0x81] sm:$0xff]
        %v8262 = vld [vmem:[#allocation4 + $0x89] sm:$0x7f]
        %v8263 = vld [vmem:[#allocation4 + $0x91] sm:$0xff]
        %v8264 = vld [vmem:[#allocation4 + $0x99] sm:$0x7f]
        %v8265 = vld [vmem:[#allocation4 + $0xa1] sm:$0xff]
        %v8266 = vld [vmem:[#allocation4 + $0xa9] sm:$0x7f]
        %v8267 = vld [vmem:[#allocation4 + $0xb1] sm:$0xff]
        %v8268 = vld [vmem:[#allocation4 + $0xb9] sm:$0x7f]
        %v8269 = vld [vmem:[#allocation4 + $0xc1] sm:$0xff]
        %v8270 = vld [vmem:[#allocation4 + $0xc9] sm:$0x7f]
        %v8271 = vld [vmem:[#allocation4 + $0xd1] sm:$0xff]
        %v8272 = vld [vmem:[#allocation4 + $0xd9] sm:$0x7f]
        %v8273 = vld [vmem:[#allocation4 + $0xe1] sm:$0xff]
        %v8274 = vld [vmem:[#allocation4 + $0xe9] sm:$0x7f]
        %v8275 = vld [vmem:[#allocation4 + $0xf1] sm:$0xff]
        %v8276 = vld [vmem:[#allocation4 + $0xf9] sm:$0x7f]
        %v8277 = vadd.f32 %v8245, %v8213
        %v8278 = vadd.f32 %v8246, %v8214
        %v8279 = vadd.f32 %v8247, %v8215
        %v8280 = vadd.f32 %v8248, %v8216
        %v8281 = vadd.f32 %v8249, %v8217
        %v8282 = vadd.f32 %v8250, %v8218
        %v8283 = vadd.f32 %v8251, %v8219
        %v8284 = vadd.f32 %v8252, %v8220
        %v8285 = vadd.f32 %v8253, %v8221
        %v8286 = vadd.f32 %v8254, %v8222
        %v8287 = vadd.f32 %v8255, %v8223
        %v8288 = vadd.f32 %v8256, %v8224
        %v8289 = vadd.f32 %v8257, %v8225
        %v8290 = vadd.f32 %v8258, %v8226
        %v8291 = vadd.f32 %v8259, %v8227
        %v8292 = vadd.f32 %v8260, %v8228
        %v8293 = vadd.f32 %v8261, %v8229
        %v8294 = vadd.f32 %v8262, %v8230
        %v8295 = vadd.f32 %v8263, %v8231
        %v8296 = vadd.f32 %v8264, %v8232
        %v8297 = vadd.f32 %v8265, %v8233
        %v8298 = vadd.f32 %v8266, %v8234
        %v8299 = vadd.f32 %v8267, %v8235
        %v8300 = vadd.f32 %v8268, %v8236
        %v8301 = vadd.f32 %v8269, %v8237
        %v8302 = vadd.f32 %v8270, %v8238
        %v8303 = vadd.f32 %v8271, %v8239
        %v8304 = vadd.f32 %v8272, %v8240
        %v8305 = vadd.f32 %v8273, %v8241
        %v8306 = vadd.f32 %v8274, %v8242
        %v8307 = vadd.f32 %v8275, %v8243
        %v8308 = vadd.f32 %v8276, %v8244
        %8309 = vst.msk [vmem:[#allocation4 + $0x1] sm:$0xff] %vm6106, %v8277
        %8310 = vst.msk [vmem:[#allocation4 + $0x9] sm:$0x7f] %vm6201, %v8278
        %8311 = vst.msk [vmem:[#allocation4 + $0x11] sm:$0xff] %vm6106, %v8279
        %8312 = vst.msk [vmem:[#allocation4 + $0x19] sm:$0x7f] %vm6201, %v8280
        %8313 = vst.msk [vmem:[#allocation4 + $0x21] sm:$0xff] %vm6106, %v8281
        %8314 = vst.msk [vmem:[#allocation4 + $0x29] sm:$0x7f] %vm6201, %v8282
        %8315 = vst.msk [vmem:[#allocation4 + $0x31] sm:$0xff] %vm6106, %v8283
        %8316 = vst.msk [vmem:[#allocation4 + $0x39] sm:$0x7f] %vm6201, %v8284
        %8317 = vst.msk [vmem:[#allocation4 + $0x41] sm:$0xff] %vm6106, %v8285
        %8318 = vst.msk [vmem:[#allocation4 + $0x49] sm:$0x7f] %vm6201, %v8286
        %8319 = vst.msk [vmem:[#allocation4 + $0x51] sm:$0xff] %vm6106, %v8287
        %8320 = vst.msk [vmem:[#allocation4 + $0x59] sm:$0x7f] %vm6201, %v8288
        %8321 = vst.msk [vmem:[#allocation4 + $0x61] sm:$0xff] %vm6106, %v8289
        %8322 = vst.msk [vmem:[#allocation4 + $0x69] sm:$0x7f] %vm6201, %v8290
        %8323 = vst.msk [vmem:[#allocation4 + $0x71] sm:$0xff] %vm6106, %v8291
        %8324 = vst.msk [vmem:[#allocation4 + $0x79] sm:$0x7f] %vm6201, %v8292
        %8325 = vst.msk [vmem:[#allocation4 + $0x81] sm:$0xff] %vm6106, %v8293
        %8326 = vst.msk [vmem:[#allocation4 + $0x89] sm:$0x7f] %vm6201, %v8294
        %8327 = vst.msk [vmem:[#allocation4 + $0x91] sm:$0xff] %vm6106, %v8295
        %8328 = vst.msk [vmem:[#allocation4 + $0x99] sm:$0x7f] %vm6201, %v8296
        %8329 = vst.msk [vmem:[#allocation4 + $0xa1] sm:$0xff] %vm6106, %v8297
        %8330 = vst.msk [vmem:[#allocation4 + $0xa9] sm:$0x7f] %vm6201, %v8298
        %8331 = vst.msk [vmem:[#allocation4 + $0xb1] sm:$0xff] %vm6106, %v8299
        %8332 = vst.msk [vmem:[#allocation4 + $0xb9] sm:$0x7f] %vm6201, %v8300
        %8333 = vst.msk [vmem:[#allocation4 + $0xc1] sm:$0xff] %vm6106, %v8301
        %8334 = vst.msk [vmem:[#allocation4 + $0xc9] sm:$0x7f] %vm6201, %v8302
        %8335 = vst.msk [vmem:[#allocation4 + $0xd1] sm:$0xff] %vm6106, %v8303
        %8336 = vst.msk [vmem:[#allocation4 + $0xd9] sm:$0x7f] %vm6201, %v8304
        %8337 = vst.msk [vmem:[#allocation4 + $0xe1] sm:$0xff] %vm6106, %v8305
        %8338 = vst.msk [vmem:[#allocation4 + $0xe9] sm:$0x7f] %vm6201, %v8306
        %8339 = vst.msk [vmem:[#allocation4 + $0xf1] sm:$0xff] %vm6106, %v8307
        %8340 = vst.msk [vmem:[#allocation4 + $0xf9] sm:$0x7f] %vm6201, %v8308
        %v8342 = vperm.slane %v7664, 0
        %v8344 = vmul.f32 %v7627, %v8342
        %v8345 = vmul.f32 %v7628, %v8342
        %v8346 = vmul.f32 %v7629, %v8342
        %v8347 = vmul.f32 %v7630, %v8342
        %v8348 = vmul.f32 %v7631, %v8342
        %v8349 = vmul.f32 %v7632, %v8342
        %v8350 = vmul.f32 %v7633, %v8342
        %v8351 = vmul.f32 %v7634, %v8342
        %v8352 = vmul.f32 %v7635, %v8342
        %v8353 = vmul.f32 %v7636, %v8342
        %v8354 = vmul.f32 %v7637, %v8342
        %v8355 = vmul.f32 %v7638, %v8342
        %v8356 = vmul.f32 %v7639, %v8342
        %v8357 = vmul.f32 %v7640, %v8342
        %v8358 = vmul.f32 %v7641, %v8342
        %v8359 = vmul.f32 %v7642, %v8342
        %v8360 = vmul.f32 %v7643, %v8342
        %v8361 = vmul.f32 %v7644, %v8342
        %v8362 = vmul.f32 %v7645, %v8342
        %v8363 = vmul.f32 %v7646, %v8342
        %v8364 = vmul.f32 %v7647, %v8342
        %v8365 = vmul.f32 %v7648, %v8342
        %v8366 = vmul.f32 %v7649, %v8342
        %v8367 = vmul.f32 %v7650, %v8342
        %v8368 = vmul.f32 %v7651, %v8342
        %v8369 = vmul.f32 %v7652, %v8342
        %v8370 = vmul.f32 %v7653, %v8342
        %v8371 = vmul.f32 %v7654, %v8342
        %v8372 = vmul.f32 %v7655, %v8342
        %v8373 = vmul.f32 %v7656, %v8342
        %v8374 = vmul.f32 %v7657, %v8342
        %v8375 = vmul.f32 %v7658, %v8342
        %v8376 = vld [vmem:[#allocation4] sm:$0xff]
        %v8377 = vld [vmem:[#allocation4 + $0x8] sm:$0x7f]
        %v8378 = vld [vmem:[#allocation4 + $0x10] sm:$0xff]
        %v8379 = vld [vmem:[#allocation4 + $0x18] sm:$0x7f]
        %v8380 = vld [vmem:[#allocation4 + $0x20] sm:$0xff]
        %v8381 = vld [vmem:[#allocation4 + $0x28] sm:$0x7f]
        %v8382 = vld [vmem:[#allocation4 + $0x30] sm:$0xff]
        %v8383 = vld [vmem:[#allocation4 + $0x38] sm:$0x7f]
        %v8384 = vld [vmem:[#allocation4 + $0x40] sm:$0xff]
        %v8385 = vld [vmem:[#allocation4 + $0x48] sm:$0x7f]
        %v8386 = vld [vmem:[#allocation4 + $0x50] sm:$0xff]
        %v8387 = vld [vmem:[#allocation4 + $0x58] sm:$0x7f]
        %v8388 = vld [vmem:[#allocation4 + $0x60] sm:$0xff]
        %v8389 = vld [vmem:[#allocation4 + $0x68] sm:$0x7f]
        %v8390 = vld [vmem:[#allocation4 + $0x70] sm:$0xff]
        %v8391 = vld [vmem:[#allocation4 + $0x78] sm:$0x7f]
        %v8392 = vld [vmem:[#allocation4 + $0x80] sm:$0xff]
        %v8393 = vld [vmem:[#allocation4 + $0x88] sm:$0x7f]
        %v8394 = vld [vmem:[#allocation4 + $0x90] sm:$0xff]
        %v8395 = vld [vmem:[#allocation4 + $0x98] sm:$0x7f]
        %v8396 = vld [vmem:[#allocation4 + $0xa0] sm:$0xff]
        %v8397 = vld [vmem:[#allocation4 + $0xa8] sm:$0x7f]
        %v8398 = vld [vmem:[#allocation4 + $0xb0] sm:$0xff]
        %v8399 = vld [vmem:[#allocation4 + $0xb8] sm:$0x7f]
        %v8400 = vld [vmem:[#allocation4 + $0xc0] sm:$0xff]
        %v8401 = vld [vmem:[#allocation4 + $0xc8] sm:$0x7f]
        %v8402 = vld [vmem:[#allocation4 + $0xd0] sm:$0xff]
        %v8403 = vld [vmem:[#allocation4 + $0xd8] sm:$0x7f]
        %v8404 = vld [vmem:[#allocation4 + $0xe0] sm:$0xff]
        %v8405 = vld [vmem:[#allocation4 + $0xe8] sm:$0x7f]
        %v8406 = vld [vmem:[#allocation4 + $0xf0] sm:$0xff]
        %v8407 = vld [vmem:[#allocation4 + $0xf8] sm:$0x7f]
        %v8440 = vrot.slane %v8344, 1
        %v8441 = vrot.slane %v8345, 1
        %v8442 = vsel %vm4498, %v8440, %v8441
        %v8443 = vrot.slane %v8346, 1
        %v8444 = vrot.slane %v8347, 1
        %v8445 = vsel %vm4498, %v8443, %v8444
        %v8446 = vrot.slane %v8348, 1
        %v8447 = vrot.slane %v8349, 1
        %v8448 = vsel %vm4498, %v8446, %v8447
        %v8449 = vrot.slane %v8350, 1
        %v8450 = vrot.slane %v8351, 1
        %v8451 = vsel %vm4498, %v8449, %v8450
        %v8452 = vrot.slane %v8352, 1
        %v8453 = vrot.slane %v8353, 1
        %v8454 = vsel %vm4498, %v8452, %v8453
        %v8455 = vrot.slane %v8354, 1
        %v8456 = vrot.slane %v8355, 1
        %v8457 = vsel %vm4498, %v8455, %v8456
        %v8458 = vrot.slane %v8356, 1
        %v8459 = vrot.slane %v8357, 1
        %v8460 = vsel %vm4498, %v8458, %v8459
        %v8461 = vrot.slane %v8358, 1
        %v8462 = vrot.slane %v8359, 1
        %v8463 = vsel %vm4498, %v8461, %v8462
        %v8464 = vrot.slane %v8360, 1
        %v8465 = vrot.slane %v8361, 1
        %v8466 = vsel %vm4498, %v8464, %v8465
        %v8467 = vrot.slane %v8362, 1
        %v8468 = vrot.slane %v8363, 1
        %v8469 = vsel %vm4498, %v8467, %v8468
        %v8470 = vrot.slane %v8364, 1
        %v8471 = vrot.slane %v8365, 1
        %v8472 = vsel %vm4498, %v8470, %v8471
        %v8473 = vrot.slane %v8366, 1
        %v8474 = vrot.slane %v8367, 1
        %v8475 = vsel %vm4498, %v8473, %v8474
        %v8476 = vrot.slane %v8368, 1
        %v8477 = vrot.slane %v8369, 1
        %v8478 = vsel %vm4498, %v8476, %v8477
        %v8479 = vrot.slane %v8370, 1
        %v8480 = vrot.slane %v8371, 1
        %v8481 = vsel %vm4498, %v8479, %v8480
        %v8482 = vrot.slane %v8372, 1
        %v8483 = vrot.slane %v8373, 1
        %v8484 = vsel %vm4498, %v8482, %v8483
        %v8485 = vrot.slane %v8374, 1
        %v8486 = vrot.slane %v8375, 1
        %v8487 = vsel %vm4498, %v8485, %v8486
        %v8520 = vadd.f32 %v8376, %v8442
        %v8521 = vadd.f32 %v8377, %v8441
        %v8522 = vadd.f32 %v8378, %v8445
        %v8523 = vadd.f32 %v8379, %v8444
        %v8524 = vadd.f32 %v8380, %v8448
        %v8525 = vadd.f32 %v8381, %v8447
        %v8526 = vadd.f32 %v8382, %v8451
        %v8527 = vadd.f32 %v8383, %v8450
        %v8528 = vadd.f32 %v8384, %v8454
        %v8529 = vadd.f32 %v8385, %v8453
        %v8530 = vadd.f32 %v8386, %v8457
        %v8531 = vadd.f32 %v8387, %v8456
        %v8532 = vadd.f32 %v8388, %v8460
        %v8533 = vadd.f32 %v8389, %v8459
        %v8534 = vadd.f32 %v8390, %v8463
        %v8535 = vadd.f32 %v8391, %v8462
        %v8536 = vadd.f32 %v8392, %v8466
        %v8537 = vadd.f32 %v8393, %v8465
        %v8538 = vadd.f32 %v8394, %v8469
        %v8539 = vadd.f32 %v8395, %v8468
        %v8540 = vadd.f32 %v8396, %v8472
        %v8541 = vadd.f32 %v8397, %v8471
        %v8542 = vadd.f32 %v8398, %v8475
        %v8543 = vadd.f32 %v8399, %v8474
        %v8544 = vadd.f32 %v8400, %v8478
        %v8545 = vadd.f32 %v8401, %v8477
        %v8546 = vadd.f32 %v8402, %v8481
        %v8547 = vadd.f32 %v8403, %v8480
        %v8548 = vadd.f32 %v8404, %v8484
        %v8549 = vadd.f32 %v8405, %v8483
        %v8550 = vadd.f32 %v8406, %v8487
        %v8551 = vadd.f32 %v8407, %v8486
        %8552 = vst.msk [vmem:[#allocation4] sm:$0xff] %vm6106, %v8520
        %8553 = vst.msk [vmem:[#allocation4 + $0x8] sm:$0x7f] %vm6201, %v8521
        %8554 = vst.msk [vmem:[#allocation4 + $0x10] sm:$0xff] %vm6106, %v8522
        %8555 = vst.msk [vmem:[#allocation4 + $0x18] sm:$0x7f] %vm6201, %v8523
        %8556 = vst.msk [vmem:[#allocation4 + $0x20] sm:$0xff] %vm6106, %v8524
        %8557 = vst.msk [vmem:[#allocation4 + $0x28] sm:$0x7f] %vm6201, %v8525
        %8558 = vst.msk [vmem:[#allocation4 + $0x30] sm:$0xff] %vm6106, %v8526
        %8559 = vst.msk [vmem:[#allocation4 + $0x38] sm:$0x7f] %vm6201, %v8527
        %8560 = vst.msk [vmem:[#allocation4 + $0x40] sm:$0xff] %vm6106, %v8528
        %8561 = vst.msk [vmem:[#allocation4 + $0x48] sm:$0x7f] %vm6201, %v8529
        %8562 = vst.msk [vmem:[#allocation4 + $0x50] sm:$0xff] %vm6106, %v8530
        %8563 = vst.msk [vmem:[#allocation4 + $0x58] sm:$0x7f] %vm6201, %v8531
        %8564 = vst.msk [vmem:[#allocation4 + $0x60] sm:$0xff] %vm6106, %v8532
        %8565 = vst.msk [vmem:[#allocation4 + $0x68] sm:$0x7f] %vm6201, %v8533
        %8566 = vst.msk [vmem:[#allocation4 + $0x70] sm:$0xff] %vm6106, %v8534
        %8567 = vst.msk [vmem:[#allocation4 + $0x78] sm:$0x7f] %vm6201, %v8535
        %8568 = vst.msk [vmem:[#allocation4 + $0x80] sm:$0xff] %vm6106, %v8536
        %8569 = vst.msk [vmem:[#allocation4 + $0x88] sm:$0x7f] %vm6201, %v8537
        %8570 = vst.msk [vmem:[#allocation4 + $0x90] sm:$0xff] %vm6106, %v8538
        %8571 = vst.msk [vmem:[#allocation4 + $0x98] sm:$0x7f] %vm6201, %v8539
        %8572 = vst.msk [vmem:[#allocation4 + $0xa0] sm:$0xff] %vm6106, %v8540
        %8573 = vst.msk [vmem:[#allocation4 + $0xa8] sm:$0x7f] %vm6201, %v8541
        %8574 = vst.msk [vmem:[#allocation4 + $0xb0] sm:$0xff] %vm6106, %v8542
        %8575 = vst.msk [vmem:[#allocation4 + $0xb8] sm:$0x7f] %vm6201, %v8543
        %8576 = vst.msk [vmem:[#allocation4 + $0xc0] sm:$0xff] %vm6106, %v8544
        %8577 = vst.msk [vmem:[#allocation4 + $0xc8] sm:$0x7f] %vm6201, %v8545
        %8578 = vst.msk [vmem:[#allocation4 + $0xd0] sm:$0xff] %vm6106, %v8546
        %8579 = vst.msk [vmem:[#allocation4 + $0xd8] sm:$0x7f] %vm6201, %v8547
        %8580 = vst.msk [vmem:[#allocation4 + $0xe0] sm:$0xff] %vm6106, %v8548
        %8581 = vst.msk [vmem:[#allocation4 + $0xe8] sm:$0x7f] %vm6201, %v8549
        %8582 = vst.msk [vmem:[#allocation4 + $0xf0] sm:$0xff] %vm6106, %v8550
        %8583 = vst.msk [vmem:[#allocation4 + $0xf8] sm:$0x7f] %vm6201, %v8551
        %v8585 = vperm.slane %v7665, 0
        %v8587 = vmul.f32 %v7629, %v8585
        %v8588 = vmul.f32 %v7630, %v8585
        %v8589 = vmul.f32 %v7631, %v8585
        %v8590 = vmul.f32 %v7632, %v8585
        %v8591 = vmul.f32 %v7633, %v8585
        %v8592 = vmul.f32 %v7634, %v8585
        %v8593 = vmul.f32 %v7635, %v8585
        %v8594 = vmul.f32 %v7636, %v8585
        %v8595 = vmul.f32 %v7637, %v8585
        %v8596 = vmul.f32 %v7638, %v8585
        %v8597 = vmul.f32 %v7639, %v8585
        %v8598 = vmul.f32 %v7640, %v8585
        %v8599 = vmul.f32 %v7641, %v8585
        %v8600 = vmul.f32 %v7642, %v8585
        %v8601 = vmul.f32 %v7643, %v8585
        %v8602 = vmul.f32 %v7644, %v8585
        %v8603 = vmul.f32 %v7645, %v8585
        %v8604 = vmul.f32 %v7646, %v8585
        %v8605 = vmul.f32 %v7647, %v8585
        %v8606 = vmul.f32 %v7648, %v8585
        %v8607 = vmul.f32 %v7649, %v8585
        %v8608 = vmul.f32 %v7650, %v8585
        %v8609 = vmul.f32 %v7651, %v8585
        %v8610 = vmul.f32 %v7652, %v8585
        %v8611 = vmul.f32 %v7653, %v8585
        %v8612 = vmul.f32 %v7654, %v8585
        %v8613 = vmul.f32 %v7655, %v8585
        %v8614 = vmul.f32 %v7656, %v8585
        %v8615 = vmul.f32 %v7657, %v8585
        %v8616 = vmul.f32 %v7658, %v8585
        %v8617 = vld [vmem:[#allocation4 + $0x1] sm:$0xff]
        %v8618 = vld [vmem:[#allocation4 + $0x9] sm:$0x7f]
        %v8619 = vld [vmem:[#allocation4 + $0x11] sm:$0xff]
        %v8620 = vld [vmem:[#allocation4 + $0x19] sm:$0x7f]
        %v8621 = vld [vmem:[#allocation4 + $0x21] sm:$0xff]
        %v8622 = vld [vmem:[#allocation4 + $0x29] sm:$0x7f]
        %v8623 = vld [vmem:[#allocation4 + $0x31] sm:$0xff]
        %v8624 = vld [vmem:[#allocation4 + $0x39] sm:$0x7f]
        %v8625 = vld [vmem:[#allocation4 + $0x41] sm:$0xff]
        %v8626 = vld [vmem:[#allocation4 + $0x49] sm:$0x7f]
        %v8627 = vld [vmem:[#allocation4 + $0x51] sm:$0xff]
        %v8628 = vld [vmem:[#allocation4 + $0x59] sm:$0x7f]
        %v8629 = vld [vmem:[#allocation4 + $0x61] sm:$0xff]
        %v8630 = vld [vmem:[#allocation4 + $0x69] sm:$0x7f]
        %v8631 = vld [vmem:[#allocation4 + $0x71] sm:$0xff]
        %v8632 = vld [vmem:[#allocation4 + $0x79] sm:$0x7f]
        %v8633 = vld [vmem:[#allocation4 + $0x81] sm:$0xff]
        %v8634 = vld [vmem:[#allocation4 + $0x89] sm:$0x7f]
        %v8635 = vld [vmem:[#allocation4 + $0x91] sm:$0xff]
        %v8636 = vld [vmem:[#allocation4 + $0x99] sm:$0x7f]
        %v8637 = vld [vmem:[#allocation4 + $0xa1] sm:$0xff]
        %v8638 = vld [vmem:[#allocation4 + $0xa9] sm:$0x7f]
        %v8639 = vld [vmem:[#allocation4 + $0xb1] sm:$0xff]
        %v8640 = vld [vmem:[#allocation4 + $0xb9] sm:$0x7f]
        %v8641 = vld [vmem:[#allocation4 + $0xc1] sm:$0xff]
        %v8642 = vld [vmem:[#allocation4 + $0xc9] sm:$0x7f]
        %v8643 = vld [vmem:[#allocation4 + $0xd1] sm:$0xff]
        %v8644 = vld [vmem:[#allocation4 + $0xd9] sm:$0x7f]
        %v8645 = vld [vmem:[#allocation4 + $0xe1] sm:$0xff]
        %v8646 = vld [vmem:[#allocation4 + $0xe9] sm:$0x7f]
        %v8647 = vadd.f32 %v8617, %v8587
        %v8648 = vadd.f32 %v8618, %v8588
        %v8649 = vadd.f32 %v8619, %v8589
        %v8650 = vadd.f32 %v8620, %v8590
        %v8651 = vadd.f32 %v8621, %v8591
        %v8652 = vadd.f32 %v8622, %v8592
        %v8653 = vadd.f32 %v8623, %v8593
        %v8654 = vadd.f32 %v8624, %v8594
        %v8655 = vadd.f32 %v8625, %v8595
        %v8656 = vadd.f32 %v8626, %v8596
        %v8657 = vadd.f32 %v8627, %v8597
        %v8658 = vadd.f32 %v8628, %v8598
        %v8659 = vadd.f32 %v8629, %v8599
        %v8660 = vadd.f32 %v8630, %v8600
        %v8661 = vadd.f32 %v8631, %v8601
        %v8662 = vadd.f32 %v8632, %v8602
        %v8663 = vadd.f32 %v8633, %v8603
        %v8664 = vadd.f32 %v8634, %v8604
        %v8665 = vadd.f32 %v8635, %v8605
        %v8666 = vadd.f32 %v8636, %v8606
        %v8667 = vadd.f32 %v8637, %v8607
        %v8668 = vadd.f32 %v8638, %v8608
        %v8669 = vadd.f32 %v8639, %v8609
        %v8670 = vadd.f32 %v8640, %v8610
        %v8671 = vadd.f32 %v8641, %v8611
        %v8672 = vadd.f32 %v8642, %v8612
        %v8673 = vadd.f32 %v8643, %v8613
        %v8674 = vadd.f32 %v8644, %v8614
        %v8675 = vadd.f32 %v8645, %v8615
        %v8676 = vadd.f32 %v8646, %v8616
        %8677 = vst.msk [vmem:[#allocation4 + $0x1] sm:$0xff] %vm6106, %v8647
        %8678 = vst.msk [vmem:[#allocation4 + $0x9] sm:$0x7f] %vm6201, %v8648
        %8679 = vst.msk [vmem:[#allocation4 + $0x11] sm:$0xff] %vm6106, %v8649
        %8680 = vst.msk [vmem:[#allocation4 + $0x19] sm:$0x7f] %vm6201, %v8650
        %8681 = vst.msk [vmem:[#allocation4 + $0x21] sm:$0xff] %vm6106, %v8651
        %8682 = vst.msk [vmem:[#allocation4 + $0x29] sm:$0x7f] %vm6201, %v8652
        %8683 = vst.msk [vmem:[#allocation4 + $0x31] sm:$0xff] %vm6106, %v8653
        %8684 = vst.msk [vmem:[#allocation4 + $0x39] sm:$0x7f] %vm6201, %v8654
        %8685 = vst.msk [vmem:[#allocation4 + $0x41] sm:$0xff] %vm6106, %v8655
        %8686 = vst.msk [vmem:[#allocation4 + $0x49] sm:$0x7f] %vm6201, %v8656
        %8687 = vst.msk [vmem:[#allocation4 + $0x51] sm:$0xff] %vm6106, %v8657
        %8688 = vst.msk [vmem:[#allocation4 + $0x59] sm:$0x7f] %vm6201, %v8658
        %8689 = vst.msk [vmem:[#allocation4 + $0x61] sm:$0xff] %vm6106, %v8659
        %8690 = vst.msk [vmem:[#allocation4 + $0x69] sm:$0x7f] %vm6201, %v8660
        %8691 = vst.msk [vmem:[#allocation4 + $0x71] sm:$0xff] %vm6106, %v8661
        %8692 = vst.msk [vmem:[#allocation4 + $0x79] sm:$0x7f] %vm6201, %v8662
        %8693 = vst.msk [vmem:[#allocation4 + $0x81] sm:$0xff] %vm6106, %v8663
        %8694 = vst.msk [vmem:[#allocation4 + $0x89] sm:$0x7f] %vm6201, %v8664
        %8695 = vst.msk [vmem:[#allocation4 + $0x91] sm:$0xff] %vm6106, %v8665
        %8696 = vst.msk [vmem:[#allocation4 + $0x99] sm:$0x7f] %vm6201, %v8666
        %8697 = vst.msk [vmem:[#allocation4 + $0xa1] sm:$0xff] %vm6106, %v8667
        %8698 = vst.msk [vmem:[#allocation4 + $0xa9] sm:$0x7f] %vm6201, %v8668
        %8699 = vst.msk [vmem:[#allocation4 + $0xb1] sm:$0xff] %vm6106, %v8669
        %8700 = vst.msk [vmem:[#allocation4 + $0xb9] sm:$0x7f] %vm6201, %v8670
        %8701 = vst.msk [vmem:[#allocation4 + $0xc1] sm:$0xff] %vm6106, %v8671
        %8702 = vst.msk [vmem:[#allocation4 + $0xc9] sm:$0x7f] %vm6201, %v8672
        %8703 = vst.msk [vmem:[#allocation4 + $0xd1] sm:$0xff] %vm6106, %v8673
        %8704 = vst.msk [vmem:[#allocation4 + $0xd9] sm:$0x7f] %vm6201, %v8674
        %8705 = vst.msk [vmem:[#allocation4 + $0xe1] sm:$0xff] %vm6106, %v8675
        %8706 = vst.msk [vmem:[#allocation4 + $0xe9] sm:$0x7f] %vm6201, %v8676
        %v8708 = vperm.slane %v7666, 0
        %v8710 = vmul.f32 %v7629, %v8708
        %v8711 = vmul.f32 %v7630, %v8708
        %v8712 = vmul.f32 %v7631, %v8708
        %v8713 = vmul.f32 %v7632, %v8708
        %v8714 = vmul.f32 %v7633, %v8708
        %v8715 = vmul.f32 %v7634, %v8708
        %v8716 = vmul.f32 %v7635, %v8708
        %v8717 = vmul.f32 %v7636, %v8708
        %v8718 = vmul.f32 %v7637, %v8708
        %v8719 = vmul.f32 %v7638, %v8708
        %v8720 = vmul.f32 %v7639, %v8708
        %v8721 = vmul.f32 %v7640, %v8708
        %v8722 = vmul.f32 %v7641, %v8708
        %v8723 = vmul.f32 %v7642, %v8708
        %v8724 = vmul.f32 %v7643, %v8708
        %v8725 = vmul.f32 %v7644, %v8708
        %v8726 = vmul.f32 %v7645, %v8708
        %v8727 = vmul.f32 %v7646, %v8708
        %v8728 = vmul.f32 %v7647, %v8708
        %v8729 = vmul.f32 %v7648, %v8708
        %v8730 = vmul.f32 %v7649, %v8708
        %v8731 = vmul.f32 %v7650, %v8708
        %v8732 = vmul.f32 %v7651, %v8708
        %v8733 = vmul.f32 %v7652, %v8708
        %v8734 = vmul.f32 %v7653, %v8708
        %v8735 = vmul.f32 %v7654, %v8708
        %v8736 = vmul.f32 %v7655, %v8708
        %v8737 = vmul.f32 %v7656, %v8708
        %v8738 = vmul.f32 %v7657, %v8708
        %v8739 = vmul.f32 %v7658, %v8708
        %v8740 = vld [vmem:[#allocation4] sm:$0xff]
        %v8741 = vld [vmem:[#allocation4 + $0x8] sm:$0xff]
        %v8742 = vld [vmem:[#allocation4 + $0x10] sm:$0xff]
        %v8743 = vld [vmem:[#allocation4 + $0x18] sm:$0xff]
        %v8744 = vld [vmem:[#allocation4 + $0x20] sm:$0xff]
        %v8745 = vld [vmem:[#allocation4 + $0x28] sm:$0xff]
        %v8746 = vld [vmem:[#allocation4 + $0x30] sm:$0xff]
        %v8747 = vld [vmem:[#allocation4 + $0x38] sm:$0xff]
        %v8748 = vld [vmem:[#allocation4 + $0x40] sm:$0xff]
        %v8749 = vld [vmem:[#allocation4 + $0x48] sm:$0xff]
        %v8750 = vld [vmem:[#allocation4 + $0x50] sm:$0xff]
        %v8751 = vld [vmem:[#allocation4 + $0x58] sm:$0xff]
        %v8752 = vld [vmem:[#allocation4 + $0x60] sm:$0xff]
        %v8753 = vld [vmem:[#allocation4 + $0x68] sm:$0xff]
        %v8754 = vld [vmem:[#allocation4 + $0x70] sm:$0xff]
        %v8755 = vld [vmem:[#allocation4 + $0x78] sm:$0xff]
        %v8756 = vld [vmem:[#allocation4 + $0x80] sm:$0xff]
        %v8757 = vld [vmem:[#allocation4 + $0x88] sm:$0xff]
        %v8758 = vld [vmem:[#allocation4 + $0x90] sm:$0xff]
        %v8759 = vld [vmem:[#allocation4 + $0x98] sm:$0xff]
        %v8760 = vld [vmem:[#allocation4 + $0xa0] sm:$0xff]
        %v8761 = vld [vmem:[#allocation4 + $0xa8] sm:$0xff]
        %v8762 = vld [vmem:[#allocation4 + $0xb0] sm:$0xff]
        %v8763 = vld [vmem:[#allocation4 + $0xb8] sm:$0xff]
        %v8764 = vld [vmem:[#allocation4 + $0xc0] sm:$0xff]
        %v8765 = vld [vmem:[#allocation4 + $0xc8] sm:$0xff]
        %v8766 = vld [vmem:[#allocation4 + $0xd0] sm:$0xff]
        %v8767 = vld [vmem:[#allocation4 + $0xd8] sm:$0xff]
        %v8768 = vld [vmem:[#allocation4 + $0xe0] sm:$0xff]
        %v8769 = vld [vmem:[#allocation4 + $0xe8] sm:$0xff]
        %v8770 = vadd.f32 %v8740, %v8710
        %v8771 = vadd.f32 %v8741, %v8711
        %v8772 = vadd.f32 %v8742, %v8712
        %v8773 = vadd.f32 %v8743, %v8713
        %v8774 = vadd.f32 %v8744, %v8714
        %v8775 = vadd.f32 %v8745, %v8715
        %v8776 = vadd.f32 %v8746, %v8716
        %v8777 = vadd.f32 %v8747, %v8717
        %v8778 = vadd.f32 %v8748, %v8718
        %v8779 = vadd.f32 %v8749, %v8719
        %v8780 = vadd.f32 %v8750, %v8720
        %v8781 = vadd.f32 %v8751, %v8721
        %v8782 = vadd.f32 %v8752, %v8722
        %v8783 = vadd.f32 %v8753, %v8723
        %v8784 = vadd.f32 %v8754, %v8724
        %v8785 = vadd.f32 %v8755, %v8725
        %v8786 = vadd.f32 %v8756, %v8726
        %v8787 = vadd.f32 %v8757, %v8727
        %v8788 = vadd.f32 %v8758, %v8728
        %v8789 = vadd.f32 %v8759, %v8729
        %v8790 = vadd.f32 %v8760, %v8730
        %v8791 = vadd.f32 %v8761, %v8731
        %v8792 = vadd.f32 %v8762, %v8732
        %v8793 = vadd.f32 %v8763, %v8733
        %v8794 = vadd.f32 %v8764, %v8734
        %v8795 = vadd.f32 %v8765, %v8735
        %v8796 = vadd.f32 %v8766, %v8736
        %v8797 = vadd.f32 %v8767, %v8737
        %v8798 = vadd.f32 %v8768, %v8738
        %v8799 = vadd.f32 %v8769, %v8739
        %8800 = vst.msk [vmem:[#allocation4] sm:$0xff] %vm6106, %v8770
        %8801 = vst.msk [vmem:[#allocation4 + $0x8] sm:$0xff] %vm6106, %v8771
        %8802 = vst.msk [vmem:[#allocation4 + $0x10] sm:$0xff] %vm6106, %v8772
        %8803 = vst.msk [vmem:[#allocation4 + $0x18] sm:$0xff] %vm6106, %v8773
        %8804 = vst.msk [vmem:[#allocation4 + $0x20] sm:$0xff] %vm6106, %v8774
        %8805 = vst.msk [vmem:[#allocation4 + $0x28] sm:$0xff] %vm6106, %v8775
        %8806 = vst.msk [vmem:[#allocation4 + $0x30] sm:$0xff] %vm6106, %v8776
        %8807 = vst.msk [vmem:[#allocation4 + $0x38] sm:$0xff] %vm6106, %v8777
        %8808 = vst.msk [vmem:[#allocation4 + $0x40] sm:$0xff] %vm6106, %v8778
        %8809 = vst.msk [vmem:[#allocation4 + $0x48] sm:$0xff] %vm6106, %v8779
        %8810 = vst.msk [vmem:[#allocation4 + $0x50] sm:$0xff] %vm6106, %v8780
        %8811 = vst.msk [vmem:[#allocation4 + $0x58] sm:$0xff] %vm6106, %v8781
        %8812 = vst.msk [vmem:[#allocation4 + $0x60] sm:$0xff] %vm6106, %v8782
        %8813 = vst.msk [vmem:[#allocation4 + $0x68] sm:$0xff] %vm6106, %v8783
        %8814 = vst.msk [vmem:[#allocation4 + $0x70] sm:$0xff] %vm6106, %v8784
        %8815 = vst.msk [vmem:[#allocation4 + $0x78] sm:$0xff] %vm6106, %v8785
        %8816 = vst.msk [vmem:[#allocation4 + $0x80] sm:$0xff] %vm6106, %v8786
        %8817 = vst.msk [vmem:[#allocation4 + $0x88] sm:$0xff] %vm6106, %v8787
        %8818 = vst.msk [vmem:[#allocation4 + $0x90] sm:$0xff] %vm6106, %v8788
        %8819 = vst.msk [vmem:[#allocation4 + $0x98] sm:$0xff] %vm6106, %v8789
        %8820 = vst.msk [vmem:[#allocation4 + $0xa0] sm:$0xff] %vm6106, %v8790
        %8821 = vst.msk [vmem:[#allocation4 + $0xa8] sm:$0xff] %vm6106, %v8791
        %8822 = vst.msk [vmem:[#allocation4 + $0xb0] sm:$0xff] %vm6106, %v8792
        %8823 = vst.msk [vmem:[#allocation4 + $0xb8] sm:$0xff] %vm6106, %v8793
        %8824 = vst.msk [vmem:[#allocation4 + $0xc0] sm:$0xff] %vm6106, %v8794
        %8825 = vst.msk [vmem:[#allocation4 + $0xc8] sm:$0xff] %vm6106, %v8795
        %8826 = vst.msk [vmem:[#allocation4 + $0xd0] sm:$0xff] %vm6106, %v8796
        %8827 = vst.msk [vmem:[#allocation4 + $0xd8] sm:$0xff] %vm6106, %v8797
        %8828 = vst.msk [vmem:[#allocation4 + $0xe0] sm:$0xff] %vm6106, %v8798
        %8829 = vst.msk [vmem:[#allocation4 + $0xe8] sm:$0xff] %vm6106, %v8799
        %v8831 = vperm.slane %v7667, 0
        %v8833 = vmul.f32 %v7629, %v8831
        %v8834 = vmul.f32 %v7630, %v8831
        %v8835 = vmul.f32 %v7631, %v8831
        %v8836 = vmul.f32 %v7632, %v8831
        %v8837 = vmul.f32 %v7633, %v8831
        %v8838 = vmul.f32 %v7634, %v8831
        %v8839 = vmul.f32 %v7635, %v8831
        %v8840 = vmul.f32 %v7636, %v8831
        %v8841 = vmul.f32 %v7637, %v8831
        %v8842 = vmul.f32 %v7638, %v8831
        %v8843 = vmul.f32 %v7639, %v8831
        %v8844 = vmul.f32 %v7640, %v8831
        %v8845 = vmul.f32 %v7641, %v8831
        %v8846 = vmul.f32 %v7642, %v8831
        %v8847 = vmul.f32 %v7643, %v8831
        %v8848 = vmul.f32 %v7644, %v8831
        %v8849 = vmul.f32 %v7645, %v8831
        %v8850 = vmul.f32 %v7646, %v8831
        %v8851 = vmul.f32 %v7647, %v8831
        %v8852 = vmul.f32 %v7648, %v8831
        %v8853 = vmul.f32 %v7649, %v8831
        %v8854 = vmul.f32 %v7650, %v8831
        %v8855 = vmul.f32 %v7651, %v8831
        %v8856 = vmul.f32 %v7652, %v8831
        %v8857 = vmul.f32 %v7653, %v8831
        %v8858 = vmul.f32 %v7654, %v8831
        %v8859 = vmul.f32 %v7655, %v8831
        %v8860 = vmul.f32 %v7656, %v8831
        %v8861 = vmul.f32 %v7657, %v8831
        %v8862 = vmul.f32 %v7658, %v8831
        %v8863 = vld [vmem:[#allocation4] sm:$0xff]
        %v8864 = vld [vmem:[#allocation4 + $0x8] sm:$0x7f]
        %v8865 = vld [vmem:[#allocation4 + $0x10] sm:$0xff]
        %v8866 = vld [vmem:[#allocation4 + $0x18] sm:$0x7f]
        %v8867 = vld [vmem:[#allocation4 + $0x20] sm:$0xff]
        %v8868 = vld [vmem:[#allocation4 + $0x28] sm:$0x7f]
        %v8869 = vld [vmem:[#allocation4 + $0x30] sm:$0xff]
        %v8870 = vld [vmem:[#allocation4 + $0x38] sm:$0x7f]
        %v8871 = vld [vmem:[#allocation4 + $0x40] sm:$0xff]
        %v8872 = vld [vmem:[#allocation4 + $0x48] sm:$0x7f]
        %v8873 = vld [vmem:[#allocation4 + $0x50] sm:$0xff]
        %v8874 = vld [vmem:[#allocation4 + $0x58] sm:$0x7f]
        %v8875 = vld [vmem:[#allocation4 + $0x60] sm:$0xff]
        %v8876 = vld [vmem:[#allocation4 + $0x68] sm:$0x7f]
        %v8877 = vld [vmem:[#allocation4 + $0x70] sm:$0xff]
        %v8878 = vld [vmem:[#allocation4 + $0x78] sm:$0x7f]
        %v8879 = vld [vmem:[#allocation4 + $0x80] sm:$0xff]
        %v8880 = vld [vmem:[#allocation4 + $0x88] sm:$0x7f]
        %v8881 = vld [vmem:[#allocation4 + $0x90] sm:$0xff]
        %v8882 = vld [vmem:[#allocation4 + $0x98] sm:$0x7f]
        %v8883 = vld [vmem:[#allocation4 + $0xa0] sm:$0xff]
        %v8884 = vld [vmem:[#allocation4 + $0xa8] sm:$0x7f]
        %v8885 = vld [vmem:[#allocation4 + $0xb0] sm:$0xff]
        %v8886 = vld [vmem:[#allocation4 + $0xb8] sm:$0x7f]
        %v8887 = vld [vmem:[#allocation4 + $0xc0] sm:$0xff]
        %v8888 = vld [vmem:[#allocation4 + $0xc8] sm:$0x7f]
        %v8889 = vld [vmem:[#allocation4 + $0xd0] sm:$0xff]
        %v8890 = vld [vmem:[#allocation4 + $0xd8] sm:$0x7f]
        %v8891 = vld [vmem:[#allocation4 + $0xe0] sm:$0xff]
        %v8892 = vld [vmem:[#allocation4 + $0xe8] sm:$0x7f]
        %v8923 = vrot.slane %v8833, 1
        %v8924 = vrot.slane %v8834, 1
        %v8925 = vsel %vm4498, %v8923, %v8924
        %v8926 = vrot.slane %v8835, 1
        %v8927 = vrot.slane %v8836, 1
        %v8928 = vsel %vm4498, %v8926, %v8927
        %v8929 = vrot.slane %v8837, 1
        %v8930 = vrot.slane %v8838, 1
        %v8931 = vsel %vm4498, %v8929, %v8930
        %v8932 = vrot.slane %v8839, 1
        %v8933 = vrot.slane %v8840, 1
        %v8934 = vsel %vm4498, %v8932, %v8933
        %v8935 = vrot.slane %v8841, 1
        %v8936 = vrot.slane %v8842, 1
        %v8937 = vsel %vm4498, %v8935, %v8936
        %v8938 = vrot.slane %v8843, 1
        %v8939 = vrot.slane %v8844, 1
        %v8940 = vsel %vm4498, %v8938, %v8939
        %v8941 = vrot.slane %v8845, 1
        %v8942 = vrot.slane %v8846, 1
        %v8943 = vsel %vm4498, %v8941, %v8942
        %v8944 = vrot.slane %v8847, 1
        %v8945 = vrot.slane %v8848, 1
        %v8946 = vsel %vm4498, %v8944, %v8945
        %v8947 = vrot.slane %v8849, 1
        %v8948 = vrot.slane %v8850, 1
        %v8949 = vsel %vm4498, %v8947, %v8948
        %v8950 = vrot.slane %v8851, 1
        %v8951 = vrot.slane %v8852, 1
        %v8952 = vsel %vm4498, %v8950, %v8951
        %v8953 = vrot.slane %v8853, 1
        %v8954 = vrot.slane %v8854, 1
        %v8955 = vsel %vm4498, %v8953, %v8954
        %v8956 = vrot.slane %v8855, 1
        %v8957 = vrot.slane %v8856, 1
        %v8958 = vsel %vm4498, %v8956, %v8957
        %v8959 = vrot.slane %v8857, 1
        %v8960 = vrot.slane %v8858, 1
        %v8961 = vsel %vm4498, %v8959, %v8960
        %v8962 = vrot.slane %v8859, 1
        %v8963 = vrot.slane %v8860, 1
        %v8964 = vsel %vm4498, %v8962, %v8963
        %v8965 = vrot.slane %v8861, 1
        %v8966 = vrot.slane %v8862, 1
        %v8967 = vsel %vm4498, %v8965, %v8966
        %v8998 = vadd.f32 %v8863, %v8925
        %v8999 = vadd.f32 %v8864, %v8924
        %v9000 = vadd.f32 %v8865, %v8928
        %v9001 = vadd.f32 %v8866, %v8927
        %v9002 = vadd.f32 %v8867, %v8931
        %v9003 = vadd.f32 %v8868, %v8930
        %v9004 = vadd.f32 %v8869, %v8934
        %v9005 = vadd.f32 %v8870, %v8933
        %v9006 = vadd.f32 %v8871, %v8937
        %v9007 = vadd.f32 %v8872, %v8936
        %v9008 = vadd.f32 %v8873, %v8940
        %v9009 = vadd.f32 %v8874, %v8939
        %v9010 = vadd.f32 %v8875, %v8943
        %v9011 = vadd.f32 %v8876, %v8942
        %v9012 = vadd.f32 %v8877, %v8946
        %v9013 = vadd.f32 %v8878, %v8945
        %v9014 = vadd.f32 %v8879, %v8949
        %v9015 = vadd.f32 %v8880, %v8948
        %v9016 = vadd.f32 %v8881, %v8952
        %v9017 = vadd.f32 %v8882, %v8951
        %v9018 = vadd.f32 %v8883, %v8955
        %v9019 = vadd.f32 %v8884, %v8954
        %v9020 = vadd.f32 %v8885, %v8958
        %v9021 = vadd.f32 %v8886, %v8957
        %v9022 = vadd.f32 %v8887, %v8961
        %v9023 = vadd.f32 %v8888, %v8960
        %v9024 = vadd.f32 %v8889, %v8964
        %v9025 = vadd.f32 %v8890, %v8963
        %v9026 = vadd.f32 %v8891, %v8967
        %v9027 = vadd.f32 %v8892, %v8966
        %9028 = vst.msk [vmem:[#allocation4] sm:$0xff] %vm6106, %v8998
        %9029 = vst.msk [vmem:[#allocation4 + $0x8] sm:$0x7f] %vm6201, %v8999
        %9030 = vst.msk [vmem:[#allocation4 + $0x10] sm:$0xff] %vm6106, %v9000
        %9031 = vst.msk [vmem:[#allocation4 + $0x18] sm:$0x7f] %vm6201, %v9001
        %9032 = vst.msk [vmem:[#allocation4 + $0x20] sm:$0xff] %vm6106, %v9002
        %9033 = vst.msk [vmem:[#allocation4 + $0x28] sm:$0x7f] %vm6201, %v9003
        %9034 = vst.msk [vmem:[#allocation4 + $0x30] sm:$0xff] %vm6106, %v9004
        %9035 = vst.msk [vmem:[#allocation4 + $0x38] sm:$0x7f] %vm6201, %v9005
        %9036 = vst.msk [vmem:[#allocation4 + $0x40] sm:$0xff] %vm6106, %v9006
        %9037 = vst.msk [vmem:[#allocation4 + $0x48] sm:$0x7f] %vm6201, %v9007
        %9038 = vst.msk [vmem:[#allocation4 + $0x50] sm:$0xff] %vm6106, %v9008
        %9039 = vst.msk [vmem:[#allocation4 + $0x58] sm:$0x7f] %vm6201, %v9009
        %9040 = vst.msk [vmem:[#allocation4 + $0x60] sm:$0xff] %vm6106, %v9010
        %9041 = vst.msk [vmem:[#allocation4 + $0x68] sm:$0x7f] %vm6201, %v9011
        %9042 = vst.msk [vmem:[#allocation4 + $0x70] sm:$0xff] %vm6106, %v9012
        %9043 = vst.msk [vmem:[#allocation4 + $0x78] sm:$0x7f] %vm6201, %v9013
        %9044 = vst.msk [vmem:[#allocation4 + $0x80] sm:$0xff] %vm6106, %v9014
        %9045 = vst.msk [vmem:[#allocation4 + $0x88] sm:$0x7f] %vm6201, %v9015
        %9046 = vst.msk [vmem:[#allocation4 + $0x90] sm:$0xff] %vm6106, %v9016
        %9047 = vst.msk [vmem:[#allocation4 + $0x98] sm:$0x7f] %vm6201, %v9017
        %9048 = vst.msk [vmem:[#allocation4 + $0xa0] sm:$0xff] %vm6106, %v9018
        %9049 = vst.msk [vmem:[#allocation4 + $0xa8] sm:$0x7f] %vm6201, %v9019
        %9050 = vst.msk [vmem:[#allocation4 + $0xb0] sm:$0xff] %vm6106, %v9020
        %9051 = vst.msk [vmem:[#allocation4 + $0xb8] sm:$0x7f] %vm6201, %v9021
        %9052 = vst.msk [vmem:[#allocation4 + $0xc0] sm:$0xff] %vm6106, %v9022
        %9053 = vst.msk [vmem:[#allocation4 + $0xc8] sm:$0x7f] %vm6201, %v9023
        %9054 = vst.msk [vmem:[#allocation4 + $0xd0] sm:$0xff] %vm6106, %v9024
        %9055 = vst.msk [vmem:[#allocation4 + $0xd8] sm:$0x7f] %vm6201, %v9025
        %9056 = vst.msk [vmem:[#allocation4 + $0xe0] sm:$0xff] %vm6106, %v9026
        %9057 = vst.msk [vmem:[#allocation4 + $0xe8] sm:$0x7f] %vm6201, %v9027
        %v9058 = vld [vmem:[#allocation5] sm:$0x1]
        %v9059 = vld [vmem:[#allocation4] sm:$0xff]
        %v9060 = vld [vmem:[#allocation4 + $0x8] sm:$0xff]
        %v9061 = vld [vmem:[#allocation4 + $0x10] sm:$0xff]
        %v9062 = vld [vmem:[#allocation4 + $0x18] sm:$0xff]
        %v9063 = vld [vmem:[#allocation4 + $0x20] sm:$0xff]
        %v9064 = vld [vmem:[#allocation4 + $0x28] sm:$0xff]
        %v9065 = vld [vmem:[#allocation4 + $0x30] sm:$0xff]
        %v9066 = vld [vmem:[#allocation4 + $0x38] sm:$0xff]
        %v9067 = vld [vmem:[#allocation4 + $0x40] sm:$0xff]
        %v9068 = vld [vmem:[#allocation4 + $0x48] sm:$0xff]
        %v9069 = vld [vmem:[#allocation4 + $0x50] sm:$0xff]
        %v9070 = vld [vmem:[#allocation4 + $0x58] sm:$0xff]
        %v9071 = vld [vmem:[#allocation4 + $0x60] sm:$0xff]
        %v9072 = vld [vmem:[#allocation4 + $0x68] sm:$0xff]
        %v9073 = vld [vmem:[#allocation4 + $0x70] sm:$0xff]
        %v9074 = vld [vmem:[#allocation4 + $0x78] sm:$0xff]
        %v9075 = vld [vmem:[#allocation4 + $0x80] sm:$0xff]
        %v9076 = vld [vmem:[#allocation4 + $0x88] sm:$0xff]
        %v9077 = vld [vmem:[#allocation4 + $0x90] sm:$0xff]
        %v9078 = vld [vmem:[#allocation4 + $0x98] sm:$0xff]
        %v9079 = vld [vmem:[#allocation4 + $0xa0] sm:$0xff]
        %v9080 = vld [vmem:[#allocation4 + $0xa8] sm:$0xff]
        %v9081 = vld [vmem:[#allocation4 + $0xb0] sm:$0xff]
        %v9082 = vld [vmem:[#allocation4 + $0xb8] sm:$0xff]
        %v9083 = vld [vmem:[#allocation4 + $0xc0] sm:$0xff]
        %v9084 = vld [vmem:[#allocation4 + $0xc8] sm:$0xff]
        %v9085 = vld [vmem:[#allocation4 + $0xd0] sm:$0xff]
        %v9086 = vld [vmem:[#allocation4 + $0xd8] sm:$0xff]
        %v9087 = vld [vmem:[#allocation4 + $0xe0] sm:$0xff]
        %v9088 = vld [vmem:[#allocation4 + $0xe8] sm:$0xff]
        %v9089 = vld [vmem:[#allocation4 + $0xf0] sm:$0xff]
        %v9090 = vld [vmem:[#allocation4 + $0xf8] sm:$0xff]
        %v9091 = vsel %vm6106, %v9059, 0.0
        %9092 = vadd.xlane.f32.xlu0 %v9091
        %v9093 = vpop.xlane.xlu0 %9092
        %v9094 = vsel %vm6106, %v9060, 0.0
        %9095 = vadd.xlane.f32.xlu0 %v9094
        %v9096 = vpop.xlane.xlu0 %9095
        %v9097 = vsel %vm6106, %v9061, 0.0
        %9098 = vadd.xlane.f32.xlu0 %v9097
        %v9099 = vpop.xlane.xlu0 %9098
        %v9100 = vsel %vm6106, %v9062, 0.0
        %9101 = vadd.xlane.f32.xlu0 %v9100
        %v9102 = vpop.xlane.xlu0 %9101
        %v9103 = vsel %vm6106, %v9063, 0.0
        %9104 = vadd.xlane.f32.xlu0 %v9103
        %v9105 = vpop.xlane.xlu0 %9104
        %v9106 = vsel %vm6106, %v9064, 0.0
        %9107 = vadd.xlane.f32.xlu0 %v9106
        %v9108 = vpop.xlane.xlu0 %9107
        %v9109 = vsel %vm6106, %v9065, 0.0
        %9110 = vadd.xlane.f32.xlu0 %v9109
        %v9111 = vpop.xlane.xlu0 %9110
        %v9112 = vsel %vm6106, %v9066, 0.0
        %9113 = vadd.xlane.f32.xlu0 %v9112
        %v9114 = vpop.xlane.xlu0 %9113
        %v9115 = vsel %vm6106, %v9067, 0.0
        %9116 = vadd.xlane.f32.xlu0 %v9115
        %v9117 = vpop.xlane.xlu0 %9116
        %v9118 = vsel %vm6106, %v9068, 0.0
        %9119 = vadd.xlane.f32.xlu0 %v9118
        %v9120 = vpop.xlane.xlu0 %9119
        %v9121 = vsel %vm6106, %v9069, 0.0
        %9122 = vadd.xlane.f32.xlu0 %v9121
        %v9123 = vpop.xlane.xlu0 %9122
        %v9124 = vsel %vm6106, %v9070, 0.0
        %9125 = vadd.xlane.f32.xlu0 %v9124
        %v9126 = vpop.xlane.xlu0 %9125
        %v9127 = vsel %vm6106, %v9071, 0.0
        %9128 = vadd.xlane.f32.xlu0 %v9127
        %v9129 = vpop.xlane.xlu0 %9128
        %v9130 = vsel %vm6106, %v9072, 0.0
        %9131 = vadd.xlane.f32.xlu0 %v9130
        %v9132 = vpop.xlane.xlu0 %9131
        %v9133 = vsel %vm6106, %v9073, 0.0
        %9134 = vadd.xlane.f32.xlu0 %v9133
        %v9135 = vpop.xlane.xlu0 %9134
        %v9136 = vsel %vm6106, %v9074, 0.0
        %9137 = vadd.xlane.f32.xlu0 %v9136
        %v9138 = vpop.xlane.xlu0 %9137
        %v9139 = vsel %vm6106, %v9075, 0.0
        %9140 = vadd.xlane.f32.xlu0 %v9139
        %v9141 = vpop.xlane.xlu0 %9140
        %v9142 = vsel %vm6106, %v9076, 0.0
        %9143 = vadd.xlane.f32.xlu0 %v9142
        %v9144 = vpop.xlane.xlu0 %9143
        %v9145 = vsel %vm6106, %v9077, 0.0
        %9146 = vadd.xlane.f32.xlu0 %v9145
        %v9147 = vpop.xlane.xlu0 %9146
        %v9148 = vsel %vm6106, %v9078, 0.0
        %9149 = vadd.xlane.f32.xlu0 %v9148
        %v9150 = vpop.xlane.xlu0 %9149
        %v9151 = vsel %vm6106, %v9079, 0.0
        %9152 = vadd.xlane.f32.xlu0 %v9151
        %v9153 = vpop.xlane.xlu0 %9152
        %v9154 = vsel %vm6106, %v9080, 0.0
        %9155 = vadd.xlane.f32.xlu0 %v9154
        %v9156 = vpop.xlane.xlu0 %9155
        %v9157 = vsel %vm6106, %v9081, 0.0
        %9158 = vadd.xlane.f32.xlu0 %v9157
        %v9159 = vpop.xlane.xlu0 %9158
        %v9160 = vsel %vm6106, %v9082, 0.0
        %9161 = vadd.xlane.f32.xlu0 %v9160
        %v9162 = vpop.xlane.xlu0 %9161
        %v9163 = vsel %vm6106, %v9083, 0.0
        %9164 = vadd.xlane.f32.xlu0 %v9163
        %v9165 = vpop.xlane.xlu0 %9164
        %v9166 = vsel %vm6106, %v9084, 0.0
        %9167 = vadd.xlane.f32.xlu0 %v9166
        %v9168 = vpop.xlane.xlu0 %9167
        %v9169 = vsel %vm6106, %v9085, 0.0
        %9170 = vadd.xlane.f32.xlu0 %v9169
        %v9171 = vpop.xlane.xlu0 %9170
        %v9172 = vsel %vm6106, %v9086, 0.0
        %9173 = vadd.xlane.f32.xlu0 %v9172
        %v9174 = vpop.xlane.xlu0 %9173
        %v9175 = vsel %vm6106, %v9087, 0.0
        %9176 = vadd.xlane.f32.xlu0 %v9175
        %v9177 = vpop.xlane.xlu0 %9176
        %v9178 = vsel %vm6106, %v9088, 0.0
        %9179 = vadd.xlane.f32.xlu0 %v9178
        %v9180 = vpop.xlane.xlu0 %9179
        %v9181 = vsel %vm6106, %v9089, 0.0
        %9182 = vadd.xlane.f32.xlu0 %v9181
        %v9183 = vpop.xlane.xlu0 %9182
        %v9184 = vsel %vm6106, %v9090, 0.0
        %9185 = vadd.xlane.f32.xlu0 %v9184
        %v9186 = vpop.xlane.xlu0 %9185
        %v9188 = vperm.slane %v9058, 0
        %v9190 = vadd.f32 %v9093, %v9188
        %v9191 = vadd.f32 %v9096, %v9188
        %v9192 = vadd.f32 %v9099, %v9188
        %v9193 = vadd.f32 %v9102, %v9188
        %v9194 = vadd.f32 %v9105, %v9188
        %v9195 = vadd.f32 %v9108, %v9188
        %v9196 = vadd.f32 %v9111, %v9188
        %v9197 = vadd.f32 %v9114, %v9188
        %v9198 = vadd.f32 %v9117, %v9188
        %v9199 = vadd.f32 %v9120, %v9188
        %v9200 = vadd.f32 %v9123, %v9188
        %v9201 = vadd.f32 %v9126, %v9188
        %v9202 = vadd.f32 %v9129, %v9188
        %v9203 = vadd.f32 %v9132, %v9188
        %v9204 = vadd.f32 %v9135, %v9188
        %v9205 = vadd.f32 %v9138, %v9188
        %v9206 = vadd.f32 %v9141, %v9188
        %v9207 = vadd.f32 %v9144, %v9188
        %v9208 = vadd.f32 %v9147, %v9188
        %v9209 = vadd.f32 %v9150, %v9188
        %v9210 = vadd.f32 %v9153, %v9188
        %v9211 = vadd.f32 %v9156, %v9188
        %v9212 = vadd.f32 %v9159, %v9188
        %v9213 = vadd.f32 %v9162, %v9188
        %v9214 = vadd.f32 %v9165, %v9188
        %v9215 = vadd.f32 %v9168, %v9188
        %v9216 = vadd.f32 %v9171, %v9188
        %v9217 = vadd.f32 %v9174, %v9188
        %v9218 = vadd.f32 %v9177, %v9188
        %v9219 = vadd.f32 %v9180, %v9188
        %v9220 = vadd.f32 %v9183, %v9188
        %v9221 = vadd.f32 %v9186, %v9188
        %v9222 = vmax.f32 %v9190, 0.0
        %v9223 = vmax.f32 %v9191, 0.0
        %v9224 = vmax.f32 %v9192, 0.0
        %v9225 = vmax.f32 %v9193, 0.0
        %v9226 = vmax.f32 %v9194, 0.0
        %v9227 = vmax.f32 %v9195, 0.0
        %v9228 = vmax.f32 %v9196, 0.0
        %v9229 = vmax.f32 %v9197, 0.0
        %v9230 = vmax.f32 %v9198, 0.0
        %v9231 = vmax.f32 %v9199, 0.0
        %v9232 = vmax.f32 %v9200, 0.0
        %v9233 = vmax.f32 %v9201, 0.0
        %v9234 = vmax.f32 %v9202, 0.0
        %v9235 = vmax.f32 %v9203, 0.0
        %v9236 = vmax.f32 %v9204, 0.0
        %v9237 = vmax.f32 %v9205, 0.0
        %v9238 = vmax.f32 %v9206, 0.0
        %v9239 = vmax.f32 %v9207, 0.0
        %v9240 = vmax.f32 %v9208, 0.0
        %v9241 = vmax.f32 %v9209, 0.0
        %v9242 = vmax.f32 %v9210, 0.0
        %v9243 = vmax.f32 %v9211, 0.0
        %v9244 = vmax.f32 %v9212, 0.0
        %v9245 = vmax.f32 %v9213, 0.0
        %v9246 = vmax.f32 %v9214, 0.0
        %v9247 = vmax.f32 %v9215, 0.0
        %v9248 = vmax.f32 %v9216, 0.0
        %v9249 = vmax.f32 %v9217, 0.0
        %v9250 = vmax.f32 %v9218, 0.0
        %v9251 = vmax.f32 %v9219, 0.0
        %v9252 = vmax.f32 %v9220, 0.0
        %v9253 = vmax.f32 %v9221, 0.0
        %9255 = vset.pattern.permute.xlu0 0
        %9256 = vperm.xlu0 %9255, %v9222
        %v9257 = vpop.permute.xlu0 %9256
        %9260 = vset.pattern.permute.xlu0 0
        %9261 = vperm.xlu0 %9260, %v9223
        %v9262 = vpop.permute.xlu0 %9261
        %9265 = vset.pattern.permute.xlu0 0
        %9266 = vperm.xlu0 %9265, %v9224
        %v9267 = vpop.permute.xlu0 %9266
        %9270 = vset.pattern.permute.xlu0 0
        %9271 = vperm.xlu0 %9270, %v9225
        %v9272 = vpop.permute.xlu0 %9271
        %9275 = vset.pattern.permute.xlu0 0
        %9276 = vperm.xlu0 %9275, %v9226
        %v9277 = vpop.permute.xlu0 %9276
        %9280 = vset.pattern.permute.xlu0 0
        %9281 = vperm.xlu0 %9280, %v9227
        %v9282 = vpop.permute.xlu0 %9281
        %9285 = vset.pattern.permute.xlu0 0
        %9286 = vperm.xlu0 %9285, %v9228
        %v9287 = vpop.permute.xlu0 %9286
        %9290 = vset.pattern.permute.xlu0 0
        %9291 = vperm.xlu0 %9290, %v9229
        %v9292 = vpop.permute.xlu0 %9291
        %9295 = vset.pattern.permute.xlu0 0
        %9296 = vperm.xlu0 %9295, %v9230
        %v9297 = vpop.permute.xlu0 %9296
        %9300 = vset.pattern.permute.xlu0 0
        %9301 = vperm.xlu0 %9300, %v9231
        %v9302 = vpop.permute.xlu0 %9301
        %9305 = vset.pattern.permute.xlu0 0
        %9306 = vperm.xlu0 %9305, %v9232
        %v9307 = vpop.permute.xlu0 %9306
        %9310 = vset.pattern.permute.xlu0 0
        %9311 = vperm.xlu0 %9310, %v9233
        %v9312 = vpop.permute.xlu0 %9311
        %9315 = vset.pattern.permute.xlu0 0
        %9316 = vperm.xlu0 %9315, %v9234
        %v9317 = vpop.permute.xlu0 %9316
        %9320 = vset.pattern.permute.xlu0 0
        %9321 = vperm.xlu0 %9320, %v9235
        %v9322 = vpop.permute.xlu0 %9321
        %9325 = vset.pattern.permute.xlu0 0
        %9326 = vperm.xlu0 %9325, %v9236
        %v9327 = vpop.permute.xlu0 %9326
        %9330 = vset.pattern.permute.xlu0 0
        %9331 = vperm.xlu0 %9330, %v9237
        %v9332 = vpop.permute.xlu0 %9331
        %9335 = vset.pattern.permute.xlu0 0
        %9336 = vperm.xlu0 %9335, %v9238
        %v9337 = vpop.permute.xlu0 %9336
        %9340 = vset.pattern.permute.xlu0 0
        %9341 = vperm.xlu0 %9340, %v9239
        %v9342 = vpop.permute.xlu0 %9341
        %9345 = vset.pattern.permute.xlu0 0
        %9346 = vperm.xlu0 %9345, %v9240
        %v9347 = vpop.permute.xlu0 %9346
        %9350 = vset.pattern.permute.xlu0 0
        %9351 = vperm.xlu0 %9350, %v9241
        %v9352 = vpop.permute.xlu0 %9351
        %9355 = vset.pattern.permute.xlu0 0
        %9356 = vperm.xlu0 %9355, %v9242
        %v9357 = vpop.permute.xlu0 %9356
        %9360 = vset.pattern.permute.xlu0 0
        %9361 = vperm.xlu0 %9360, %v9243
        %v9362 = vpop.permute.xlu0 %9361
        %9365 = vset.pattern.permute.xlu0 0
        %9366 = vperm.xlu0 %9365, %v9244
        %v9367 = vpop.permute.xlu0 %9366
        %9370 = vset.pattern.permute.xlu0 0
        %9371 = vperm.xlu0 %9370, %v9245
        %v9372 = vpop.permute.xlu0 %9371
        %9375 = vset.pattern.permute.xlu0 0
        %9376 = vperm.xlu0 %9375, %v9246
        %v9377 = vpop.permute.xlu0 %9376
        %9380 = vset.pattern.permute.xlu0 0
        %9381 = vperm.xlu0 %9380, %v9247
        %v9382 = vpop.permute.xlu0 %9381
        %9385 = vset.pattern.permute.xlu0 0
        %9386 = vperm.xlu0 %9385, %v9248
        %v9387 = vpop.permute.xlu0 %9386
        %9390 = vset.pattern.permute.xlu0 0
        %9391 = vperm.xlu0 %9390, %v9249
        %v9392 = vpop.permute.xlu0 %9391
        %9395 = vset.pattern.permute.xlu0 0
        %9396 = vperm.xlu0 %9395, %v9250
        %v9397 = vpop.permute.xlu0 %9396
        %9400 = vset.pattern.permute.xlu0 0
        %9401 = vperm.xlu0 %9400, %v9251
        %v9402 = vpop.permute.xlu0 %9401
        %9405 = vset.pattern.permute.xlu0 0
        %9406 = vperm.xlu0 %9405, %v9252
        %v9407 = vpop.permute.xlu0 %9406
        %9410 = vset.pattern.permute.xlu0 0
        %9411 = vperm.xlu0 %9410, %v9253
        %v9412 = vpop.permute.xlu0 %9411
        %v9414 = vmul.f32 %v9257, %v711
        %v9415 = vmul.f32 %v9257, %v712
        %v9416 = vmul.f32 %v9257, %v713
        %v9417 = vmul.f32 %v9257, %v714
        %v9418 = vmul.f32 %v9262, %v715
        %v9419 = vmul.f32 %v9262, %v716
        %v9420 = vmul.f32 %v9262, %v717
        %v9421 = vmul.f32 %v9262, %v718
        %v9422 = vmul.f32 %v9267, %v719
        %v9423 = vmul.f32 %v9267, %v720
        %v9424 = vmul.f32 %v9267, %v721
        %v9425 = vmul.f32 %v9267, %v722
        %v9426 = vmul.f32 %v9272, %v723
        %v9427 = vmul.f32 %v9272, %v724
        %v9428 = vmul.f32 %v9272, %v725
        %v9429 = vmul.f32 %v9272, %v726
        %v9430 = vmul.f32 %v9277, %v727
        %v9431 = vmul.f32 %v9277, %v728
        %v9432 = vmul.f32 %v9277, %v729
        %v9433 = vmul.f32 %v9277, %v730
        %v9434 = vmul.f32 %v9282, %v731
        %v9435 = vmul.f32 %v9282, %v732
        %v9436 = vmul.f32 %v9282, %v733
        %v9437 = vmul.f32 %v9282, %v734
        %v9438 = vmul.f32 %v9287, %v735
        %v9439 = vmul.f32 %v9287, %v736
        %v9440 = vmul.f32 %v9287, %v737
        %v9441 = vmul.f32 %v9287, %v738
        %v9442 = vmul.f32 %v9292, %v739
        %v9443 = vmul.f32 %v9292, %v740
        %v9444 = vmul.f32 %v9292, %v741
        %v9445 = vmul.f32 %v9292, %v742
        %v9446 = vmul.f32 %v9297, %v743
        %v9447 = vmul.f32 %v9297, %v744
        %v9448 = vmul.f32 %v9297, %v745
        %v9449 = vmul.f32 %v9297, %v746
        %v9450 = vmul.f32 %v9302, %v747
        %v9451 = vmul.f32 %v9302, %v748
        %v9452 = vmul.f32 %v9302, %v749
        %v9453 = vmul.f32 %v9302, %v750
        %v9454 = vmul.f32 %v9307, %v751
        %v9455 = vmul.f32 %v9307, %v752
        %v9456 = vmul.f32 %v9307, %v753
        %v9457 = vmul.f32 %v9307, %v754
        %v9458 = vmul.f32 %v9312, %v755
        %v9459 = vmul.f32 %v9312, %v756
        %v9460 = vmul.f32 %v9312, %v757
        %v9461 = vmul.f32 %v9312, %v758
        %v9462 = vmul.f32 %v9317, %v759
        %v9463 = vmul.f32 %v9317, %v760
        %v9464 = vmul.f32 %v9317, %v761
        %v9465 = vmul.f32 %v9317, %v762
        %v9466 = vmul.f32 %v9322, %v763
        %v9467 = vmul.f32 %v9322, %v764
        %v9468 = vmul.f32 %v9322, %v765
        %v9469 = vmul.f32 %v9322, %v766
        %v9470 = vmul.f32 %v9327, %v767
        %v9471 = vmul.f32 %v9327, %v768
        %v9472 = vmul.f32 %v9327, %v769
        %v9473 = vmul.f32 %v9327, %v770
        %v9474 = vmul.f32 %v9332, %v771
        %v9475 = vmul.f32 %v9332, %v772
        %v9476 = vmul.f32 %v9332, %v773
        %v9477 = vmul.f32 %v9332, %v774
        %v9478 = vmul.f32 %v9337, %v775
        %v9479 = vmul.f32 %v9337, %v776
        %v9480 = vmul.f32 %v9337, %v777
        %v9481 = vmul.f32 %v9337, %v778
        %v9482 = vmul.f32 %v9342, %v779
        %v9483 = vmul.f32 %v9342, %v780
        %v9484 = vmul.f32 %v9342, %v781
        %v9485 = vmul.f32 %v9342, %v782
        %v9486 = vmul.f32 %v9347, %v783
        %v9487 = vmul.f32 %v9347, %v784
        %v9488 = vmul.f32 %v9347, %v785
        %v9489 = vmul.f32 %v9347, %v786
        %v9490 = vmul.f32 %v9352, %v787
        %v9491 = vmul.f32 %v9352, %v788
        %v9492 = vmul.f32 %v9352, %v789
        %v9493 = vmul.f32 %v9352, %v790
        %v9494 = vmul.f32 %v9357, %v791
        %v9495 = vmul.f32 %v9357, %v792
        %v9496 = vmul.f32 %v9357, %v793
        %v9497 = vmul.f32 %v9357, %v794
        %v9498 = vmul.f32 %v9362, %v795
        %v9499 = vmul.f32 %v9362, %v796
        %v9500 = vmul.f32 %v9362, %v797
        %v9501 = vmul.f32 %v9362, %v798
        %v9502 = vmul.f32 %v9367, %v799
        %v9503 = vmul.f32 %v9367, %v800
        %v9504 = vmul.f32 %v9367, %v801
        %v9505 = vmul.f32 %v9367, %v802
        %v9506 = vmul.f32 %v9372, %v803
        %v9507 = vmul.f32 %v9372, %v804
        %v9508 = vmul.f32 %v9372, %v805
        %v9509 = vmul.f32 %v9372, %v806
        %v9510 = vmul.f32 %v9377, %v807
        %v9511 = vmul.f32 %v9377, %v808
        %v9512 = vmul.f32 %v9377, %v809
        %v9513 = vmul.f32 %v9377, %v810
        %v9514 = vmul.f32 %v9382, %v811
        %v9515 = vmul.f32 %v9382, %v812
        %v9516 = vmul.f32 %v9382, %v813
        %v9517 = vmul.f32 %v9382, %v814
        %v9518 = vmul.f32 %v9387, %v815
        %v9519 = vmul.f32 %v9387, %v816
        %v9520 = vmul.f32 %v9387, %v817
        %v9521 = vmul.f32 %v9387, %v818
        %v9522 = vmul.f32 %v9392, %v819
        %v9523 = vmul.f32 %v9392, %v820
        %v9524 = vmul.f32 %v9392, %v821
        %v9525 = vmul.f32 %v9392, %v822
        %v9526 = vmul.f32 %v9397, %v823
        %v9527 = vmul.f32 %v9397, %v824
        %v9528 = vmul.f32 %v9397, %v825
        %v9529 = vmul.f32 %v9397, %v826
        %v9530 = vmul.f32 %v9402, %v827
        %v9531 = vmul.f32 %v9402, %v828
        %v9532 = vmul.f32 %v9402, %v829
        %v9533 = vmul.f32 %v9402, %v830
        %v9534 = vmul.f32 %v9407, %v831
        %v9535 = vmul.f32 %v9407, %v832
        %v9536 = vmul.f32 %v9407, %v833
        %v9537 = vmul.f32 %v9407, %v834
        %v9538 = vmul.f32 %v9412, %v835
        %v9539 = vmul.f32 %v9412, %v836
        %v9540 = vmul.f32 %v9412, %v837
        %v9541 = vmul.f32 %v9412, %v838
        %v9542 = vadd.f32 %v583, %v9414
        %v9543 = vadd.f32 %v584, %v9415
        %v9544 = vadd.f32 %v585, %v9416
        %v9545 = vadd.f32 %v586, %v9417
        %v9546 = vadd.f32 %v587, %v9418
        %v9547 = vadd.f32 %v588, %v9419
        %v9548 = vadd.f32 %v589, %v9420
        %v9549 = vadd.f32 %v590, %v9421
        %v9550 = vadd.f32 %v591, %v9422
        %v9551 = vadd.f32 %v592, %v9423
        %v9552 = vadd.f32 %v593, %v9424
        %v9553 = vadd.f32 %v594, %v9425
        %v9554 = vadd.f32 %v595, %v9426
        %v9555 = vadd.f32 %v596, %v9427
        %v9556 = vadd.f32 %v597, %v9428
        %v9557 = vadd.f32 %v598, %v9429
        %v9558 = vadd.f32 %v599, %v9430
        %v9559 = vadd.f32 %v600, %v9431
        %v9560 = vadd.f32 %v601, %v9432
        %v9561 = vadd.f32 %v602, %v9433
        %v9562 = vadd.f32 %v603, %v9434
        %v9563 = vadd.f32 %v604, %v9435
        %v9564 = vadd.f32 %v605, %v9436
        %v9565 = vadd.f32 %v606, %v9437
        %v9566 = vadd.f32 %v607, %v9438
        %v9567 = vadd.f32 %v608, %v9439
        %v9568 = vadd.f32 %v609, %v9440
        %v9569 = vadd.f32 %v610, %v9441
        %v9570 = vadd.f32 %v611, %v9442
        %v9571 = vadd.f32 %v612, %v9443
        %v9572 = vadd.f32 %v613, %v9444
        %v9573 = vadd.f32 %v614, %v9445
        %v9574 = vadd.f32 %v615, %v9446
        %v9575 = vadd.f32 %v616, %v9447
        %v9576 = vadd.f32 %v617, %v9448
        %v9577 = vadd.f32 %v618, %v9449
        %v9578 = vadd.f32 %v619, %v9450
        %v9579 = vadd.f32 %v620, %v9451
        %v9580 = vadd.f32 %v621, %v9452
        %v9581 = vadd.f32 %v622, %v9453
        %v9582 = vadd.f32 %v623, %v9454
        %v9583 = vadd.f32 %v624, %v9455
        %v9584 = vadd.f32 %v625, %v9456
        %v9585 = vadd.f32 %v626, %v9457
        %v9586 = vadd.f32 %v627, %v9458
        %v9587 = vadd.f32 %v628, %v9459
        %v9588 = vadd.f32 %v629, %v9460
        %v9589 = vadd.f32 %v630, %v9461
        %v9590 = vadd.f32 %v631, %v9462
        %v9591 = vadd.f32 %v632, %v9463
        %v9592 = vadd.f32 %v633, %v9464
        %v9593 = vadd.f32 %v634, %v9465
        %v9594 = vadd.f32 %v635, %v9466
        %v9595 = vadd.f32 %v636, %v9467
        %v9596 = vadd.f32 %v637, %v9468
        %v9597 = vadd.f32 %v638, %v9469
        %v9598 = vadd.f32 %v639, %v9470
        %v9599 = vadd.f32 %v640, %v9471
        %v9600 = vadd.f32 %v641, %v9472
        %v9601 = vadd.f32 %v642, %v9473
        %v9602 = vadd.f32 %v643, %v9474
        %v9603 = vadd.f32 %v644, %v9475
        %v9604 = vadd.f32 %v645, %v9476
        %v9605 = vadd.f32 %v646, %v9477
        %v9606 = vadd.f32 %v647, %v9478
        %v9607 = vadd.f32 %v648, %v9479
        %v9608 = vadd.f32 %v649, %v9480
        %v9609 = vadd.f32 %v650, %v9481
        %v9610 = vadd.f32 %v651, %v9482
        %v9611 = vadd.f32 %v652, %v9483
        %v9612 = vadd.f32 %v653, %v9484
        %v9613 = vadd.f32 %v654, %v9485
        %v9614 = vadd.f32 %v655, %v9486
        %v9615 = vadd.f32 %v656, %v9487
        %v9616 = vadd.f32 %v657, %v9488
        %v9617 = vadd.f32 %v658, %v9489
        %v9618 = vadd.f32 %v659, %v9490
        %v9619 = vadd.f32 %v660, %v9491
        %v9620 = vadd.f32 %v661, %v9492
        %v9621 = vadd.f32 %v662, %v9493
        %v9622 = vadd.f32 %v663, %v9494
        %v9623 = vadd.f32 %v664, %v9495
        %v9624 = vadd.f32 %v665, %v9496
        %v9625 = vadd.f32 %v666, %v9497
        %v9626 = vadd.f32 %v667, %v9498
        %v9627 = vadd.f32 %v668, %v9499
        %v9628 = vadd.f32 %v669, %v9500
        %v9629 = vadd.f32 %v670, %v9501
        %v9630 = vadd.f32 %v671, %v9502
        %v9631 = vadd.f32 %v672, %v9503
        %v9632 = vadd.f32 %v673, %v9504
        %v9633 = vadd.f32 %v674, %v9505
        %v9634 = vadd.f32 %v675, %v9506
        %v9635 = vadd.f32 %v676, %v9507
        %v9636 = vadd.f32 %v677, %v9508
        %v9637 = vadd.f32 %v678, %v9509
        %v9638 = vadd.f32 %v679, %v9510
        %v9639 = vadd.f32 %v680, %v9511
        %v9640 = vadd.f32 %v681, %v9512
        %v9641 = vadd.f32 %v682, %v9513
        %v9642 = vadd.f32 %v683, %v9514
        %v9643 = vadd.f32 %v684, %v9515
        %v9644 = vadd.f32 %v685, %v9516
        %v9645 = vadd.f32 %v686, %v9517
        %v9646 = vadd.f32 %v687, %v9518
        %v9647 = vadd.f32 %v688, %v9519
        %v9648 = vadd.f32 %v689, %v9520
        %v9649 = vadd.f32 %v690, %v9521
        %v9650 = vadd.f32 %v691, %v9522
        %v9651 = vadd.f32 %v692, %v9523
        %v9652 = vadd.f32 %v693, %v9524
        %v9653 = vadd.f32 %v694, %v9525
        %v9654 = vadd.f32 %v695, %v9526
        %v9655 = vadd.f32 %v696, %v9527
        %v9656 = vadd.f32 %v697, %v9528
        %v9657 = vadd.f32 %v698, %v9529
        %v9658 = vadd.f32 %v699, %v9530
        %v9659 = vadd.f32 %v700, %v9531
        %v9660 = vadd.f32 %v701, %v9532
        %v9661 = vadd.f32 %v702, %v9533
        %v9662 = vadd.f32 %v703, %v9534
        %v9663 = vadd.f32 %v704, %v9535
        %v9664 = vadd.f32 %v705, %v9536
        %v9665 = vadd.f32 %v706, %v9537
        %v9666 = vadd.f32 %v707, %v9538
        %v9667 = vadd.f32 %v708, %v9539
        %v9668 = vadd.f32 %v709, %v9540
        %v9669 = vadd.f32 %v710, %v9541
        %9670 = vst [vmem:[%s315] sm:$0xff] %v9542
        %9671 = vst [vmem:[%s315 + $0x8] sm:$0xff] %v9543
        %9672 = vst [vmem:[%s315 + $0x10] sm:$0xff] %v9544
        %9673 = vst [vmem:[%s315 + $0x18] sm:$0xff] %v9545
        %9674 = vst [vmem:[%s315 + $0x20] sm:$0xff] %v9546
        %9675 = vst [vmem:[%s315 + $0x28] sm:$0xff] %v9547
        %9676 = vst [vmem:[%s315 + $0x30] sm:$0xff] %v9548
        %9677 = vst [vmem:[%s315 + $0x38] sm:$0xff] %v9549
        %9678 = vst [vmem:[%s315 + $0x40] sm:$0xff] %v9550
        %9679 = vst [vmem:[%s315 + $0x48] sm:$0xff] %v9551
        %9680 = vst [vmem:[%s315 + $0x50] sm:$0xff] %v9552
        %9681 = vst [vmem:[%s315 + $0x58] sm:$0xff] %v9553
        %9682 = vst [vmem:[%s315 + $0x60] sm:$0xff] %v9554
        %9683 = vst [vmem:[%s315 + $0x68] sm:$0xff] %v9555
        %9684 = vst [vmem:[%s315 + $0x70] sm:$0xff] %v9556
        %9685 = vst [vmem:[%s315 + $0x78] sm:$0xff] %v9557
        %9686 = vst [vmem:[%s315 + $0x80] sm:$0xff] %v9558
        %9687 = vst [vmem:[%s315 + $0x88] sm:$0xff] %v9559
        %9688 = vst [vmem:[%s315 + $0x90] sm:$0xff] %v9560
        %9689 = vst [vmem:[%s315 + $0x98] sm:$0xff] %v9561
        %9690 = vst [vmem:[%s315 + $0xa0] sm:$0xff] %v9562
        %9691 = vst [vmem:[%s315 + $0xa8] sm:$0xff] %v9563
        %9692 = vst [vmem:[%s315 + $0xb0] sm:$0xff] %v9564
        %9693 = vst [vmem:[%s315 + $0xb8] sm:$0xff] %v9565
        %9694 = vst [vmem:[%s315 + $0xc0] sm:$0xff] %v9566
        %9695 = vst [vmem:[%s315 + $0xc8] sm:$0xff] %v9567
        %9696 = vst [vmem:[%s315 + $0xd0] sm:$0xff] %v9568
        %9697 = vst [vmem:[%s315 + $0xd8] sm:$0xff] %v9569
        %9698 = vst [vmem:[%s315 + $0xe0] sm:$0xff] %v9570
        %9699 = vst [vmem:[%s315 + $0xe8] sm:$0xff] %v9571
        %9700 = vst [vmem:[%s315 + $0xf0] sm:$0xff] %v9572
        %9701 = vst [vmem:[%s315 + $0xf8] sm:$0xff] %v9573
        %9702 = vst [vmem:[%s315 + $0x100] sm:$0xff] %v9574
        %9703 = vst [vmem:[%s315 + $0x108] sm:$0xff] %v9575
        %9704 = vst [vmem:[%s315 + $0x110] sm:$0xff] %v9576
        %9705 = vst [vmem:[%s315 + $0x118] sm:$0xff] %v9577
        %9706 = vst [vmem:[%s315 + $0x120] sm:$0xff] %v9578
        %9707 = vst [vmem:[%s315 + $0x128] sm:$0xff] %v9579
        %9708 = vst [vmem:[%s315 + $0x130] sm:$0xff] %v9580
        %9709 = vst [vmem:[%s315 + $0x138] sm:$0xff] %v9581
        %9710 = vst [vmem:[%s315 + $0x140] sm:$0xff] %v9582
        %9711 = vst [vmem:[%s315 + $0x148] sm:$0xff] %v9583
        %9712 = vst [vmem:[%s315 + $0x150] sm:$0xff] %v9584
        %9713 = vst [vmem:[%s315 + $0x158] sm:$0xff] %v9585
        %9714 = vst [vmem:[%s315 + $0x160] sm:$0xff] %v9586
        %9715 = vst [vmem:[%s315 + $0x168] sm:$0xff] %v9587
        %9716 = vst [vmem:[%s315 + $0x170] sm:$0xff] %v9588
        %9717 = vst [vmem:[%s315 + $0x178] sm:$0xff] %v9589
        %9718 = vst [vmem:[%s315 + $0x180] sm:$0xff] %v9590
        %9719 = vst [vmem:[%s315 + $0x188] sm:$0xff] %v9591
        %9720 = vst [vmem:[%s315 + $0x190] sm:$0xff] %v9592
        %9721 = vst [vmem:[%s315 + $0x198] sm:$0xff] %v9593
        %9722 = vst [vmem:[%s315 + $0x1a0] sm:$0xff] %v9594
        %9723 = vst [vmem:[%s315 + $0x1a8] sm:$0xff] %v9595
        %9724 = vst [vmem:[%s315 + $0x1b0] sm:$0xff] %v9596
        %9725 = vst [vmem:[%s315 + $0x1b8] sm:$0xff] %v9597
        %9726 = vst [vmem:[%s315 + $0x1c0] sm:$0xff] %v9598
        %9727 = vst [vmem:[%s315 + $0x1c8] sm:$0xff] %v9599
        %9728 = vst [vmem:[%s315 + $0x1d0] sm:$0xff] %v9600
        %9729 = vst [vmem:[%s315 + $0x1d8] sm:$0xff] %v9601
        %9730 = vst [vmem:[%s315 + $0x1e0] sm:$0xff] %v9602
        %9731 = vst [vmem:[%s315 + $0x1e8] sm:$0xff] %v9603
        %9732 = vst [vmem:[%s315 + $0x1f0] sm:$0xff] %v9604
        %9733 = vst [vmem:[%s315 + $0x1f8] sm:$0xff] %v9605
        %9734 = vst [vmem:[%s315 + $0x200] sm:$0xff] %v9606
        %9735 = vst [vmem:[%s315 + $0x208] sm:$0xff] %v9607
        %9736 = vst [vmem:[%s315 + $0x210] sm:$0xff] %v9608
        %9737 = vst [vmem:[%s315 + $0x218] sm:$0xff] %v9609
        %9738 = vst [vmem:[%s315 + $0x220] sm:$0xff] %v9610
        %9739 = vst [vmem:[%s315 + $0x228] sm:$0xff] %v9611
        %9740 = vst [vmem:[%s315 + $0x230] sm:$0xff] %v9612
        %9741 = vst [vmem:[%s315 + $0x238] sm:$0xff] %v9613
        %9742 = vst [vmem:[%s315 + $0x240] sm:$0xff] %v9614
        %9743 = vst [vmem:[%s315 + $0x248] sm:$0xff] %v9615
        %9744 = vst [vmem:[%s315 + $0x250] sm:$0xff] %v9616
        %9745 = vst [vmem:[%s315 + $0x258] sm:$0xff] %v9617
        %9746 = vst [vmem:[%s315 + $0x260] sm:$0xff] %v9618
        %9747 = vst [vmem:[%s315 + $0x268] sm:$0xff] %v9619
        %9748 = vst [vmem:[%s315 + $0x270] sm:$0xff] %v9620
        %9749 = vst [vmem:[%s315 + $0x278] sm:$0xff] %v9621
        %9750 = vst [vmem:[%s315 + $0x280] sm:$0xff] %v9622
        %9751 = vst [vmem:[%s315 + $0x288] sm:$0xff] %v9623
        %9752 = vst [vmem:[%s315 + $0x290] sm:$0xff] %v9624
        %9753 = vst [vmem:[%s315 + $0x298] sm:$0xff] %v9625
        %9754 = vst [vmem:[%s315 + $0x2a0] sm:$0xff] %v9626
        %9755 = vst [vmem:[%s315 + $0x2a8] sm:$0xff] %v9627
        %9756 = vst [vmem:[%s315 + $0x2b0] sm:$0xff] %v9628
        %9757 = vst [vmem:[%s315 + $0x2b8] sm:$0xff] %v9629
        %9758 = vst [vmem:[%s315 + $0x2c0] sm:$0xff] %v9630
        %9759 = vst [vmem:[%s315 + $0x2c8] sm:$0xff] %v9631
        %9760 = vst [vmem:[%s315 + $0x2d0] sm:$0xff] %v9632
        %9761 = vst [vmem:[%s315 + $0x2d8] sm:$0xff] %v9633
        %9762 = vst [vmem:[%s315 + $0x2e0] sm:$0xff] %v9634
        %9763 = vst [vmem:[%s315 + $0x2e8] sm:$0xff] %v9635
        %9764 = vst [vmem:[%s315 + $0x2f0] sm:$0xff] %v9636
        %9765 = vst [vmem:[%s315 + $0x2f8] sm:$0xff] %v9637
        %9766 = vst [vmem:[%s315 + $0x300] sm:$0xff] %v9638
        %9767 = vst [vmem:[%s315 + $0x308] sm:$0xff] %v9639
        %9768 = vst [vmem:[%s315 + $0x310] sm:$0xff] %v9640
        %9769 = vst [vmem:[%s315 + $0x318] sm:$0xff] %v9641
        %9770 = vst [vmem:[%s315 + $0x320] sm:$0xff] %v9642
        %9771 = vst [vmem:[%s315 + $0x328] sm:$0xff] %v9643
        %9772 = vst [vmem:[%s315 + $0x330] sm:$0xff] %v9644
        %9773 = vst [vmem:[%s315 + $0x338] sm:$0xff] %v9645
        %9774 = vst [vmem:[%s315 + $0x340] sm:$0xff] %v9646
        %9775 = vst [vmem:[%s315 + $0x348] sm:$0xff] %v9647
        %9776 = vst [vmem:[%s315 + $0x350] sm:$0xff] %v9648
        %9777 = vst [vmem:[%s315 + $0x358] sm:$0xff] %v9649
        %9778 = vst [vmem:[%s315 + $0x360] sm:$0xff] %v9650
        %9779 = vst [vmem:[%s315 + $0x368] sm:$0xff] %v9651
        %9780 = vst [vmem:[%s315 + $0x370] sm:$0xff] %v9652
        %9781 = vst [vmem:[%s315 + $0x378] sm:$0xff] %v9653
        %9782 = vst [vmem:[%s315 + $0x380] sm:$0xff] %v9654
        %9783 = vst [vmem:[%s315 + $0x388] sm:$0xff] %v9655
        %9784 = vst [vmem:[%s315 + $0x390] sm:$0xff] %v9656
        %9785 = vst [vmem:[%s315 + $0x398] sm:$0xff] %v9657
        %9786 = vst [vmem:[%s315 + $0x3a0] sm:$0xff] %v9658
        %9787 = vst [vmem:[%s315 + $0x3a8] sm:$0xff] %v9659
        %9788 = vst [vmem:[%s315 + $0x3b0] sm:$0xff] %v9660
        %9789 = vst [vmem:[%s315 + $0x3b8] sm:$0xff] %v9661
        %9790 = vst [vmem:[%s315 + $0x3c0] sm:$0xff] %v9662
        %9791 = vst [vmem:[%s315 + $0x3c8] sm:$0xff] %v9663
        %9792 = vst [vmem:[%s315 + $0x3d0] sm:$0xff] %v9664
        %9793 = vst [vmem:[%s315 + $0x3d8] sm:$0xff] %v9665
        %9794 = vst [vmem:[%s315 + $0x3e0] sm:$0xff] %v9666
        %9795 = vst [vmem:[%s315 + $0x3e8] sm:$0xff] %v9667
        %9796 = vst [vmem:[%s315 + $0x3f0] sm:$0xff] %v9668
        %9797 = vst [vmem:[%s315 + $0x3f8] sm:$0xff] %v9669
        %s9798 = sand.u32 %s210, 1
        %s9799 = scalar_lea.sflag [#allocation7], %s9798
        %s9800 = sand.u32 %s210, 1
        %s9801 = smul.addr %s9800, 1024
        %s9802 = scalar_lea.vmem [#allocation6], %s9801
        // Predicated region
        $region53: #{video_colorization_forward.1} parent=51 // pred_check
          %p9803 = pneg %p220
        $region54: #{video_colorization_forward.1} parent=51 // pred_check_branch
          %9805 = sbr.rel (%p9803) target = $region56
        $region55: #{video_colorization_forward.1} parent=51 // pred_region
          %9807 = vsyncadd %s9799, 0
          %s9808 = smul.addr %s24, 128
          %s9809 = smul.addr %s9808, 8
          %s9810 = scalar_lea.hbm %s8, %s9809
          %s9811 = sshll.u32 %s9802, 4
          %s9812 = int_to_ptr.vmem [resolvable:$true] %s9811
          %s9813 = sshll.u32 %s9810, 4
          %s9814 = int_to_ptr.hbm [resolvable:$true] %s9813
          %9819 = dma.vmem_to_hbm [thread:$0]  %s9812, 16384, %s9814, %s9799, 512, 512, 32
        $region56: #{video_colorization_forward.1} parent=51 // pred_fallthru
          _
      $region52: #{video_colorization_forward.1} parent=5 // pred_fallthru
        _
      %p9820 = scmp.le.s32.totalorder 2, %s19
      // Predicated region
      $region57: #{video_colorization_forward.1} parent=5 // pred_check
        %p9821 = pneg %p9820
      $region58: #{video_colorization_forward.1} parent=5 // pred_check_branch
        %9823 = sbr.rel (%p9821) target = $region60
      $region59: #{video_colorization_forward.1} parent=5 // pred_region
        %s9824 = ssub.s32 %s19, 2
        // Predicated region
        $region61: #{video_colorization_forward.1} parent=59 // pred_check
          %p9825 = pneg %p226
        $region62: #{video_colorization_forward.1} parent=59 // pred_check_branch
          %9827 = sbr.rel (%p9825) target = $region64
        $region63: #{video_colorization_forward.1} parent=59 // pred_region
          %s9828 = sand.u32 %s211, 1
          %s9829 = scalar_lea.sflag [#allocation7], %s9828
          %s9830 = sand.u32 %s211, 1
          %s9831 = smul.addr %s9830, 1024
          %s9832 = scalar_lea.vmem [#allocation6], %s9831
          %9834 = dma.done %s9829, 16384
        $region64: #{video_colorization_forward.1} parent=59 // pred_fallthru
          _
      $region60: #{video_colorization_forward.1} parent=5 // pred_fallthru
        _
    $region6: #{video_colorization_forward.1} parent=1 // loop_footer
      %s23 = sadd.s32 1, %s19
    $region7: #{video_colorization_forward.1} parent=1 // loop_footer_branch
      %18 = sbr.rel target = $region3
    $region8: #{video_colorization_forward.1} parent=1 // loop_exit
      _
    %9835 = vsyncpa [#allocation7], 1
    %s9836 = scalar_lea.sflag [#allocation7], 1
    %9837 = vsyncpa %s9836, 1

</llo_original>
